<compile_context>
chip_gen: v7x
topology: tpu7x:2x2x1
jax: 0.10.0
libtpu: 0.0.40
codegen_flags: <defaults>
</compile_context>

<pallas_src>
import jax
import jax.numpy as jnp
from jax import lax
from jax.experimental import pallas as pl
from jax.experimental.pallas import tpu as pltpu


# ----------------------------------------------------------------------------
# Fused Pallas kernel: the whole 6-layer MLP forward for one row-block
# ----------------------------------------------------------------------------
def sr_mlp_kernel(locs_ref,
                  p1, w2h, p2, w3h, p3, w4h, p4, w5h, p5, w6h, p6,
                  o_ref):
    """locs_ref: (Bblk, 2) f32.
    p_i : (3, N_i) f32 packed operand, rows 0-1 = W_i[-2:], row 2 = bias_i
          (for layer 1 the bias row already contains emb @ W1[:E] + b1).
    wXh : hidden part W_X[:-2]; bf16 for the two big layers, f32 otherwise."""
    locs = locs_ref[...]                       # (Bblk, 2) f32
    lx = locs[:, 0:1]                          # hoisted lane slices, reused by
    ly = locs[:, 1:2]                          # all six layers

    def loc_bias(p_ref):
        p = p_ref[...]                         # (3, N) f32
        # (Bblk,2) x (2,N) + bias as two VPU broadcast multiply-adds.
        return lx * p[0:1, :] + ly * p[1:2, :] + p[2:3, :]

    def dense(h, wh_ref, p_ref, relu=True):
        w = wh_ref[...]
        # bf16 x bf16 -> f32 accumulate on the MXU for the big layers;
        # plain f32 for the small ones (astype is a no-op there).
        y = jnp.dot(h.astype(w.dtype), w, preferred_element_type=jnp.float32)
        y = y + loc_bias(p_ref)
        return jnp.maximum(y, 0.0) if relu else y

    # Layer 1: the constant emb @ W1[:E] term is pre-folded into p1's bias row.
    h = jnp.maximum(loc_bias(p1), 0.0)         # (Bblk, 2048)
    h = dense(h, w2h, p2)                      # (Bblk, 1024)  bf16 weights
    h = dense(h, w3h, p3)                      # (Bblk, 512)   bf16 weights
    h = dense(h, w4h, p4)                      # (Bblk, 128)
    h = dense(h, w5h, p5)                      # (Bblk, 64)
    o_ref[...] = dense(h, w6h, p6, relu=False).astype(o_ref.dtype)  # (Bblk, 3)


def _round_up(x, m):
    return ((x + m - 1) // m) * m


def sr_forward(flat_params, locs, *, row_block=256):
    """locs: (B, 1, 2) -> (B, 1, 3), matching the PyTorch module."""
    B = locs.shape[0]
    locs2d = locs.reshape(B, 2).astype(jnp.float32)

    # Row-block size: multiple of 8 (sublane), capped so activations stay small.
    bblk = min(row_block, _round_up(B, 8))
    b_pad = _round_up(B, bblk)
    if b_pad != B:
        locs2d = jnp.pad(locs2d, ((0, b_pad - B), (0, 0)))
    n_blocks = b_pad // bblk

    # locs/output tiles stream over the grid; weights use a constant index_map
    # so they are DMA'd into VMEM once and stay resident across all blocks.
    in_specs = [pl.BlockSpec((bblk, 2), lambda i: (i, 0))]
    in_specs += [pl.BlockSpec(p.shape, lambda i: (0, 0)) for p in flat_params]
    out_spec = pl.BlockSpec((bblk, 3), lambda i: (i, 0))

    # VMEM budget from the actual footprint (weights possibly double-buffered
    # by the pipeline + activation temporaries + margin).
    weight_bytes = sum(int(p.size) * p.dtype.itemsize for p in flat_params)
    act_bytes = bblk * 2048 * 4 * 6
    vmem_limit = min(2 * weight_bytes + act_bytes + (4 << 20), 48 << 20)

    out = pl.pallas_call(
        sr_mlp_kernel,
        out_shape=jax.ShapeDtypeStruct((b_pad, 3), jnp.float32),
        grid=(n_blocks,),
        in_specs=in_specs,
        out_specs=out_spec,
        compiler_params=pltpu.CompilerParams(
            dimension_semantics=("arbitrary",),
            vmem_limit_bytes=int(vmem_limit)),
    )(locs2d, *flat_params)
    return out[:B].reshape(B, 1, 3)


# ----------------------------------------------------------------------------
# Parameter setup (deterministic, synthetic) + emb preprocessing (plain JAX)
# ----------------------------------------------------------------------------
def compute_emb(key, embeddings):
    """__init__/set_emb preprocessing: DownBlock(C->16, k=5, valid) on the
    stacked embeddings, then flatten. One-time setup, plain JAX."""
    x = jnp.concatenate(embeddings, axis=0)[None]          # (1, C, 32, 32)
    # MaxPool2d(2)
    x = lax.reduce_window(x, -jnp.inf, lax.max,
                          (1, 1, 2, 2), (1, 1, 2, 2), "VALID")   # (1, C, 16, 16)
    C = x.shape[1]
    k1, k2, k3, k4 = jax.random.split(key, 4)
    w = jax.random.normal(k1, (16, C, 5, 5), jnp.float32) / jnp.sqrt(C * 25.0)
    b = 0.01 * jax.random.normal(k2, (16,), jnp.float32)
    y = lax.conv_general_dilated(x, w, (1, 1), "VALID",
                                 dimension_numbers=("NCHW", "OIHW", "NCHW"))
    y = y + b[None, :, None, None]                         # (1, 16, 12, 12)
    # BatchNorm (batch statistics, as in torch's train-mode init pass)
    gamma = 1.0 + 0.05 * jax.random.normal(k3, (16,), jnp.float32)
    beta = 0.05 * jax.random.normal(k4, (16,), jnp.float32)
    mean = jnp.mean(y, axis=(0, 2, 3), keepdims=True)
    var = jnp.var(y, axis=(0, 2, 3), keepdims=True)
    y = (y - mean) / jnp.sqrt(var + 1e-5)
    y = y * gamma[None, :, None, None] + beta[None, :, None, None]
    y = jnp.where(y >= 0.0, y, 0.2 * y)                    # LeakyReLU(0.2)
    return y.reshape(-1)                                   # (2304,)


def make_mlp_params(key, emb_size):
    dims_in = [emb_size + 2, 2048 + 2, 1024 + 2, 512 + 2, 128 + 2, 64 + 2]
    dims_out = [2048, 1024, 512, 128, 64, 3]
    params = []
    for i, (din, dout) in enumerate(zip(dims_in, dims_out)):
        kw, kb = jax.random.split(jax.random.fold_in(key, i))
        w = jax.random.normal(kw, (din, dout), jnp.float32) / jnp.sqrt(float(din))
        b = 0.01 * jax.random.normal(kb, (dout,), jnp.float32)
        params.append((w, b))
    return params


def prepare_kernel_params(params, emb):
    """Per layer: split W into hidden / locs parts, pack (W[-2:], bias) into a
    single (3, N) f32 operand, fold the constant emb term of layer 1 into its
    bias (f32 HIGHEST), and store the two big hidden weights in bf16."""
    def pack(wl, b):
        return jnp.concatenate(
            [wl.astype(jnp.float32), b.astype(jnp.float32)[None, :]], axis=0)

    w1, b1 = params[0]
    E = emb.shape[0]
    # emb contribution of layer 1, computed once in full f32 precision.
    b1_eff = jnp.dot(emb, w1[:E], precision=lax.Precision.HIGHEST) + b1

    flat = [pack(w1[E:], b1_eff)]                          # p1: (3, 2048)
    bf16_layers = {1, 2}                                   # L2 (2048x1024), L3 (1024x512)
    for i, (w, b) in enumerate(params[1:], start=1):
        wh = w[:-2]
        wh = wh.astype(jnp.bfloat16 if i in bf16_layers else jnp.float32)
        flat.append(wh)                                    # wXh
        flat.append(pack(w[-2:], b))                       # pX: (3, N)
    return flat


# ----------------------------------------------------------------------------
# Pure-JAX reference (naive concat form, for correctness check only)
# ----------------------------------------------------------------------------
def sr_forward_ref(params, emb, locs):
    B = locs.shape[0]
    locs = locs.astype(jnp.float32)
    y = jnp.concatenate(
        [jnp.broadcast_to(emb[None, None, :], (B, 1, emb.shape[0])), locs],
        axis=2)
    n = len(params)
    for i, (w, b) in enumerate(params):
        y = jnp.dot(y, w, precision=lax.Precision.HIGHEST) + b
        if i < n - 1:
            y = jnp.maximum(y, 0.0)
            y = jnp.concatenate([y, locs], axis=2)
    return y


# ----------------------------------------------------------------------------
if __name__ == "__main__":
    key = jax.random.PRNGKey(0)
    k_emb_in, k_down, k_mlp, k_locs = jax.random.split(key, 4)

    # One embedding tensor of shape (32, 32, 32), as in the PyTorch __init__.
    embeddings = [jax.random.normal(k_emb_in, (32, 32, 32), jnp.float32)]
    emb = compute_emb(k_down, embeddings)                  # (2304,)

    params = make_mlp_params(k_mlp, emb.shape[0])
    flat = prepare_kernel_params(params, emb)

    B = 8
    locs = jax.random.uniform(k_locs, (B, 1, 2), jnp.float32, -1.0, 1.0)

    fwd = jax.jit(sr_forward)
    out = jax.block_until_ready(fwd(flat, locs))
    assert out.shape == (B, 1, 3), out.shape

    ref = jax.block_until_ready(sr_forward_ref(params, emb, locs))
    # Tolerance covers the bf16 storage of the two big weights (f32 accumulate)
    # and MXU-vs-XLA f32 decomposition differences; real bugs give O(1) errors.
    err = float(jnp.max(jnp.abs(out - ref)))
    assert jnp.allclose(out, ref, rtol=1e-2, atol=1e-2), err

    print("KERNEL_OK")
</pallas_src>

<mosaic_0001>
module attributes {stable_mosaic.version = 11 : i64} {
  func.func @sr_mlp_kernel(%arg0: i32, %arg1: memref<8x2xf32, #tpu.memory_space<vmem>>, %arg2: memref<3x2048xf32, #tpu.memory_space<vmem>>, %arg3: memref<2048x1024xbf16, #tpu.memory_space<vmem>>, %arg4: memref<3x1024xf32, #tpu.memory_space<vmem>>, %arg5: memref<1024x512xbf16, #tpu.memory_space<vmem>>, %arg6: memref<3x512xf32, #tpu.memory_space<vmem>>, %arg7: memref<512x128xf32, #tpu.memory_space<vmem>>, %arg8: memref<3x128xf32, #tpu.memory_space<vmem>>, %arg9: memref<128x64xf32, #tpu.memory_space<vmem>>, %arg10: memref<3x64xf32, #tpu.memory_space<vmem>>, %arg11: memref<64x3xf32, #tpu.memory_space<vmem>>, %arg12: memref<3x3xf32, #tpu.memory_space<vmem>>, %arg13: memref<8x3xf32, #tpu.memory_space<vmem>>) attributes {dimension_semantics = [#tpu.dimension_semantics<arbitrary>], iteration_bounds = array<i64: 1>, scalar_prefetch = 0 : i64, scratch_operands = 0 : i64, tpu.core_type = #tpu.core_type<tc>, window_params = [{transform_indices = @transform_0, window_bounds = array<i64: 8, 2>}, {pipeline_mode = #tpu.pipeline_mode<synchronous>, transform_indices = @transform_1, window_bounds = array<i64: 3, 2048>}, {pipeline_mode = #tpu.pipeline_mode<synchronous>, transform_indices = @transform_2, window_bounds = array<i64: 2048, 1024>}, {pipeline_mode = #tpu.pipeline_mode<synchronous>, transform_indices = @transform_3, window_bounds = array<i64: 3, 1024>}, {pipeline_mode = #tpu.pipeline_mode<synchronous>, transform_indices = @transform_4, window_bounds = array<i64: 1024, 512>}, {pipeline_mode = #tpu.pipeline_mode<synchronous>, transform_indices = @transform_5, window_bounds = array<i64: 3, 512>}, {pipeline_mode = #tpu.pipeline_mode<synchronous>, transform_indices = @transform_6, window_bounds = array<i64: 512, 128>}, {pipeline_mode = #tpu.pipeline_mode<synchronous>, transform_indices = @transform_7, window_bounds = array<i64: 3, 128>}, {pipeline_mode = #tpu.pipeline_mode<synchronous>, transform_indices = @transform_8, window_bounds = array<i64: 128, 64>}, {pipeline_mode = #tpu.pipeline_mode<synchronous>, transform_indices = @transform_9, window_bounds = array<i64: 3, 64>}, {pipeline_mode = #tpu.pipeline_mode<synchronous>, transform_indices = @transform_10, window_bounds = array<i64: 64, 3>}, {pipeline_mode = #tpu.pipeline_mode<synchronous>, transform_indices = @transform_11, window_bounds = array<i64: 3, 3>}, {transform_indices = @transform_12, window_bounds = array<i64: 8, 3>}]} {
    %c0 = arith.constant 0 : index
    %c0_0 = arith.constant 0 : index
    %0 = vector.load %arg1[%c0, %c0_0] : memref<8x2xf32, #tpu.memory_space<vmem>>, vector<8x2xf32>
    %1 = vector.extract_strided_slice %0 {offsets = [0, 0], sizes = [8, 1], strides = [1, 1]} : vector<8x2xf32> to vector<8x1xf32>
    %2 = vector.extract_strided_slice %0 {offsets = [0, 1], sizes = [8, 1], strides = [1, 1]} : vector<8x2xf32> to vector<8x1xf32>
    %c0_1 = arith.constant 0 : index
    %c0_2 = arith.constant 0 : index
    %3 = vector.load %arg2[%c0_1, %c0_2] : memref<3x2048xf32, #tpu.memory_space<vmem>>, vector<3x2048xf32>
    %4 = vector.extract_strided_slice %3 {offsets = [0, 0], sizes = [1, 2048], strides = [1, 1]} : vector<3x2048xf32> to vector<1x2048xf32>
    %5 = vector.broadcast %1 : vector<8x1xf32> to vector<8x2048xf32>
    %6 = vector.broadcast %4 : vector<1x2048xf32> to vector<8x2048xf32>
    %7 = arith.mulf %5, %6 : vector<8x2048xf32>
    %8 = vector.extract_strided_slice %3 {offsets = [1, 0], sizes = [1, 2048], strides = [1, 1]} : vector<3x2048xf32> to vector<1x2048xf32>
    %9 = vector.broadcast %2 : vector<8x1xf32> to vector<8x2048xf32>
    %10 = vector.broadcast %8 : vector<1x2048xf32> to vector<8x2048xf32>
    %11 = arith.mulf %9, %10 : vector<8x2048xf32>
    %12 = arith.addf %7, %11 : vector<8x2048xf32>
    %13 = vector.extract_strided_slice %3 {offsets = [2, 0], sizes = [1, 2048], strides = [1, 1]} : vector<3x2048xf32> to vector<1x2048xf32>
    %14 = vector.broadcast %13 : vector<1x2048xf32> to vector<8x2048xf32>
    %15 = arith.addf %12, %14 : vector<8x2048xf32>
    %cst = arith.constant 0.000000e+00 : f32
    %16 = vector.broadcast %cst : f32 to vector<8x2048xf32>
    %17 = arith.maximumf %15, %16 : vector<8x2048xf32>
    %c0_3 = arith.constant 0 : index
    %c0_4 = arith.constant 0 : index
    %18 = vector.load %arg3[%c0_3, %c0_4] : memref<2048x1024xbf16, #tpu.memory_space<vmem>>, vector<2048x1024xbf16>
    %19 = arith.truncf %17 : vector<8x2048xf32> to vector<8x2048xbf16>
    %cst_5 = arith.constant dense<0.000000e+00> : vector<8x1024xf32>
    %20 = tpu.matmul %19, %18, %cst_5 {dimension_numbers = #tpu.dot_dimension_numbers<[1], [0], [0], [1], [0, 0, 1, 1], [], []>} : vector<8x2048xbf16>, vector<2048x1024xbf16>, vector<8x1024xf32> -> vector<8x1024xf32>
    %c0_6 = arith.constant 0 : index
    %c0_7 = arith.constant 0 : index
    %21 = vector.load %arg4[%c0_6, %c0_7] : memref<3x1024xf32, #tpu.memory_space<vmem>>, vector<3x1024xf32>
    %22 = vector.extract_strided_slice %21 {offsets = [0, 0], sizes = [1, 1024], strides = [1, 1]} : vector<3x1024xf32> to vector<1x1024xf32>
    %23 = vector.broadcast %1 : vector<8x1xf32> to vector<8x1024xf32>
    %24 = vector.broadcast %22 : vector<1x1024xf32> to vector<8x1024xf32>
    %25 = arith.mulf %23, %24 : vector<8x1024xf32>
    %26 = vector.extract_strided_slice %21 {offsets = [1, 0], sizes = [1, 1024], strides = [1, 1]} : vector<3x1024xf32> to vector<1x1024xf32>
    %27 = vector.broadcast %2 : vector<8x1xf32> to vector<8x1024xf32>
    %28 = vector.broadcast %26 : vector<1x1024xf32> to vector<8x1024xf32>
    %29 = arith.mulf %27, %28 : vector<8x1024xf32>
    %30 = arith.addf %25, %29 : vector<8x1024xf32>
    %31 = vector.extract_strided_slice %21 {offsets = [2, 0], sizes = [1, 1024], strides = [1, 1]} : vector<3x1024xf32> to vector<1x1024xf32>
    %32 = vector.broadcast %31 : vector<1x1024xf32> to vector<8x1024xf32>
    %33 = arith.addf %30, %32 : vector<8x1024xf32>
    %34 = arith.addf %20, %33 : vector<8x1024xf32>
    %cst_8 = arith.constant 0.000000e+00 : f32
    %35 = vector.broadcast %cst_8 : f32 to vector<8x1024xf32>
    %36 = arith.maximumf %34, %35 : vector<8x1024xf32>
    %c0_9 = arith.constant 0 : index
    %c0_10 = arith.constant 0 : index
    %37 = vector.load %arg5[%c0_9, %c0_10] : memref<1024x512xbf16, #tpu.memory_space<vmem>>, vector<1024x512xbf16>
    %38 = arith.truncf %36 : vector<8x1024xf32> to vector<8x1024xbf16>
    %cst_11 = arith.constant dense<0.000000e+00> : vector<8x512xf32>
    %39 = tpu.matmul %38, %37, %cst_11 {dimension_numbers = #tpu.dot_dimension_numbers<[1], [0], [0], [1], [0, 0, 1, 1], [], []>} : vector<8x1024xbf16>, vector<1024x512xbf16>, vector<8x512xf32> -> vector<8x512xf32>
    %c0_12 = arith.constant 0 : index
    %c0_13 = arith.constant 0 : index
    %40 = vector.load %arg6[%c0_12, %c0_13] : memref<3x512xf32, #tpu.memory_space<vmem>>, vector<3x512xf32>
    %41 = vector.extract_strided_slice %40 {offsets = [0, 0], sizes = [1, 512], strides = [1, 1]} : vector<3x512xf32> to vector<1x512xf32>
    %42 = vector.broadcast %1 : vector<8x1xf32> to vector<8x512xf32>
    %43 = vector.broadcast %41 : vector<1x512xf32> to vector<8x512xf32>
    %44 = arith.mulf %42, %43 : vector<8x512xf32>
    %45 = vector.extract_strided_slice %40 {offsets = [1, 0], sizes = [1, 512], strides = [1, 1]} : vector<3x512xf32> to vector<1x512xf32>
    %46 = vector.broadcast %2 : vector<8x1xf32> to vector<8x512xf32>
    %47 = vector.broadcast %45 : vector<1x512xf32> to vector<8x512xf32>
    %48 = arith.mulf %46, %47 : vector<8x512xf32>
    %49 = arith.addf %44, %48 : vector<8x512xf32>
    %50 = vector.extract_strided_slice %40 {offsets = [2, 0], sizes = [1, 512], strides = [1, 1]} : vector<3x512xf32> to vector<1x512xf32>
    %51 = vector.broadcast %50 : vector<1x512xf32> to vector<8x512xf32>
    %52 = arith.addf %49, %51 : vector<8x512xf32>
    %53 = arith.addf %39, %52 : vector<8x512xf32>
    %cst_14 = arith.constant 0.000000e+00 : f32
    %54 = vector.broadcast %cst_14 : f32 to vector<8x512xf32>
    %55 = arith.maximumf %53, %54 : vector<8x512xf32>
    %c0_15 = arith.constant 0 : index
    %c0_16 = arith.constant 0 : index
    %56 = vector.load %arg7[%c0_15, %c0_16] : memref<512x128xf32, #tpu.memory_space<vmem>>, vector<512x128xf32>
    %cst_17 = arith.constant dense<0.000000e+00> : vector<8x128xf32>
    %57 = tpu.matmul %55, %56, %cst_17 {dimension_numbers = #tpu.dot_dimension_numbers<[1], [0], [0], [1], [0, 0, 1, 1], [], []>} : vector<8x512xf32>, vector<512x128xf32>, vector<8x128xf32> -> vector<8x128xf32>
    %c0_18 = arith.constant 0 : index
    %c0_19 = arith.constant 0 : index
    %58 = vector.load %arg8[%c0_18, %c0_19] : memref<3x128xf32, #tpu.memory_space<vmem>>, vector<3x128xf32>
    %59 = vector.extract_strided_slice %58 {offsets = [0, 0], sizes = [1, 128], strides = [1, 1]} : vector<3x128xf32> to vector<1x128xf32>
    %60 = vector.broadcast %1 : vector<8x1xf32> to vector<8x128xf32>
    %61 = vector.broadcast %59 : vector<1x128xf32> to vector<8x128xf32>
    %62 = arith.mulf %60, %61 : vector<8x128xf32>
    %63 = vector.extract_strided_slice %58 {offsets = [1, 0], sizes = [1, 128], strides = [1, 1]} : vector<3x128xf32> to vector<1x128xf32>
    %64 = vector.broadcast %2 : vector<8x1xf32> to vector<8x128xf32>
    %65 = vector.broadcast %63 : vector<1x128xf32> to vector<8x128xf32>
    %66 = arith.mulf %64, %65 : vector<8x128xf32>
    %67 = arith.addf %62, %66 : vector<8x128xf32>
    %68 = vector.extract_strided_slice %58 {offsets = [2, 0], sizes = [1, 128], strides = [1, 1]} : vector<3x128xf32> to vector<1x128xf32>
    %69 = vector.broadcast %68 : vector<1x128xf32> to vector<8x128xf32>
    %70 = arith.addf %67, %69 : vector<8x128xf32>
    %71 = arith.addf %57, %70 : vector<8x128xf32>
    %cst_20 = arith.constant 0.000000e+00 : f32
    %72 = vector.broadcast %cst_20 : f32 to vector<8x128xf32>
    %73 = arith.maximumf %71, %72 : vector<8x128xf32>
    %c0_21 = arith.constant 0 : index
    %c0_22 = arith.constant 0 : index
    %74 = vector.load %arg9[%c0_21, %c0_22] : memref<128x64xf32, #tpu.memory_space<vmem>>, vector<128x64xf32>
    %cst_23 = arith.constant dense<0.000000e+00> : vector<8x64xf32>
    %75 = tpu.matmul %73, %74, %cst_23 {dimension_numbers = #tpu.dot_dimension_numbers<[1], [0], [0], [1], [0, 0, 1, 1], [], []>} : vector<8x128xf32>, vector<128x64xf32>, vector<8x64xf32> -> vector<8x64xf32>
    %c0_24 = arith.constant 0 : index
    %c0_25 = arith.constant 0 : index
    %76 = vector.load %arg10[%c0_24, %c0_25] : memref<3x64xf32, #tpu.memory_space<vmem>>, vector<3x64xf32>
    %77 = vector.extract_strided_slice %76 {offsets = [0, 0], sizes = [1, 64], strides = [1, 1]} : vector<3x64xf32> to vector<1x64xf32>
    %78 = vector.broadcast %1 : vector<8x1xf32> to vector<8x64xf32>
    %79 = vector.broadcast %77 : vector<1x64xf32> to vector<8x64xf32>
    %80 = arith.mulf %78, %79 : vector<8x64xf32>
    %81 = vector.extract_strided_slice %76 {offsets = [1, 0], sizes = [1, 64], strides = [1, 1]} : vector<3x64xf32> to vector<1x64xf32>
    %82 = vector.broadcast %2 : vector<8x1xf32> to vector<8x64xf32>
    %83 = vector.broadcast %81 : vector<1x64xf32> to vector<8x64xf32>
    %84 = arith.mulf %82, %83 : vector<8x64xf32>
    %85 = arith.addf %80, %84 : vector<8x64xf32>
    %86 = vector.extract_strided_slice %76 {offsets = [2, 0], sizes = [1, 64], strides = [1, 1]} : vector<3x64xf32> to vector<1x64xf32>
    %87 = vector.broadcast %86 : vector<1x64xf32> to vector<8x64xf32>
    %88 = arith.addf %85, %87 : vector<8x64xf32>
    %89 = arith.addf %75, %88 : vector<8x64xf32>
    %cst_26 = arith.constant 0.000000e+00 : f32
    %90 = vector.broadcast %cst_26 : f32 to vector<8x64xf32>
    %91 = arith.maximumf %89, %90 : vector<8x64xf32>
    %c0_27 = arith.constant 0 : index
    %c0_28 = arith.constant 0 : index
    %92 = vector.load %arg11[%c0_27, %c0_28] : memref<64x3xf32, #tpu.memory_space<vmem>>, vector<64x3xf32>
    %cst_29 = arith.constant dense<0.000000e+00> : vector<8x3xf32>
    %93 = tpu.matmul %91, %92, %cst_29 {dimension_numbers = #tpu.dot_dimension_numbers<[1], [0], [0], [1], [0, 0, 1, 1], [], []>} : vector<8x64xf32>, vector<64x3xf32>, vector<8x3xf32> -> vector<8x3xf32>
    %c0_30 = arith.constant 0 : index
    %c0_31 = arith.constant 0 : index
    %94 = vector.load %arg12[%c0_30, %c0_31] : memref<3x3xf32, #tpu.memory_space<vmem>>, vector<3x3xf32>
    %95 = vector.extract_strided_slice %94 {offsets = [0, 0], sizes = [1, 3], strides = [1, 1]} : vector<3x3xf32> to vector<1x3xf32>
    %96 = vector.broadcast %1 : vector<8x1xf32> to vector<8x3xf32>
    %97 = vector.broadcast %95 : vector<1x3xf32> to vector<8x3xf32>
    %98 = arith.mulf %96, %97 : vector<8x3xf32>
    %99 = vector.extract_strided_slice %94 {offsets = [1, 0], sizes = [1, 3], strides = [1, 1]} : vector<3x3xf32> to vector<1x3xf32>
    %100 = vector.broadcast %2 : vector<8x1xf32> to vector<8x3xf32>
    %101 = vector.broadcast %99 : vector<1x3xf32> to vector<8x3xf32>
    %102 = arith.mulf %100, %101 : vector<8x3xf32>
    %103 = arith.addf %98, %102 : vector<8x3xf32>
    %104 = vector.extract_strided_slice %94 {offsets = [2, 0], sizes = [1, 3], strides = [1, 1]} : vector<3x3xf32> to vector<1x3xf32>
    %105 = vector.broadcast %104 : vector<1x3xf32> to vector<8x3xf32>
    %106 = arith.addf %103, %105 : vector<8x3xf32>
    %107 = arith.addf %93, %106 : vector<8x3xf32>
    %c0_32 = arith.constant 0 : index
    %c0_33 = arith.constant 0 : index
    %108 = vector.load %arg13[%c0_32, %c0_33] : memref<8x3xf32, #tpu.memory_space<vmem>>, vector<8x3xf32>
    tpu.vector_store %arg13[%c0_32, %c0_33], %107 {strides = array<i32>} : memref<8x3xf32, #tpu.memory_space<vmem>>, vector<8x3xf32>,
    return
  }
  func.func @transform_0(%arg0: i32) -> (i32, i32) {
    %c0_i32 = arith.constant 0 : i32
    %c0_i32_0 = arith.constant 0 : i32
    return %arg0, %c0_i32 : i32, i32
  }
  func.func @transform_1(%arg0: i32) -> (i32, i32) {
    %c0_i32 = arith.constant 0 : i32
    %c0_i32_0 = arith.constant 0 : i32
    %c0_i32_1 = arith.constant 0 : i32
    return %c0_i32, %c0_i32_0 : i32, i32
  }
  func.func @transform_2(%arg0: i32) -> (i32, i32) {
    %c0_i32 = arith.constant 0 : i32
    %c0_i32_0 = arith.constant 0 : i32
    %c0_i32_1 = arith.constant 0 : i32
    return %c0_i32, %c0_i32_0 : i32, i32
  }
  func.func @transform_3(%arg0: i32) -> (i32, i32) {
    %c0_i32 = arith.constant 0 : i32
    %c0_i32_0 = arith.constant 0 : i32
    %c0_i32_1 = arith.constant 0 : i32
    return %c0_i32, %c0_i32_0 : i32, i32
  }
  func.func @transform_4(%arg0: i32) -> (i32, i32) {
    %c0_i32 = arith.constant 0 : i32
    %c0_i32_0 = arith.constant 0 : i32
    %c0_i32_1 = arith.constant 0 : i32
    return %c0_i32, %c0_i32_0 : i32, i32
  }
  func.func @transform_5(%arg0: i32) -> (i32, i32) {
    %c0_i32 = arith.constant 0 : i32
    %c0_i32_0 = arith.constant 0 : i32
    %c0_i32_1 = arith.constant 0 : i32
    return %c0_i32, %c0_i32_0 : i32, i32
  }
  func.func @transform_6(%arg0: i32) -> (i32, i32) {
    %c0_i32 = arith.constant 0 : i32
    %c0_i32_0 = arith.constant 0 : i32
    %c0_i32_1 = arith.constant 0 : i32
    return %c0_i32, %c0_i32_0 : i32, i32
  }
  func.func @transform_7(%arg0: i32) -> (i32, i32) {
    %c0_i32 = arith.constant 0 : i32
    %c0_i32_0 = arith.constant 0 : i32
    %c0_i32_1 = arith.constant 0 : i32
    return %c0_i32, %c0_i32_0 : i32, i32
  }
  func.func @transform_8(%arg0: i32) -> (i32, i32) {
    %c0_i32 = arith.constant 0 : i32
    %c0_i32_0 = arith.constant 0 : i32
    %c0_i32_1 = arith.constant 0 : i32
    return %c0_i32, %c0_i32_0 : i32, i32
  }
  func.func @transform_9(%arg0: i32) -> (i32, i32) {
    %c0_i32 = arith.constant 0 : i32
    %c0_i32_0 = arith.constant 0 : i32
    %c0_i32_1 = arith.constant 0 : i32
    return %c0_i32, %c0_i32_0 : i32, i32
  }
  func.func @transform_10(%arg0: i32) -> (i32, i32) {
    %c0_i32 = arith.constant 0 : i32
    %c0_i32_0 = arith.constant 0 : i32
    %c0_i32_1 = arith.constant 0 : i32
    return %c0_i32, %c0_i32_0 : i32, i32
  }
  func.func @transform_11(%arg0: i32) -> (i32, i32) {
    %c0_i32 = arith.constant 0 : i32
    %c0_i32_0 = arith.constant 0 : i32
    %c0_i32_1 = arith.constant 0 : i32
    return %c0_i32, %c0_i32_0 : i32, i32
  }
  func.func @transform_12(%arg0: i32) -> (i32, i32) {
    %c0_i32 = arith.constant 0 : i32
    %c0_i32_0 = arith.constant 0 : i32
    return %arg0, %c0_i32 : i32, i32
  }
}

</mosaic_0001>

<llo_original>
// kernel: sr_forward.1
$region0: #{sr_forward.1}
  #allocation0 [shape = 'u32[]', space=smem, size = 0x4, offset = 0x4, fixed_abs, tag = 'smem constant byte address 0x4 - core index']
  #allocation1 [shape = 'u32[144,128]{1,0:T(1,128)}', space=vmem, size = 0x12000, scoped, tag = 'internal scratch']
  %s0 = inlined_call_operand.vmem [shape: f32[8,2], index: 0, kind: input, shape index: {}]
  %s1 = inlined_call_operand.hbm [shape: f32[3,2048], index: 1, kind: input, shape index: {}]
  %s2 = inlined_call_operand.hbm [shape: bf16[2048,1024], index: 2, kind: input, shape index: {}]
  %s3 = inlined_call_operand.hbm [shape: f32[3,1024], index: 3, kind: input, shape index: {}]
  %s4 = inlined_call_operand.hbm [shape: bf16[1024,512], index: 4, kind: input, shape index: {}]
  %s5 = inlined_call_operand.hbm [shape: f32[3,512], index: 5, kind: input, shape index: {}]
  %s6 = inlined_call_operand.hbm [shape: f32[512,128], index: 6, kind: input, shape index: {}]
  %s7 = inlined_call_operand.hbm [shape: f32[3,128], index: 7, kind: input, shape index: {}]
  %s8 = inlined_call_operand.vmem [shape: f32[128,64], index: 8, kind: input, shape index: {}]
  %s9 = inlined_call_operand.hbm [shape: f32[3,64], index: 9, kind: input, shape index: {}]
  %s10 = inlined_call_operand.vmem [shape: f32[64,3], index: 10, kind: input, shape index: {}]
  %s11 = inlined_call_operand.hbm [shape: f32[3,3], index: 11, kind: input, shape index: {}]
  %s12 = inlined_call_operand.vmem [shape: f32[8,3], index: 12, kind: output, shape index: {}]
  %s13 = sld [smem:[#allocation0]]
  $region94: #{sr_forward.1} parent=0
    _
  %s15 = ssub.s32 1, %s13
  %s16 = scalar_select 0, %s15, %s13
  $region1: #{sr_forward.1} parent=0
    #allocation2 [shape = 'u8[32768]{0}', space=vmem, size = 0x8000, scoped, tag = 'input window, operand 1, single buffered']
    #allocation3 [shape = 's32[1]{0}', space=sflag, size = 0x4, scoped, tag = 'scoped memory for sr_forward.1']
    #allocation4 [shape = 'u8[4194304]{0}', space=vmem, size = 0x400000, scoped, tag = 'input window, operand 2, single buffered']
    #allocation5 [shape = 's32[1]{0}', space=sflag, size = 0x4, scoped, tag = 'scoped memory for sr_forward.1']
    #allocation6 [shape = 'u8[16384]{0}', space=vmem, size = 0x4000, scoped, tag = 'input window, operand 3, single buffered']
    #allocation7 [shape = 'u8[1048576]{0}', space=vmem, size = 0x100000, scoped, tag = 'input window, operand 4, single buffered']
    #allocation8 [shape = 's32[1]{0}', space=sflag, size = 0x4, scoped, tag = 'scoped memory for sr_forward.1']
    #allocation9 [shape = 'u8[8192]{0}', space=vmem, size = 0x2000, scoped, tag = 'input window, operand 5, single buffered']
    #allocation10 [shape = 'u8[262144]{0}', space=vmem, size = 0x40000, scoped, tag = 'input window, operand 6, single buffered']
    #allocation11 [shape = 's32[1]{0}', space=sflag, size = 0x4, scoped, tag = 'scoped memory for sr_forward.1']
    #allocation12 [shape = 'u8[2048]{0}', space=vmem, size = 0x800, scoped, tag = 'input window, operand 7, single buffered']
    #allocation13 [shape = 'u8[2048]{0}', space=vmem, size = 0x800, scoped, tag = 'input window, operand 9, single buffered']
    #allocation14 [shape = 's32[1]{0}', space=sflag, size = 0x4, scoped, tag = 'scoped memory for sr_forward.1']
    #allocation15 [shape = 'u8[2048]{0}', space=vmem, size = 0x800, scoped, tag = 'input window, operand 11, single buffered']
    %17 = vsyncpa [#allocation3], 0
    %18 = vsyncpa [#allocation5], 0
    %19 = vsyncpa [#allocation8], 0
    %20 = vsyncpa [#allocation11], 0
    %21 = vsyncpa [#allocation14], 0
    // Predicated region
    $region2: #{sr_forward.1} parent=1 // pred_check
      _
    $region3: #{sr_forward.1} parent=1 // pred_check_branch
      %23 = sbr.rel (0) target = $region5
    $region4: #{sr_forward.1} parent=1 // pred_region
      _
    $region5: #{sr_forward.1} parent=1 // pred_fallthru
      _
    // Predicated region
    $region6: #{sr_forward.1} parent=1 // pred_check
      _
    $region7: #{sr_forward.1} parent=1 // pred_check_branch
      %25 = sbr.rel (0) target = $region9
    $region8: #{sr_forward.1} parent=1 // pred_region
      %s27 = ssub.s32 1024, 1024
      %28 = vsyncadd [#allocation3], %s27
      %s30 = sshll.u32 [#allocation2], 4
      %s31 = int_to_ptr.vmem [resolvable:$true] %s30
      %33 = dma.hbm_to_vmem [thread:$0]  %s1, 1024, %s31, [#allocation3]
    $region9: #{sr_forward.1} parent=1 // pred_fallthru
      _
    // Predicated region
    $region10: #{sr_forward.1} parent=1 // pred_check
      _
    $region11: #{sr_forward.1} parent=1 // pred_check_branch
      %35 = sbr.rel (0) target = $region13
    $region12: #{sr_forward.1} parent=1 // pred_region
      %s37 = ssub.s32 131072, 131072
      %38 = vsyncadd [#allocation5], %s37
      %s39 = sshll.u32 [#allocation4], 4
      %s40 = int_to_ptr.vmem [resolvable:$true] %s39
      %45 = dma.hbm_to_vmem [thread:$0]  %s2, 131072, %s40, [#allocation5], 512, 512, 32
    $region13: #{sr_forward.1} parent=1 // pred_fallthru
      _
    // Predicated region
    $region14: #{sr_forward.1} parent=1 // pred_check
      _
    $region15: #{sr_forward.1} parent=1 // pred_check_branch
      %47 = sbr.rel (0) target = $region17
    $region16: #{sr_forward.1} parent=1 // pred_region
      %s49 = ssub.s32 512, 512
      %50 = vsyncadd [#allocation5], %s49
      %s52 = sshll.u32 [#allocation6], 4
      %s53 = int_to_ptr.vmem [resolvable:$true] %s52
      %55 = dma.hbm_to_vmem [thread:$0]  %s3, 512, %s53, [#allocation5]
    $region17: #{sr_forward.1} parent=1 // pred_fallthru
      _
    // Predicated region
    $region18: #{sr_forward.1} parent=1 // pred_check
      _
    $region19: #{sr_forward.1} parent=1 // pred_check_branch
      %57 = sbr.rel (0) target = $region21
    $region20: #{sr_forward.1} parent=1 // pred_region
      %s59 = ssub.s32 32768, 32768
      %60 = vsyncadd [#allocation8], %s59
      %s61 = sshll.u32 [#allocation7], 4
      %s62 = int_to_ptr.vmem [resolvable:$true] %s61
      %67 = dma.hbm_to_vmem [thread:$0]  %s4, 32768, %s62, [#allocation8], 256, 256, 16
    $region21: #{sr_forward.1} parent=1 // pred_fallthru
      _
    // Predicated region
    $region22: #{sr_forward.1} parent=1 // pred_check
      _
    $region23: #{sr_forward.1} parent=1 // pred_check_branch
      %69 = sbr.rel (0) target = $region25
    $region24: #{sr_forward.1} parent=1 // pred_region
      %s71 = ssub.s32 256, 256
      %72 = vsyncadd [#allocation8], %s71
      %s74 = sshll.u32 [#allocation9], 4
      %s75 = int_to_ptr.vmem [resolvable:$true] %s74
      %77 = dma.hbm_to_vmem [thread:$0]  %s5, 256, %s75, [#allocation8]
    $region25: #{sr_forward.1} parent=1 // pred_fallthru
      _
    // Predicated region
    $region26: #{sr_forward.1} parent=1 // pred_check
      _
    $region27: #{sr_forward.1} parent=1 // pred_check_branch
      %79 = sbr.rel (0) target = $region29
    $region28: #{sr_forward.1} parent=1 // pred_region
      %s81 = ssub.s32 8192, 8192
      %82 = vsyncadd [#allocation11], %s81
      %s83 = sshll.u32 [#allocation10], 4
      %s84 = int_to_ptr.vmem [resolvable:$true] %s83
      %89 = dma.hbm_to_vmem [thread:$0]  %s6, 8192, %s84, [#allocation11], 128, 128, 8
    $region29: #{sr_forward.1} parent=1 // pred_fallthru
      _
    // Predicated region
    $region30: #{sr_forward.1} parent=1 // pred_check
      _
    $region31: #{sr_forward.1} parent=1 // pred_check_branch
      %91 = sbr.rel (0) target = $region33
    $region32: #{sr_forward.1} parent=1 // pred_region
      %s93 = ssub.s32 64, 64
      %94 = vsyncadd [#allocation11], %s93
      %s96 = sshll.u32 [#allocation12], 4
      %s97 = int_to_ptr.vmem [resolvable:$true] %s96
      %99 = dma.hbm_to_vmem [thread:$0]  %s7, 64, %s97, [#allocation11]
    $region33: #{sr_forward.1} parent=1 // pred_fallthru
      _
    // Predicated region
    $region34: #{sr_forward.1} parent=1 // pred_check
      _
    $region35: #{sr_forward.1} parent=1 // pred_check_branch
      %101 = sbr.rel (0) target = $region37
    $region36: #{sr_forward.1} parent=1 // pred_region
      _
    $region37: #{sr_forward.1} parent=1 // pred_fallthru
      _
    // Predicated region
    $region38: #{sr_forward.1} parent=1 // pred_check
      _
    $region39: #{sr_forward.1} parent=1 // pred_check_branch
      %103 = sbr.rel (0) target = $region41
    $region40: #{sr_forward.1} parent=1 // pred_region
      %s105 = ssub.s32 64, 64
      %106 = vsyncadd [#allocation14], %s105
      %s108 = sshll.u32 [#allocation13], 4
      %s109 = int_to_ptr.vmem [resolvable:$true] %s108
      %111 = dma.hbm_to_vmem [thread:$0]  %s9, 64, %s109, [#allocation14]
    $region41: #{sr_forward.1} parent=1 // pred_fallthru
      _
    // Predicated region
    $region42: #{sr_forward.1} parent=1 // pred_check
      _
    $region43: #{sr_forward.1} parent=1 // pred_check_branch
      %113 = sbr.rel (0) target = $region45
    $region44: #{sr_forward.1} parent=1 // pred_region
      _
    $region45: #{sr_forward.1} parent=1 // pred_fallthru
      _
    // Predicated region
    $region46: #{sr_forward.1} parent=1 // pred_check
      _
    $region47: #{sr_forward.1} parent=1 // pred_check_branch
      %115 = sbr.rel (0) target = $region49
    $region48: #{sr_forward.1} parent=1 // pred_region
      %s117 = ssub.s32 64, 64
      %118 = vsyncadd [#allocation14], %s117
      %s120 = sshll.u32 [#allocation15], 4
      %s121 = int_to_ptr.vmem [resolvable:$true] %s120
      %123 = dma.hbm_to_vmem [thread:$0]  %s11, 64, %s121, [#allocation14]
    $region49: #{sr_forward.1} parent=1 // pred_fallthru
      _
    // Predicated region
    $region50: #{sr_forward.1} parent=1 // pred_check
      _
    $region51: #{sr_forward.1} parent=1 // pred_check_branch
      %125 = sbr.rel (0) target = $region53
    $region52: #{sr_forward.1} parent=1 // pred_region
      %126 = dma.done [#allocation3], 1024
    $region53: #{sr_forward.1} parent=1 // pred_fallthru
      _
    // Predicated region
    $region54: #{sr_forward.1} parent=1 // pred_check
      _
    $region55: #{sr_forward.1} parent=1 // pred_check_branch
      %128 = sbr.rel (0) target = $region57
    $region56: #{sr_forward.1} parent=1 // pred_region
      %129 = dma.done [#allocation5], 131072
    $region57: #{sr_forward.1} parent=1 // pred_fallthru
      _
    // Predicated region
    $region58: #{sr_forward.1} parent=1 // pred_check
      _
    $region59: #{sr_forward.1} parent=1 // pred_check_branch
      %131 = sbr.rel (0) target = $region61
    $region60: #{sr_forward.1} parent=1 // pred_region
      %132 = dma.done [#allocation5], 512
    $region61: #{sr_forward.1} parent=1 // pred_fallthru
      _
    // Predicated region
    $region62: #{sr_forward.1} parent=1 // pred_check
      _
    $region63: #{sr_forward.1} parent=1 // pred_check_branch
      %134 = sbr.rel (0) target = $region65
    $region64: #{sr_forward.1} parent=1 // pred_region
      %135 = dma.done [#allocation8], 32768
    $region65: #{sr_forward.1} parent=1 // pred_fallthru
      _
    // Predicated region
    $region66: #{sr_forward.1} parent=1 // pred_check
      _
    $region67: #{sr_forward.1} parent=1 // pred_check_branch
      %137 = sbr.rel (0) target = $region69
    $region68: #{sr_forward.1} parent=1 // pred_region
      %138 = dma.done [#allocation8], 256
    $region69: #{sr_forward.1} parent=1 // pred_fallthru
      _
    // Predicated region
    $region70: #{sr_forward.1} parent=1 // pred_check
      _
    $region71: #{sr_forward.1} parent=1 // pred_check_branch
      %140 = sbr.rel (0) target = $region73
    $region72: #{sr_forward.1} parent=1 // pred_region
      %141 = dma.done [#allocation11], 8192
    $region73: #{sr_forward.1} parent=1 // pred_fallthru
      _
    // Predicated region
    $region74: #{sr_forward.1} parent=1 // pred_check
      _
    $region75: #{sr_forward.1} parent=1 // pred_check_branch
      %143 = sbr.rel (0) target = $region77
    $region76: #{sr_forward.1} parent=1 // pred_region
      %144 = dma.done [#allocation11], 64
    $region77: #{sr_forward.1} parent=1 // pred_fallthru
      _
    // Predicated region
    $region78: #{sr_forward.1} parent=1 // pred_check
      _
    $region79: #{sr_forward.1} parent=1 // pred_check_branch
      %146 = sbr.rel (0) target = $region81
    $region80: #{sr_forward.1} parent=1 // pred_region
      %147 = dma.done [#allocation14], 64
    $region81: #{sr_forward.1} parent=1 // pred_fallthru
      _
    // Predicated region
    $region82: #{sr_forward.1} parent=1 // pred_check
      _
    $region83: #{sr_forward.1} parent=1 // pred_check_branch
      %149 = sbr.rel (0) target = $region85
    $region84: #{sr_forward.1} parent=1 // pred_region
      %150 = dma.done [#allocation14], 64
    $region85: #{sr_forward.1} parent=1 // pred_fallthru
      _
    %v151 = vld [vmem:[%s0] sm:$0xff]
    %v152 = vld [vmem:[#allocation2] sm:$0x77]
    %v153 = vld [vmem:[#allocation2 + $0x8] sm:$0x77]
    %v154 = vld [vmem:[#allocation2 + $0x10] sm:$0x77]
    %v155 = vld [vmem:[#allocation2 + $0x18] sm:$0x77]
    %v156 = vld [vmem:[#allocation2 + $0x20] sm:$0x77]
    %v157 = vld [vmem:[#allocation2 + $0x28] sm:$0x77]
    %v158 = vld [vmem:[#allocation2 + $0x30] sm:$0x77]
    %v159 = vld [vmem:[#allocation2 + $0x38] sm:$0x77]
    %161 = vset.pattern.permute.xlu0 0
    %162 = vperm.xlu0 %161, %v151
    %v163 = vpop.permute.xlu0 %162
    %v173 = vlaneseq
    %v174 = vshrl.u32 %v173, 7
    %v175 = vsub.s32 0, %v174
    %v176 = vrot.slane %v152, %v175
    %v177 = vlaneseq
    %v178 = vshrl.u32 %v177, 7
    %v179 = vsub.s32 4, %v178
    %v180 = vrot.slane %v152, %v179
    %v181 = vlaneseq
    %v182 = vshrl.u32 %v181, 7
    %v183 = vsub.s32 0, %v182
    %v184 = vrot.slane %v153, %v183
    %v185 = vlaneseq
    %v186 = vshrl.u32 %v185, 7
    %v187 = vsub.s32 4, %v186
    %v188 = vrot.slane %v153, %v187
    %v189 = vlaneseq
    %v190 = vshrl.u32 %v189, 7
    %v191 = vsub.s32 0, %v190
    %v192 = vrot.slane %v154, %v191
    %v193 = vlaneseq
    %v194 = vshrl.u32 %v193, 7
    %v195 = vsub.s32 4, %v194
    %v196 = vrot.slane %v154, %v195
    %v197 = vlaneseq
    %v198 = vshrl.u32 %v197, 7
    %v199 = vsub.s32 0, %v198
    %v200 = vrot.slane %v155, %v199
    %v201 = vlaneseq
    %v202 = vshrl.u32 %v201, 7
    %v203 = vsub.s32 4, %v202
    %v204 = vrot.slane %v155, %v203
    %v205 = vlaneseq
    %v206 = vshrl.u32 %v205, 7
    %v207 = vsub.s32 0, %v206
    %v208 = vrot.slane %v156, %v207
    %v209 = vlaneseq
    %v210 = vshrl.u32 %v209, 7
    %v211 = vsub.s32 4, %v210
    %v212 = vrot.slane %v156, %v211
    %v213 = vlaneseq
    %v214 = vshrl.u32 %v213, 7
    %v215 = vsub.s32 0, %v214
    %v216 = vrot.slane %v157, %v215
    %v217 = vlaneseq
    %v218 = vshrl.u32 %v217, 7
    %v219 = vsub.s32 4, %v218
    %v220 = vrot.slane %v157, %v219
    %v221 = vlaneseq
    %v222 = vshrl.u32 %v221, 7
    %v223 = vsub.s32 0, %v222
    %v224 = vrot.slane %v158, %v223
    %v225 = vlaneseq
    %v226 = vshrl.u32 %v225, 7
    %v227 = vsub.s32 4, %v226
    %v228 = vrot.slane %v158, %v227
    %v229 = vlaneseq
    %v230 = vshrl.u32 %v229, 7
    %v231 = vsub.s32 0, %v230
    %v232 = vrot.slane %v159, %v231
    %v233 = vlaneseq
    %v234 = vshrl.u32 %v233, 7
    %v235 = vsub.s32 4, %v234
    %v236 = vrot.slane %v159, %v235
    %v253 = vlaneseq
    %v254 = vshrl.u32 %v253, 7
    %v255 = vsub.s32 0, %v254
    %v256 = vrot.slane %v176, %v255
    %v257 = vlaneseq
    %v258 = vshrl.u32 %v257, 7
    %v259 = vsub.s32 0, %v258
    %v260 = vrot.slane %v180, %v259
    %v261 = vlaneseq
    %v262 = vshrl.u32 %v261, 7
    %v263 = vsub.s32 0, %v262
    %v264 = vrot.slane %v184, %v263
    %v265 = vlaneseq
    %v266 = vshrl.u32 %v265, 7
    %v267 = vsub.s32 0, %v266
    %v268 = vrot.slane %v188, %v267
    %v269 = vlaneseq
    %v270 = vshrl.u32 %v269, 7
    %v271 = vsub.s32 0, %v270
    %v272 = vrot.slane %v192, %v271
    %v273 = vlaneseq
    %v274 = vshrl.u32 %v273, 7
    %v275 = vsub.s32 0, %v274
    %v276 = vrot.slane %v196, %v275
    %v277 = vlaneseq
    %v278 = vshrl.u32 %v277, 7
    %v279 = vsub.s32 0, %v278
    %v280 = vrot.slane %v200, %v279
    %v281 = vlaneseq
    %v282 = vshrl.u32 %v281, 7
    %v283 = vsub.s32 0, %v282
    %v284 = vrot.slane %v204, %v283
    %v285 = vlaneseq
    %v286 = vshrl.u32 %v285, 7
    %v287 = vsub.s32 0, %v286
    %v288 = vrot.slane %v208, %v287
    %v289 = vlaneseq
    %v290 = vshrl.u32 %v289, 7
    %v291 = vsub.s32 0, %v290
    %v292 = vrot.slane %v212, %v291
    %v293 = vlaneseq
    %v294 = vshrl.u32 %v293, 7
    %v295 = vsub.s32 0, %v294
    %v296 = vrot.slane %v216, %v295
    %v297 = vlaneseq
    %v298 = vshrl.u32 %v297, 7
    %v299 = vsub.s32 0, %v298
    %v300 = vrot.slane %v220, %v299
    %v301 = vlaneseq
    %v302 = vshrl.u32 %v301, 7
    %v303 = vsub.s32 0, %v302
    %v304 = vrot.slane %v224, %v303
    %v305 = vlaneseq
    %v306 = vshrl.u32 %v305, 7
    %v307 = vsub.s32 0, %v306
    %v308 = vrot.slane %v228, %v307
    %v309 = vlaneseq
    %v310 = vshrl.u32 %v309, 7
    %v311 = vsub.s32 0, %v310
    %v312 = vrot.slane %v232, %v311
    %v313 = vlaneseq
    %v314 = vshrl.u32 %v313, 7
    %v315 = vsub.s32 0, %v314
    %v316 = vrot.slane %v236, %v315
    %v317 = vmul.f32 %v163, %v256
    %v318 = vmul.f32 %v163, %v260
    %v319 = vmul.f32 %v163, %v264
    %v320 = vmul.f32 %v163, %v268
    %v321 = vmul.f32 %v163, %v272
    %v322 = vmul.f32 %v163, %v276
    %v323 = vmul.f32 %v163, %v280
    %v324 = vmul.f32 %v163, %v284
    %v325 = vmul.f32 %v163, %v288
    %v326 = vmul.f32 %v163, %v292
    %v327 = vmul.f32 %v163, %v296
    %v328 = vmul.f32 %v163, %v300
    %v329 = vmul.f32 %v163, %v304
    %v330 = vmul.f32 %v163, %v308
    %v331 = vmul.f32 %v163, %v312
    %v332 = vmul.f32 %v163, %v316
    %333 = vset.pattern.permute.xlu0 1
    %334 = vperm.xlu0 %333, %v151
    %v335 = vpop.permute.xlu0 %334
    %v337 = vlaneseq
    %v338 = vshrl.u32 %v337, 7
    %v339 = vsub.s32 1, %v338
    %v340 = vrot.slane %v152, %v339
    %v341 = vlaneseq
    %v342 = vshrl.u32 %v341, 7
    %v343 = vsub.s32 5, %v342
    %v344 = vrot.slane %v152, %v343
    %v345 = vlaneseq
    %v346 = vshrl.u32 %v345, 7
    %v347 = vsub.s32 1, %v346
    %v348 = vrot.slane %v153, %v347
    %v349 = vlaneseq
    %v350 = vshrl.u32 %v349, 7
    %v351 = vsub.s32 5, %v350
    %v352 = vrot.slane %v153, %v351
    %v353 = vlaneseq
    %v354 = vshrl.u32 %v353, 7
    %v355 = vsub.s32 1, %v354
    %v356 = vrot.slane %v154, %v355
    %v357 = vlaneseq
    %v358 = vshrl.u32 %v357, 7
    %v359 = vsub.s32 5, %v358
    %v360 = vrot.slane %v154, %v359
    %v361 = vlaneseq
    %v362 = vshrl.u32 %v361, 7
    %v363 = vsub.s32 1, %v362
    %v364 = vrot.slane %v155, %v363
    %v365 = vlaneseq
    %v366 = vshrl.u32 %v365, 7
    %v367 = vsub.s32 5, %v366
    %v368 = vrot.slane %v155, %v367
    %v369 = vlaneseq
    %v370 = vshrl.u32 %v369, 7
    %v371 = vsub.s32 1, %v370
    %v372 = vrot.slane %v156, %v371
    %v373 = vlaneseq
    %v374 = vshrl.u32 %v373, 7
    %v375 = vsub.s32 5, %v374
    %v376 = vrot.slane %v156, %v375
    %v377 = vlaneseq
    %v378 = vshrl.u32 %v377, 7
    %v379 = vsub.s32 1, %v378
    %v380 = vrot.slane %v157, %v379
    %v381 = vlaneseq
    %v382 = vshrl.u32 %v381, 7
    %v383 = vsub.s32 5, %v382
    %v384 = vrot.slane %v157, %v383
    %v385 = vlaneseq
    %v386 = vshrl.u32 %v385, 7
    %v387 = vsub.s32 1, %v386
    %v388 = vrot.slane %v158, %v387
    %v389 = vlaneseq
    %v390 = vshrl.u32 %v389, 7
    %v391 = vsub.s32 5, %v390
    %v392 = vrot.slane %v158, %v391
    %v393 = vlaneseq
    %v394 = vshrl.u32 %v393, 7
    %v395 = vsub.s32 1, %v394
    %v396 = vrot.slane %v159, %v395
    %v397 = vlaneseq
    %v398 = vshrl.u32 %v397, 7
    %v399 = vsub.s32 5, %v398
    %v400 = vrot.slane %v159, %v399
    %v417 = vlaneseq
    %v418 = vshrl.u32 %v417, 7
    %v419 = vsub.s32 1, %v418
    %v420 = vrot.slane %v340, %v419
    %v421 = vlaneseq
    %v422 = vshrl.u32 %v421, 7
    %v423 = vsub.s32 1, %v422
    %v424 = vrot.slane %v344, %v423
    %v425 = vlaneseq
    %v426 = vshrl.u32 %v425, 7
    %v427 = vsub.s32 1, %v426
    %v428 = vrot.slane %v348, %v427
    %v429 = vlaneseq
    %v430 = vshrl.u32 %v429, 7
    %v431 = vsub.s32 1, %v430
    %v432 = vrot.slane %v352, %v431
    %v433 = vlaneseq
    %v434 = vshrl.u32 %v433, 7
    %v435 = vsub.s32 1, %v434
    %v436 = vrot.slane %v356, %v435
    %v437 = vlaneseq
    %v438 = vshrl.u32 %v437, 7
    %v439 = vsub.s32 1, %v438
    %v440 = vrot.slane %v360, %v439
    %v441 = vlaneseq
    %v442 = vshrl.u32 %v441, 7
    %v443 = vsub.s32 1, %v442
    %v444 = vrot.slane %v364, %v443
    %v445 = vlaneseq
    %v446 = vshrl.u32 %v445, 7
    %v447 = vsub.s32 1, %v446
    %v448 = vrot.slane %v368, %v447
    %v449 = vlaneseq
    %v450 = vshrl.u32 %v449, 7
    %v451 = vsub.s32 1, %v450
    %v452 = vrot.slane %v372, %v451
    %v453 = vlaneseq
    %v454 = vshrl.u32 %v453, 7
    %v455 = vsub.s32 1, %v454
    %v456 = vrot.slane %v376, %v455
    %v457 = vlaneseq
    %v458 = vshrl.u32 %v457, 7
    %v459 = vsub.s32 1, %v458
    %v460 = vrot.slane %v380, %v459
    %v461 = vlaneseq
    %v462 = vshrl.u32 %v461, 7
    %v463 = vsub.s32 1, %v462
    %v464 = vrot.slane %v384, %v463
    %v465 = vlaneseq
    %v466 = vshrl.u32 %v465, 7
    %v467 = vsub.s32 1, %v466
    %v468 = vrot.slane %v388, %v467
    %v469 = vlaneseq
    %v470 = vshrl.u32 %v469, 7
    %v471 = vsub.s32 1, %v470
    %v472 = vrot.slane %v392, %v471
    %v473 = vlaneseq
    %v474 = vshrl.u32 %v473, 7
    %v475 = vsub.s32 1, %v474
    %v476 = vrot.slane %v396, %v475
    %v477 = vlaneseq
    %v478 = vshrl.u32 %v477, 7
    %v479 = vsub.s32 1, %v478
    %v480 = vrot.slane %v400, %v479
    %v481 = vmul.f32 %v335, %v420
    %v482 = vmul.f32 %v335, %v424
    %v483 = vmul.f32 %v335, %v428
    %v484 = vmul.f32 %v335, %v432
    %v485 = vmul.f32 %v335, %v436
    %v486 = vmul.f32 %v335, %v440
    %v487 = vmul.f32 %v335, %v444
    %v488 = vmul.f32 %v335, %v448
    %v489 = vmul.f32 %v335, %v452
    %v490 = vmul.f32 %v335, %v456
    %v491 = vmul.f32 %v335, %v460
    %v492 = vmul.f32 %v335, %v464
    %v493 = vmul.f32 %v335, %v468
    %v494 = vmul.f32 %v335, %v472
    %v495 = vmul.f32 %v335, %v476
    %v496 = vmul.f32 %v335, %v480
    %v497 = vadd.f32 %v317, %v481
    %v498 = vadd.f32 %v318, %v482
    %v499 = vadd.f32 %v319, %v483
    %v500 = vadd.f32 %v320, %v484
    %v501 = vadd.f32 %v321, %v485
    %v502 = vadd.f32 %v322, %v486
    %v503 = vadd.f32 %v323, %v487
    %v504 = vadd.f32 %v324, %v488
    %v505 = vadd.f32 %v325, %v489
    %v506 = vadd.f32 %v326, %v490
    %v507 = vadd.f32 %v327, %v491
    %v508 = vadd.f32 %v328, %v492
    %v509 = vadd.f32 %v329, %v493
    %v510 = vadd.f32 %v330, %v494
    %v511 = vadd.f32 %v331, %v495
    %v512 = vadd.f32 %v332, %v496
    %v513 = vlaneseq
    %v514 = vshrl.u32 %v513, 7
    %v515 = vsub.s32 2, %v514
    %v516 = vrot.slane %v152, %v515
    %v517 = vlaneseq
    %v518 = vshrl.u32 %v517, 7
    %v519 = vsub.s32 6, %v518
    %v520 = vrot.slane %v152, %v519
    %v521 = vlaneseq
    %v522 = vshrl.u32 %v521, 7
    %v523 = vsub.s32 2, %v522
    %v524 = vrot.slane %v153, %v523
    %v525 = vlaneseq
    %v526 = vshrl.u32 %v525, 7
    %v527 = vsub.s32 6, %v526
    %v528 = vrot.slane %v153, %v527
    %v529 = vlaneseq
    %v530 = vshrl.u32 %v529, 7
    %v531 = vsub.s32 2, %v530
    %v532 = vrot.slane %v154, %v531
    %v533 = vlaneseq
    %v534 = vshrl.u32 %v533, 7
    %v535 = vsub.s32 6, %v534
    %v536 = vrot.slane %v154, %v535
    %v537 = vlaneseq
    %v538 = vshrl.u32 %v537, 7
    %v539 = vsub.s32 2, %v538
    %v540 = vrot.slane %v155, %v539
    %v541 = vlaneseq
    %v542 = vshrl.u32 %v541, 7
    %v543 = vsub.s32 6, %v542
    %v544 = vrot.slane %v155, %v543
    %v545 = vlaneseq
    %v546 = vshrl.u32 %v545, 7
    %v547 = vsub.s32 2, %v546
    %v548 = vrot.slane %v156, %v547
    %v549 = vlaneseq
    %v550 = vshrl.u32 %v549, 7
    %v551 = vsub.s32 6, %v550
    %v552 = vrot.slane %v156, %v551
    %v553 = vlaneseq
    %v554 = vshrl.u32 %v553, 7
    %v555 = vsub.s32 2, %v554
    %v556 = vrot.slane %v157, %v555
    %v557 = vlaneseq
    %v558 = vshrl.u32 %v557, 7
    %v559 = vsub.s32 6, %v558
    %v560 = vrot.slane %v157, %v559
    %v561 = vlaneseq
    %v562 = vshrl.u32 %v561, 7
    %v563 = vsub.s32 2, %v562
    %v564 = vrot.slane %v158, %v563
    %v565 = vlaneseq
    %v566 = vshrl.u32 %v565, 7
    %v567 = vsub.s32 6, %v566
    %v568 = vrot.slane %v158, %v567
    %v569 = vlaneseq
    %v570 = vshrl.u32 %v569, 7
    %v571 = vsub.s32 2, %v570
    %v572 = vrot.slane %v159, %v571
    %v573 = vlaneseq
    %v574 = vshrl.u32 %v573, 7
    %v575 = vsub.s32 6, %v574
    %v576 = vrot.slane %v159, %v575
    %v593 = vlaneseq
    %v594 = vshrl.u32 %v593, 7
    %v595 = vsub.s32 2, %v594
    %v596 = vrot.slane %v516, %v595
    %v597 = vlaneseq
    %v598 = vshrl.u32 %v597, 7
    %v599 = vsub.s32 2, %v598
    %v600 = vrot.slane %v520, %v599
    %v601 = vlaneseq
    %v602 = vshrl.u32 %v601, 7
    %v603 = vsub.s32 2, %v602
    %v604 = vrot.slane %v524, %v603
    %v605 = vlaneseq
    %v606 = vshrl.u32 %v605, 7
    %v607 = vsub.s32 2, %v606
    %v608 = vrot.slane %v528, %v607
    %v609 = vlaneseq
    %v610 = vshrl.u32 %v609, 7
    %v611 = vsub.s32 2, %v610
    %v612 = vrot.slane %v532, %v611
    %v613 = vlaneseq
    %v614 = vshrl.u32 %v613, 7
    %v615 = vsub.s32 2, %v614
    %v616 = vrot.slane %v536, %v615
    %v617 = vlaneseq
    %v618 = vshrl.u32 %v617, 7
    %v619 = vsub.s32 2, %v618
    %v620 = vrot.slane %v540, %v619
    %v621 = vlaneseq
    %v622 = vshrl.u32 %v621, 7
    %v623 = vsub.s32 2, %v622
    %v624 = vrot.slane %v544, %v623
    %v625 = vlaneseq
    %v626 = vshrl.u32 %v625, 7
    %v627 = vsub.s32 2, %v626
    %v628 = vrot.slane %v548, %v627
    %v629 = vlaneseq
    %v630 = vshrl.u32 %v629, 7
    %v631 = vsub.s32 2, %v630
    %v632 = vrot.slane %v552, %v631
    %v633 = vlaneseq
    %v634 = vshrl.u32 %v633, 7
    %v635 = vsub.s32 2, %v634
    %v636 = vrot.slane %v556, %v635
    %v637 = vlaneseq
    %v638 = vshrl.u32 %v637, 7
    %v639 = vsub.s32 2, %v638
    %v640 = vrot.slane %v560, %v639
    %v641 = vlaneseq
    %v642 = vshrl.u32 %v641, 7
    %v643 = vsub.s32 2, %v642
    %v644 = vrot.slane %v564, %v643
    %v645 = vlaneseq
    %v646 = vshrl.u32 %v645, 7
    %v647 = vsub.s32 2, %v646
    %v648 = vrot.slane %v568, %v647
    %v649 = vlaneseq
    %v650 = vshrl.u32 %v649, 7
    %v651 = vsub.s32 2, %v650
    %v652 = vrot.slane %v572, %v651
    %v653 = vlaneseq
    %v654 = vshrl.u32 %v653, 7
    %v655 = vsub.s32 2, %v654
    %v656 = vrot.slane %v576, %v655
    %v657 = vadd.f32 %v497, %v596
    %v658 = vadd.f32 %v498, %v600
    %v659 = vadd.f32 %v499, %v604
    %v660 = vadd.f32 %v500, %v608
    %v661 = vadd.f32 %v501, %v612
    %v662 = vadd.f32 %v502, %v616
    %v663 = vadd.f32 %v503, %v620
    %v664 = vadd.f32 %v504, %v624
    %v665 = vadd.f32 %v505, %v628
    %v666 = vadd.f32 %v506, %v632
    %v667 = vadd.f32 %v507, %v636
    %v668 = vadd.f32 %v508, %v640
    %v669 = vadd.f32 %v509, %v644
    %v670 = vadd.f32 %v510, %v648
    %v671 = vadd.f32 %v511, %v652
    %v672 = vadd.f32 %v512, %v656
    %v673 = vmax.f32 %v657, 0.0
    %v674 = vmax.f32 %v658, 0.0
    %v675 = vmax.f32 %v659, 0.0
    %v676 = vmax.f32 %v660, 0.0
    %v677 = vmax.f32 %v661, 0.0
    %v678 = vmax.f32 %v662, 0.0
    %v679 = vmax.f32 %v663, 0.0
    %v680 = vmax.f32 %v664, 0.0
    %v681 = vmax.f32 %v665, 0.0
    %v682 = vmax.f32 %v666, 0.0
    %v683 = vmax.f32 %v667, 0.0
    %v684 = vmax.f32 %v668, 0.0
    %v685 = vmax.f32 %v669, 0.0
    %v686 = vmax.f32 %v670, 0.0
    %v687 = vmax.f32 %v671, 0.0
    %v688 = vmax.f32 %v672, 0.0
    %v689 = vld [vmem:[#allocation4] sm:$0xff]
    %v690 = vld [vmem:[#allocation4 + $0x8] sm:$0xff]
    %v691 = vld [vmem:[#allocation4 + $0x10] sm:$0xff]
    %v692 = vld [vmem:[#allocation4 + $0x18] sm:$0xff]
    %v693 = vld [vmem:[#allocation4 + $0x20] sm:$0xff]
    %v694 = vld [vmem:[#allocation4 + $0x28] sm:$0xff]
    %v695 = vld [vmem:[#allocation4 + $0x30] sm:$0xff]
    %v696 = vld [vmem:[#allocation4 + $0x38] sm:$0xff]
    %v697 = vld [vmem:[#allocation4 + $0x40] sm:$0xff]
    %v698 = vld [vmem:[#allocation4 + $0x48] sm:$0xff]
    %v699 = vld [vmem:[#allocation4 + $0x50] sm:$0xff]
    %v700 = vld [vmem:[#allocation4 + $0x58] sm:$0xff]
    %v701 = vld [vmem:[#allocation4 + $0x60] sm:$0xff]
    %v702 = vld [vmem:[#allocation4 + $0x68] sm:$0xff]
    %v703 = vld [vmem:[#allocation4 + $0x70] sm:$0xff]
    %v704 = vld [vmem:[#allocation4 + $0x78] sm:$0xff]
    %v705 = vld [vmem:[#allocation4 + $0x80] sm:$0xff]
    %v706 = vld [vmem:[#allocation4 + $0x88] sm:$0xff]
    %v707 = vld [vmem:[#allocation4 + $0x90] sm:$0xff]
    %v708 = vld [vmem:[#allocation4 + $0x98] sm:$0xff]
    %v709 = vld [vmem:[#allocation4 + $0xa0] sm:$0xff]
    %v710 = vld [vmem:[#allocation4 + $0xa8] sm:$0xff]
    %v711 = vld [vmem:[#allocation4 + $0xb0] sm:$0xff]
    %v712 = vld [vmem:[#allocation4 + $0xb8] sm:$0xff]
    %v713 = vld [vmem:[#allocation4 + $0xc0] sm:$0xff]
    %v714 = vld [vmem:[#allocation4 + $0xc8] sm:$0xff]
    %v715 = vld [vmem:[#allocation4 + $0xd0] sm:$0xff]
    %v716 = vld [vmem:[#allocation4 + $0xd8] sm:$0xff]
    %v717 = vld [vmem:[#allocation4 + $0xe0] sm:$0xff]
    %v718 = vld [vmem:[#allocation4 + $0xe8] sm:$0xff]
    %v719 = vld [vmem:[#allocation4 + $0xf0] sm:$0xff]
    %v720 = vld [vmem:[#allocation4 + $0xf8] sm:$0xff]
    %v721 = vld [vmem:[#allocation4 + $0x100] sm:$0xff]
    %v722 = vld [vmem:[#allocation4 + $0x108] sm:$0xff]
    %v723 = vld [vmem:[#allocation4 + $0x110] sm:$0xff]
    %v724 = vld [vmem:[#allocation4 + $0x118] sm:$0xff]
    %v725 = vld [vmem:[#allocation4 + $0x120] sm:$0xff]
    %v726 = vld [vmem:[#allocation4 + $0x128] sm:$0xff]
    %v727 = vld [vmem:[#allocation4 + $0x130] sm:$0xff]
    %v728 = vld [vmem:[#allocation4 + $0x138] sm:$0xff]
    %v729 = vld [vmem:[#allocation4 + $0x140] sm:$0xff]
    %v730 = vld [vmem:[#allocation4 + $0x148] sm:$0xff]
    %v731 = vld [vmem:[#allocation4 + $0x150] sm:$0xff]
    %v732 = vld [vmem:[#allocation4 + $0x158] sm:$0xff]
    %v733 = vld [vmem:[#allocation4 + $0x160] sm:$0xff]
    %v734 = vld [vmem:[#allocation4 + $0x168] sm:$0xff]
    %v735 = vld [vmem:[#allocation4 + $0x170] sm:$0xff]
    %v736 = vld [vmem:[#allocation4 + $0x178] sm:$0xff]
    %v737 = vld [vmem:[#allocation4 + $0x180] sm:$0xff]
    %v738 = vld [vmem:[#allocation4 + $0x188] sm:$0xff]
    %v739 = vld [vmem:[#allocation4 + $0x190] sm:$0xff]
    %v740 = vld [vmem:[#allocation4 + $0x198] sm:$0xff]
    %v741 = vld [vmem:[#allocation4 + $0x1a0] sm:$0xff]
    %v742 = vld [vmem:[#allocation4 + $0x1a8] sm:$0xff]
    %v743 = vld [vmem:[#allocation4 + $0x1b0] sm:$0xff]
    %v744 = vld [vmem:[#allocation4 + $0x1b8] sm:$0xff]
    %v745 = vld [vmem:[#allocation4 + $0x1c0] sm:$0xff]
    %v746 = vld [vmem:[#allocation4 + $0x1c8] sm:$0xff]
    %v747 = vld [vmem:[#allocation4 + $0x1d0] sm:$0xff]
    %v748 = vld [vmem:[#allocation4 + $0x1d8] sm:$0xff]
    %v749 = vld [vmem:[#allocation4 + $0x1e0] sm:$0xff]
    %v750 = vld [vmem:[#allocation4 + $0x1e8] sm:$0xff]
    %v751 = vld [vmem:[#allocation4 + $0x1f0] sm:$0xff]
    %v752 = vld [vmem:[#allocation4 + $0x1f8] sm:$0xff]
    %v753 = vld [vmem:[#allocation4 + $0x200] sm:$0xff]
    %v754 = vld [vmem:[#allocation4 + $0x208] sm:$0xff]
    %v755 = vld [vmem:[#allocation4 + $0x210] sm:$0xff]
    %v756 = vld [vmem:[#allocation4 + $0x218] sm:$0xff]
    %v757 = vld [vmem:[#allocation4 + $0x220] sm:$0xff]
    %v758 = vld [vmem:[#allocation4 + $0x228] sm:$0xff]
    %v759 = vld [vmem:[#allocation4 + $0x230] sm:$0xff]
    %v760 = vld [vmem:[#allocation4 + $0x238] sm:$0xff]
    %v761 = vld [vmem:[#allocation4 + $0x240] sm:$0xff]
    %v762 = vld [vmem:[#allocation4 + $0x248] sm:$0xff]
    %v763 = vld [vmem:[#allocation4 + $0x250] sm:$0xff]
    %v764 = vld [vmem:[#allocation4 + $0x258] sm:$0xff]
    %v765 = vld [vmem:[#allocation4 + $0x260] sm:$0xff]
    %v766 = vld [vmem:[#allocation4 + $0x268] sm:$0xff]
    %v767 = vld [vmem:[#allocation4 + $0x270] sm:$0xff]
    %v768 = vld [vmem:[#allocation4 + $0x278] sm:$0xff]
    %v769 = vld [vmem:[#allocation4 + $0x280] sm:$0xff]
    %v770 = vld [vmem:[#allocation4 + $0x288] sm:$0xff]
    %v771 = vld [vmem:[#allocation4 + $0x290] sm:$0xff]
    %v772 = vld [vmem:[#allocation4 + $0x298] sm:$0xff]
    %v773 = vld [vmem:[#allocation4 + $0x2a0] sm:$0xff]
    %v774 = vld [vmem:[#allocation4 + $0x2a8] sm:$0xff]
    %v775 = vld [vmem:[#allocation4 + $0x2b0] sm:$0xff]
    %v776 = vld [vmem:[#allocation4 + $0x2b8] sm:$0xff]
    %v777 = vld [vmem:[#allocation4 + $0x2c0] sm:$0xff]
    %v778 = vld [vmem:[#allocation4 + $0x2c8] sm:$0xff]
    %v779 = vld [vmem:[#allocation4 + $0x2d0] sm:$0xff]
    %v780 = vld [vmem:[#allocation4 + $0x2d8] sm:$0xff]
    %v781 = vld [vmem:[#allocation4 + $0x2e0] sm:$0xff]
    %v782 = vld [vmem:[#allocation4 + $0x2e8] sm:$0xff]
    %v783 = vld [vmem:[#allocation4 + $0x2f0] sm:$0xff]
    %v784 = vld [vmem:[#allocation4 + $0x2f8] sm:$0xff]
    %v785 = vld [vmem:[#allocation4 + $0x300] sm:$0xff]
    %v786 = vld [vmem:[#allocation4 + $0x308] sm:$0xff]
    %v787 = vld [vmem:[#allocation4 + $0x310] sm:$0xff]
    %v788 = vld [vmem:[#allocation4 + $0x318] sm:$0xff]
    %v789 = vld [vmem:[#allocation4 + $0x320] sm:$0xff]
    %v790 = vld [vmem:[#allocation4 + $0x328] sm:$0xff]
    %v791 = vld [vmem:[#allocation4 + $0x330] sm:$0xff]
    %v792 = vld [vmem:[#allocation4 + $0x338] sm:$0xff]
    %v793 = vld [vmem:[#allocation4 + $0x340] sm:$0xff]
    %v794 = vld [vmem:[#allocation4 + $0x348] sm:$0xff]
    %v795 = vld [vmem:[#allocation4 + $0x350] sm:$0xff]
    %v796 = vld [vmem:[#allocation4 + $0x358] sm:$0xff]
    %v797 = vld [vmem:[#allocation4 + $0x360] sm:$0xff]
    %v798 = vld [vmem:[#allocation4 + $0x368] sm:$0xff]
    %v799 = vld [vmem:[#allocation4 + $0x370] sm:$0xff]
    %v800 = vld [vmem:[#allocation4 + $0x378] sm:$0xff]
    %v801 = vld [vmem:[#allocation4 + $0x380] sm:$0xff]
    %v802 = vld [vmem:[#allocation4 + $0x388] sm:$0xff]
    %v803 = vld [vmem:[#allocation4 + $0x390] sm:$0xff]
    %v804 = vld [vmem:[#allocation4 + $0x398] sm:$0xff]
    %v805 = vld [vmem:[#allocation4 + $0x3a0] sm:$0xff]
    %v806 = vld [vmem:[#allocation4 + $0x3a8] sm:$0xff]
    %v807 = vld [vmem:[#allocation4 + $0x3b0] sm:$0xff]
    %v808 = vld [vmem:[#allocation4 + $0x3b8] sm:$0xff]
    %v809 = vld [vmem:[#allocation4 + $0x3c0] sm:$0xff]
    %v810 = vld [vmem:[#allocation4 + $0x3c8] sm:$0xff]
    %v811 = vld [vmem:[#allocation4 + $0x3d0] sm:$0xff]
    %v812 = vld [vmem:[#allocation4 + $0x3d8] sm:$0xff]
    %v813 = vld [vmem:[#allocation4 + $0x3e0] sm:$0xff]
    %v814 = vld [vmem:[#allocation4 + $0x3e8] sm:$0xff]
    %v815 = vld [vmem:[#allocation4 + $0x3f0] sm:$0xff]
    %v816 = vld [vmem:[#allocation4 + $0x3f8] sm:$0xff]
    %v817 = vld [vmem:[#allocation4 + $0x400] sm:$0xff]
    %v818 = vld [vmem:[#allocation4 + $0x408] sm:$0xff]
    %v819 = vld [vmem:[#allocation4 + $0x410] sm:$0xff]
    %v820 = vld [vmem:[#allocation4 + $0x418] sm:$0xff]
    %v821 = vld [vmem:[#allocation4 + $0x420] sm:$0xff]
    %v822 = vld [vmem:[#allocation4 + $0x428] sm:$0xff]
    %v823 = vld [vmem:[#allocation4 + $0x430] sm:$0xff]
    %v824 = vld [vmem:[#allocation4 + $0x438] sm:$0xff]
    %v825 = vld [vmem:[#allocation4 + $0x440] sm:$0xff]
    %v826 = vld [vmem:[#allocation4 + $0x448] sm:$0xff]
    %v827 = vld [vmem:[#allocation4 + $0x450] sm:$0xff]
    %v828 = vld [vmem:[#allocation4 + $0x458] sm:$0xff]
    %v829 = vld [vmem:[#allocation4 + $0x460] sm:$0xff]
    %v830 = vld [vmem:[#allocation4 + $0x468] sm:$0xff]
    %v831 = vld [vmem:[#allocation4 + $0x470] sm:$0xff]
    %v832 = vld [vmem:[#allocation4 + $0x478] sm:$0xff]
    %v833 = vld [vmem:[#allocation4 + $0x480] sm:$0xff]
    %v834 = vld [vmem:[#allocation4 + $0x488] sm:$0xff]
    %v835 = vld [vmem:[#allocation4 + $0x490] sm:$0xff]
    %v836 = vld [vmem:[#allocation4 + $0x498] sm:$0xff]
    %v837 = vld [vmem:[#allocation4 + $0x4a0] sm:$0xff]
    %v838 = vld [vmem:[#allocation4 + $0x4a8] sm:$0xff]
    %v839 = vld [vmem:[#allocation4 + $0x4b0] sm:$0xff]
    %v840 = vld [vmem:[#allocation4 + $0x4b8] sm:$0xff]
    %v841 = vld [vmem:[#allocation4 + $0x4c0] sm:$0xff]
    %v842 = vld [vmem:[#allocation4 + $0x4c8] sm:$0xff]
    %v843 = vld [vmem:[#allocation4 + $0x4d0] sm:$0xff]
    %v844 = vld [vmem:[#allocation4 + $0x4d8] sm:$0xff]
    %v845 = vld [vmem:[#allocation4 + $0x4e0] sm:$0xff]
    %v846 = vld [vmem:[#allocation4 + $0x4e8] sm:$0xff]
    %v847 = vld [vmem:[#allocation4 + $0x4f0] sm:$0xff]
    %v848 = vld [vmem:[#allocation4 + $0x4f8] sm:$0xff]
    %v849 = vld [vmem:[#allocation4 + $0x500] sm:$0xff]
    %v850 = vld [vmem:[#allocation4 + $0x508] sm:$0xff]
    %v851 = vld [vmem:[#allocation4 + $0x510] sm:$0xff]
    %v852 = vld [vmem:[#allocation4 + $0x518] sm:$0xff]
    %v853 = vld [vmem:[#allocation4 + $0x520] sm:$0xff]
    %v854 = vld [vmem:[#allocation4 + $0x528] sm:$0xff]
    %v855 = vld [vmem:[#allocation4 + $0x530] sm:$0xff]
    %v856 = vld [vmem:[#allocation4 + $0x538] sm:$0xff]
    %v857 = vld [vmem:[#allocation4 + $0x540] sm:$0xff]
    %v858 = vld [vmem:[#allocation4 + $0x548] sm:$0xff]
    %v859 = vld [vmem:[#allocation4 + $0x550] sm:$0xff]
    %v860 = vld [vmem:[#allocation4 + $0x558] sm:$0xff]
    %v861 = vld [vmem:[#allocation4 + $0x560] sm:$0xff]
    %v862 = vld [vmem:[#allocation4 + $0x568] sm:$0xff]
    %v863 = vld [vmem:[#allocation4 + $0x570] sm:$0xff]
    %v864 = vld [vmem:[#allocation4 + $0x578] sm:$0xff]
    %v865 = vld [vmem:[#allocation4 + $0x580] sm:$0xff]
    %v866 = vld [vmem:[#allocation4 + $0x588] sm:$0xff]
    %v867 = vld [vmem:[#allocation4 + $0x590] sm:$0xff]
    %v868 = vld [vmem:[#allocation4 + $0x598] sm:$0xff]
    %v869 = vld [vmem:[#allocation4 + $0x5a0] sm:$0xff]
    %v870 = vld [vmem:[#allocation4 + $0x5a8] sm:$0xff]
    %v871 = vld [vmem:[#allocation4 + $0x5b0] sm:$0xff]
    %v872 = vld [vmem:[#allocation4 + $0x5b8] sm:$0xff]
    %v873 = vld [vmem:[#allocation4 + $0x5c0] sm:$0xff]
    %v874 = vld [vmem:[#allocation4 + $0x5c8] sm:$0xff]
    %v875 = vld [vmem:[#allocation4 + $0x5d0] sm:$0xff]
    %v876 = vld [vmem:[#allocation4 + $0x5d8] sm:$0xff]
    %v877 = vld [vmem:[#allocation4 + $0x5e0] sm:$0xff]
    %v878 = vld [vmem:[#allocation4 + $0x5e8] sm:$0xff]
    %v879 = vld [vmem:[#allocation4 + $0x5f0] sm:$0xff]
    %v880 = vld [vmem:[#allocation4 + $0x5f8] sm:$0xff]
    %v881 = vld [vmem:[#allocation4 + $0x600] sm:$0xff]
    %v882 = vld [vmem:[#allocation4 + $0x608] sm:$0xff]
    %v883 = vld [vmem:[#allocation4 + $0x610] sm:$0xff]
    %v884 = vld [vmem:[#allocation4 + $0x618] sm:$0xff]
    %v885 = vld [vmem:[#allocation4 + $0x620] sm:$0xff]
    %v886 = vld [vmem:[#allocation4 + $0x628] sm:$0xff]
    %v887 = vld [vmem:[#allocation4 + $0x630] sm:$0xff]
    %v888 = vld [vmem:[#allocation4 + $0x638] sm:$0xff]
    %v889 = vld [vmem:[#allocation4 + $0x640] sm:$0xff]
    %v890 = vld [vmem:[#allocation4 + $0x648] sm:$0xff]
    %v891 = vld [vmem:[#allocation4 + $0x650] sm:$0xff]
    %v892 = vld [vmem:[#allocation4 + $0x658] sm:$0xff]
    %v893 = vld [vmem:[#allocation4 + $0x660] sm:$0xff]
    %v894 = vld [vmem:[#allocation4 + $0x668] sm:$0xff]
    %v895 = vld [vmem:[#allocation4 + $0x670] sm:$0xff]
    %v896 = vld [vmem:[#allocation4 + $0x678] sm:$0xff]
    %v897 = vld [vmem:[#allocation4 + $0x680] sm:$0xff]
    %v898 = vld [vmem:[#allocation4 + $0x688] sm:$0xff]
    %v899 = vld [vmem:[#allocation4 + $0x690] sm:$0xff]
    %v900 = vld [vmem:[#allocation4 + $0x698] sm:$0xff]
    %v901 = vld [vmem:[#allocation4 + $0x6a0] sm:$0xff]
    %v902 = vld [vmem:[#allocation4 + $0x6a8] sm:$0xff]
    %v903 = vld [vmem:[#allocation4 + $0x6b0] sm:$0xff]
    %v904 = vld [vmem:[#allocation4 + $0x6b8] sm:$0xff]
    %v905 = vld [vmem:[#allocation4 + $0x6c0] sm:$0xff]
    %v906 = vld [vmem:[#allocation4 + $0x6c8] sm:$0xff]
    %v907 = vld [vmem:[#allocation4 + $0x6d0] sm:$0xff]
    %v908 = vld [vmem:[#allocation4 + $0x6d8] sm:$0xff]
    %v909 = vld [vmem:[#allocation4 + $0x6e0] sm:$0xff]
    %v910 = vld [vmem:[#allocation4 + $0x6e8] sm:$0xff]
    %v911 = vld [vmem:[#allocation4 + $0x6f0] sm:$0xff]
    %v912 = vld [vmem:[#allocation4 + $0x6f8] sm:$0xff]
    %v913 = vld [vmem:[#allocation4 + $0x700] sm:$0xff]
    %v914 = vld [vmem:[#allocation4 + $0x708] sm:$0xff]
    %v915 = vld [vmem:[#allocation4 + $0x710] sm:$0xff]
    %v916 = vld [vmem:[#allocation4 + $0x718] sm:$0xff]
    %v917 = vld [vmem:[#allocation4 + $0x720] sm:$0xff]
    %v918 = vld [vmem:[#allocation4 + $0x728] sm:$0xff]
    %v919 = vld [vmem:[#allocation4 + $0x730] sm:$0xff]
    %v920 = vld [vmem:[#allocation4 + $0x738] sm:$0xff]
    %v921 = vld [vmem:[#allocation4 + $0x740] sm:$0xff]
    %v922 = vld [vmem:[#allocation4 + $0x748] sm:$0xff]
    %v923 = vld [vmem:[#allocation4 + $0x750] sm:$0xff]
    %v924 = vld [vmem:[#allocation4 + $0x758] sm:$0xff]
    %v925 = vld [vmem:[#allocation4 + $0x760] sm:$0xff]
    %v926 = vld [vmem:[#allocation4 + $0x768] sm:$0xff]
    %v927 = vld [vmem:[#allocation4 + $0x770] sm:$0xff]
    %v928 = vld [vmem:[#allocation4 + $0x778] sm:$0xff]
    %v929 = vld [vmem:[#allocation4 + $0x780] sm:$0xff]
    %v930 = vld [vmem:[#allocation4 + $0x788] sm:$0xff]
    %v931 = vld [vmem:[#allocation4 + $0x790] sm:$0xff]
    %v932 = vld [vmem:[#allocation4 + $0x798] sm:$0xff]
    %v933 = vld [vmem:[#allocation4 + $0x7a0] sm:$0xff]
    %v934 = vld [vmem:[#allocation4 + $0x7a8] sm:$0xff]
    %v935 = vld [vmem:[#allocation4 + $0x7b0] sm:$0xff]
    %v936 = vld [vmem:[#allocation4 + $0x7b8] sm:$0xff]
    %v937 = vld [vmem:[#allocation4 + $0x7c0] sm:$0xff]
    %v938 = vld [vmem:[#allocation4 + $0x7c8] sm:$0xff]
    %v939 = vld [vmem:[#allocation4 + $0x7d0] sm:$0xff]
    %v940 = vld [vmem:[#allocation4 + $0x7d8] sm:$0xff]
    %v941 = vld [vmem:[#allocation4 + $0x7e0] sm:$0xff]
    %v942 = vld [vmem:[#allocation4 + $0x7e8] sm:$0xff]
    %v943 = vld [vmem:[#allocation4 + $0x7f0] sm:$0xff]
    %v944 = vld [vmem:[#allocation4 + $0x7f8] sm:$0xff]
    %v945 = vld [vmem:[#allocation4 + $0x800] sm:$0xff]
    %v946 = vld [vmem:[#allocation4 + $0x808] sm:$0xff]
    %v947 = vld [vmem:[#allocation4 + $0x810] sm:$0xff]
    %v948 = vld [vmem:[#allocation4 + $0x818] sm:$0xff]
    %v949 = vld [vmem:[#allocation4 + $0x820] sm:$0xff]
    %v950 = vld [vmem:[#allocation4 + $0x828] sm:$0xff]
    %v951 = vld [vmem:[#allocation4 + $0x830] sm:$0xff]
    %v952 = vld [vmem:[#allocation4 + $0x838] sm:$0xff]
    %v953 = vld [vmem:[#allocation4 + $0x840] sm:$0xff]
    %v954 = vld [vmem:[#allocation4 + $0x848] sm:$0xff]
    %v955 = vld [vmem:[#allocation4 + $0x850] sm:$0xff]
    %v956 = vld [vmem:[#allocation4 + $0x858] sm:$0xff]
    %v957 = vld [vmem:[#allocation4 + $0x860] sm:$0xff]
    %v958 = vld [vmem:[#allocation4 + $0x868] sm:$0xff]
    %v959 = vld [vmem:[#allocation4 + $0x870] sm:$0xff]
    %v960 = vld [vmem:[#allocation4 + $0x878] sm:$0xff]
    %v961 = vld [vmem:[#allocation4 + $0x880] sm:$0xff]
    %v962 = vld [vmem:[#allocation4 + $0x888] sm:$0xff]
    %v963 = vld [vmem:[#allocation4 + $0x890] sm:$0xff]
    %v964 = vld [vmem:[#allocation4 + $0x898] sm:$0xff]
    %v965 = vld [vmem:[#allocation4 + $0x8a0] sm:$0xff]
    %v966 = vld [vmem:[#allocation4 + $0x8a8] sm:$0xff]
    %v967 = vld [vmem:[#allocation4 + $0x8b0] sm:$0xff]
    %v968 = vld [vmem:[#allocation4 + $0x8b8] sm:$0xff]
    %v969 = vld [vmem:[#allocation4 + $0x8c0] sm:$0xff]
    %v970 = vld [vmem:[#allocation4 + $0x8c8] sm:$0xff]
    %v971 = vld [vmem:[#allocation4 + $0x8d0] sm:$0xff]
    %v972 = vld [vmem:[#allocation4 + $0x8d8] sm:$0xff]
    %v973 = vld [vmem:[#allocation4 + $0x8e0] sm:$0xff]
    %v974 = vld [vmem:[#allocation4 + $0x8e8] sm:$0xff]
    %v975 = vld [vmem:[#allocation4 + $0x8f0] sm:$0xff]
    %v976 = vld [vmem:[#allocation4 + $0x8f8] sm:$0xff]
    %v977 = vld [vmem:[#allocation4 + $0x900] sm:$0xff]
    %v978 = vld [vmem:[#allocation4 + $0x908] sm:$0xff]
    %v979 = vld [vmem:[#allocation4 + $0x910] sm:$0xff]
    %v980 = vld [vmem:[#allocation4 + $0x918] sm:$0xff]
    %v981 = vld [vmem:[#allocation4 + $0x920] sm:$0xff]
    %v982 = vld [vmem:[#allocation4 + $0x928] sm:$0xff]
    %v983 = vld [vmem:[#allocation4 + $0x930] sm:$0xff]
    %v984 = vld [vmem:[#allocation4 + $0x938] sm:$0xff]
    %v985 = vld [vmem:[#allocation4 + $0x940] sm:$0xff]
    %v986 = vld [vmem:[#allocation4 + $0x948] sm:$0xff]
    %v987 = vld [vmem:[#allocation4 + $0x950] sm:$0xff]
    %v988 = vld [vmem:[#allocation4 + $0x958] sm:$0xff]
    %v989 = vld [vmem:[#allocation4 + $0x960] sm:$0xff]
    %v990 = vld [vmem:[#allocation4 + $0x968] sm:$0xff]
    %v991 = vld [vmem:[#allocation4 + $0x970] sm:$0xff]
    %v992 = vld [vmem:[#allocation4 + $0x978] sm:$0xff]
    %v993 = vld [vmem:[#allocation4 + $0x980] sm:$0xff]
    %v994 = vld [vmem:[#allocation4 + $0x988] sm:$0xff]
    %v995 = vld [vmem:[#allocation4 + $0x990] sm:$0xff]
    %v996 = vld [vmem:[#allocation4 + $0x998] sm:$0xff]
    %v997 = vld [vmem:[#allocation4 + $0x9a0] sm:$0xff]
    %v998 = vld [vmem:[#allocation4 + $0x9a8] sm:$0xff]
    %v999 = vld [vmem:[#allocation4 + $0x9b0] sm:$0xff]
    %v1000 = vld [vmem:[#allocation4 + $0x9b8] sm:$0xff]
    %v1001 = vld [vmem:[#allocation4 + $0x9c0] sm:$0xff]
    %v1002 = vld [vmem:[#allocation4 + $0x9c8] sm:$0xff]
    %v1003 = vld [vmem:[#allocation4 + $0x9d0] sm:$0xff]
    %v1004 = vld [vmem:[#allocation4 + $0x9d8] sm:$0xff]
    %v1005 = vld [vmem:[#allocation4 + $0x9e0] sm:$0xff]
    %v1006 = vld [vmem:[#allocation4 + $0x9e8] sm:$0xff]
    %v1007 = vld [vmem:[#allocation4 + $0x9f0] sm:$0xff]
    %v1008 = vld [vmem:[#allocation4 + $0x9f8] sm:$0xff]
    %v1009 = vld [vmem:[#allocation4 + $0xa00] sm:$0xff]
    %v1010 = vld [vmem:[#allocation4 + $0xa08] sm:$0xff]
    %v1011 = vld [vmem:[#allocation4 + $0xa10] sm:$0xff]
    %v1012 = vld [vmem:[#allocation4 + $0xa18] sm:$0xff]
    %v1013 = vld [vmem:[#allocation4 + $0xa20] sm:$0xff]
    %v1014 = vld [vmem:[#allocation4 + $0xa28] sm:$0xff]
    %v1015 = vld [vmem:[#allocation4 + $0xa30] sm:$0xff]
    %v1016 = vld [vmem:[#allocation4 + $0xa38] sm:$0xff]
    %v1017 = vld [vmem:[#allocation4 + $0xa40] sm:$0xff]
    %v1018 = vld [vmem:[#allocation4 + $0xa48] sm:$0xff]
    %v1019 = vld [vmem:[#allocation4 + $0xa50] sm:$0xff]
    %v1020 = vld [vmem:[#allocation4 + $0xa58] sm:$0xff]
    %v1021 = vld [vmem:[#allocation4 + $0xa60] sm:$0xff]
    %v1022 = vld [vmem:[#allocation4 + $0xa68] sm:$0xff]
    %v1023 = vld [vmem:[#allocation4 + $0xa70] sm:$0xff]
    %v1024 = vld [vmem:[#allocation4 + $0xa78] sm:$0xff]
    %v1025 = vld [vmem:[#allocation4 + $0xa80] sm:$0xff]
    %v1026 = vld [vmem:[#allocation4 + $0xa88] sm:$0xff]
    %v1027 = vld [vmem:[#allocation4 + $0xa90] sm:$0xff]
    %v1028 = vld [vmem:[#allocation4 + $0xa98] sm:$0xff]
    %v1029 = vld [vmem:[#allocation4 + $0xaa0] sm:$0xff]
    %v1030 = vld [vmem:[#allocation4 + $0xaa8] sm:$0xff]
    %v1031 = vld [vmem:[#allocation4 + $0xab0] sm:$0xff]
    %v1032 = vld [vmem:[#allocation4 + $0xab8] sm:$0xff]
    %v1033 = vld [vmem:[#allocation4 + $0xac0] sm:$0xff]
    %v1034 = vld [vmem:[#allocation4 + $0xac8] sm:$0xff]
    %v1035 = vld [vmem:[#allocation4 + $0xad0] sm:$0xff]
    %v1036 = vld [vmem:[#allocation4 + $0xad8] sm:$0xff]
    %v1037 = vld [vmem:[#allocation4 + $0xae0] sm:$0xff]
    %v1038 = vld [vmem:[#allocation4 + $0xae8] sm:$0xff]
    %v1039 = vld [vmem:[#allocation4 + $0xaf0] sm:$0xff]
    %v1040 = vld [vmem:[#allocation4 + $0xaf8] sm:$0xff]
    %v1041 = vld [vmem:[#allocation4 + $0xb00] sm:$0xff]
    %v1042 = vld [vmem:[#allocation4 + $0xb08] sm:$0xff]
    %v1043 = vld [vmem:[#allocation4 + $0xb10] sm:$0xff]
    %v1044 = vld [vmem:[#allocation4 + $0xb18] sm:$0xff]
    %v1045 = vld [vmem:[#allocation4 + $0xb20] sm:$0xff]
    %v1046 = vld [vmem:[#allocation4 + $0xb28] sm:$0xff]
    %v1047 = vld [vmem:[#allocation4 + $0xb30] sm:$0xff]
    %v1048 = vld [vmem:[#allocation4 + $0xb38] sm:$0xff]
    %v1049 = vld [vmem:[#allocation4 + $0xb40] sm:$0xff]
    %v1050 = vld [vmem:[#allocation4 + $0xb48] sm:$0xff]
    %v1051 = vld [vmem:[#allocation4 + $0xb50] sm:$0xff]
    %v1052 = vld [vmem:[#allocation4 + $0xb58] sm:$0xff]
    %v1053 = vld [vmem:[#allocation4 + $0xb60] sm:$0xff]
    %v1054 = vld [vmem:[#allocation4 + $0xb68] sm:$0xff]
    %v1055 = vld [vmem:[#allocation4 + $0xb70] sm:$0xff]
    %v1056 = vld [vmem:[#allocation4 + $0xb78] sm:$0xff]
    %v1057 = vld [vmem:[#allocation4 + $0xb80] sm:$0xff]
    %v1058 = vld [vmem:[#allocation4 + $0xb88] sm:$0xff]
    %v1059 = vld [vmem:[#allocation4 + $0xb90] sm:$0xff]
    %v1060 = vld [vmem:[#allocation4 + $0xb98] sm:$0xff]
    %v1061 = vld [vmem:[#allocation4 + $0xba0] sm:$0xff]
    %v1062 = vld [vmem:[#allocation4 + $0xba8] sm:$0xff]
    %v1063 = vld [vmem:[#allocation4 + $0xbb0] sm:$0xff]
    %v1064 = vld [vmem:[#allocation4 + $0xbb8] sm:$0xff]
    %v1065 = vld [vmem:[#allocation4 + $0xbc0] sm:$0xff]
    %v1066 = vld [vmem:[#allocation4 + $0xbc8] sm:$0xff]
    %v1067 = vld [vmem:[#allocation4 + $0xbd0] sm:$0xff]
    %v1068 = vld [vmem:[#allocation4 + $0xbd8] sm:$0xff]
    %v1069 = vld [vmem:[#allocation4 + $0xbe0] sm:$0xff]
    %v1070 = vld [vmem:[#allocation4 + $0xbe8] sm:$0xff]
    %v1071 = vld [vmem:[#allocation4 + $0xbf0] sm:$0xff]
    %v1072 = vld [vmem:[#allocation4 + $0xbf8] sm:$0xff]
    %v1073 = vld [vmem:[#allocation4 + $0xc00] sm:$0xff]
    %v1074 = vld [vmem:[#allocation4 + $0xc08] sm:$0xff]
    %v1075 = vld [vmem:[#allocation4 + $0xc10] sm:$0xff]
    %v1076 = vld [vmem:[#allocation4 + $0xc18] sm:$0xff]
    %v1077 = vld [vmem:[#allocation4 + $0xc20] sm:$0xff]
    %v1078 = vld [vmem:[#allocation4 + $0xc28] sm:$0xff]
    %v1079 = vld [vmem:[#allocation4 + $0xc30] sm:$0xff]
    %v1080 = vld [vmem:[#allocation4 + $0xc38] sm:$0xff]
    %v1081 = vld [vmem:[#allocation4 + $0xc40] sm:$0xff]
    %v1082 = vld [vmem:[#allocation4 + $0xc48] sm:$0xff]
    %v1083 = vld [vmem:[#allocation4 + $0xc50] sm:$0xff]
    %v1084 = vld [vmem:[#allocation4 + $0xc58] sm:$0xff]
    %v1085 = vld [vmem:[#allocation4 + $0xc60] sm:$0xff]
    %v1086 = vld [vmem:[#allocation4 + $0xc68] sm:$0xff]
    %v1087 = vld [vmem:[#allocation4 + $0xc70] sm:$0xff]
    %v1088 = vld [vmem:[#allocation4 + $0xc78] sm:$0xff]
    %v1089 = vld [vmem:[#allocation4 + $0xc80] sm:$0xff]
    %v1090 = vld [vmem:[#allocation4 + $0xc88] sm:$0xff]
    %v1091 = vld [vmem:[#allocation4 + $0xc90] sm:$0xff]
    %v1092 = vld [vmem:[#allocation4 + $0xc98] sm:$0xff]
    %v1093 = vld [vmem:[#allocation4 + $0xca0] sm:$0xff]
    %v1094 = vld [vmem:[#allocation4 + $0xca8] sm:$0xff]
    %v1095 = vld [vmem:[#allocation4 + $0xcb0] sm:$0xff]
    %v1096 = vld [vmem:[#allocation4 + $0xcb8] sm:$0xff]
    %v1097 = vld [vmem:[#allocation4 + $0xcc0] sm:$0xff]
    %v1098 = vld [vmem:[#allocation4 + $0xcc8] sm:$0xff]
    %v1099 = vld [vmem:[#allocation4 + $0xcd0] sm:$0xff]
    %v1100 = vld [vmem:[#allocation4 + $0xcd8] sm:$0xff]
    %v1101 = vld [vmem:[#allocation4 + $0xce0] sm:$0xff]
    %v1102 = vld [vmem:[#allocation4 + $0xce8] sm:$0xff]
    %v1103 = vld [vmem:[#allocation4 + $0xcf0] sm:$0xff]
    %v1104 = vld [vmem:[#allocation4 + $0xcf8] sm:$0xff]
    %v1105 = vld [vmem:[#allocation4 + $0xd00] sm:$0xff]
    %v1106 = vld [vmem:[#allocation4 + $0xd08] sm:$0xff]
    %v1107 = vld [vmem:[#allocation4 + $0xd10] sm:$0xff]
    %v1108 = vld [vmem:[#allocation4 + $0xd18] sm:$0xff]
    %v1109 = vld [vmem:[#allocation4 + $0xd20] sm:$0xff]
    %v1110 = vld [vmem:[#allocation4 + $0xd28] sm:$0xff]
    %v1111 = vld [vmem:[#allocation4 + $0xd30] sm:$0xff]
    %v1112 = vld [vmem:[#allocation4 + $0xd38] sm:$0xff]
    %v1113 = vld [vmem:[#allocation4 + $0xd40] sm:$0xff]
    %v1114 = vld [vmem:[#allocation4 + $0xd48] sm:$0xff]
    %v1115 = vld [vmem:[#allocation4 + $0xd50] sm:$0xff]
    %v1116 = vld [vmem:[#allocation4 + $0xd58] sm:$0xff]
    %v1117 = vld [vmem:[#allocation4 + $0xd60] sm:$0xff]
    %v1118 = vld [vmem:[#allocation4 + $0xd68] sm:$0xff]
    %v1119 = vld [vmem:[#allocation4 + $0xd70] sm:$0xff]
    %v1120 = vld [vmem:[#allocation4 + $0xd78] sm:$0xff]
    %v1121 = vld [vmem:[#allocation4 + $0xd80] sm:$0xff]
    %v1122 = vld [vmem:[#allocation4 + $0xd88] sm:$0xff]
    %v1123 = vld [vmem:[#allocation4 + $0xd90] sm:$0xff]
    %v1124 = vld [vmem:[#allocation4 + $0xd98] sm:$0xff]
    %v1125 = vld [vmem:[#allocation4 + $0xda0] sm:$0xff]
    %v1126 = vld [vmem:[#allocation4 + $0xda8] sm:$0xff]
    %v1127 = vld [vmem:[#allocation4 + $0xdb0] sm:$0xff]
    %v1128 = vld [vmem:[#allocation4 + $0xdb8] sm:$0xff]
    %v1129 = vld [vmem:[#allocation4 + $0xdc0] sm:$0xff]
    %v1130 = vld [vmem:[#allocation4 + $0xdc8] sm:$0xff]
    %v1131 = vld [vmem:[#allocation4 + $0xdd0] sm:$0xff]
    %v1132 = vld [vmem:[#allocation4 + $0xdd8] sm:$0xff]
    %v1133 = vld [vmem:[#allocation4 + $0xde0] sm:$0xff]
    %v1134 = vld [vmem:[#allocation4 + $0xde8] sm:$0xff]
    %v1135 = vld [vmem:[#allocation4 + $0xdf0] sm:$0xff]
    %v1136 = vld [vmem:[#allocation4 + $0xdf8] sm:$0xff]
    %v1137 = vld [vmem:[#allocation4 + $0xe00] sm:$0xff]
    %v1138 = vld [vmem:[#allocation4 + $0xe08] sm:$0xff]
    %v1139 = vld [vmem:[#allocation4 + $0xe10] sm:$0xff]
    %v1140 = vld [vmem:[#allocation4 + $0xe18] sm:$0xff]
    %v1141 = vld [vmem:[#allocation4 + $0xe20] sm:$0xff]
    %v1142 = vld [vmem:[#allocation4 + $0xe28] sm:$0xff]
    %v1143 = vld [vmem:[#allocation4 + $0xe30] sm:$0xff]
    %v1144 = vld [vmem:[#allocation4 + $0xe38] sm:$0xff]
    %v1145 = vld [vmem:[#allocation4 + $0xe40] sm:$0xff]
    %v1146 = vld [vmem:[#allocation4 + $0xe48] sm:$0xff]
    %v1147 = vld [vmem:[#allocation4 + $0xe50] sm:$0xff]
    %v1148 = vld [vmem:[#allocation4 + $0xe58] sm:$0xff]
    %v1149 = vld [vmem:[#allocation4 + $0xe60] sm:$0xff]
    %v1150 = vld [vmem:[#allocation4 + $0xe68] sm:$0xff]
    %v1151 = vld [vmem:[#allocation4 + $0xe70] sm:$0xff]
    %v1152 = vld [vmem:[#allocation4 + $0xe78] sm:$0xff]
    %v1153 = vld [vmem:[#allocation4 + $0xe80] sm:$0xff]
    %v1154 = vld [vmem:[#allocation4 + $0xe88] sm:$0xff]
    %v1155 = vld [vmem:[#allocation4 + $0xe90] sm:$0xff]
    %v1156 = vld [vmem:[#allocation4 + $0xe98] sm:$0xff]
    %v1157 = vld [vmem:[#allocation4 + $0xea0] sm:$0xff]
    %v1158 = vld [vmem:[#allocation4 + $0xea8] sm:$0xff]
    %v1159 = vld [vmem:[#allocation4 + $0xeb0] sm:$0xff]
    %v1160 = vld [vmem:[#allocation4 + $0xeb8] sm:$0xff]
    %v1161 = vld [vmem:[#allocation4 + $0xec0] sm:$0xff]
    %v1162 = vld [vmem:[#allocation4 + $0xec8] sm:$0xff]
    %v1163 = vld [vmem:[#allocation4 + $0xed0] sm:$0xff]
    %v1164 = vld [vmem:[#allocation4 + $0xed8] sm:$0xff]
    %v1165 = vld [vmem:[#allocation4 + $0xee0] sm:$0xff]
    %v1166 = vld [vmem:[#allocation4 + $0xee8] sm:$0xff]
    %v1167 = vld [vmem:[#allocation4 + $0xef0] sm:$0xff]
    %v1168 = vld [vmem:[#allocation4 + $0xef8] sm:$0xff]
    %v1169 = vld [vmem:[#allocation4 + $0xf00] sm:$0xff]
    %v1170 = vld [vmem:[#allocation4 + $0xf08] sm:$0xff]
    %v1171 = vld [vmem:[#allocation4 + $0xf10] sm:$0xff]
    %v1172 = vld [vmem:[#allocation4 + $0xf18] sm:$0xff]
    %v1173 = vld [vmem:[#allocation4 + $0xf20] sm:$0xff]
    %v1174 = vld [vmem:[#allocation4 + $0xf28] sm:$0xff]
    %v1175 = vld [vmem:[#allocation4 + $0xf30] sm:$0xff]
    %v1176 = vld [vmem:[#allocation4 + $0xf38] sm:$0xff]
    %v1177 = vld [vmem:[#allocation4 + $0xf40] sm:$0xff]
    %v1178 = vld [vmem:[#allocation4 + $0xf48] sm:$0xff]
    %v1179 = vld [vmem:[#allocation4 + $0xf50] sm:$0xff]
    %v1180 = vld [vmem:[#allocation4 + $0xf58] sm:$0xff]
    %v1181 = vld [vmem:[#allocation4 + $0xf60] sm:$0xff]
    %v1182 = vld [vmem:[#allocation4 + $0xf68] sm:$0xff]
    %v1183 = vld [vmem:[#allocation4 + $0xf70] sm:$0xff]
    %v1184 = vld [vmem:[#allocation4 + $0xf78] sm:$0xff]
    %v1185 = vld [vmem:[#allocation4 + $0xf80] sm:$0xff]
    %v1186 = vld [vmem:[#allocation4 + $0xf88] sm:$0xff]
    %v1187 = vld [vmem:[#allocation4 + $0xf90] sm:$0xff]
    %v1188 = vld [vmem:[#allocation4 + $0xf98] sm:$0xff]
    %v1189 = vld [vmem:[#allocation4 + $0xfa0] sm:$0xff]
    %v1190 = vld [vmem:[#allocation4 + $0xfa8] sm:$0xff]
    %v1191 = vld [vmem:[#allocation4 + $0xfb0] sm:$0xff]
    %v1192 = vld [vmem:[#allocation4 + $0xfb8] sm:$0xff]
    %v1193 = vld [vmem:[#allocation4 + $0xfc0] sm:$0xff]
    %v1194 = vld [vmem:[#allocation4 + $0xfc8] sm:$0xff]
    %v1195 = vld [vmem:[#allocation4 + $0xfd0] sm:$0xff]
    %v1196 = vld [vmem:[#allocation4 + $0xfd8] sm:$0xff]
    %v1197 = vld [vmem:[#allocation4 + $0xfe0] sm:$0xff]
    %v1198 = vld [vmem:[#allocation4 + $0xfe8] sm:$0xff]
    %v1199 = vld [vmem:[#allocation4 + $0xff0] sm:$0xff]
    %v1200 = vld [vmem:[#allocation4 + $0xff8] sm:$0xff]
    %v1201 = vld [vmem:[#allocation4 + $0x1000] sm:$0xff]
    %v1202 = vld [vmem:[#allocation4 + $0x1008] sm:$0xff]
    %v1203 = vld [vmem:[#allocation4 + $0x1010] sm:$0xff]
    %v1204 = vld [vmem:[#allocation4 + $0x1018] sm:$0xff]
    %v1205 = vld [vmem:[#allocation4 + $0x1020] sm:$0xff]
    %v1206 = vld [vmem:[#allocation4 + $0x1028] sm:$0xff]
    %v1207 = vld [vmem:[#allocation4 + $0x1030] sm:$0xff]
    %v1208 = vld [vmem:[#allocation4 + $0x1038] sm:$0xff]
    %v1209 = vld [vmem:[#allocation4 + $0x1040] sm:$0xff]
    %v1210 = vld [vmem:[#allocation4 + $0x1048] sm:$0xff]
    %v1211 = vld [vmem:[#allocation4 + $0x1050] sm:$0xff]
    %v1212 = vld [vmem:[#allocation4 + $0x1058] sm:$0xff]
    %v1213 = vld [vmem:[#allocation4 + $0x1060] sm:$0xff]
    %v1214 = vld [vmem:[#allocation4 + $0x1068] sm:$0xff]
    %v1215 = vld [vmem:[#allocation4 + $0x1070] sm:$0xff]
    %v1216 = vld [vmem:[#allocation4 + $0x1078] sm:$0xff]
    %v1217 = vld [vmem:[#allocation4 + $0x1080] sm:$0xff]
    %v1218 = vld [vmem:[#allocation4 + $0x1088] sm:$0xff]
    %v1219 = vld [vmem:[#allocation4 + $0x1090] sm:$0xff]
    %v1220 = vld [vmem:[#allocation4 + $0x1098] sm:$0xff]
    %v1221 = vld [vmem:[#allocation4 + $0x10a0] sm:$0xff]
    %v1222 = vld [vmem:[#allocation4 + $0x10a8] sm:$0xff]
    %v1223 = vld [vmem:[#allocation4 + $0x10b0] sm:$0xff]
    %v1224 = vld [vmem:[#allocation4 + $0x10b8] sm:$0xff]
    %v1225 = vld [vmem:[#allocation4 + $0x10c0] sm:$0xff]
    %v1226 = vld [vmem:[#allocation4 + $0x10c8] sm:$0xff]
    %v1227 = vld [vmem:[#allocation4 + $0x10d0] sm:$0xff]
    %v1228 = vld [vmem:[#allocation4 + $0x10d8] sm:$0xff]
    %v1229 = vld [vmem:[#allocation4 + $0x10e0] sm:$0xff]
    %v1230 = vld [vmem:[#allocation4 + $0x10e8] sm:$0xff]
    %v1231 = vld [vmem:[#allocation4 + $0x10f0] sm:$0xff]
    %v1232 = vld [vmem:[#allocation4 + $0x10f8] sm:$0xff]
    %v1233 = vld [vmem:[#allocation4 + $0x1100] sm:$0xff]
    %v1234 = vld [vmem:[#allocation4 + $0x1108] sm:$0xff]
    %v1235 = vld [vmem:[#allocation4 + $0x1110] sm:$0xff]
    %v1236 = vld [vmem:[#allocation4 + $0x1118] sm:$0xff]
    %v1237 = vld [vmem:[#allocation4 + $0x1120] sm:$0xff]
    %v1238 = vld [vmem:[#allocation4 + $0x1128] sm:$0xff]
    %v1239 = vld [vmem:[#allocation4 + $0x1130] sm:$0xff]
    %v1240 = vld [vmem:[#allocation4 + $0x1138] sm:$0xff]
    %v1241 = vld [vmem:[#allocation4 + $0x1140] sm:$0xff]
    %v1242 = vld [vmem:[#allocation4 + $0x1148] sm:$0xff]
    %v1243 = vld [vmem:[#allocation4 + $0x1150] sm:$0xff]
    %v1244 = vld [vmem:[#allocation4 + $0x1158] sm:$0xff]
    %v1245 = vld [vmem:[#allocation4 + $0x1160] sm:$0xff]
    %v1246 = vld [vmem:[#allocation4 + $0x1168] sm:$0xff]
    %v1247 = vld [vmem:[#allocation4 + $0x1170] sm:$0xff]
    %v1248 = vld [vmem:[#allocation4 + $0x1178] sm:$0xff]
    %v1249 = vld [vmem:[#allocation4 + $0x1180] sm:$0xff]
    %v1250 = vld [vmem:[#allocation4 + $0x1188] sm:$0xff]
    %v1251 = vld [vmem:[#allocation4 + $0x1190] sm:$0xff]
    %v1252 = vld [vmem:[#allocation4 + $0x1198] sm:$0xff]
    %v1253 = vld [vmem:[#allocation4 + $0x11a0] sm:$0xff]
    %v1254 = vld [vmem:[#allocation4 + $0x11a8] sm:$0xff]
    %v1255 = vld [vmem:[#allocation4 + $0x11b0] sm:$0xff]
    %v1256 = vld [vmem:[#allocation4 + $0x11b8] sm:$0xff]
    %v1257 = vld [vmem:[#allocation4 + $0x11c0] sm:$0xff]
    %v1258 = vld [vmem:[#allocation4 + $0x11c8] sm:$0xff]
    %v1259 = vld [vmem:[#allocation4 + $0x11d0] sm:$0xff]
    %v1260 = vld [vmem:[#allocation4 + $0x11d8] sm:$0xff]
    %v1261 = vld [vmem:[#allocation4 + $0x11e0] sm:$0xff]
    %v1262 = vld [vmem:[#allocation4 + $0x11e8] sm:$0xff]
    %v1263 = vld [vmem:[#allocation4 + $0x11f0] sm:$0xff]
    %v1264 = vld [vmem:[#allocation4 + $0x11f8] sm:$0xff]
    %v1265 = vld [vmem:[#allocation4 + $0x1200] sm:$0xff]
    %v1266 = vld [vmem:[#allocation4 + $0x1208] sm:$0xff]
    %v1267 = vld [vmem:[#allocation4 + $0x1210] sm:$0xff]
    %v1268 = vld [vmem:[#allocation4 + $0x1218] sm:$0xff]
    %v1269 = vld [vmem:[#allocation4 + $0x1220] sm:$0xff]
    %v1270 = vld [vmem:[#allocation4 + $0x1228] sm:$0xff]
    %v1271 = vld [vmem:[#allocation4 + $0x1230] sm:$0xff]
    %v1272 = vld [vmem:[#allocation4 + $0x1238] sm:$0xff]
    %v1273 = vld [vmem:[#allocation4 + $0x1240] sm:$0xff]
    %v1274 = vld [vmem:[#allocation4 + $0x1248] sm:$0xff]
    %v1275 = vld [vmem:[#allocation4 + $0x1250] sm:$0xff]
    %v1276 = vld [vmem:[#allocation4 + $0x1258] sm:$0xff]
    %v1277 = vld [vmem:[#allocation4 + $0x1260] sm:$0xff]
    %v1278 = vld [vmem:[#allocation4 + $0x1268] sm:$0xff]
    %v1279 = vld [vmem:[#allocation4 + $0x1270] sm:$0xff]
    %v1280 = vld [vmem:[#allocation4 + $0x1278] sm:$0xff]
    %v1281 = vld [vmem:[#allocation4 + $0x1280] sm:$0xff]
    %v1282 = vld [vmem:[#allocation4 + $0x1288] sm:$0xff]
    %v1283 = vld [vmem:[#allocation4 + $0x1290] sm:$0xff]
    %v1284 = vld [vmem:[#allocation4 + $0x1298] sm:$0xff]
    %v1285 = vld [vmem:[#allocation4 + $0x12a0] sm:$0xff]
    %v1286 = vld [vmem:[#allocation4 + $0x12a8] sm:$0xff]
    %v1287 = vld [vmem:[#allocation4 + $0x12b0] sm:$0xff]
    %v1288 = vld [vmem:[#allocation4 + $0x12b8] sm:$0xff]
    %v1289 = vld [vmem:[#allocation4 + $0x12c0] sm:$0xff]
    %v1290 = vld [vmem:[#allocation4 + $0x12c8] sm:$0xff]
    %v1291 = vld [vmem:[#allocation4 + $0x12d0] sm:$0xff]
    %v1292 = vld [vmem:[#allocation4 + $0x12d8] sm:$0xff]
    %v1293 = vld [vmem:[#allocation4 + $0x12e0] sm:$0xff]
    %v1294 = vld [vmem:[#allocation4 + $0x12e8] sm:$0xff]
    %v1295 = vld [vmem:[#allocation4 + $0x12f0] sm:$0xff]
    %v1296 = vld [vmem:[#allocation4 + $0x12f8] sm:$0xff]
    %v1297 = vld [vmem:[#allocation4 + $0x1300] sm:$0xff]
    %v1298 = vld [vmem:[#allocation4 + $0x1308] sm:$0xff]
    %v1299 = vld [vmem:[#allocation4 + $0x1310] sm:$0xff]
    %v1300 = vld [vmem:[#allocation4 + $0x1318] sm:$0xff]
    %v1301 = vld [vmem:[#allocation4 + $0x1320] sm:$0xff]
    %v1302 = vld [vmem:[#allocation4 + $0x1328] sm:$0xff]
    %v1303 = vld [vmem:[#allocation4 + $0x1330] sm:$0xff]
    %v1304 = vld [vmem:[#allocation4 + $0x1338] sm:$0xff]
    %v1305 = vld [vmem:[#allocation4 + $0x1340] sm:$0xff]
    %v1306 = vld [vmem:[#allocation4 + $0x1348] sm:$0xff]
    %v1307 = vld [vmem:[#allocation4 + $0x1350] sm:$0xff]
    %v1308 = vld [vmem:[#allocation4 + $0x1358] sm:$0xff]
    %v1309 = vld [vmem:[#allocation4 + $0x1360] sm:$0xff]
    %v1310 = vld [vmem:[#allocation4 + $0x1368] sm:$0xff]
    %v1311 = vld [vmem:[#allocation4 + $0x1370] sm:$0xff]
    %v1312 = vld [vmem:[#allocation4 + $0x1378] sm:$0xff]
    %v1313 = vld [vmem:[#allocation4 + $0x1380] sm:$0xff]
    %v1314 = vld [vmem:[#allocation4 + $0x1388] sm:$0xff]
    %v1315 = vld [vmem:[#allocation4 + $0x1390] sm:$0xff]
    %v1316 = vld [vmem:[#allocation4 + $0x1398] sm:$0xff]
    %v1317 = vld [vmem:[#allocation4 + $0x13a0] sm:$0xff]
    %v1318 = vld [vmem:[#allocation4 + $0x13a8] sm:$0xff]
    %v1319 = vld [vmem:[#allocation4 + $0x13b0] sm:$0xff]
    %v1320 = vld [vmem:[#allocation4 + $0x13b8] sm:$0xff]
    %v1321 = vld [vmem:[#allocation4 + $0x13c0] sm:$0xff]
    %v1322 = vld [vmem:[#allocation4 + $0x13c8] sm:$0xff]
    %v1323 = vld [vmem:[#allocation4 + $0x13d0] sm:$0xff]
    %v1324 = vld [vmem:[#allocation4 + $0x13d8] sm:$0xff]
    %v1325 = vld [vmem:[#allocation4 + $0x13e0] sm:$0xff]
    %v1326 = vld [vmem:[#allocation4 + $0x13e8] sm:$0xff]
    %v1327 = vld [vmem:[#allocation4 + $0x13f0] sm:$0xff]
    %v1328 = vld [vmem:[#allocation4 + $0x13f8] sm:$0xff]
    %v1329 = vld [vmem:[#allocation4 + $0x1400] sm:$0xff]
    %v1330 = vld [vmem:[#allocation4 + $0x1408] sm:$0xff]
    %v1331 = vld [vmem:[#allocation4 + $0x1410] sm:$0xff]
    %v1332 = vld [vmem:[#allocation4 + $0x1418] sm:$0xff]
    %v1333 = vld [vmem:[#allocation4 + $0x1420] sm:$0xff]
    %v1334 = vld [vmem:[#allocation4 + $0x1428] sm:$0xff]
    %v1335 = vld [vmem:[#allocation4 + $0x1430] sm:$0xff]
    %v1336 = vld [vmem:[#allocation4 + $0x1438] sm:$0xff]
    %v1337 = vld [vmem:[#allocation4 + $0x1440] sm:$0xff]
    %v1338 = vld [vmem:[#allocation4 + $0x1448] sm:$0xff]
    %v1339 = vld [vmem:[#allocation4 + $0x1450] sm:$0xff]
    %v1340 = vld [vmem:[#allocation4 + $0x1458] sm:$0xff]
    %v1341 = vld [vmem:[#allocation4 + $0x1460] sm:$0xff]
    %v1342 = vld [vmem:[#allocation4 + $0x1468] sm:$0xff]
    %v1343 = vld [vmem:[#allocation4 + $0x1470] sm:$0xff]
    %v1344 = vld [vmem:[#allocation4 + $0x1478] sm:$0xff]
    %v1345 = vld [vmem:[#allocation4 + $0x1480] sm:$0xff]
    %v1346 = vld [vmem:[#allocation4 + $0x1488] sm:$0xff]
    %v1347 = vld [vmem:[#allocation4 + $0x1490] sm:$0xff]
    %v1348 = vld [vmem:[#allocation4 + $0x1498] sm:$0xff]
    %v1349 = vld [vmem:[#allocation4 + $0x14a0] sm:$0xff]
    %v1350 = vld [vmem:[#allocation4 + $0x14a8] sm:$0xff]
    %v1351 = vld [vmem:[#allocation4 + $0x14b0] sm:$0xff]
    %v1352 = vld [vmem:[#allocation4 + $0x14b8] sm:$0xff]
    %v1353 = vld [vmem:[#allocation4 + $0x14c0] sm:$0xff]
    %v1354 = vld [vmem:[#allocation4 + $0x14c8] sm:$0xff]
    %v1355 = vld [vmem:[#allocation4 + $0x14d0] sm:$0xff]
    %v1356 = vld [vmem:[#allocation4 + $0x14d8] sm:$0xff]
    %v1357 = vld [vmem:[#allocation4 + $0x14e0] sm:$0xff]
    %v1358 = vld [vmem:[#allocation4 + $0x14e8] sm:$0xff]
    %v1359 = vld [vmem:[#allocation4 + $0x14f0] sm:$0xff]
    %v1360 = vld [vmem:[#allocation4 + $0x14f8] sm:$0xff]
    %v1361 = vld [vmem:[#allocation4 + $0x1500] sm:$0xff]
    %v1362 = vld [vmem:[#allocation4 + $0x1508] sm:$0xff]
    %v1363 = vld [vmem:[#allocation4 + $0x1510] sm:$0xff]
    %v1364 = vld [vmem:[#allocation4 + $0x1518] sm:$0xff]
    %v1365 = vld [vmem:[#allocation4 + $0x1520] sm:$0xff]
    %v1366 = vld [vmem:[#allocation4 + $0x1528] sm:$0xff]
    %v1367 = vld [vmem:[#allocation4 + $0x1530] sm:$0xff]
    %v1368 = vld [vmem:[#allocation4 + $0x1538] sm:$0xff]
    %v1369 = vld [vmem:[#allocation4 + $0x1540] sm:$0xff]
    %v1370 = vld [vmem:[#allocation4 + $0x1548] sm:$0xff]
    %v1371 = vld [vmem:[#allocation4 + $0x1550] sm:$0xff]
    %v1372 = vld [vmem:[#allocation4 + $0x1558] sm:$0xff]
    %v1373 = vld [vmem:[#allocation4 + $0x1560] sm:$0xff]
    %v1374 = vld [vmem:[#allocation4 + $0x1568] sm:$0xff]
    %v1375 = vld [vmem:[#allocation4 + $0x1570] sm:$0xff]
    %v1376 = vld [vmem:[#allocation4 + $0x1578] sm:$0xff]
    %v1377 = vld [vmem:[#allocation4 + $0x1580] sm:$0xff]
    %v1378 = vld [vmem:[#allocation4 + $0x1588] sm:$0xff]
    %v1379 = vld [vmem:[#allocation4 + $0x1590] sm:$0xff]
    %v1380 = vld [vmem:[#allocation4 + $0x1598] sm:$0xff]
    %v1381 = vld [vmem:[#allocation4 + $0x15a0] sm:$0xff]
    %v1382 = vld [vmem:[#allocation4 + $0x15a8] sm:$0xff]
    %v1383 = vld [vmem:[#allocation4 + $0x15b0] sm:$0xff]
    %v1384 = vld [vmem:[#allocation4 + $0x15b8] sm:$0xff]
    %v1385 = vld [vmem:[#allocation4 + $0x15c0] sm:$0xff]
    %v1386 = vld [vmem:[#allocation4 + $0x15c8] sm:$0xff]
    %v1387 = vld [vmem:[#allocation4 + $0x15d0] sm:$0xff]
    %v1388 = vld [vmem:[#allocation4 + $0x15d8] sm:$0xff]
    %v1389 = vld [vmem:[#allocation4 + $0x15e0] sm:$0xff]
    %v1390 = vld [vmem:[#allocation4 + $0x15e8] sm:$0xff]
    %v1391 = vld [vmem:[#allocation4 + $0x15f0] sm:$0xff]
    %v1392 = vld [vmem:[#allocation4 + $0x15f8] sm:$0xff]
    %v1393 = vld [vmem:[#allocation4 + $0x1600] sm:$0xff]
    %v1394 = vld [vmem:[#allocation4 + $0x1608] sm:$0xff]
    %v1395 = vld [vmem:[#allocation4 + $0x1610] sm:$0xff]
    %v1396 = vld [vmem:[#allocation4 + $0x1618] sm:$0xff]
    %v1397 = vld [vmem:[#allocation4 + $0x1620] sm:$0xff]
    %v1398 = vld [vmem:[#allocation4 + $0x1628] sm:$0xff]
    %v1399 = vld [vmem:[#allocation4 + $0x1630] sm:$0xff]
    %v1400 = vld [vmem:[#allocation4 + $0x1638] sm:$0xff]
    %v1401 = vld [vmem:[#allocation4 + $0x1640] sm:$0xff]
    %v1402 = vld [vmem:[#allocation4 + $0x1648] sm:$0xff]
    %v1403 = vld [vmem:[#allocation4 + $0x1650] sm:$0xff]
    %v1404 = vld [vmem:[#allocation4 + $0x1658] sm:$0xff]
    %v1405 = vld [vmem:[#allocation4 + $0x1660] sm:$0xff]
    %v1406 = vld [vmem:[#allocation4 + $0x1668] sm:$0xff]
    %v1407 = vld [vmem:[#allocation4 + $0x1670] sm:$0xff]
    %v1408 = vld [vmem:[#allocation4 + $0x1678] sm:$0xff]
    %v1409 = vld [vmem:[#allocation4 + $0x1680] sm:$0xff]
    %v1410 = vld [vmem:[#allocation4 + $0x1688] sm:$0xff]
    %v1411 = vld [vmem:[#allocation4 + $0x1690] sm:$0xff]
    %v1412 = vld [vmem:[#allocation4 + $0x1698] sm:$0xff]
    %v1413 = vld [vmem:[#allocation4 + $0x16a0] sm:$0xff]
    %v1414 = vld [vmem:[#allocation4 + $0x16a8] sm:$0xff]
    %v1415 = vld [vmem:[#allocation4 + $0x16b0] sm:$0xff]
    %v1416 = vld [vmem:[#allocation4 + $0x16b8] sm:$0xff]
    %v1417 = vld [vmem:[#allocation4 + $0x16c0] sm:$0xff]
    %v1418 = vld [vmem:[#allocation4 + $0x16c8] sm:$0xff]
    %v1419 = vld [vmem:[#allocation4 + $0x16d0] sm:$0xff]
    %v1420 = vld [vmem:[#allocation4 + $0x16d8] sm:$0xff]
    %v1421 = vld [vmem:[#allocation4 + $0x16e0] sm:$0xff]
    %v1422 = vld [vmem:[#allocation4 + $0x16e8] sm:$0xff]
    %v1423 = vld [vmem:[#allocation4 + $0x16f0] sm:$0xff]
    %v1424 = vld [vmem:[#allocation4 + $0x16f8] sm:$0xff]
    %v1425 = vld [vmem:[#allocation4 + $0x1700] sm:$0xff]
    %v1426 = vld [vmem:[#allocation4 + $0x1708] sm:$0xff]
    %v1427 = vld [vmem:[#allocation4 + $0x1710] sm:$0xff]
    %v1428 = vld [vmem:[#allocation4 + $0x1718] sm:$0xff]
    %v1429 = vld [vmem:[#allocation4 + $0x1720] sm:$0xff]
    %v1430 = vld [vmem:[#allocation4 + $0x1728] sm:$0xff]
    %v1431 = vld [vmem:[#allocation4 + $0x1730] sm:$0xff]
    %v1432 = vld [vmem:[#allocation4 + $0x1738] sm:$0xff]
    %v1433 = vld [vmem:[#allocation4 + $0x1740] sm:$0xff]
    %v1434 = vld [vmem:[#allocation4 + $0x1748] sm:$0xff]
    %v1435 = vld [vmem:[#allocation4 + $0x1750] sm:$0xff]
    %v1436 = vld [vmem:[#allocation4 + $0x1758] sm:$0xff]
    %v1437 = vld [vmem:[#allocation4 + $0x1760] sm:$0xff]
    %v1438 = vld [vmem:[#allocation4 + $0x1768] sm:$0xff]
    %v1439 = vld [vmem:[#allocation4 + $0x1770] sm:$0xff]
    %v1440 = vld [vmem:[#allocation4 + $0x1778] sm:$0xff]
    %v1441 = vld [vmem:[#allocation4 + $0x1780] sm:$0xff]
    %v1442 = vld [vmem:[#allocation4 + $0x1788] sm:$0xff]
    %v1443 = vld [vmem:[#allocation4 + $0x1790] sm:$0xff]
    %v1444 = vld [vmem:[#allocation4 + $0x1798] sm:$0xff]
    %v1445 = vld [vmem:[#allocation4 + $0x17a0] sm:$0xff]
    %v1446 = vld [vmem:[#allocation4 + $0x17a8] sm:$0xff]
    %v1447 = vld [vmem:[#allocation4 + $0x17b0] sm:$0xff]
    %v1448 = vld [vmem:[#allocation4 + $0x17b8] sm:$0xff]
    %v1449 = vld [vmem:[#allocation4 + $0x17c0] sm:$0xff]
    %v1450 = vld [vmem:[#allocation4 + $0x17c8] sm:$0xff]
    %v1451 = vld [vmem:[#allocation4 + $0x17d0] sm:$0xff]
    %v1452 = vld [vmem:[#allocation4 + $0x17d8] sm:$0xff]
    %v1453 = vld [vmem:[#allocation4 + $0x17e0] sm:$0xff]
    %v1454 = vld [vmem:[#allocation4 + $0x17e8] sm:$0xff]
    %v1455 = vld [vmem:[#allocation4 + $0x17f0] sm:$0xff]
    %v1456 = vld [vmem:[#allocation4 + $0x17f8] sm:$0xff]
    %v1457 = vld [vmem:[#allocation4 + $0x1800] sm:$0xff]
    %v1458 = vld [vmem:[#allocation4 + $0x1808] sm:$0xff]
    %v1459 = vld [vmem:[#allocation4 + $0x1810] sm:$0xff]
    %v1460 = vld [vmem:[#allocation4 + $0x1818] sm:$0xff]
    %v1461 = vld [vmem:[#allocation4 + $0x1820] sm:$0xff]
    %v1462 = vld [vmem:[#allocation4 + $0x1828] sm:$0xff]
    %v1463 = vld [vmem:[#allocation4 + $0x1830] sm:$0xff]
    %v1464 = vld [vmem:[#allocation4 + $0x1838] sm:$0xff]
    %v1465 = vld [vmem:[#allocation4 + $0x1840] sm:$0xff]
    %v1466 = vld [vmem:[#allocation4 + $0x1848] sm:$0xff]
    %v1467 = vld [vmem:[#allocation4 + $0x1850] sm:$0xff]
    %v1468 = vld [vmem:[#allocation4 + $0x1858] sm:$0xff]
    %v1469 = vld [vmem:[#allocation4 + $0x1860] sm:$0xff]
    %v1470 = vld [vmem:[#allocation4 + $0x1868] sm:$0xff]
    %v1471 = vld [vmem:[#allocation4 + $0x1870] sm:$0xff]
    %v1472 = vld [vmem:[#allocation4 + $0x1878] sm:$0xff]
    %v1473 = vld [vmem:[#allocation4 + $0x1880] sm:$0xff]
    %v1474 = vld [vmem:[#allocation4 + $0x1888] sm:$0xff]
    %v1475 = vld [vmem:[#allocation4 + $0x1890] sm:$0xff]
    %v1476 = vld [vmem:[#allocation4 + $0x1898] sm:$0xff]
    %v1477 = vld [vmem:[#allocation4 + $0x18a0] sm:$0xff]
    %v1478 = vld [vmem:[#allocation4 + $0x18a8] sm:$0xff]
    %v1479 = vld [vmem:[#allocation4 + $0x18b0] sm:$0xff]
    %v1480 = vld [vmem:[#allocation4 + $0x18b8] sm:$0xff]
    %v1481 = vld [vmem:[#allocation4 + $0x18c0] sm:$0xff]
    %v1482 = vld [vmem:[#allocation4 + $0x18c8] sm:$0xff]
    %v1483 = vld [vmem:[#allocation4 + $0x18d0] sm:$0xff]
    %v1484 = vld [vmem:[#allocation4 + $0x18d8] sm:$0xff]
    %v1485 = vld [vmem:[#allocation4 + $0x18e0] sm:$0xff]
    %v1486 = vld [vmem:[#allocation4 + $0x18e8] sm:$0xff]
    %v1487 = vld [vmem:[#allocation4 + $0x18f0] sm:$0xff]
    %v1488 = vld [vmem:[#allocation4 + $0x18f8] sm:$0xff]
    %v1489 = vld [vmem:[#allocation4 + $0x1900] sm:$0xff]
    %v1490 = vld [vmem:[#allocation4 + $0x1908] sm:$0xff]
    %v1491 = vld [vmem:[#allocation4 + $0x1910] sm:$0xff]
    %v1492 = vld [vmem:[#allocation4 + $0x1918] sm:$0xff]
    %v1493 = vld [vmem:[#allocation4 + $0x1920] sm:$0xff]
    %v1494 = vld [vmem:[#allocation4 + $0x1928] sm:$0xff]
    %v1495 = vld [vmem:[#allocation4 + $0x1930] sm:$0xff]
    %v1496 = vld [vmem:[#allocation4 + $0x1938] sm:$0xff]
    %v1497 = vld [vmem:[#allocation4 + $0x1940] sm:$0xff]
    %v1498 = vld [vmem:[#allocation4 + $0x1948] sm:$0xff]
    %v1499 = vld [vmem:[#allocation4 + $0x1950] sm:$0xff]
    %v1500 = vld [vmem:[#allocation4 + $0x1958] sm:$0xff]
    %v1501 = vld [vmem:[#allocation4 + $0x1960] sm:$0xff]
    %v1502 = vld [vmem:[#allocation4 + $0x1968] sm:$0xff]
    %v1503 = vld [vmem:[#allocation4 + $0x1970] sm:$0xff]
    %v1504 = vld [vmem:[#allocation4 + $0x1978] sm:$0xff]
    %v1505 = vld [vmem:[#allocation4 + $0x1980] sm:$0xff]
    %v1506 = vld [vmem:[#allocation4 + $0x1988] sm:$0xff]
    %v1507 = vld [vmem:[#allocation4 + $0x1990] sm:$0xff]
    %v1508 = vld [vmem:[#allocation4 + $0x1998] sm:$0xff]
    %v1509 = vld [vmem:[#allocation4 + $0x19a0] sm:$0xff]
    %v1510 = vld [vmem:[#allocation4 + $0x19a8] sm:$0xff]
    %v1511 = vld [vmem:[#allocation4 + $0x19b0] sm:$0xff]
    %v1512 = vld [vmem:[#allocation4 + $0x19b8] sm:$0xff]
    %v1513 = vld [vmem:[#allocation4 + $0x19c0] sm:$0xff]
    %v1514 = vld [vmem:[#allocation4 + $0x19c8] sm:$0xff]
    %v1515 = vld [vmem:[#allocation4 + $0x19d0] sm:$0xff]
    %v1516 = vld [vmem:[#allocation4 + $0x19d8] sm:$0xff]
    %v1517 = vld [vmem:[#allocation4 + $0x19e0] sm:$0xff]
    %v1518 = vld [vmem:[#allocation4 + $0x19e8] sm:$0xff]
    %v1519 = vld [vmem:[#allocation4 + $0x19f0] sm:$0xff]
    %v1520 = vld [vmem:[#allocation4 + $0x19f8] sm:$0xff]
    %v1521 = vld [vmem:[#allocation4 + $0x1a00] sm:$0xff]
    %v1522 = vld [vmem:[#allocation4 + $0x1a08] sm:$0xff]
    %v1523 = vld [vmem:[#allocation4 + $0x1a10] sm:$0xff]
    %v1524 = vld [vmem:[#allocation4 + $0x1a18] sm:$0xff]
    %v1525 = vld [vmem:[#allocation4 + $0x1a20] sm:$0xff]
    %v1526 = vld [vmem:[#allocation4 + $0x1a28] sm:$0xff]
    %v1527 = vld [vmem:[#allocation4 + $0x1a30] sm:$0xff]
    %v1528 = vld [vmem:[#allocation4 + $0x1a38] sm:$0xff]
    %v1529 = vld [vmem:[#allocation4 + $0x1a40] sm:$0xff]
    %v1530 = vld [vmem:[#allocation4 + $0x1a48] sm:$0xff]
    %v1531 = vld [vmem:[#allocation4 + $0x1a50] sm:$0xff]
    %v1532 = vld [vmem:[#allocation4 + $0x1a58] sm:$0xff]
    %v1533 = vld [vmem:[#allocation4 + $0x1a60] sm:$0xff]
    %v1534 = vld [vmem:[#allocation4 + $0x1a68] sm:$0xff]
    %v1535 = vld [vmem:[#allocation4 + $0x1a70] sm:$0xff]
    %v1536 = vld [vmem:[#allocation4 + $0x1a78] sm:$0xff]
    %v1537 = vld [vmem:[#allocation4 + $0x1a80] sm:$0xff]
    %v1538 = vld [vmem:[#allocation4 + $0x1a88] sm:$0xff]
    %v1539 = vld [vmem:[#allocation4 + $0x1a90] sm:$0xff]
    %v1540 = vld [vmem:[#allocation4 + $0x1a98] sm:$0xff]
    %v1541 = vld [vmem:[#allocation4 + $0x1aa0] sm:$0xff]
    %v1542 = vld [vmem:[#allocation4 + $0x1aa8] sm:$0xff]
    %v1543 = vld [vmem:[#allocation4 + $0x1ab0] sm:$0xff]
    %v1544 = vld [vmem:[#allocation4 + $0x1ab8] sm:$0xff]
    %v1545 = vld [vmem:[#allocation4 + $0x1ac0] sm:$0xff]
    %v1546 = vld [vmem:[#allocation4 + $0x1ac8] sm:$0xff]
    %v1547 = vld [vmem:[#allocation4 + $0x1ad0] sm:$0xff]
    %v1548 = vld [vmem:[#allocation4 + $0x1ad8] sm:$0xff]
    %v1549 = vld [vmem:[#allocation4 + $0x1ae0] sm:$0xff]
    %v1550 = vld [vmem:[#allocation4 + $0x1ae8] sm:$0xff]
    %v1551 = vld [vmem:[#allocation4 + $0x1af0] sm:$0xff]
    %v1552 = vld [vmem:[#allocation4 + $0x1af8] sm:$0xff]
    %v1553 = vld [vmem:[#allocation4 + $0x1b00] sm:$0xff]
    %v1554 = vld [vmem:[#allocation4 + $0x1b08] sm:$0xff]
    %v1555 = vld [vmem:[#allocation4 + $0x1b10] sm:$0xff]
    %v1556 = vld [vmem:[#allocation4 + $0x1b18] sm:$0xff]
    %v1557 = vld [vmem:[#allocation4 + $0x1b20] sm:$0xff]
    %v1558 = vld [vmem:[#allocation4 + $0x1b28] sm:$0xff]
    %v1559 = vld [vmem:[#allocation4 + $0x1b30] sm:$0xff]
    %v1560 = vld [vmem:[#allocation4 + $0x1b38] sm:$0xff]
    %v1561 = vld [vmem:[#allocation4 + $0x1b40] sm:$0xff]
    %v1562 = vld [vmem:[#allocation4 + $0x1b48] sm:$0xff]
    %v1563 = vld [vmem:[#allocation4 + $0x1b50] sm:$0xff]
    %v1564 = vld [vmem:[#allocation4 + $0x1b58] sm:$0xff]
    %v1565 = vld [vmem:[#allocation4 + $0x1b60] sm:$0xff]
    %v1566 = vld [vmem:[#allocation4 + $0x1b68] sm:$0xff]
    %v1567 = vld [vmem:[#allocation4 + $0x1b70] sm:$0xff]
    %v1568 = vld [vmem:[#allocation4 + $0x1b78] sm:$0xff]
    %v1569 = vld [vmem:[#allocation4 + $0x1b80] sm:$0xff]
    %v1570 = vld [vmem:[#allocation4 + $0x1b88] sm:$0xff]
    %v1571 = vld [vmem:[#allocation4 + $0x1b90] sm:$0xff]
    %v1572 = vld [vmem:[#allocation4 + $0x1b98] sm:$0xff]
    %v1573 = vld [vmem:[#allocation4 + $0x1ba0] sm:$0xff]
    %v1574 = vld [vmem:[#allocation4 + $0x1ba8] sm:$0xff]
    %v1575 = vld [vmem:[#allocation4 + $0x1bb0] sm:$0xff]
    %v1576 = vld [vmem:[#allocation4 + $0x1bb8] sm:$0xff]
    %v1577 = vld [vmem:[#allocation4 + $0x1bc0] sm:$0xff]
    %v1578 = vld [vmem:[#allocation4 + $0x1bc8] sm:$0xff]
    %v1579 = vld [vmem:[#allocation4 + $0x1bd0] sm:$0xff]
    %v1580 = vld [vmem:[#allocation4 + $0x1bd8] sm:$0xff]
    %v1581 = vld [vmem:[#allocation4 + $0x1be0] sm:$0xff]
    %v1582 = vld [vmem:[#allocation4 + $0x1be8] sm:$0xff]
    %v1583 = vld [vmem:[#allocation4 + $0x1bf0] sm:$0xff]
    %v1584 = vld [vmem:[#allocation4 + $0x1bf8] sm:$0xff]
    %v1585 = vld [vmem:[#allocation4 + $0x1c00] sm:$0xff]
    %v1586 = vld [vmem:[#allocation4 + $0x1c08] sm:$0xff]
    %v1587 = vld [vmem:[#allocation4 + $0x1c10] sm:$0xff]
    %v1588 = vld [vmem:[#allocation4 + $0x1c18] sm:$0xff]
    %v1589 = vld [vmem:[#allocation4 + $0x1c20] sm:$0xff]
    %v1590 = vld [vmem:[#allocation4 + $0x1c28] sm:$0xff]
    %v1591 = vld [vmem:[#allocation4 + $0x1c30] sm:$0xff]
    %v1592 = vld [vmem:[#allocation4 + $0x1c38] sm:$0xff]
    %v1593 = vld [vmem:[#allocation4 + $0x1c40] sm:$0xff]
    %v1594 = vld [vmem:[#allocation4 + $0x1c48] sm:$0xff]
    %v1595 = vld [vmem:[#allocation4 + $0x1c50] sm:$0xff]
    %v1596 = vld [vmem:[#allocation4 + $0x1c58] sm:$0xff]
    %v1597 = vld [vmem:[#allocation4 + $0x1c60] sm:$0xff]
    %v1598 = vld [vmem:[#allocation4 + $0x1c68] sm:$0xff]
    %v1599 = vld [vmem:[#allocation4 + $0x1c70] sm:$0xff]
    %v1600 = vld [vmem:[#allocation4 + $0x1c78] sm:$0xff]
    %v1601 = vld [vmem:[#allocation4 + $0x1c80] sm:$0xff]
    %v1602 = vld [vmem:[#allocation4 + $0x1c88] sm:$0xff]
    %v1603 = vld [vmem:[#allocation4 + $0x1c90] sm:$0xff]
    %v1604 = vld [vmem:[#allocation4 + $0x1c98] sm:$0xff]
    %v1605 = vld [vmem:[#allocation4 + $0x1ca0] sm:$0xff]
    %v1606 = vld [vmem:[#allocation4 + $0x1ca8] sm:$0xff]
    %v1607 = vld [vmem:[#allocation4 + $0x1cb0] sm:$0xff]
    %v1608 = vld [vmem:[#allocation4 + $0x1cb8] sm:$0xff]
    %v1609 = vld [vmem:[#allocation4 + $0x1cc0] sm:$0xff]
    %v1610 = vld [vmem:[#allocation4 + $0x1cc8] sm:$0xff]
    %v1611 = vld [vmem:[#allocation4 + $0x1cd0] sm:$0xff]
    %v1612 = vld [vmem:[#allocation4 + $0x1cd8] sm:$0xff]
    %v1613 = vld [vmem:[#allocation4 + $0x1ce0] sm:$0xff]
    %v1614 = vld [vmem:[#allocation4 + $0x1ce8] sm:$0xff]
    %v1615 = vld [vmem:[#allocation4 + $0x1cf0] sm:$0xff]
    %v1616 = vld [vmem:[#allocation4 + $0x1cf8] sm:$0xff]
    %v1617 = vld [vmem:[#allocation4 + $0x1d00] sm:$0xff]
    %v1618 = vld [vmem:[#allocation4 + $0x1d08] sm:$0xff]
    %v1619 = vld [vmem:[#allocation4 + $0x1d10] sm:$0xff]
    %v1620 = vld [vmem:[#allocation4 + $0x1d18] sm:$0xff]
    %v1621 = vld [vmem:[#allocation4 + $0x1d20] sm:$0xff]
    %v1622 = vld [vmem:[#allocation4 + $0x1d28] sm:$0xff]
    %v1623 = vld [vmem:[#allocation4 + $0x1d30] sm:$0xff]
    %v1624 = vld [vmem:[#allocation4 + $0x1d38] sm:$0xff]
    %v1625 = vld [vmem:[#allocation4 + $0x1d40] sm:$0xff]
    %v1626 = vld [vmem:[#allocation4 + $0x1d48] sm:$0xff]
    %v1627 = vld [vmem:[#allocation4 + $0x1d50] sm:$0xff]
    %v1628 = vld [vmem:[#allocation4 + $0x1d58] sm:$0xff]
    %v1629 = vld [vmem:[#allocation4 + $0x1d60] sm:$0xff]
    %v1630 = vld [vmem:[#allocation4 + $0x1d68] sm:$0xff]
    %v1631 = vld [vmem:[#allocation4 + $0x1d70] sm:$0xff]
    %v1632 = vld [vmem:[#allocation4 + $0x1d78] sm:$0xff]
    %v1633 = vld [vmem:[#allocation4 + $0x1d80] sm:$0xff]
    %v1634 = vld [vmem:[#allocation4 + $0x1d88] sm:$0xff]
    %v1635 = vld [vmem:[#allocation4 + $0x1d90] sm:$0xff]
    %v1636 = vld [vmem:[#allocation4 + $0x1d98] sm:$0xff]
    %v1637 = vld [vmem:[#allocation4 + $0x1da0] sm:$0xff]
    %v1638 = vld [vmem:[#allocation4 + $0x1da8] sm:$0xff]
    %v1639 = vld [vmem:[#allocation4 + $0x1db0] sm:$0xff]
    %v1640 = vld [vmem:[#allocation4 + $0x1db8] sm:$0xff]
    %v1641 = vld [vmem:[#allocation4 + $0x1dc0] sm:$0xff]
    %v1642 = vld [vmem:[#allocation4 + $0x1dc8] sm:$0xff]
    %v1643 = vld [vmem:[#allocation4 + $0x1dd0] sm:$0xff]
    %v1644 = vld [vmem:[#allocation4 + $0x1dd8] sm:$0xff]
    %v1645 = vld [vmem:[#allocation4 + $0x1de0] sm:$0xff]
    %v1646 = vld [vmem:[#allocation4 + $0x1de8] sm:$0xff]
    %v1647 = vld [vmem:[#allocation4 + $0x1df0] sm:$0xff]
    %v1648 = vld [vmem:[#allocation4 + $0x1df8] sm:$0xff]
    %v1649 = vld [vmem:[#allocation4 + $0x1e00] sm:$0xff]
    %v1650 = vld [vmem:[#allocation4 + $0x1e08] sm:$0xff]
    %v1651 = vld [vmem:[#allocation4 + $0x1e10] sm:$0xff]
    %v1652 = vld [vmem:[#allocation4 + $0x1e18] sm:$0xff]
    %v1653 = vld [vmem:[#allocation4 + $0x1e20] sm:$0xff]
    %v1654 = vld [vmem:[#allocation4 + $0x1e28] sm:$0xff]
    %v1655 = vld [vmem:[#allocation4 + $0x1e30] sm:$0xff]
    %v1656 = vld [vmem:[#allocation4 + $0x1e38] sm:$0xff]
    %v1657 = vld [vmem:[#allocation4 + $0x1e40] sm:$0xff]
    %v1658 = vld [vmem:[#allocation4 + $0x1e48] sm:$0xff]
    %v1659 = vld [vmem:[#allocation4 + $0x1e50] sm:$0xff]
    %v1660 = vld [vmem:[#allocation4 + $0x1e58] sm:$0xff]
    %v1661 = vld [vmem:[#allocation4 + $0x1e60] sm:$0xff]
    %v1662 = vld [vmem:[#allocation4 + $0x1e68] sm:$0xff]
    %v1663 = vld [vmem:[#allocation4 + $0x1e70] sm:$0xff]
    %v1664 = vld [vmem:[#allocation4 + $0x1e78] sm:$0xff]
    %v1665 = vld [vmem:[#allocation4 + $0x1e80] sm:$0xff]
    %v1666 = vld [vmem:[#allocation4 + $0x1e88] sm:$0xff]
    %v1667 = vld [vmem:[#allocation4 + $0x1e90] sm:$0xff]
    %v1668 = vld [vmem:[#allocation4 + $0x1e98] sm:$0xff]
    %v1669 = vld [vmem:[#allocation4 + $0x1ea0] sm:$0xff]
    %v1670 = vld [vmem:[#allocation4 + $0x1ea8] sm:$0xff]
    %v1671 = vld [vmem:[#allocation4 + $0x1eb0] sm:$0xff]
    %v1672 = vld [vmem:[#allocation4 + $0x1eb8] sm:$0xff]
    %v1673 = vld [vmem:[#allocation4 + $0x1ec0] sm:$0xff]
    %v1674 = vld [vmem:[#allocation4 + $0x1ec8] sm:$0xff]
    %v1675 = vld [vmem:[#allocation4 + $0x1ed0] sm:$0xff]
    %v1676 = vld [vmem:[#allocation4 + $0x1ed8] sm:$0xff]
    %v1677 = vld [vmem:[#allocation4 + $0x1ee0] sm:$0xff]
    %v1678 = vld [vmem:[#allocation4 + $0x1ee8] sm:$0xff]
    %v1679 = vld [vmem:[#allocation4 + $0x1ef0] sm:$0xff]
    %v1680 = vld [vmem:[#allocation4 + $0x1ef8] sm:$0xff]
    %v1681 = vld [vmem:[#allocation4 + $0x1f00] sm:$0xff]
    %v1682 = vld [vmem:[#allocation4 + $0x1f08] sm:$0xff]
    %v1683 = vld [vmem:[#allocation4 + $0x1f10] sm:$0xff]
    %v1684 = vld [vmem:[#allocation4 + $0x1f18] sm:$0xff]
    %v1685 = vld [vmem:[#allocation4 + $0x1f20] sm:$0xff]
    %v1686 = vld [vmem:[#allocation4 + $0x1f28] sm:$0xff]
    %v1687 = vld [vmem:[#allocation4 + $0x1f30] sm:$0xff]
    %v1688 = vld [vmem:[#allocation4 + $0x1f38] sm:$0xff]
    %v1689 = vld [vmem:[#allocation4 + $0x1f40] sm:$0xff]
    %v1690 = vld [vmem:[#allocation4 + $0x1f48] sm:$0xff]
    %v1691 = vld [vmem:[#allocation4 + $0x1f50] sm:$0xff]
    %v1692 = vld [vmem:[#allocation4 + $0x1f58] sm:$0xff]
    %v1693 = vld [vmem:[#allocation4 + $0x1f60] sm:$0xff]
    %v1694 = vld [vmem:[#allocation4 + $0x1f68] sm:$0xff]
    %v1695 = vld [vmem:[#allocation4 + $0x1f70] sm:$0xff]
    %v1696 = vld [vmem:[#allocation4 + $0x1f78] sm:$0xff]
    %v1697 = vld [vmem:[#allocation4 + $0x1f80] sm:$0xff]
    %v1698 = vld [vmem:[#allocation4 + $0x1f88] sm:$0xff]
    %v1699 = vld [vmem:[#allocation4 + $0x1f90] sm:$0xff]
    %v1700 = vld [vmem:[#allocation4 + $0x1f98] sm:$0xff]
    %v1701 = vld [vmem:[#allocation4 + $0x1fa0] sm:$0xff]
    %v1702 = vld [vmem:[#allocation4 + $0x1fa8] sm:$0xff]
    %v1703 = vld [vmem:[#allocation4 + $0x1fb0] sm:$0xff]
    %v1704 = vld [vmem:[#allocation4 + $0x1fb8] sm:$0xff]
    %v1705 = vld [vmem:[#allocation4 + $0x1fc0] sm:$0xff]
    %v1706 = vld [vmem:[#allocation4 + $0x1fc8] sm:$0xff]
    %v1707 = vld [vmem:[#allocation4 + $0x1fd0] sm:$0xff]
    %v1708 = vld [vmem:[#allocation4 + $0x1fd8] sm:$0xff]
    %v1709 = vld [vmem:[#allocation4 + $0x1fe0] sm:$0xff]
    %v1710 = vld [vmem:[#allocation4 + $0x1fe8] sm:$0xff]
    %v1711 = vld [vmem:[#allocation4 + $0x1ff0] sm:$0xff]
    %v1712 = vld [vmem:[#allocation4 + $0x1ff8] sm:$0xff]
    %v1713 = vpack.c.bf16 %v673, %v673
    %v1714 = vpack.c.bf16 %v674, %v674
    %v1715 = vpack.c.bf16 %v675, %v675
    %v1716 = vpack.c.bf16 %v676, %v676
    %v1717 = vpack.c.bf16 %v677, %v677
    %v1718 = vpack.c.bf16 %v678, %v678
    %v1719 = vpack.c.bf16 %v679, %v679
    %v1720 = vpack.c.bf16 %v680, %v680
    %v1721 = vpack.c.bf16 %v681, %v681
    %v1722 = vpack.c.bf16 %v682, %v682
    %v1723 = vpack.c.bf16 %v683, %v683
    %v1724 = vpack.c.bf16 %v684, %v684
    %v1725 = vpack.c.bf16 %v685, %v685
    %v1726 = vpack.c.bf16 %v686, %v686
    %v1727 = vpack.c.bf16 %v687, %v687
    %v1728 = vpack.c.bf16 %v688, %v688
    %v1729 = vld [vmem:[#allocation6] sm:$0x77]
    %v1730 = vld [vmem:[#allocation6 + $0x8] sm:$0x77]
    %v1731 = vld [vmem:[#allocation6 + $0x10] sm:$0x77]
    %v1732 = vld [vmem:[#allocation6 + $0x18] sm:$0x77]
    %v1737 = vlaneseq
    %v1738 = vshrl.u32 %v1737, 7
    %v1739 = vsub.s32 0, %v1738
    %v1740 = vrot.slane %v1729, %v1739
    %v1741 = vlaneseq
    %v1742 = vshrl.u32 %v1741, 7
    %v1743 = vsub.s32 4, %v1742
    %v1744 = vrot.slane %v1729, %v1743
    %v1745 = vlaneseq
    %v1746 = vshrl.u32 %v1745, 7
    %v1747 = vsub.s32 0, %v1746
    %v1748 = vrot.slane %v1730, %v1747
    %v1749 = vlaneseq
    %v1750 = vshrl.u32 %v1749, 7
    %v1751 = vsub.s32 4, %v1750
    %v1752 = vrot.slane %v1730, %v1751
    %v1753 = vlaneseq
    %v1754 = vshrl.u32 %v1753, 7
    %v1755 = vsub.s32 0, %v1754
    %v1756 = vrot.slane %v1731, %v1755
    %v1757 = vlaneseq
    %v1758 = vshrl.u32 %v1757, 7
    %v1759 = vsub.s32 4, %v1758
    %v1760 = vrot.slane %v1731, %v1759
    %v1761 = vlaneseq
    %v1762 = vshrl.u32 %v1761, 7
    %v1763 = vsub.s32 0, %v1762
    %v1764 = vrot.slane %v1732, %v1763
    %v1765 = vlaneseq
    %v1766 = vshrl.u32 %v1765, 7
    %v1767 = vsub.s32 4, %v1766
    %v1768 = vrot.slane %v1732, %v1767
    %v1777 = vlaneseq
    %v1778 = vshrl.u32 %v1777, 7
    %v1779 = vsub.s32 0, %v1778
    %v1780 = vrot.slane %v1740, %v1779
    %v1781 = vlaneseq
    %v1782 = vshrl.u32 %v1781, 7
    %v1783 = vsub.s32 0, %v1782
    %v1784 = vrot.slane %v1744, %v1783
    %v1785 = vlaneseq
    %v1786 = vshrl.u32 %v1785, 7
    %v1787 = vsub.s32 0, %v1786
    %v1788 = vrot.slane %v1748, %v1787
    %v1789 = vlaneseq
    %v1790 = vshrl.u32 %v1789, 7
    %v1791 = vsub.s32 0, %v1790
    %v1792 = vrot.slane %v1752, %v1791
    %v1793 = vlaneseq
    %v1794 = vshrl.u32 %v1793, 7
    %v1795 = vsub.s32 0, %v1794
    %v1796 = vrot.slane %v1756, %v1795
    %v1797 = vlaneseq
    %v1798 = vshrl.u32 %v1797, 7
    %v1799 = vsub.s32 0, %v1798
    %v1800 = vrot.slane %v1760, %v1799
    %v1801 = vlaneseq
    %v1802 = vshrl.u32 %v1801, 7
    %v1803 = vsub.s32 0, %v1802
    %v1804 = vrot.slane %v1764, %v1803
    %v1805 = vlaneseq
    %v1806 = vshrl.u32 %v1805, 7
    %v1807 = vsub.s32 0, %v1806
    %v1808 = vrot.slane %v1768, %v1807
    %v1809 = vmul.f32 %v163, %v1780
    %v1810 = vmul.f32 %v163, %v1784
    %v1811 = vmul.f32 %v163, %v1788
    %v1812 = vmul.f32 %v163, %v1792
    %v1813 = vmul.f32 %v163, %v1796
    %v1814 = vmul.f32 %v163, %v1800
    %v1815 = vmul.f32 %v163, %v1804
    %v1816 = vmul.f32 %v163, %v1808
    %v1817 = vlaneseq
    %v1818 = vshrl.u32 %v1817, 7
    %v1819 = vsub.s32 1, %v1818
    %v1820 = vrot.slane %v1729, %v1819
    %v1821 = vlaneseq
    %v1822 = vshrl.u32 %v1821, 7
    %v1823 = vsub.s32 5, %v1822
    %v1824 = vrot.slane %v1729, %v1823
    %v1825 = vlaneseq
    %v1826 = vshrl.u32 %v1825, 7
    %v1827 = vsub.s32 1, %v1826
    %v1828 = vrot.slane %v1730, %v1827
    %v1829 = vlaneseq
    %v1830 = vshrl.u32 %v1829, 7
    %v1831 = vsub.s32 5, %v1830
    %v1832 = vrot.slane %v1730, %v1831
    %v1833 = vlaneseq
    %v1834 = vshrl.u32 %v1833, 7
    %v1835 = vsub.s32 1, %v1834
    %v1836 = vrot.slane %v1731, %v1835
    %v1837 = vlaneseq
    %v1838 = vshrl.u32 %v1837, 7
    %v1839 = vsub.s32 5, %v1838
    %v1840 = vrot.slane %v1731, %v1839
    %v1841 = vlaneseq
    %v1842 = vshrl.u32 %v1841, 7
    %v1843 = vsub.s32 1, %v1842
    %v1844 = vrot.slane %v1732, %v1843
    %v1845 = vlaneseq
    %v1846 = vshrl.u32 %v1845, 7
    %v1847 = vsub.s32 5, %v1846
    %v1848 = vrot.slane %v1732, %v1847
    %v1857 = vlaneseq
    %v1858 = vshrl.u32 %v1857, 7
    %v1859 = vsub.s32 1, %v1858
    %v1860 = vrot.slane %v1820, %v1859
    %v1861 = vlaneseq
    %v1862 = vshrl.u32 %v1861, 7
    %v1863 = vsub.s32 1, %v1862
    %v1864 = vrot.slane %v1824, %v1863
    %v1865 = vlaneseq
    %v1866 = vshrl.u32 %v1865, 7
    %v1867 = vsub.s32 1, %v1866
    %v1868 = vrot.slane %v1828, %v1867
    %v1869 = vlaneseq
    %v1870 = vshrl.u32 %v1869, 7
    %v1871 = vsub.s32 1, %v1870
    %v1872 = vrot.slane %v1832, %v1871
    %v1873 = vlaneseq
    %v1874 = vshrl.u32 %v1873, 7
    %v1875 = vsub.s32 1, %v1874
    %v1876 = vrot.slane %v1836, %v1875
    %v1877 = vlaneseq
    %v1878 = vshrl.u32 %v1877, 7
    %v1879 = vsub.s32 1, %v1878
    %v1880 = vrot.slane %v1840, %v1879
    %v1881 = vlaneseq
    %v1882 = vshrl.u32 %v1881, 7
    %v1883 = vsub.s32 1, %v1882
    %v1884 = vrot.slane %v1844, %v1883
    %v1885 = vlaneseq
    %v1886 = vshrl.u32 %v1885, 7
    %v1887 = vsub.s32 1, %v1886
    %v1888 = vrot.slane %v1848, %v1887
    %v1889 = vmul.f32 %v335, %v1860
    %v1890 = vmul.f32 %v335, %v1864
    %v1891 = vmul.f32 %v335, %v1868
    %v1892 = vmul.f32 %v335, %v1872
    %v1893 = vmul.f32 %v335, %v1876
    %v1894 = vmul.f32 %v335, %v1880
    %v1895 = vmul.f32 %v335, %v1884
    %v1896 = vmul.f32 %v335, %v1888
    %v1897 = vadd.f32 %v1809, %v1889
    %v1898 = vadd.f32 %v1810, %v1890
    %v1899 = vadd.f32 %v1811, %v1891
    %v1900 = vadd.f32 %v1812, %v1892
    %v1901 = vadd.f32 %v1813, %v1893
    %v1902 = vadd.f32 %v1814, %v1894
    %v1903 = vadd.f32 %v1815, %v1895
    %v1904 = vadd.f32 %v1816, %v1896
    %v1905 = vlaneseq
    %v1906 = vshrl.u32 %v1905, 7
    %v1907 = vsub.s32 2, %v1906
    %v1908 = vrot.slane %v1729, %v1907
    %v1909 = vlaneseq
    %v1910 = vshrl.u32 %v1909, 7
    %v1911 = vsub.s32 6, %v1910
    %v1912 = vrot.slane %v1729, %v1911
    %v1913 = vlaneseq
    %v1914 = vshrl.u32 %v1913, 7
    %v1915 = vsub.s32 2, %v1914
    %v1916 = vrot.slane %v1730, %v1915
    %v1917 = vlaneseq
    %v1918 = vshrl.u32 %v1917, 7
    %v1919 = vsub.s32 6, %v1918
    %v1920 = vrot.slane %v1730, %v1919
    %v1921 = vlaneseq
    %v1922 = vshrl.u32 %v1921, 7
    %v1923 = vsub.s32 2, %v1922
    %v1924 = vrot.slane %v1731, %v1923
    %v1925 = vlaneseq
    %v1926 = vshrl.u32 %v1925, 7
    %v1927 = vsub.s32 6, %v1926
    %v1928 = vrot.slane %v1731, %v1927
    %v1929 = vlaneseq
    %v1930 = vshrl.u32 %v1929, 7
    %v1931 = vsub.s32 2, %v1930
    %v1932 = vrot.slane %v1732, %v1931
    %v1933 = vlaneseq
    %v1934 = vshrl.u32 %v1933, 7
    %v1935 = vsub.s32 6, %v1934
    %v1936 = vrot.slane %v1732, %v1935
    %v1945 = vlaneseq
    %v1946 = vshrl.u32 %v1945, 7
    %v1947 = vsub.s32 2, %v1946
    %v1948 = vrot.slane %v1908, %v1947
    %v1949 = vlaneseq
    %v1950 = vshrl.u32 %v1949, 7
    %v1951 = vsub.s32 2, %v1950
    %v1952 = vrot.slane %v1912, %v1951
    %v1953 = vlaneseq
    %v1954 = vshrl.u32 %v1953, 7
    %v1955 = vsub.s32 2, %v1954
    %v1956 = vrot.slane %v1916, %v1955
    %v1957 = vlaneseq
    %v1958 = vshrl.u32 %v1957, 7
    %v1959 = vsub.s32 2, %v1958
    %v1960 = vrot.slane %v1920, %v1959
    %v1961 = vlaneseq
    %v1962 = vshrl.u32 %v1961, 7
    %v1963 = vsub.s32 2, %v1962
    %v1964 = vrot.slane %v1924, %v1963
    %v1965 = vlaneseq
    %v1966 = vshrl.u32 %v1965, 7
    %v1967 = vsub.s32 2, %v1966
    %v1968 = vrot.slane %v1928, %v1967
    %v1969 = vlaneseq
    %v1970 = vshrl.u32 %v1969, 7
    %v1971 = vsub.s32 2, %v1970
    %v1972 = vrot.slane %v1932, %v1971
    %v1973 = vlaneseq
    %v1974 = vshrl.u32 %v1973, 7
    %v1975 = vsub.s32 2, %v1974
    %v1976 = vrot.slane %v1936, %v1975
    %v1977 = vadd.f32 %v1897, %v1948
    %v1978 = vadd.f32 %v1898, %v1952
    %v1979 = vadd.f32 %v1899, %v1956
    %v1980 = vadd.f32 %v1900, %v1960
    %v1981 = vadd.f32 %v1901, %v1964
    %v1982 = vadd.f32 %v1902, %v1968
    %v1983 = vadd.f32 %v1903, %v1972
    %v1984 = vadd.f32 %v1904, %v1976
    %v3009 = vunpack.c.l.b16 %v689
    %v3010 = vunpack.c.h.b16 %v689
    %v3011 = vunpack.c.l.b16 %v690
    %v3012 = vunpack.c.h.b16 %v690
    %v3013 = vunpack.c.l.b16 %v691
    %v3014 = vunpack.c.h.b16 %v691
    %v3015 = vunpack.c.l.b16 %v692
    %v3016 = vunpack.c.h.b16 %v692
    %v3017 = vunpack.c.l.b16 %v693
    %v3018 = vunpack.c.h.b16 %v693
    %v3019 = vunpack.c.l.b16 %v694
    %v3020 = vunpack.c.h.b16 %v694
    %v3021 = vunpack.c.l.b16 %v695
    %v3022 = vunpack.c.h.b16 %v695
    %v3023 = vunpack.c.l.b16 %v696
    %v3024 = vunpack.c.h.b16 %v696
    %v3025 = vunpack.c.l.b16 %v697
    %v3026 = vunpack.c.h.b16 %v697
    %v3027 = vunpack.c.l.b16 %v698
    %v3028 = vunpack.c.h.b16 %v698
    %v3029 = vunpack.c.l.b16 %v699
    %v3030 = vunpack.c.h.b16 %v699
    %v3031 = vunpack.c.l.b16 %v700
    %v3032 = vunpack.c.h.b16 %v700
    %v3033 = vunpack.c.l.b16 %v701
    %v3034 = vunpack.c.h.b16 %v701
    %v3035 = vunpack.c.l.b16 %v702
    %v3036 = vunpack.c.h.b16 %v702
    %v3037 = vunpack.c.l.b16 %v703
    %v3038 = vunpack.c.h.b16 %v703
    %v3039 = vunpack.c.l.b16 %v704
    %v3040 = vunpack.c.h.b16 %v704
    %v3041 = vunpack.c.l.b16 %v705
    %v3042 = vunpack.c.h.b16 %v705
    %v3043 = vunpack.c.l.b16 %v706
    %v3044 = vunpack.c.h.b16 %v706
    %v3045 = vunpack.c.l.b16 %v707
    %v3046 = vunpack.c.h.b16 %v707
    %v3047 = vunpack.c.l.b16 %v708
    %v3048 = vunpack.c.h.b16 %v708
    %v3049 = vunpack.c.l.b16 %v709
    %v3050 = vunpack.c.h.b16 %v709
    %v3051 = vunpack.c.l.b16 %v710
    %v3052 = vunpack.c.h.b16 %v710
    %v3053 = vunpack.c.l.b16 %v711
    %v3054 = vunpack.c.h.b16 %v711
    %v3055 = vunpack.c.l.b16 %v712
    %v3056 = vunpack.c.h.b16 %v712
    %v3057 = vunpack.c.l.b16 %v713
    %v3058 = vunpack.c.h.b16 %v713
    %v3059 = vunpack.c.l.b16 %v714
    %v3060 = vunpack.c.h.b16 %v714
    %v3061 = vunpack.c.l.b16 %v715
    %v3062 = vunpack.c.h.b16 %v715
    %v3063 = vunpack.c.l.b16 %v716
    %v3064 = vunpack.c.h.b16 %v716
    %v3065 = vunpack.c.l.b16 %v717
    %v3066 = vunpack.c.h.b16 %v717
    %v3067 = vunpack.c.l.b16 %v718
    %v3068 = vunpack.c.h.b16 %v718
    %v3069 = vunpack.c.l.b16 %v719
    %v3070 = vunpack.c.h.b16 %v719
    %v3071 = vunpack.c.l.b16 %v720
    %v3072 = vunpack.c.h.b16 %v720
    %v3073 = vunpack.c.l.b16 %v721
    %v3074 = vunpack.c.h.b16 %v721
    %v3075 = vunpack.c.l.b16 %v722
    %v3076 = vunpack.c.h.b16 %v722
    %v3077 = vunpack.c.l.b16 %v723
    %v3078 = vunpack.c.h.b16 %v723
    %v3079 = vunpack.c.l.b16 %v724
    %v3080 = vunpack.c.h.b16 %v724
    %v3081 = vunpack.c.l.b16 %v725
    %v3082 = vunpack.c.h.b16 %v725
    %v3083 = vunpack.c.l.b16 %v726
    %v3084 = vunpack.c.h.b16 %v726
    %v3085 = vunpack.c.l.b16 %v727
    %v3086 = vunpack.c.h.b16 %v727
    %v3087 = vunpack.c.l.b16 %v728
    %v3088 = vunpack.c.h.b16 %v728
    %v3089 = vunpack.c.l.b16 %v729
    %v3090 = vunpack.c.h.b16 %v729
    %v3091 = vunpack.c.l.b16 %v730
    %v3092 = vunpack.c.h.b16 %v730
    %v3093 = vunpack.c.l.b16 %v731
    %v3094 = vunpack.c.h.b16 %v731
    %v3095 = vunpack.c.l.b16 %v732
    %v3096 = vunpack.c.h.b16 %v732
    %v3097 = vunpack.c.l.b16 %v733
    %v3098 = vunpack.c.h.b16 %v733
    %v3099 = vunpack.c.l.b16 %v734
    %v3100 = vunpack.c.h.b16 %v734
    %v3101 = vunpack.c.l.b16 %v735
    %v3102 = vunpack.c.h.b16 %v735
    %v3103 = vunpack.c.l.b16 %v736
    %v3104 = vunpack.c.h.b16 %v736
    %v3105 = vunpack.c.l.b16 %v737
    %v3106 = vunpack.c.h.b16 %v737
    %v3107 = vunpack.c.l.b16 %v738
    %v3108 = vunpack.c.h.b16 %v738
    %v3109 = vunpack.c.l.b16 %v739
    %v3110 = vunpack.c.h.b16 %v739
    %v3111 = vunpack.c.l.b16 %v740
    %v3112 = vunpack.c.h.b16 %v740
    %v3113 = vunpack.c.l.b16 %v741
    %v3114 = vunpack.c.h.b16 %v741
    %v3115 = vunpack.c.l.b16 %v742
    %v3116 = vunpack.c.h.b16 %v742
    %v3117 = vunpack.c.l.b16 %v743
    %v3118 = vunpack.c.h.b16 %v743
    %v3119 = vunpack.c.l.b16 %v744
    %v3120 = vunpack.c.h.b16 %v744
    %v3121 = vunpack.c.l.b16 %v745
    %v3122 = vunpack.c.h.b16 %v745
    %v3123 = vunpack.c.l.b16 %v746
    %v3124 = vunpack.c.h.b16 %v746
    %v3125 = vunpack.c.l.b16 %v747
    %v3126 = vunpack.c.h.b16 %v747
    %v3127 = vunpack.c.l.b16 %v748
    %v3128 = vunpack.c.h.b16 %v748
    %v3129 = vunpack.c.l.b16 %v749
    %v3130 = vunpack.c.h.b16 %v749
    %v3131 = vunpack.c.l.b16 %v750
    %v3132 = vunpack.c.h.b16 %v750
    %v3133 = vunpack.c.l.b16 %v751
    %v3134 = vunpack.c.h.b16 %v751
    %v3135 = vunpack.c.l.b16 %v752
    %v3136 = vunpack.c.h.b16 %v752
    %v3137 = vunpack.c.l.b16 %v753
    %v3138 = vunpack.c.h.b16 %v753
    %v3139 = vunpack.c.l.b16 %v754
    %v3140 = vunpack.c.h.b16 %v754
    %v3141 = vunpack.c.l.b16 %v755
    %v3142 = vunpack.c.h.b16 %v755
    %v3143 = vunpack.c.l.b16 %v756
    %v3144 = vunpack.c.h.b16 %v756
    %v3145 = vunpack.c.l.b16 %v757
    %v3146 = vunpack.c.h.b16 %v757
    %v3147 = vunpack.c.l.b16 %v758
    %v3148 = vunpack.c.h.b16 %v758
    %v3149 = vunpack.c.l.b16 %v759
    %v3150 = vunpack.c.h.b16 %v759
    %v3151 = vunpack.c.l.b16 %v760
    %v3152 = vunpack.c.h.b16 %v760
    %v3153 = vunpack.c.l.b16 %v761
    %v3154 = vunpack.c.h.b16 %v761
    %v3155 = vunpack.c.l.b16 %v762
    %v3156 = vunpack.c.h.b16 %v762
    %v3157 = vunpack.c.l.b16 %v763
    %v3158 = vunpack.c.h.b16 %v763
    %v3159 = vunpack.c.l.b16 %v764
    %v3160 = vunpack.c.h.b16 %v764
    %v3161 = vunpack.c.l.b16 %v765
    %v3162 = vunpack.c.h.b16 %v765
    %v3163 = vunpack.c.l.b16 %v766
    %v3164 = vunpack.c.h.b16 %v766
    %v3165 = vunpack.c.l.b16 %v767
    %v3166 = vunpack.c.h.b16 %v767
    %v3167 = vunpack.c.l.b16 %v768
    %v3168 = vunpack.c.h.b16 %v768
    %v3169 = vunpack.c.l.b16 %v769
    %v3170 = vunpack.c.h.b16 %v769
    %v3171 = vunpack.c.l.b16 %v770
    %v3172 = vunpack.c.h.b16 %v770
    %v3173 = vunpack.c.l.b16 %v771
    %v3174 = vunpack.c.h.b16 %v771
    %v3175 = vunpack.c.l.b16 %v772
    %v3176 = vunpack.c.h.b16 %v772
    %v3177 = vunpack.c.l.b16 %v773
    %v3178 = vunpack.c.h.b16 %v773
    %v3179 = vunpack.c.l.b16 %v774
    %v3180 = vunpack.c.h.b16 %v774
    %v3181 = vunpack.c.l.b16 %v775
    %v3182 = vunpack.c.h.b16 %v775
    %v3183 = vunpack.c.l.b16 %v776
    %v3184 = vunpack.c.h.b16 %v776
    %v3185 = vunpack.c.l.b16 %v777
    %v3186 = vunpack.c.h.b16 %v777
    %v3187 = vunpack.c.l.b16 %v778
    %v3188 = vunpack.c.h.b16 %v778
    %v3189 = vunpack.c.l.b16 %v779
    %v3190 = vunpack.c.h.b16 %v779
    %v3191 = vunpack.c.l.b16 %v780
    %v3192 = vunpack.c.h.b16 %v780
    %v3193 = vunpack.c.l.b16 %v781
    %v3194 = vunpack.c.h.b16 %v781
    %v3195 = vunpack.c.l.b16 %v782
    %v3196 = vunpack.c.h.b16 %v782
    %v3197 = vunpack.c.l.b16 %v783
    %v3198 = vunpack.c.h.b16 %v783
    %v3199 = vunpack.c.l.b16 %v784
    %v3200 = vunpack.c.h.b16 %v784
    %v3201 = vunpack.c.l.b16 %v785
    %v3202 = vunpack.c.h.b16 %v785
    %v3203 = vunpack.c.l.b16 %v786
    %v3204 = vunpack.c.h.b16 %v786
    %v3205 = vunpack.c.l.b16 %v787
    %v3206 = vunpack.c.h.b16 %v787
    %v3207 = vunpack.c.l.b16 %v788
    %v3208 = vunpack.c.h.b16 %v788
    %v3209 = vunpack.c.l.b16 %v789
    %v3210 = vunpack.c.h.b16 %v789
    %v3211 = vunpack.c.l.b16 %v790
    %v3212 = vunpack.c.h.b16 %v790
    %v3213 = vunpack.c.l.b16 %v791
    %v3214 = vunpack.c.h.b16 %v791
    %v3215 = vunpack.c.l.b16 %v792
    %v3216 = vunpack.c.h.b16 %v792
    %v3217 = vunpack.c.l.b16 %v793
    %v3218 = vunpack.c.h.b16 %v793
    %v3219 = vunpack.c.l.b16 %v794
    %v3220 = vunpack.c.h.b16 %v794
    %v3221 = vunpack.c.l.b16 %v795
    %v3222 = vunpack.c.h.b16 %v795
    %v3223 = vunpack.c.l.b16 %v796
    %v3224 = vunpack.c.h.b16 %v796
    %v3225 = vunpack.c.l.b16 %v797
    %v3226 = vunpack.c.h.b16 %v797
    %v3227 = vunpack.c.l.b16 %v798
    %v3228 = vunpack.c.h.b16 %v798
    %v3229 = vunpack.c.l.b16 %v799
    %v3230 = vunpack.c.h.b16 %v799
    %v3231 = vunpack.c.l.b16 %v800
    %v3232 = vunpack.c.h.b16 %v800
    %v3233 = vunpack.c.l.b16 %v801
    %v3234 = vunpack.c.h.b16 %v801
    %v3235 = vunpack.c.l.b16 %v802
    %v3236 = vunpack.c.h.b16 %v802
    %v3237 = vunpack.c.l.b16 %v803
    %v3238 = vunpack.c.h.b16 %v803
    %v3239 = vunpack.c.l.b16 %v804
    %v3240 = vunpack.c.h.b16 %v804
    %v3241 = vunpack.c.l.b16 %v805
    %v3242 = vunpack.c.h.b16 %v805
    %v3243 = vunpack.c.l.b16 %v806
    %v3244 = vunpack.c.h.b16 %v806
    %v3245 = vunpack.c.l.b16 %v807
    %v3246 = vunpack.c.h.b16 %v807
    %v3247 = vunpack.c.l.b16 %v808
    %v3248 = vunpack.c.h.b16 %v808
    %v3249 = vunpack.c.l.b16 %v809
    %v3250 = vunpack.c.h.b16 %v809
    %v3251 = vunpack.c.l.b16 %v810
    %v3252 = vunpack.c.h.b16 %v810
    %v3253 = vunpack.c.l.b16 %v811
    %v3254 = vunpack.c.h.b16 %v811
    %v3255 = vunpack.c.l.b16 %v812
    %v3256 = vunpack.c.h.b16 %v812
    %v3257 = vunpack.c.l.b16 %v813
    %v3258 = vunpack.c.h.b16 %v813
    %v3259 = vunpack.c.l.b16 %v814
    %v3260 = vunpack.c.h.b16 %v814
    %v3261 = vunpack.c.l.b16 %v815
    %v3262 = vunpack.c.h.b16 %v815
    %v3263 = vunpack.c.l.b16 %v816
    %v3264 = vunpack.c.h.b16 %v816
    %v3265 = vunpack.c.l.b16 %v817
    %v3266 = vunpack.c.h.b16 %v817
    %v3267 = vunpack.c.l.b16 %v818
    %v3268 = vunpack.c.h.b16 %v818
    %v3269 = vunpack.c.l.b16 %v819
    %v3270 = vunpack.c.h.b16 %v819
    %v3271 = vunpack.c.l.b16 %v820
    %v3272 = vunpack.c.h.b16 %v820
    %v3273 = vunpack.c.l.b16 %v821
    %v3274 = vunpack.c.h.b16 %v821
    %v3275 = vunpack.c.l.b16 %v822
    %v3276 = vunpack.c.h.b16 %v822
    %v3277 = vunpack.c.l.b16 %v823
    %v3278 = vunpack.c.h.b16 %v823
    %v3279 = vunpack.c.l.b16 %v824
    %v3280 = vunpack.c.h.b16 %v824
    %v3281 = vunpack.c.l.b16 %v825
    %v3282 = vunpack.c.h.b16 %v825
    %v3283 = vunpack.c.l.b16 %v826
    %v3284 = vunpack.c.h.b16 %v826
    %v3285 = vunpack.c.l.b16 %v827
    %v3286 = vunpack.c.h.b16 %v827
    %v3287 = vunpack.c.l.b16 %v828
    %v3288 = vunpack.c.h.b16 %v828
    %v3289 = vunpack.c.l.b16 %v829
    %v3290 = vunpack.c.h.b16 %v829
    %v3291 = vunpack.c.l.b16 %v830
    %v3292 = vunpack.c.h.b16 %v830
    %v3293 = vunpack.c.l.b16 %v831
    %v3294 = vunpack.c.h.b16 %v831
    %v3295 = vunpack.c.l.b16 %v832
    %v3296 = vunpack.c.h.b16 %v832
    %v3297 = vunpack.c.l.b16 %v833
    %v3298 = vunpack.c.h.b16 %v833
    %v3299 = vunpack.c.l.b16 %v834
    %v3300 = vunpack.c.h.b16 %v834
    %v3301 = vunpack.c.l.b16 %v835
    %v3302 = vunpack.c.h.b16 %v835
    %v3303 = vunpack.c.l.b16 %v836
    %v3304 = vunpack.c.h.b16 %v836
    %v3305 = vunpack.c.l.b16 %v837
    %v3306 = vunpack.c.h.b16 %v837
    %v3307 = vunpack.c.l.b16 %v838
    %v3308 = vunpack.c.h.b16 %v838
    %v3309 = vunpack.c.l.b16 %v839
    %v3310 = vunpack.c.h.b16 %v839
    %v3311 = vunpack.c.l.b16 %v840
    %v3312 = vunpack.c.h.b16 %v840
    %v3313 = vunpack.c.l.b16 %v841
    %v3314 = vunpack.c.h.b16 %v841
    %v3315 = vunpack.c.l.b16 %v842
    %v3316 = vunpack.c.h.b16 %v842
    %v3317 = vunpack.c.l.b16 %v843
    %v3318 = vunpack.c.h.b16 %v843
    %v3319 = vunpack.c.l.b16 %v844
    %v3320 = vunpack.c.h.b16 %v844
    %v3321 = vunpack.c.l.b16 %v845
    %v3322 = vunpack.c.h.b16 %v845
    %v3323 = vunpack.c.l.b16 %v846
    %v3324 = vunpack.c.h.b16 %v846
    %v3325 = vunpack.c.l.b16 %v847
    %v3326 = vunpack.c.h.b16 %v847
    %v3327 = vunpack.c.l.b16 %v848
    %v3328 = vunpack.c.h.b16 %v848
    %v3329 = vunpack.c.l.b16 %v849
    %v3330 = vunpack.c.h.b16 %v849
    %v3331 = vunpack.c.l.b16 %v850
    %v3332 = vunpack.c.h.b16 %v850
    %v3333 = vunpack.c.l.b16 %v851
    %v3334 = vunpack.c.h.b16 %v851
    %v3335 = vunpack.c.l.b16 %v852
    %v3336 = vunpack.c.h.b16 %v852
    %v3337 = vunpack.c.l.b16 %v853
    %v3338 = vunpack.c.h.b16 %v853
    %v3339 = vunpack.c.l.b16 %v854
    %v3340 = vunpack.c.h.b16 %v854
    %v3341 = vunpack.c.l.b16 %v855
    %v3342 = vunpack.c.h.b16 %v855
    %v3343 = vunpack.c.l.b16 %v856
    %v3344 = vunpack.c.h.b16 %v856
    %v3345 = vunpack.c.l.b16 %v857
    %v3346 = vunpack.c.h.b16 %v857
    %v3347 = vunpack.c.l.b16 %v858
    %v3348 = vunpack.c.h.b16 %v858
    %v3349 = vunpack.c.l.b16 %v859
    %v3350 = vunpack.c.h.b16 %v859
    %v3351 = vunpack.c.l.b16 %v860
    %v3352 = vunpack.c.h.b16 %v860
    %v3353 = vunpack.c.l.b16 %v861
    %v3354 = vunpack.c.h.b16 %v861
    %v3355 = vunpack.c.l.b16 %v862
    %v3356 = vunpack.c.h.b16 %v862
    %v3357 = vunpack.c.l.b16 %v863
    %v3358 = vunpack.c.h.b16 %v863
    %v3359 = vunpack.c.l.b16 %v864
    %v3360 = vunpack.c.h.b16 %v864
    %v3361 = vunpack.c.l.b16 %v865
    %v3362 = vunpack.c.h.b16 %v865
    %v3363 = vunpack.c.l.b16 %v866
    %v3364 = vunpack.c.h.b16 %v866
    %v3365 = vunpack.c.l.b16 %v867
    %v3366 = vunpack.c.h.b16 %v867
    %v3367 = vunpack.c.l.b16 %v868
    %v3368 = vunpack.c.h.b16 %v868
    %v3369 = vunpack.c.l.b16 %v869
    %v3370 = vunpack.c.h.b16 %v869
    %v3371 = vunpack.c.l.b16 %v870
    %v3372 = vunpack.c.h.b16 %v870
    %v3373 = vunpack.c.l.b16 %v871
    %v3374 = vunpack.c.h.b16 %v871
    %v3375 = vunpack.c.l.b16 %v872
    %v3376 = vunpack.c.h.b16 %v872
    %v3377 = vunpack.c.l.b16 %v873
    %v3378 = vunpack.c.h.b16 %v873
    %v3379 = vunpack.c.l.b16 %v874
    %v3380 = vunpack.c.h.b16 %v874
    %v3381 = vunpack.c.l.b16 %v875
    %v3382 = vunpack.c.h.b16 %v875
    %v3383 = vunpack.c.l.b16 %v876
    %v3384 = vunpack.c.h.b16 %v876
    %v3385 = vunpack.c.l.b16 %v877
    %v3386 = vunpack.c.h.b16 %v877
    %v3387 = vunpack.c.l.b16 %v878
    %v3388 = vunpack.c.h.b16 %v878
    %v3389 = vunpack.c.l.b16 %v879
    %v3390 = vunpack.c.h.b16 %v879
    %v3391 = vunpack.c.l.b16 %v880
    %v3392 = vunpack.c.h.b16 %v880
    %v3393 = vunpack.c.l.b16 %v881
    %v3394 = vunpack.c.h.b16 %v881
    %v3395 = vunpack.c.l.b16 %v882
    %v3396 = vunpack.c.h.b16 %v882
    %v3397 = vunpack.c.l.b16 %v883
    %v3398 = vunpack.c.h.b16 %v883
    %v3399 = vunpack.c.l.b16 %v884
    %v3400 = vunpack.c.h.b16 %v884
    %v3401 = vunpack.c.l.b16 %v885
    %v3402 = vunpack.c.h.b16 %v885
    %v3403 = vunpack.c.l.b16 %v886
    %v3404 = vunpack.c.h.b16 %v886
    %v3405 = vunpack.c.l.b16 %v887
    %v3406 = vunpack.c.h.b16 %v887
    %v3407 = vunpack.c.l.b16 %v888
    %v3408 = vunpack.c.h.b16 %v888
    %v3409 = vunpack.c.l.b16 %v889
    %v3410 = vunpack.c.h.b16 %v889
    %v3411 = vunpack.c.l.b16 %v890
    %v3412 = vunpack.c.h.b16 %v890
    %v3413 = vunpack.c.l.b16 %v891
    %v3414 = vunpack.c.h.b16 %v891
    %v3415 = vunpack.c.l.b16 %v892
    %v3416 = vunpack.c.h.b16 %v892
    %v3417 = vunpack.c.l.b16 %v893
    %v3418 = vunpack.c.h.b16 %v893
    %v3419 = vunpack.c.l.b16 %v894
    %v3420 = vunpack.c.h.b16 %v894
    %v3421 = vunpack.c.l.b16 %v895
    %v3422 = vunpack.c.h.b16 %v895
    %v3423 = vunpack.c.l.b16 %v896
    %v3424 = vunpack.c.h.b16 %v896
    %v3425 = vunpack.c.l.b16 %v897
    %v3426 = vunpack.c.h.b16 %v897
    %v3427 = vunpack.c.l.b16 %v898
    %v3428 = vunpack.c.h.b16 %v898
    %v3429 = vunpack.c.l.b16 %v899
    %v3430 = vunpack.c.h.b16 %v899
    %v3431 = vunpack.c.l.b16 %v900
    %v3432 = vunpack.c.h.b16 %v900
    %v3433 = vunpack.c.l.b16 %v901
    %v3434 = vunpack.c.h.b16 %v901
    %v3435 = vunpack.c.l.b16 %v902
    %v3436 = vunpack.c.h.b16 %v902
    %v3437 = vunpack.c.l.b16 %v903
    %v3438 = vunpack.c.h.b16 %v903
    %v3439 = vunpack.c.l.b16 %v904
    %v3440 = vunpack.c.h.b16 %v904
    %v3441 = vunpack.c.l.b16 %v905
    %v3442 = vunpack.c.h.b16 %v905
    %v3443 = vunpack.c.l.b16 %v906
    %v3444 = vunpack.c.h.b16 %v906
    %v3445 = vunpack.c.l.b16 %v907
    %v3446 = vunpack.c.h.b16 %v907
    %v3447 = vunpack.c.l.b16 %v908
    %v3448 = vunpack.c.h.b16 %v908
    %v3449 = vunpack.c.l.b16 %v909
    %v3450 = vunpack.c.h.b16 %v909
    %v3451 = vunpack.c.l.b16 %v910
    %v3452 = vunpack.c.h.b16 %v910
    %v3453 = vunpack.c.l.b16 %v911
    %v3454 = vunpack.c.h.b16 %v911
    %v3455 = vunpack.c.l.b16 %v912
    %v3456 = vunpack.c.h.b16 %v912
    %v3457 = vunpack.c.l.b16 %v913
    %v3458 = vunpack.c.h.b16 %v913
    %v3459 = vunpack.c.l.b16 %v914
    %v3460 = vunpack.c.h.b16 %v914
    %v3461 = vunpack.c.l.b16 %v915
    %v3462 = vunpack.c.h.b16 %v915
    %v3463 = vunpack.c.l.b16 %v916
    %v3464 = vunpack.c.h.b16 %v916
    %v3465 = vunpack.c.l.b16 %v917
    %v3466 = vunpack.c.h.b16 %v917
    %v3467 = vunpack.c.l.b16 %v918
    %v3468 = vunpack.c.h.b16 %v918
    %v3469 = vunpack.c.l.b16 %v919
    %v3470 = vunpack.c.h.b16 %v919
    %v3471 = vunpack.c.l.b16 %v920
    %v3472 = vunpack.c.h.b16 %v920
    %v3473 = vunpack.c.l.b16 %v921
    %v3474 = vunpack.c.h.b16 %v921
    %v3475 = vunpack.c.l.b16 %v922
    %v3476 = vunpack.c.h.b16 %v922
    %v3477 = vunpack.c.l.b16 %v923
    %v3478 = vunpack.c.h.b16 %v923
    %v3479 = vunpack.c.l.b16 %v924
    %v3480 = vunpack.c.h.b16 %v924
    %v3481 = vunpack.c.l.b16 %v925
    %v3482 = vunpack.c.h.b16 %v925
    %v3483 = vunpack.c.l.b16 %v926
    %v3484 = vunpack.c.h.b16 %v926
    %v3485 = vunpack.c.l.b16 %v927
    %v3486 = vunpack.c.h.b16 %v927
    %v3487 = vunpack.c.l.b16 %v928
    %v3488 = vunpack.c.h.b16 %v928
    %v3489 = vunpack.c.l.b16 %v929
    %v3490 = vunpack.c.h.b16 %v929
    %v3491 = vunpack.c.l.b16 %v930
    %v3492 = vunpack.c.h.b16 %v930
    %v3493 = vunpack.c.l.b16 %v931
    %v3494 = vunpack.c.h.b16 %v931
    %v3495 = vunpack.c.l.b16 %v932
    %v3496 = vunpack.c.h.b16 %v932
    %v3497 = vunpack.c.l.b16 %v933
    %v3498 = vunpack.c.h.b16 %v933
    %v3499 = vunpack.c.l.b16 %v934
    %v3500 = vunpack.c.h.b16 %v934
    %v3501 = vunpack.c.l.b16 %v935
    %v3502 = vunpack.c.h.b16 %v935
    %v3503 = vunpack.c.l.b16 %v936
    %v3504 = vunpack.c.h.b16 %v936
    %v3505 = vunpack.c.l.b16 %v937
    %v3506 = vunpack.c.h.b16 %v937
    %v3507 = vunpack.c.l.b16 %v938
    %v3508 = vunpack.c.h.b16 %v938
    %v3509 = vunpack.c.l.b16 %v939
    %v3510 = vunpack.c.h.b16 %v939
    %v3511 = vunpack.c.l.b16 %v940
    %v3512 = vunpack.c.h.b16 %v940
    %v3513 = vunpack.c.l.b16 %v941
    %v3514 = vunpack.c.h.b16 %v941
    %v3515 = vunpack.c.l.b16 %v942
    %v3516 = vunpack.c.h.b16 %v942
    %v3517 = vunpack.c.l.b16 %v943
    %v3518 = vunpack.c.h.b16 %v943
    %v3519 = vunpack.c.l.b16 %v944
    %v3520 = vunpack.c.h.b16 %v944
    %v3521 = vunpack.c.l.b16 %v945
    %v3522 = vunpack.c.h.b16 %v945
    %v3523 = vunpack.c.l.b16 %v946
    %v3524 = vunpack.c.h.b16 %v946
    %v3525 = vunpack.c.l.b16 %v947
    %v3526 = vunpack.c.h.b16 %v947
    %v3527 = vunpack.c.l.b16 %v948
    %v3528 = vunpack.c.h.b16 %v948
    %v3529 = vunpack.c.l.b16 %v949
    %v3530 = vunpack.c.h.b16 %v949
    %v3531 = vunpack.c.l.b16 %v950
    %v3532 = vunpack.c.h.b16 %v950
    %v3533 = vunpack.c.l.b16 %v951
    %v3534 = vunpack.c.h.b16 %v951
    %v3535 = vunpack.c.l.b16 %v952
    %v3536 = vunpack.c.h.b16 %v952
    %v3537 = vunpack.c.l.b16 %v953
    %v3538 = vunpack.c.h.b16 %v953
    %v3539 = vunpack.c.l.b16 %v954
    %v3540 = vunpack.c.h.b16 %v954
    %v3541 = vunpack.c.l.b16 %v955
    %v3542 = vunpack.c.h.b16 %v955
    %v3543 = vunpack.c.l.b16 %v956
    %v3544 = vunpack.c.h.b16 %v956
    %v3545 = vunpack.c.l.b16 %v957
    %v3546 = vunpack.c.h.b16 %v957
    %v3547 = vunpack.c.l.b16 %v958
    %v3548 = vunpack.c.h.b16 %v958
    %v3549 = vunpack.c.l.b16 %v959
    %v3550 = vunpack.c.h.b16 %v959
    %v3551 = vunpack.c.l.b16 %v960
    %v3552 = vunpack.c.h.b16 %v960
    %v3553 = vunpack.c.l.b16 %v961
    %v3554 = vunpack.c.h.b16 %v961
    %v3555 = vunpack.c.l.b16 %v962
    %v3556 = vunpack.c.h.b16 %v962
    %v3557 = vunpack.c.l.b16 %v963
    %v3558 = vunpack.c.h.b16 %v963
    %v3559 = vunpack.c.l.b16 %v964
    %v3560 = vunpack.c.h.b16 %v964
    %v3561 = vunpack.c.l.b16 %v965
    %v3562 = vunpack.c.h.b16 %v965
    %v3563 = vunpack.c.l.b16 %v966
    %v3564 = vunpack.c.h.b16 %v966
    %v3565 = vunpack.c.l.b16 %v967
    %v3566 = vunpack.c.h.b16 %v967
    %v3567 = vunpack.c.l.b16 %v968
    %v3568 = vunpack.c.h.b16 %v968
    %v3569 = vunpack.c.l.b16 %v969
    %v3570 = vunpack.c.h.b16 %v969
    %v3571 = vunpack.c.l.b16 %v970
    %v3572 = vunpack.c.h.b16 %v970
    %v3573 = vunpack.c.l.b16 %v971
    %v3574 = vunpack.c.h.b16 %v971
    %v3575 = vunpack.c.l.b16 %v972
    %v3576 = vunpack.c.h.b16 %v972
    %v3577 = vunpack.c.l.b16 %v973
    %v3578 = vunpack.c.h.b16 %v973
    %v3579 = vunpack.c.l.b16 %v974
    %v3580 = vunpack.c.h.b16 %v974
    %v3581 = vunpack.c.l.b16 %v975
    %v3582 = vunpack.c.h.b16 %v975
    %v3583 = vunpack.c.l.b16 %v976
    %v3584 = vunpack.c.h.b16 %v976
    %v3585 = vunpack.c.l.b16 %v977
    %v3586 = vunpack.c.h.b16 %v977
    %v3587 = vunpack.c.l.b16 %v978
    %v3588 = vunpack.c.h.b16 %v978
    %v3589 = vunpack.c.l.b16 %v979
    %v3590 = vunpack.c.h.b16 %v979
    %v3591 = vunpack.c.l.b16 %v980
    %v3592 = vunpack.c.h.b16 %v980
    %v3593 = vunpack.c.l.b16 %v981
    %v3594 = vunpack.c.h.b16 %v981
    %v3595 = vunpack.c.l.b16 %v982
    %v3596 = vunpack.c.h.b16 %v982
    %v3597 = vunpack.c.l.b16 %v983
    %v3598 = vunpack.c.h.b16 %v983
    %v3599 = vunpack.c.l.b16 %v984
    %v3600 = vunpack.c.h.b16 %v984
    %v3601 = vunpack.c.l.b16 %v985
    %v3602 = vunpack.c.h.b16 %v985
    %v3603 = vunpack.c.l.b16 %v986
    %v3604 = vunpack.c.h.b16 %v986
    %v3605 = vunpack.c.l.b16 %v987
    %v3606 = vunpack.c.h.b16 %v987
    %v3607 = vunpack.c.l.b16 %v988
    %v3608 = vunpack.c.h.b16 %v988
    %v3609 = vunpack.c.l.b16 %v989
    %v3610 = vunpack.c.h.b16 %v989
    %v3611 = vunpack.c.l.b16 %v990
    %v3612 = vunpack.c.h.b16 %v990
    %v3613 = vunpack.c.l.b16 %v991
    %v3614 = vunpack.c.h.b16 %v991
    %v3615 = vunpack.c.l.b16 %v992
    %v3616 = vunpack.c.h.b16 %v992
    %v3617 = vunpack.c.l.b16 %v993
    %v3618 = vunpack.c.h.b16 %v993
    %v3619 = vunpack.c.l.b16 %v994
    %v3620 = vunpack.c.h.b16 %v994
    %v3621 = vunpack.c.l.b16 %v995
    %v3622 = vunpack.c.h.b16 %v995
    %v3623 = vunpack.c.l.b16 %v996
    %v3624 = vunpack.c.h.b16 %v996
    %v3625 = vunpack.c.l.b16 %v997
    %v3626 = vunpack.c.h.b16 %v997
    %v3627 = vunpack.c.l.b16 %v998
    %v3628 = vunpack.c.h.b16 %v998
    %v3629 = vunpack.c.l.b16 %v999
    %v3630 = vunpack.c.h.b16 %v999
    %v3631 = vunpack.c.l.b16 %v1000
    %v3632 = vunpack.c.h.b16 %v1000
    %v3633 = vunpack.c.l.b16 %v1001
    %v3634 = vunpack.c.h.b16 %v1001
    %v3635 = vunpack.c.l.b16 %v1002
    %v3636 = vunpack.c.h.b16 %v1002
    %v3637 = vunpack.c.l.b16 %v1003
    %v3638 = vunpack.c.h.b16 %v1003
    %v3639 = vunpack.c.l.b16 %v1004
    %v3640 = vunpack.c.h.b16 %v1004
    %v3641 = vunpack.c.l.b16 %v1005
    %v3642 = vunpack.c.h.b16 %v1005
    %v3643 = vunpack.c.l.b16 %v1006
    %v3644 = vunpack.c.h.b16 %v1006
    %v3645 = vunpack.c.l.b16 %v1007
    %v3646 = vunpack.c.h.b16 %v1007
    %v3647 = vunpack.c.l.b16 %v1008
    %v3648 = vunpack.c.h.b16 %v1008
    %v3649 = vunpack.c.l.b16 %v1009
    %v3650 = vunpack.c.h.b16 %v1009
    %v3651 = vunpack.c.l.b16 %v1010
    %v3652 = vunpack.c.h.b16 %v1010
    %v3653 = vunpack.c.l.b16 %v1011
    %v3654 = vunpack.c.h.b16 %v1011
    %v3655 = vunpack.c.l.b16 %v1012
    %v3656 = vunpack.c.h.b16 %v1012
    %v3657 = vunpack.c.l.b16 %v1013
    %v3658 = vunpack.c.h.b16 %v1013
    %v3659 = vunpack.c.l.b16 %v1014
    %v3660 = vunpack.c.h.b16 %v1014
    %v3661 = vunpack.c.l.b16 %v1015
    %v3662 = vunpack.c.h.b16 %v1015
    %v3663 = vunpack.c.l.b16 %v1016
    %v3664 = vunpack.c.h.b16 %v1016
    %v3665 = vunpack.c.l.b16 %v1017
    %v3666 = vunpack.c.h.b16 %v1017
    %v3667 = vunpack.c.l.b16 %v1018
    %v3668 = vunpack.c.h.b16 %v1018
    %v3669 = vunpack.c.l.b16 %v1019
    %v3670 = vunpack.c.h.b16 %v1019
    %v3671 = vunpack.c.l.b16 %v1020
    %v3672 = vunpack.c.h.b16 %v1020
    %v3673 = vunpack.c.l.b16 %v1021
    %v3674 = vunpack.c.h.b16 %v1021
    %v3675 = vunpack.c.l.b16 %v1022
    %v3676 = vunpack.c.h.b16 %v1022
    %v3677 = vunpack.c.l.b16 %v1023
    %v3678 = vunpack.c.h.b16 %v1023
    %v3679 = vunpack.c.l.b16 %v1024
    %v3680 = vunpack.c.h.b16 %v1024
    %v3681 = vunpack.c.l.b16 %v1025
    %v3682 = vunpack.c.h.b16 %v1025
    %v3683 = vunpack.c.l.b16 %v1026
    %v3684 = vunpack.c.h.b16 %v1026
    %v3685 = vunpack.c.l.b16 %v1027
    %v3686 = vunpack.c.h.b16 %v1027
    %v3687 = vunpack.c.l.b16 %v1028
    %v3688 = vunpack.c.h.b16 %v1028
    %v3689 = vunpack.c.l.b16 %v1029
    %v3690 = vunpack.c.h.b16 %v1029
    %v3691 = vunpack.c.l.b16 %v1030
    %v3692 = vunpack.c.h.b16 %v1030
    %v3693 = vunpack.c.l.b16 %v1031
    %v3694 = vunpack.c.h.b16 %v1031
    %v3695 = vunpack.c.l.b16 %v1032
    %v3696 = vunpack.c.h.b16 %v1032
    %v3697 = vunpack.c.l.b16 %v1033
    %v3698 = vunpack.c.h.b16 %v1033
    %v3699 = vunpack.c.l.b16 %v1034
    %v3700 = vunpack.c.h.b16 %v1034
    %v3701 = vunpack.c.l.b16 %v1035
    %v3702 = vunpack.c.h.b16 %v1035
    %v3703 = vunpack.c.l.b16 %v1036
    %v3704 = vunpack.c.h.b16 %v1036
    %v3705 = vunpack.c.l.b16 %v1037
    %v3706 = vunpack.c.h.b16 %v1037
    %v3707 = vunpack.c.l.b16 %v1038
    %v3708 = vunpack.c.h.b16 %v1038
    %v3709 = vunpack.c.l.b16 %v1039
    %v3710 = vunpack.c.h.b16 %v1039
    %v3711 = vunpack.c.l.b16 %v1040
    %v3712 = vunpack.c.h.b16 %v1040
    %v3713 = vunpack.c.l.b16 %v1041
    %v3714 = vunpack.c.h.b16 %v1041
    %v3715 = vunpack.c.l.b16 %v1042
    %v3716 = vunpack.c.h.b16 %v1042
    %v3717 = vunpack.c.l.b16 %v1043
    %v3718 = vunpack.c.h.b16 %v1043
    %v3719 = vunpack.c.l.b16 %v1044
    %v3720 = vunpack.c.h.b16 %v1044
    %v3721 = vunpack.c.l.b16 %v1045
    %v3722 = vunpack.c.h.b16 %v1045
    %v3723 = vunpack.c.l.b16 %v1046
    %v3724 = vunpack.c.h.b16 %v1046
    %v3725 = vunpack.c.l.b16 %v1047
    %v3726 = vunpack.c.h.b16 %v1047
    %v3727 = vunpack.c.l.b16 %v1048
    %v3728 = vunpack.c.h.b16 %v1048
    %v3729 = vunpack.c.l.b16 %v1049
    %v3730 = vunpack.c.h.b16 %v1049
    %v3731 = vunpack.c.l.b16 %v1050
    %v3732 = vunpack.c.h.b16 %v1050
    %v3733 = vunpack.c.l.b16 %v1051
    %v3734 = vunpack.c.h.b16 %v1051
    %v3735 = vunpack.c.l.b16 %v1052
    %v3736 = vunpack.c.h.b16 %v1052
    %v3737 = vunpack.c.l.b16 %v1053
    %v3738 = vunpack.c.h.b16 %v1053
    %v3739 = vunpack.c.l.b16 %v1054
    %v3740 = vunpack.c.h.b16 %v1054
    %v3741 = vunpack.c.l.b16 %v1055
    %v3742 = vunpack.c.h.b16 %v1055
    %v3743 = vunpack.c.l.b16 %v1056
    %v3744 = vunpack.c.h.b16 %v1056
    %v3745 = vunpack.c.l.b16 %v1057
    %v3746 = vunpack.c.h.b16 %v1057
    %v3747 = vunpack.c.l.b16 %v1058
    %v3748 = vunpack.c.h.b16 %v1058
    %v3749 = vunpack.c.l.b16 %v1059
    %v3750 = vunpack.c.h.b16 %v1059
    %v3751 = vunpack.c.l.b16 %v1060
    %v3752 = vunpack.c.h.b16 %v1060
    %v3753 = vunpack.c.l.b16 %v1061
    %v3754 = vunpack.c.h.b16 %v1061
    %v3755 = vunpack.c.l.b16 %v1062
    %v3756 = vunpack.c.h.b16 %v1062
    %v3757 = vunpack.c.l.b16 %v1063
    %v3758 = vunpack.c.h.b16 %v1063
    %v3759 = vunpack.c.l.b16 %v1064
    %v3760 = vunpack.c.h.b16 %v1064
    %v3761 = vunpack.c.l.b16 %v1065
    %v3762 = vunpack.c.h.b16 %v1065
    %v3763 = vunpack.c.l.b16 %v1066
    %v3764 = vunpack.c.h.b16 %v1066
    %v3765 = vunpack.c.l.b16 %v1067
    %v3766 = vunpack.c.h.b16 %v1067
    %v3767 = vunpack.c.l.b16 %v1068
    %v3768 = vunpack.c.h.b16 %v1068
    %v3769 = vunpack.c.l.b16 %v1069
    %v3770 = vunpack.c.h.b16 %v1069
    %v3771 = vunpack.c.l.b16 %v1070
    %v3772 = vunpack.c.h.b16 %v1070
    %v3773 = vunpack.c.l.b16 %v1071
    %v3774 = vunpack.c.h.b16 %v1071
    %v3775 = vunpack.c.l.b16 %v1072
    %v3776 = vunpack.c.h.b16 %v1072
    %v3777 = vunpack.c.l.b16 %v1073
    %v3778 = vunpack.c.h.b16 %v1073
    %v3779 = vunpack.c.l.b16 %v1074
    %v3780 = vunpack.c.h.b16 %v1074
    %v3781 = vunpack.c.l.b16 %v1075
    %v3782 = vunpack.c.h.b16 %v1075
    %v3783 = vunpack.c.l.b16 %v1076
    %v3784 = vunpack.c.h.b16 %v1076
    %v3785 = vunpack.c.l.b16 %v1077
    %v3786 = vunpack.c.h.b16 %v1077
    %v3787 = vunpack.c.l.b16 %v1078
    %v3788 = vunpack.c.h.b16 %v1078
    %v3789 = vunpack.c.l.b16 %v1079
    %v3790 = vunpack.c.h.b16 %v1079
    %v3791 = vunpack.c.l.b16 %v1080
    %v3792 = vunpack.c.h.b16 %v1080
    %v3793 = vunpack.c.l.b16 %v1081
    %v3794 = vunpack.c.h.b16 %v1081
    %v3795 = vunpack.c.l.b16 %v1082
    %v3796 = vunpack.c.h.b16 %v1082
    %v3797 = vunpack.c.l.b16 %v1083
    %v3798 = vunpack.c.h.b16 %v1083
    %v3799 = vunpack.c.l.b16 %v1084
    %v3800 = vunpack.c.h.b16 %v1084
    %v3801 = vunpack.c.l.b16 %v1085
    %v3802 = vunpack.c.h.b16 %v1085
    %v3803 = vunpack.c.l.b16 %v1086
    %v3804 = vunpack.c.h.b16 %v1086
    %v3805 = vunpack.c.l.b16 %v1087
    %v3806 = vunpack.c.h.b16 %v1087
    %v3807 = vunpack.c.l.b16 %v1088
    %v3808 = vunpack.c.h.b16 %v1088
    %v3809 = vunpack.c.l.b16 %v1089
    %v3810 = vunpack.c.h.b16 %v1089
    %v3811 = vunpack.c.l.b16 %v1090
    %v3812 = vunpack.c.h.b16 %v1090
    %v3813 = vunpack.c.l.b16 %v1091
    %v3814 = vunpack.c.h.b16 %v1091
    %v3815 = vunpack.c.l.b16 %v1092
    %v3816 = vunpack.c.h.b16 %v1092
    %v3817 = vunpack.c.l.b16 %v1093
    %v3818 = vunpack.c.h.b16 %v1093
    %v3819 = vunpack.c.l.b16 %v1094
    %v3820 = vunpack.c.h.b16 %v1094
    %v3821 = vunpack.c.l.b16 %v1095
    %v3822 = vunpack.c.h.b16 %v1095
    %v3823 = vunpack.c.l.b16 %v1096
    %v3824 = vunpack.c.h.b16 %v1096
    %v3825 = vunpack.c.l.b16 %v1097
    %v3826 = vunpack.c.h.b16 %v1097
    %v3827 = vunpack.c.l.b16 %v1098
    %v3828 = vunpack.c.h.b16 %v1098
    %v3829 = vunpack.c.l.b16 %v1099
    %v3830 = vunpack.c.h.b16 %v1099
    %v3831 = vunpack.c.l.b16 %v1100
    %v3832 = vunpack.c.h.b16 %v1100
    %v3833 = vunpack.c.l.b16 %v1101
    %v3834 = vunpack.c.h.b16 %v1101
    %v3835 = vunpack.c.l.b16 %v1102
    %v3836 = vunpack.c.h.b16 %v1102
    %v3837 = vunpack.c.l.b16 %v1103
    %v3838 = vunpack.c.h.b16 %v1103
    %v3839 = vunpack.c.l.b16 %v1104
    %v3840 = vunpack.c.h.b16 %v1104
    %v3841 = vunpack.c.l.b16 %v1105
    %v3842 = vunpack.c.h.b16 %v1105
    %v3843 = vunpack.c.l.b16 %v1106
    %v3844 = vunpack.c.h.b16 %v1106
    %v3845 = vunpack.c.l.b16 %v1107
    %v3846 = vunpack.c.h.b16 %v1107
    %v3847 = vunpack.c.l.b16 %v1108
    %v3848 = vunpack.c.h.b16 %v1108
    %v3849 = vunpack.c.l.b16 %v1109
    %v3850 = vunpack.c.h.b16 %v1109
    %v3851 = vunpack.c.l.b16 %v1110
    %v3852 = vunpack.c.h.b16 %v1110
    %v3853 = vunpack.c.l.b16 %v1111
    %v3854 = vunpack.c.h.b16 %v1111
    %v3855 = vunpack.c.l.b16 %v1112
    %v3856 = vunpack.c.h.b16 %v1112
    %v3857 = vunpack.c.l.b16 %v1113
    %v3858 = vunpack.c.h.b16 %v1113
    %v3859 = vunpack.c.l.b16 %v1114
    %v3860 = vunpack.c.h.b16 %v1114
    %v3861 = vunpack.c.l.b16 %v1115
    %v3862 = vunpack.c.h.b16 %v1115
    %v3863 = vunpack.c.l.b16 %v1116
    %v3864 = vunpack.c.h.b16 %v1116
    %v3865 = vunpack.c.l.b16 %v1117
    %v3866 = vunpack.c.h.b16 %v1117
    %v3867 = vunpack.c.l.b16 %v1118
    %v3868 = vunpack.c.h.b16 %v1118
    %v3869 = vunpack.c.l.b16 %v1119
    %v3870 = vunpack.c.h.b16 %v1119
    %v3871 = vunpack.c.l.b16 %v1120
    %v3872 = vunpack.c.h.b16 %v1120
    %v3873 = vunpack.c.l.b16 %v1121
    %v3874 = vunpack.c.h.b16 %v1121
    %v3875 = vunpack.c.l.b16 %v1122
    %v3876 = vunpack.c.h.b16 %v1122
    %v3877 = vunpack.c.l.b16 %v1123
    %v3878 = vunpack.c.h.b16 %v1123
    %v3879 = vunpack.c.l.b16 %v1124
    %v3880 = vunpack.c.h.b16 %v1124
    %v3881 = vunpack.c.l.b16 %v1125
    %v3882 = vunpack.c.h.b16 %v1125
    %v3883 = vunpack.c.l.b16 %v1126
    %v3884 = vunpack.c.h.b16 %v1126
    %v3885 = vunpack.c.l.b16 %v1127
    %v3886 = vunpack.c.h.b16 %v1127
    %v3887 = vunpack.c.l.b16 %v1128
    %v3888 = vunpack.c.h.b16 %v1128
    %v3889 = vunpack.c.l.b16 %v1129
    %v3890 = vunpack.c.h.b16 %v1129
    %v3891 = vunpack.c.l.b16 %v1130
    %v3892 = vunpack.c.h.b16 %v1130
    %v3893 = vunpack.c.l.b16 %v1131
    %v3894 = vunpack.c.h.b16 %v1131
    %v3895 = vunpack.c.l.b16 %v1132
    %v3896 = vunpack.c.h.b16 %v1132
    %v3897 = vunpack.c.l.b16 %v1133
    %v3898 = vunpack.c.h.b16 %v1133
    %v3899 = vunpack.c.l.b16 %v1134
    %v3900 = vunpack.c.h.b16 %v1134
    %v3901 = vunpack.c.l.b16 %v1135
    %v3902 = vunpack.c.h.b16 %v1135
    %v3903 = vunpack.c.l.b16 %v1136
    %v3904 = vunpack.c.h.b16 %v1136
    %v3905 = vunpack.c.l.b16 %v1137
    %v3906 = vunpack.c.h.b16 %v1137
    %v3907 = vunpack.c.l.b16 %v1138
    %v3908 = vunpack.c.h.b16 %v1138
    %v3909 = vunpack.c.l.b16 %v1139
    %v3910 = vunpack.c.h.b16 %v1139
    %v3911 = vunpack.c.l.b16 %v1140
    %v3912 = vunpack.c.h.b16 %v1140
    %v3913 = vunpack.c.l.b16 %v1141
    %v3914 = vunpack.c.h.b16 %v1141
    %v3915 = vunpack.c.l.b16 %v1142
    %v3916 = vunpack.c.h.b16 %v1142
    %v3917 = vunpack.c.l.b16 %v1143
    %v3918 = vunpack.c.h.b16 %v1143
    %v3919 = vunpack.c.l.b16 %v1144
    %v3920 = vunpack.c.h.b16 %v1144
    %v3921 = vunpack.c.l.b16 %v1145
    %v3922 = vunpack.c.h.b16 %v1145
    %v3923 = vunpack.c.l.b16 %v1146
    %v3924 = vunpack.c.h.b16 %v1146
    %v3925 = vunpack.c.l.b16 %v1147
    %v3926 = vunpack.c.h.b16 %v1147
    %v3927 = vunpack.c.l.b16 %v1148
    %v3928 = vunpack.c.h.b16 %v1148
    %v3929 = vunpack.c.l.b16 %v1149
    %v3930 = vunpack.c.h.b16 %v1149
    %v3931 = vunpack.c.l.b16 %v1150
    %v3932 = vunpack.c.h.b16 %v1150
    %v3933 = vunpack.c.l.b16 %v1151
    %v3934 = vunpack.c.h.b16 %v1151
    %v3935 = vunpack.c.l.b16 %v1152
    %v3936 = vunpack.c.h.b16 %v1152
    %v3937 = vunpack.c.l.b16 %v1153
    %v3938 = vunpack.c.h.b16 %v1153
    %v3939 = vunpack.c.l.b16 %v1154
    %v3940 = vunpack.c.h.b16 %v1154
    %v3941 = vunpack.c.l.b16 %v1155
    %v3942 = vunpack.c.h.b16 %v1155
    %v3943 = vunpack.c.l.b16 %v1156
    %v3944 = vunpack.c.h.b16 %v1156
    %v3945 = vunpack.c.l.b16 %v1157
    %v3946 = vunpack.c.h.b16 %v1157
    %v3947 = vunpack.c.l.b16 %v1158
    %v3948 = vunpack.c.h.b16 %v1158
    %v3949 = vunpack.c.l.b16 %v1159
    %v3950 = vunpack.c.h.b16 %v1159
    %v3951 = vunpack.c.l.b16 %v1160
    %v3952 = vunpack.c.h.b16 %v1160
    %v3953 = vunpack.c.l.b16 %v1161
    %v3954 = vunpack.c.h.b16 %v1161
    %v3955 = vunpack.c.l.b16 %v1162
    %v3956 = vunpack.c.h.b16 %v1162
    %v3957 = vunpack.c.l.b16 %v1163
    %v3958 = vunpack.c.h.b16 %v1163
    %v3959 = vunpack.c.l.b16 %v1164
    %v3960 = vunpack.c.h.b16 %v1164
    %v3961 = vunpack.c.l.b16 %v1165
    %v3962 = vunpack.c.h.b16 %v1165
    %v3963 = vunpack.c.l.b16 %v1166
    %v3964 = vunpack.c.h.b16 %v1166
    %v3965 = vunpack.c.l.b16 %v1167
    %v3966 = vunpack.c.h.b16 %v1167
    %v3967 = vunpack.c.l.b16 %v1168
    %v3968 = vunpack.c.h.b16 %v1168
    %v3969 = vunpack.c.l.b16 %v1169
    %v3970 = vunpack.c.h.b16 %v1169
    %v3971 = vunpack.c.l.b16 %v1170
    %v3972 = vunpack.c.h.b16 %v1170
    %v3973 = vunpack.c.l.b16 %v1171
    %v3974 = vunpack.c.h.b16 %v1171
    %v3975 = vunpack.c.l.b16 %v1172
    %v3976 = vunpack.c.h.b16 %v1172
    %v3977 = vunpack.c.l.b16 %v1173
    %v3978 = vunpack.c.h.b16 %v1173
    %v3979 = vunpack.c.l.b16 %v1174
    %v3980 = vunpack.c.h.b16 %v1174
    %v3981 = vunpack.c.l.b16 %v1175
    %v3982 = vunpack.c.h.b16 %v1175
    %v3983 = vunpack.c.l.b16 %v1176
    %v3984 = vunpack.c.h.b16 %v1176
    %v3985 = vunpack.c.l.b16 %v1177
    %v3986 = vunpack.c.h.b16 %v1177
    %v3987 = vunpack.c.l.b16 %v1178
    %v3988 = vunpack.c.h.b16 %v1178
    %v3989 = vunpack.c.l.b16 %v1179
    %v3990 = vunpack.c.h.b16 %v1179
    %v3991 = vunpack.c.l.b16 %v1180
    %v3992 = vunpack.c.h.b16 %v1180
    %v3993 = vunpack.c.l.b16 %v1181
    %v3994 = vunpack.c.h.b16 %v1181
    %v3995 = vunpack.c.l.b16 %v1182
    %v3996 = vunpack.c.h.b16 %v1182
    %v3997 = vunpack.c.l.b16 %v1183
    %v3998 = vunpack.c.h.b16 %v1183
    %v3999 = vunpack.c.l.b16 %v1184
    %v4000 = vunpack.c.h.b16 %v1184
    %v4001 = vunpack.c.l.b16 %v1185
    %v4002 = vunpack.c.h.b16 %v1185
    %v4003 = vunpack.c.l.b16 %v1186
    %v4004 = vunpack.c.h.b16 %v1186
    %v4005 = vunpack.c.l.b16 %v1187
    %v4006 = vunpack.c.h.b16 %v1187
    %v4007 = vunpack.c.l.b16 %v1188
    %v4008 = vunpack.c.h.b16 %v1188
    %v4009 = vunpack.c.l.b16 %v1189
    %v4010 = vunpack.c.h.b16 %v1189
    %v4011 = vunpack.c.l.b16 %v1190
    %v4012 = vunpack.c.h.b16 %v1190
    %v4013 = vunpack.c.l.b16 %v1191
    %v4014 = vunpack.c.h.b16 %v1191
    %v4015 = vunpack.c.l.b16 %v1192
    %v4016 = vunpack.c.h.b16 %v1192
    %v4017 = vunpack.c.l.b16 %v1193
    %v4018 = vunpack.c.h.b16 %v1193
    %v4019 = vunpack.c.l.b16 %v1194
    %v4020 = vunpack.c.h.b16 %v1194
    %v4021 = vunpack.c.l.b16 %v1195
    %v4022 = vunpack.c.h.b16 %v1195
    %v4023 = vunpack.c.l.b16 %v1196
    %v4024 = vunpack.c.h.b16 %v1196
    %v4025 = vunpack.c.l.b16 %v1197
    %v4026 = vunpack.c.h.b16 %v1197
    %v4027 = vunpack.c.l.b16 %v1198
    %v4028 = vunpack.c.h.b16 %v1198
    %v4029 = vunpack.c.l.b16 %v1199
    %v4030 = vunpack.c.h.b16 %v1199
    %v4031 = vunpack.c.l.b16 %v1200
    %v4032 = vunpack.c.h.b16 %v1200
    %v4033 = vunpack.c.l.b16 %v1201
    %v4034 = vunpack.c.h.b16 %v1201
    %v4035 = vunpack.c.l.b16 %v1202
    %v4036 = vunpack.c.h.b16 %v1202
    %v4037 = vunpack.c.l.b16 %v1203
    %v4038 = vunpack.c.h.b16 %v1203
    %v4039 = vunpack.c.l.b16 %v1204
    %v4040 = vunpack.c.h.b16 %v1204
    %v4041 = vunpack.c.l.b16 %v1205
    %v4042 = vunpack.c.h.b16 %v1205
    %v4043 = vunpack.c.l.b16 %v1206
    %v4044 = vunpack.c.h.b16 %v1206
    %v4045 = vunpack.c.l.b16 %v1207
    %v4046 = vunpack.c.h.b16 %v1207
    %v4047 = vunpack.c.l.b16 %v1208
    %v4048 = vunpack.c.h.b16 %v1208
    %v4049 = vunpack.c.l.b16 %v1209
    %v4050 = vunpack.c.h.b16 %v1209
    %v4051 = vunpack.c.l.b16 %v1210
    %v4052 = vunpack.c.h.b16 %v1210
    %v4053 = vunpack.c.l.b16 %v1211
    %v4054 = vunpack.c.h.b16 %v1211
    %v4055 = vunpack.c.l.b16 %v1212
    %v4056 = vunpack.c.h.b16 %v1212
    %v4057 = vunpack.c.l.b16 %v1213
    %v4058 = vunpack.c.h.b16 %v1213
    %v4059 = vunpack.c.l.b16 %v1214
    %v4060 = vunpack.c.h.b16 %v1214
    %v4061 = vunpack.c.l.b16 %v1215
    %v4062 = vunpack.c.h.b16 %v1215
    %v4063 = vunpack.c.l.b16 %v1216
    %v4064 = vunpack.c.h.b16 %v1216
    %v4065 = vunpack.c.l.b16 %v1217
    %v4066 = vunpack.c.h.b16 %v1217
    %v4067 = vunpack.c.l.b16 %v1218
    %v4068 = vunpack.c.h.b16 %v1218
    %v4069 = vunpack.c.l.b16 %v1219
    %v4070 = vunpack.c.h.b16 %v1219
    %v4071 = vunpack.c.l.b16 %v1220
    %v4072 = vunpack.c.h.b16 %v1220
    %v4073 = vunpack.c.l.b16 %v1221
    %v4074 = vunpack.c.h.b16 %v1221
    %v4075 = vunpack.c.l.b16 %v1222
    %v4076 = vunpack.c.h.b16 %v1222
    %v4077 = vunpack.c.l.b16 %v1223
    %v4078 = vunpack.c.h.b16 %v1223
    %v4079 = vunpack.c.l.b16 %v1224
    %v4080 = vunpack.c.h.b16 %v1224
    %v4081 = vunpack.c.l.b16 %v1225
    %v4082 = vunpack.c.h.b16 %v1225
    %v4083 = vunpack.c.l.b16 %v1226
    %v4084 = vunpack.c.h.b16 %v1226
    %v4085 = vunpack.c.l.b16 %v1227
    %v4086 = vunpack.c.h.b16 %v1227
    %v4087 = vunpack.c.l.b16 %v1228
    %v4088 = vunpack.c.h.b16 %v1228
    %v4089 = vunpack.c.l.b16 %v1229
    %v4090 = vunpack.c.h.b16 %v1229
    %v4091 = vunpack.c.l.b16 %v1230
    %v4092 = vunpack.c.h.b16 %v1230
    %v4093 = vunpack.c.l.b16 %v1231
    %v4094 = vunpack.c.h.b16 %v1231
    %v4095 = vunpack.c.l.b16 %v1232
    %v4096 = vunpack.c.h.b16 %v1232
    %v4097 = vunpack.c.l.b16 %v1233
    %v4098 = vunpack.c.h.b16 %v1233
    %v4099 = vunpack.c.l.b16 %v1234
    %v4100 = vunpack.c.h.b16 %v1234
    %v4101 = vunpack.c.l.b16 %v1235
    %v4102 = vunpack.c.h.b16 %v1235
    %v4103 = vunpack.c.l.b16 %v1236
    %v4104 = vunpack.c.h.b16 %v1236
    %v4105 = vunpack.c.l.b16 %v1237
    %v4106 = vunpack.c.h.b16 %v1237
    %v4107 = vunpack.c.l.b16 %v1238
    %v4108 = vunpack.c.h.b16 %v1238
    %v4109 = vunpack.c.l.b16 %v1239
    %v4110 = vunpack.c.h.b16 %v1239
    %v4111 = vunpack.c.l.b16 %v1240
    %v4112 = vunpack.c.h.b16 %v1240
    %v4113 = vunpack.c.l.b16 %v1241
    %v4114 = vunpack.c.h.b16 %v1241
    %v4115 = vunpack.c.l.b16 %v1242
    %v4116 = vunpack.c.h.b16 %v1242
    %v4117 = vunpack.c.l.b16 %v1243
    %v4118 = vunpack.c.h.b16 %v1243
    %v4119 = vunpack.c.l.b16 %v1244
    %v4120 = vunpack.c.h.b16 %v1244
    %v4121 = vunpack.c.l.b16 %v1245
    %v4122 = vunpack.c.h.b16 %v1245
    %v4123 = vunpack.c.l.b16 %v1246
    %v4124 = vunpack.c.h.b16 %v1246
    %v4125 = vunpack.c.l.b16 %v1247
    %v4126 = vunpack.c.h.b16 %v1247
    %v4127 = vunpack.c.l.b16 %v1248
    %v4128 = vunpack.c.h.b16 %v1248
    %v4129 = vunpack.c.l.b16 %v1249
    %v4130 = vunpack.c.h.b16 %v1249
    %v4131 = vunpack.c.l.b16 %v1250
    %v4132 = vunpack.c.h.b16 %v1250
    %v4133 = vunpack.c.l.b16 %v1251
    %v4134 = vunpack.c.h.b16 %v1251
    %v4135 = vunpack.c.l.b16 %v1252
    %v4136 = vunpack.c.h.b16 %v1252
    %v4137 = vunpack.c.l.b16 %v1253
    %v4138 = vunpack.c.h.b16 %v1253
    %v4139 = vunpack.c.l.b16 %v1254
    %v4140 = vunpack.c.h.b16 %v1254
    %v4141 = vunpack.c.l.b16 %v1255
    %v4142 = vunpack.c.h.b16 %v1255
    %v4143 = vunpack.c.l.b16 %v1256
    %v4144 = vunpack.c.h.b16 %v1256
    %v4145 = vunpack.c.l.b16 %v1257
    %v4146 = vunpack.c.h.b16 %v1257
    %v4147 = vunpack.c.l.b16 %v1258
    %v4148 = vunpack.c.h.b16 %v1258
    %v4149 = vunpack.c.l.b16 %v1259
    %v4150 = vunpack.c.h.b16 %v1259
    %v4151 = vunpack.c.l.b16 %v1260
    %v4152 = vunpack.c.h.b16 %v1260
    %v4153 = vunpack.c.l.b16 %v1261
    %v4154 = vunpack.c.h.b16 %v1261
    %v4155 = vunpack.c.l.b16 %v1262
    %v4156 = vunpack.c.h.b16 %v1262
    %v4157 = vunpack.c.l.b16 %v1263
    %v4158 = vunpack.c.h.b16 %v1263
    %v4159 = vunpack.c.l.b16 %v1264
    %v4160 = vunpack.c.h.b16 %v1264
    %v4161 = vunpack.c.l.b16 %v1265
    %v4162 = vunpack.c.h.b16 %v1265
    %v4163 = vunpack.c.l.b16 %v1266
    %v4164 = vunpack.c.h.b16 %v1266
    %v4165 = vunpack.c.l.b16 %v1267
    %v4166 = vunpack.c.h.b16 %v1267
    %v4167 = vunpack.c.l.b16 %v1268
    %v4168 = vunpack.c.h.b16 %v1268
    %v4169 = vunpack.c.l.b16 %v1269
    %v4170 = vunpack.c.h.b16 %v1269
    %v4171 = vunpack.c.l.b16 %v1270
    %v4172 = vunpack.c.h.b16 %v1270
    %v4173 = vunpack.c.l.b16 %v1271
    %v4174 = vunpack.c.h.b16 %v1271
    %v4175 = vunpack.c.l.b16 %v1272
    %v4176 = vunpack.c.h.b16 %v1272
    %v4177 = vunpack.c.l.b16 %v1273
    %v4178 = vunpack.c.h.b16 %v1273
    %v4179 = vunpack.c.l.b16 %v1274
    %v4180 = vunpack.c.h.b16 %v1274
    %v4181 = vunpack.c.l.b16 %v1275
    %v4182 = vunpack.c.h.b16 %v1275
    %v4183 = vunpack.c.l.b16 %v1276
    %v4184 = vunpack.c.h.b16 %v1276
    %v4185 = vunpack.c.l.b16 %v1277
    %v4186 = vunpack.c.h.b16 %v1277
    %v4187 = vunpack.c.l.b16 %v1278
    %v4188 = vunpack.c.h.b16 %v1278
    %v4189 = vunpack.c.l.b16 %v1279
    %v4190 = vunpack.c.h.b16 %v1279
    %v4191 = vunpack.c.l.b16 %v1280
    %v4192 = vunpack.c.h.b16 %v1280
    %v4193 = vunpack.c.l.b16 %v1281
    %v4194 = vunpack.c.h.b16 %v1281
    %v4195 = vunpack.c.l.b16 %v1282
    %v4196 = vunpack.c.h.b16 %v1282
    %v4197 = vunpack.c.l.b16 %v1283
    %v4198 = vunpack.c.h.b16 %v1283
    %v4199 = vunpack.c.l.b16 %v1284
    %v4200 = vunpack.c.h.b16 %v1284
    %v4201 = vunpack.c.l.b16 %v1285
    %v4202 = vunpack.c.h.b16 %v1285
    %v4203 = vunpack.c.l.b16 %v1286
    %v4204 = vunpack.c.h.b16 %v1286
    %v4205 = vunpack.c.l.b16 %v1287
    %v4206 = vunpack.c.h.b16 %v1287
    %v4207 = vunpack.c.l.b16 %v1288
    %v4208 = vunpack.c.h.b16 %v1288
    %v4209 = vunpack.c.l.b16 %v1289
    %v4210 = vunpack.c.h.b16 %v1289
    %v4211 = vunpack.c.l.b16 %v1290
    %v4212 = vunpack.c.h.b16 %v1290
    %v4213 = vunpack.c.l.b16 %v1291
    %v4214 = vunpack.c.h.b16 %v1291
    %v4215 = vunpack.c.l.b16 %v1292
    %v4216 = vunpack.c.h.b16 %v1292
    %v4217 = vunpack.c.l.b16 %v1293
    %v4218 = vunpack.c.h.b16 %v1293
    %v4219 = vunpack.c.l.b16 %v1294
    %v4220 = vunpack.c.h.b16 %v1294
    %v4221 = vunpack.c.l.b16 %v1295
    %v4222 = vunpack.c.h.b16 %v1295
    %v4223 = vunpack.c.l.b16 %v1296
    %v4224 = vunpack.c.h.b16 %v1296
    %v4225 = vunpack.c.l.b16 %v1297
    %v4226 = vunpack.c.h.b16 %v1297
    %v4227 = vunpack.c.l.b16 %v1298
    %v4228 = vunpack.c.h.b16 %v1298
    %v4229 = vunpack.c.l.b16 %v1299
    %v4230 = vunpack.c.h.b16 %v1299
    %v4231 = vunpack.c.l.b16 %v1300
    %v4232 = vunpack.c.h.b16 %v1300
    %v4233 = vunpack.c.l.b16 %v1301
    %v4234 = vunpack.c.h.b16 %v1301
    %v4235 = vunpack.c.l.b16 %v1302
    %v4236 = vunpack.c.h.b16 %v1302
    %v4237 = vunpack.c.l.b16 %v1303
    %v4238 = vunpack.c.h.b16 %v1303
    %v4239 = vunpack.c.l.b16 %v1304
    %v4240 = vunpack.c.h.b16 %v1304
    %v4241 = vunpack.c.l.b16 %v1305
    %v4242 = vunpack.c.h.b16 %v1305
    %v4243 = vunpack.c.l.b16 %v1306
    %v4244 = vunpack.c.h.b16 %v1306
    %v4245 = vunpack.c.l.b16 %v1307
    %v4246 = vunpack.c.h.b16 %v1307
    %v4247 = vunpack.c.l.b16 %v1308
    %v4248 = vunpack.c.h.b16 %v1308
    %v4249 = vunpack.c.l.b16 %v1309
    %v4250 = vunpack.c.h.b16 %v1309
    %v4251 = vunpack.c.l.b16 %v1310
    %v4252 = vunpack.c.h.b16 %v1310
    %v4253 = vunpack.c.l.b16 %v1311
    %v4254 = vunpack.c.h.b16 %v1311
    %v4255 = vunpack.c.l.b16 %v1312
    %v4256 = vunpack.c.h.b16 %v1312
    %v4257 = vunpack.c.l.b16 %v1313
    %v4258 = vunpack.c.h.b16 %v1313
    %v4259 = vunpack.c.l.b16 %v1314
    %v4260 = vunpack.c.h.b16 %v1314
    %v4261 = vunpack.c.l.b16 %v1315
    %v4262 = vunpack.c.h.b16 %v1315
    %v4263 = vunpack.c.l.b16 %v1316
    %v4264 = vunpack.c.h.b16 %v1316
    %v4265 = vunpack.c.l.b16 %v1317
    %v4266 = vunpack.c.h.b16 %v1317
    %v4267 = vunpack.c.l.b16 %v1318
    %v4268 = vunpack.c.h.b16 %v1318
    %v4269 = vunpack.c.l.b16 %v1319
    %v4270 = vunpack.c.h.b16 %v1319
    %v4271 = vunpack.c.l.b16 %v1320
    %v4272 = vunpack.c.h.b16 %v1320
    %v4273 = vunpack.c.l.b16 %v1321
    %v4274 = vunpack.c.h.b16 %v1321
    %v4275 = vunpack.c.l.b16 %v1322
    %v4276 = vunpack.c.h.b16 %v1322
    %v4277 = vunpack.c.l.b16 %v1323
    %v4278 = vunpack.c.h.b16 %v1323
    %v4279 = vunpack.c.l.b16 %v1324
    %v4280 = vunpack.c.h.b16 %v1324
    %v4281 = vunpack.c.l.b16 %v1325
    %v4282 = vunpack.c.h.b16 %v1325
    %v4283 = vunpack.c.l.b16 %v1326
    %v4284 = vunpack.c.h.b16 %v1326
    %v4285 = vunpack.c.l.b16 %v1327
    %v4286 = vunpack.c.h.b16 %v1327
    %v4287 = vunpack.c.l.b16 %v1328
    %v4288 = vunpack.c.h.b16 %v1328
    %v4289 = vunpack.c.l.b16 %v1329
    %v4290 = vunpack.c.h.b16 %v1329
    %v4291 = vunpack.c.l.b16 %v1330
    %v4292 = vunpack.c.h.b16 %v1330
    %v4293 = vunpack.c.l.b16 %v1331
    %v4294 = vunpack.c.h.b16 %v1331
    %v4295 = vunpack.c.l.b16 %v1332
    %v4296 = vunpack.c.h.b16 %v1332
    %v4297 = vunpack.c.l.b16 %v1333
    %v4298 = vunpack.c.h.b16 %v1333
    %v4299 = vunpack.c.l.b16 %v1334
    %v4300 = vunpack.c.h.b16 %v1334
    %v4301 = vunpack.c.l.b16 %v1335
    %v4302 = vunpack.c.h.b16 %v1335
    %v4303 = vunpack.c.l.b16 %v1336
    %v4304 = vunpack.c.h.b16 %v1336
    %v4305 = vunpack.c.l.b16 %v1337
    %v4306 = vunpack.c.h.b16 %v1337
    %v4307 = vunpack.c.l.b16 %v1338
    %v4308 = vunpack.c.h.b16 %v1338
    %v4309 = vunpack.c.l.b16 %v1339
    %v4310 = vunpack.c.h.b16 %v1339
    %v4311 = vunpack.c.l.b16 %v1340
    %v4312 = vunpack.c.h.b16 %v1340
    %v4313 = vunpack.c.l.b16 %v1341
    %v4314 = vunpack.c.h.b16 %v1341
    %v4315 = vunpack.c.l.b16 %v1342
    %v4316 = vunpack.c.h.b16 %v1342
    %v4317 = vunpack.c.l.b16 %v1343
    %v4318 = vunpack.c.h.b16 %v1343
    %v4319 = vunpack.c.l.b16 %v1344
    %v4320 = vunpack.c.h.b16 %v1344
    %v4321 = vunpack.c.l.b16 %v1345
    %v4322 = vunpack.c.h.b16 %v1345
    %v4323 = vunpack.c.l.b16 %v1346
    %v4324 = vunpack.c.h.b16 %v1346
    %v4325 = vunpack.c.l.b16 %v1347
    %v4326 = vunpack.c.h.b16 %v1347
    %v4327 = vunpack.c.l.b16 %v1348
    %v4328 = vunpack.c.h.b16 %v1348
    %v4329 = vunpack.c.l.b16 %v1349
    %v4330 = vunpack.c.h.b16 %v1349
    %v4331 = vunpack.c.l.b16 %v1350
    %v4332 = vunpack.c.h.b16 %v1350
    %v4333 = vunpack.c.l.b16 %v1351
    %v4334 = vunpack.c.h.b16 %v1351
    %v4335 = vunpack.c.l.b16 %v1352
    %v4336 = vunpack.c.h.b16 %v1352
    %v4337 = vunpack.c.l.b16 %v1353
    %v4338 = vunpack.c.h.b16 %v1353
    %v4339 = vunpack.c.l.b16 %v1354
    %v4340 = vunpack.c.h.b16 %v1354
    %v4341 = vunpack.c.l.b16 %v1355
    %v4342 = vunpack.c.h.b16 %v1355
    %v4343 = vunpack.c.l.b16 %v1356
    %v4344 = vunpack.c.h.b16 %v1356
    %v4345 = vunpack.c.l.b16 %v1357
    %v4346 = vunpack.c.h.b16 %v1357
    %v4347 = vunpack.c.l.b16 %v1358
    %v4348 = vunpack.c.h.b16 %v1358
    %v4349 = vunpack.c.l.b16 %v1359
    %v4350 = vunpack.c.h.b16 %v1359
    %v4351 = vunpack.c.l.b16 %v1360
    %v4352 = vunpack.c.h.b16 %v1360
    %v4353 = vunpack.c.l.b16 %v1361
    %v4354 = vunpack.c.h.b16 %v1361
    %v4355 = vunpack.c.l.b16 %v1362
    %v4356 = vunpack.c.h.b16 %v1362
    %v4357 = vunpack.c.l.b16 %v1363
    %v4358 = vunpack.c.h.b16 %v1363
    %v4359 = vunpack.c.l.b16 %v1364
    %v4360 = vunpack.c.h.b16 %v1364
    %v4361 = vunpack.c.l.b16 %v1365
    %v4362 = vunpack.c.h.b16 %v1365
    %v4363 = vunpack.c.l.b16 %v1366
    %v4364 = vunpack.c.h.b16 %v1366
    %v4365 = vunpack.c.l.b16 %v1367
    %v4366 = vunpack.c.h.b16 %v1367
    %v4367 = vunpack.c.l.b16 %v1368
    %v4368 = vunpack.c.h.b16 %v1368
    %v4369 = vunpack.c.l.b16 %v1369
    %v4370 = vunpack.c.h.b16 %v1369
    %v4371 = vunpack.c.l.b16 %v1370
    %v4372 = vunpack.c.h.b16 %v1370
    %v4373 = vunpack.c.l.b16 %v1371
    %v4374 = vunpack.c.h.b16 %v1371
    %v4375 = vunpack.c.l.b16 %v1372
    %v4376 = vunpack.c.h.b16 %v1372
    %v4377 = vunpack.c.l.b16 %v1373
    %v4378 = vunpack.c.h.b16 %v1373
    %v4379 = vunpack.c.l.b16 %v1374
    %v4380 = vunpack.c.h.b16 %v1374
    %v4381 = vunpack.c.l.b16 %v1375
    %v4382 = vunpack.c.h.b16 %v1375
    %v4383 = vunpack.c.l.b16 %v1376
    %v4384 = vunpack.c.h.b16 %v1376
    %v4385 = vunpack.c.l.b16 %v1377
    %v4386 = vunpack.c.h.b16 %v1377
    %v4387 = vunpack.c.l.b16 %v1378
    %v4388 = vunpack.c.h.b16 %v1378
    %v4389 = vunpack.c.l.b16 %v1379
    %v4390 = vunpack.c.h.b16 %v1379
    %v4391 = vunpack.c.l.b16 %v1380
    %v4392 = vunpack.c.h.b16 %v1380
    %v4393 = vunpack.c.l.b16 %v1381
    %v4394 = vunpack.c.h.b16 %v1381
    %v4395 = vunpack.c.l.b16 %v1382
    %v4396 = vunpack.c.h.b16 %v1382
    %v4397 = vunpack.c.l.b16 %v1383
    %v4398 = vunpack.c.h.b16 %v1383
    %v4399 = vunpack.c.l.b16 %v1384
    %v4400 = vunpack.c.h.b16 %v1384
    %v4401 = vunpack.c.l.b16 %v1385
    %v4402 = vunpack.c.h.b16 %v1385
    %v4403 = vunpack.c.l.b16 %v1386
    %v4404 = vunpack.c.h.b16 %v1386
    %v4405 = vunpack.c.l.b16 %v1387
    %v4406 = vunpack.c.h.b16 %v1387
    %v4407 = vunpack.c.l.b16 %v1388
    %v4408 = vunpack.c.h.b16 %v1388
    %v4409 = vunpack.c.l.b16 %v1389
    %v4410 = vunpack.c.h.b16 %v1389
    %v4411 = vunpack.c.l.b16 %v1390
    %v4412 = vunpack.c.h.b16 %v1390
    %v4413 = vunpack.c.l.b16 %v1391
    %v4414 = vunpack.c.h.b16 %v1391
    %v4415 = vunpack.c.l.b16 %v1392
    %v4416 = vunpack.c.h.b16 %v1392
    %v4417 = vunpack.c.l.b16 %v1393
    %v4418 = vunpack.c.h.b16 %v1393
    %v4419 = vunpack.c.l.b16 %v1394
    %v4420 = vunpack.c.h.b16 %v1394
    %v4421 = vunpack.c.l.b16 %v1395
    %v4422 = vunpack.c.h.b16 %v1395
    %v4423 = vunpack.c.l.b16 %v1396
    %v4424 = vunpack.c.h.b16 %v1396
    %v4425 = vunpack.c.l.b16 %v1397
    %v4426 = vunpack.c.h.b16 %v1397
    %v4427 = vunpack.c.l.b16 %v1398
    %v4428 = vunpack.c.h.b16 %v1398
    %v4429 = vunpack.c.l.b16 %v1399
    %v4430 = vunpack.c.h.b16 %v1399
    %v4431 = vunpack.c.l.b16 %v1400
    %v4432 = vunpack.c.h.b16 %v1400
    %v4433 = vunpack.c.l.b16 %v1401
    %v4434 = vunpack.c.h.b16 %v1401
    %v4435 = vunpack.c.l.b16 %v1402
    %v4436 = vunpack.c.h.b16 %v1402
    %v4437 = vunpack.c.l.b16 %v1403
    %v4438 = vunpack.c.h.b16 %v1403
    %v4439 = vunpack.c.l.b16 %v1404
    %v4440 = vunpack.c.h.b16 %v1404
    %v4441 = vunpack.c.l.b16 %v1405
    %v4442 = vunpack.c.h.b16 %v1405
    %v4443 = vunpack.c.l.b16 %v1406
    %v4444 = vunpack.c.h.b16 %v1406
    %v4445 = vunpack.c.l.b16 %v1407
    %v4446 = vunpack.c.h.b16 %v1407
    %v4447 = vunpack.c.l.b16 %v1408
    %v4448 = vunpack.c.h.b16 %v1408
    %v4449 = vunpack.c.l.b16 %v1409
    %v4450 = vunpack.c.h.b16 %v1409
    %v4451 = vunpack.c.l.b16 %v1410
    %v4452 = vunpack.c.h.b16 %v1410
    %v4453 = vunpack.c.l.b16 %v1411
    %v4454 = vunpack.c.h.b16 %v1411
    %v4455 = vunpack.c.l.b16 %v1412
    %v4456 = vunpack.c.h.b16 %v1412
    %v4457 = vunpack.c.l.b16 %v1413
    %v4458 = vunpack.c.h.b16 %v1413
    %v4459 = vunpack.c.l.b16 %v1414
    %v4460 = vunpack.c.h.b16 %v1414
    %v4461 = vunpack.c.l.b16 %v1415
    %v4462 = vunpack.c.h.b16 %v1415
    %v4463 = vunpack.c.l.b16 %v1416
    %v4464 = vunpack.c.h.b16 %v1416
    %v4465 = vunpack.c.l.b16 %v1417
    %v4466 = vunpack.c.h.b16 %v1417
    %v4467 = vunpack.c.l.b16 %v1418
    %v4468 = vunpack.c.h.b16 %v1418
    %v4469 = vunpack.c.l.b16 %v1419
    %v4470 = vunpack.c.h.b16 %v1419
    %v4471 = vunpack.c.l.b16 %v1420
    %v4472 = vunpack.c.h.b16 %v1420
    %v4473 = vunpack.c.l.b16 %v1421
    %v4474 = vunpack.c.h.b16 %v1421
    %v4475 = vunpack.c.l.b16 %v1422
    %v4476 = vunpack.c.h.b16 %v1422
    %v4477 = vunpack.c.l.b16 %v1423
    %v4478 = vunpack.c.h.b16 %v1423
    %v4479 = vunpack.c.l.b16 %v1424
    %v4480 = vunpack.c.h.b16 %v1424
    %v4481 = vunpack.c.l.b16 %v1425
    %v4482 = vunpack.c.h.b16 %v1425
    %v4483 = vunpack.c.l.b16 %v1426
    %v4484 = vunpack.c.h.b16 %v1426
    %v4485 = vunpack.c.l.b16 %v1427
    %v4486 = vunpack.c.h.b16 %v1427
    %v4487 = vunpack.c.l.b16 %v1428
    %v4488 = vunpack.c.h.b16 %v1428
    %v4489 = vunpack.c.l.b16 %v1429
    %v4490 = vunpack.c.h.b16 %v1429
    %v4491 = vunpack.c.l.b16 %v1430
    %v4492 = vunpack.c.h.b16 %v1430
    %v4493 = vunpack.c.l.b16 %v1431
    %v4494 = vunpack.c.h.b16 %v1431
    %v4495 = vunpack.c.l.b16 %v1432
    %v4496 = vunpack.c.h.b16 %v1432
    %v4497 = vunpack.c.l.b16 %v1433
    %v4498 = vunpack.c.h.b16 %v1433
    %v4499 = vunpack.c.l.b16 %v1434
    %v4500 = vunpack.c.h.b16 %v1434
    %v4501 = vunpack.c.l.b16 %v1435
    %v4502 = vunpack.c.h.b16 %v1435
    %v4503 = vunpack.c.l.b16 %v1436
    %v4504 = vunpack.c.h.b16 %v1436
    %v4505 = vunpack.c.l.b16 %v1437
    %v4506 = vunpack.c.h.b16 %v1437
    %v4507 = vunpack.c.l.b16 %v1438
    %v4508 = vunpack.c.h.b16 %v1438
    %v4509 = vunpack.c.l.b16 %v1439
    %v4510 = vunpack.c.h.b16 %v1439
    %v4511 = vunpack.c.l.b16 %v1440
    %v4512 = vunpack.c.h.b16 %v1440
    %v4513 = vunpack.c.l.b16 %v1441
    %v4514 = vunpack.c.h.b16 %v1441
    %v4515 = vunpack.c.l.b16 %v1442
    %v4516 = vunpack.c.h.b16 %v1442
    %v4517 = vunpack.c.l.b16 %v1443
    %v4518 = vunpack.c.h.b16 %v1443
    %v4519 = vunpack.c.l.b16 %v1444
    %v4520 = vunpack.c.h.b16 %v1444
    %v4521 = vunpack.c.l.b16 %v1445
    %v4522 = vunpack.c.h.b16 %v1445
    %v4523 = vunpack.c.l.b16 %v1446
    %v4524 = vunpack.c.h.b16 %v1446
    %v4525 = vunpack.c.l.b16 %v1447
    %v4526 = vunpack.c.h.b16 %v1447
    %v4527 = vunpack.c.l.b16 %v1448
    %v4528 = vunpack.c.h.b16 %v1448
    %v4529 = vunpack.c.l.b16 %v1449
    %v4530 = vunpack.c.h.b16 %v1449
    %v4531 = vunpack.c.l.b16 %v1450
    %v4532 = vunpack.c.h.b16 %v1450
    %v4533 = vunpack.c.l.b16 %v1451
    %v4534 = vunpack.c.h.b16 %v1451
    %v4535 = vunpack.c.l.b16 %v1452
    %v4536 = vunpack.c.h.b16 %v1452
    %v4537 = vunpack.c.l.b16 %v1453
    %v4538 = vunpack.c.h.b16 %v1453
    %v4539 = vunpack.c.l.b16 %v1454
    %v4540 = vunpack.c.h.b16 %v1454
    %v4541 = vunpack.c.l.b16 %v1455
    %v4542 = vunpack.c.h.b16 %v1455
    %v4543 = vunpack.c.l.b16 %v1456
    %v4544 = vunpack.c.h.b16 %v1456
    %v4545 = vunpack.c.l.b16 %v1457
    %v4546 = vunpack.c.h.b16 %v1457
    %v4547 = vunpack.c.l.b16 %v1458
    %v4548 = vunpack.c.h.b16 %v1458
    %v4549 = vunpack.c.l.b16 %v1459
    %v4550 = vunpack.c.h.b16 %v1459
    %v4551 = vunpack.c.l.b16 %v1460
    %v4552 = vunpack.c.h.b16 %v1460
    %v4553 = vunpack.c.l.b16 %v1461
    %v4554 = vunpack.c.h.b16 %v1461
    %v4555 = vunpack.c.l.b16 %v1462
    %v4556 = vunpack.c.h.b16 %v1462
    %v4557 = vunpack.c.l.b16 %v1463
    %v4558 = vunpack.c.h.b16 %v1463
    %v4559 = vunpack.c.l.b16 %v1464
    %v4560 = vunpack.c.h.b16 %v1464
    %v4561 = vunpack.c.l.b16 %v1465
    %v4562 = vunpack.c.h.b16 %v1465
    %v4563 = vunpack.c.l.b16 %v1466
    %v4564 = vunpack.c.h.b16 %v1466
    %v4565 = vunpack.c.l.b16 %v1467
    %v4566 = vunpack.c.h.b16 %v1467
    %v4567 = vunpack.c.l.b16 %v1468
    %v4568 = vunpack.c.h.b16 %v1468
    %v4569 = vunpack.c.l.b16 %v1469
    %v4570 = vunpack.c.h.b16 %v1469
    %v4571 = vunpack.c.l.b16 %v1470
    %v4572 = vunpack.c.h.b16 %v1470
    %v4573 = vunpack.c.l.b16 %v1471
    %v4574 = vunpack.c.h.b16 %v1471
    %v4575 = vunpack.c.l.b16 %v1472
    %v4576 = vunpack.c.h.b16 %v1472
    %v4577 = vunpack.c.l.b16 %v1473
    %v4578 = vunpack.c.h.b16 %v1473
    %v4579 = vunpack.c.l.b16 %v1474
    %v4580 = vunpack.c.h.b16 %v1474
    %v4581 = vunpack.c.l.b16 %v1475
    %v4582 = vunpack.c.h.b16 %v1475
    %v4583 = vunpack.c.l.b16 %v1476
    %v4584 = vunpack.c.h.b16 %v1476
    %v4585 = vunpack.c.l.b16 %v1477
    %v4586 = vunpack.c.h.b16 %v1477
    %v4587 = vunpack.c.l.b16 %v1478
    %v4588 = vunpack.c.h.b16 %v1478
    %v4589 = vunpack.c.l.b16 %v1479
    %v4590 = vunpack.c.h.b16 %v1479
    %v4591 = vunpack.c.l.b16 %v1480
    %v4592 = vunpack.c.h.b16 %v1480
    %v4593 = vunpack.c.l.b16 %v1481
    %v4594 = vunpack.c.h.b16 %v1481
    %v4595 = vunpack.c.l.b16 %v1482
    %v4596 = vunpack.c.h.b16 %v1482
    %v4597 = vunpack.c.l.b16 %v1483
    %v4598 = vunpack.c.h.b16 %v1483
    %v4599 = vunpack.c.l.b16 %v1484
    %v4600 = vunpack.c.h.b16 %v1484
    %v4601 = vunpack.c.l.b16 %v1485
    %v4602 = vunpack.c.h.b16 %v1485
    %v4603 = vunpack.c.l.b16 %v1486
    %v4604 = vunpack.c.h.b16 %v1486
    %v4605 = vunpack.c.l.b16 %v1487
    %v4606 = vunpack.c.h.b16 %v1487
    %v4607 = vunpack.c.l.b16 %v1488
    %v4608 = vunpack.c.h.b16 %v1488
    %v4609 = vunpack.c.l.b16 %v1489
    %v4610 = vunpack.c.h.b16 %v1489
    %v4611 = vunpack.c.l.b16 %v1490
    %v4612 = vunpack.c.h.b16 %v1490
    %v4613 = vunpack.c.l.b16 %v1491
    %v4614 = vunpack.c.h.b16 %v1491
    %v4615 = vunpack.c.l.b16 %v1492
    %v4616 = vunpack.c.h.b16 %v1492
    %v4617 = vunpack.c.l.b16 %v1493
    %v4618 = vunpack.c.h.b16 %v1493
    %v4619 = vunpack.c.l.b16 %v1494
    %v4620 = vunpack.c.h.b16 %v1494
    %v4621 = vunpack.c.l.b16 %v1495
    %v4622 = vunpack.c.h.b16 %v1495
    %v4623 = vunpack.c.l.b16 %v1496
    %v4624 = vunpack.c.h.b16 %v1496
    %v4625 = vunpack.c.l.b16 %v1497
    %v4626 = vunpack.c.h.b16 %v1497
    %v4627 = vunpack.c.l.b16 %v1498
    %v4628 = vunpack.c.h.b16 %v1498
    %v4629 = vunpack.c.l.b16 %v1499
    %v4630 = vunpack.c.h.b16 %v1499
    %v4631 = vunpack.c.l.b16 %v1500
    %v4632 = vunpack.c.h.b16 %v1500
    %v4633 = vunpack.c.l.b16 %v1501
    %v4634 = vunpack.c.h.b16 %v1501
    %v4635 = vunpack.c.l.b16 %v1502
    %v4636 = vunpack.c.h.b16 %v1502
    %v4637 = vunpack.c.l.b16 %v1503
    %v4638 = vunpack.c.h.b16 %v1503
    %v4639 = vunpack.c.l.b16 %v1504
    %v4640 = vunpack.c.h.b16 %v1504
    %v4641 = vunpack.c.l.b16 %v1505
    %v4642 = vunpack.c.h.b16 %v1505
    %v4643 = vunpack.c.l.b16 %v1506
    %v4644 = vunpack.c.h.b16 %v1506
    %v4645 = vunpack.c.l.b16 %v1507
    %v4646 = vunpack.c.h.b16 %v1507
    %v4647 = vunpack.c.l.b16 %v1508
    %v4648 = vunpack.c.h.b16 %v1508
    %v4649 = vunpack.c.l.b16 %v1509
    %v4650 = vunpack.c.h.b16 %v1509
    %v4651 = vunpack.c.l.b16 %v1510
    %v4652 = vunpack.c.h.b16 %v1510
    %v4653 = vunpack.c.l.b16 %v1511
    %v4654 = vunpack.c.h.b16 %v1511
    %v4655 = vunpack.c.l.b16 %v1512
    %v4656 = vunpack.c.h.b16 %v1512
    %v4657 = vunpack.c.l.b16 %v1513
    %v4658 = vunpack.c.h.b16 %v1513
    %v4659 = vunpack.c.l.b16 %v1514
    %v4660 = vunpack.c.h.b16 %v1514
    %v4661 = vunpack.c.l.b16 %v1515
    %v4662 = vunpack.c.h.b16 %v1515
    %v4663 = vunpack.c.l.b16 %v1516
    %v4664 = vunpack.c.h.b16 %v1516
    %v4665 = vunpack.c.l.b16 %v1517
    %v4666 = vunpack.c.h.b16 %v1517
    %v4667 = vunpack.c.l.b16 %v1518
    %v4668 = vunpack.c.h.b16 %v1518
    %v4669 = vunpack.c.l.b16 %v1519
    %v4670 = vunpack.c.h.b16 %v1519
    %v4671 = vunpack.c.l.b16 %v1520
    %v4672 = vunpack.c.h.b16 %v1520
    %v4673 = vunpack.c.l.b16 %v1521
    %v4674 = vunpack.c.h.b16 %v1521
    %v4675 = vunpack.c.l.b16 %v1522
    %v4676 = vunpack.c.h.b16 %v1522
    %v4677 = vunpack.c.l.b16 %v1523
    %v4678 = vunpack.c.h.b16 %v1523
    %v4679 = vunpack.c.l.b16 %v1524
    %v4680 = vunpack.c.h.b16 %v1524
    %v4681 = vunpack.c.l.b16 %v1525
    %v4682 = vunpack.c.h.b16 %v1525
    %v4683 = vunpack.c.l.b16 %v1526
    %v4684 = vunpack.c.h.b16 %v1526
    %v4685 = vunpack.c.l.b16 %v1527
    %v4686 = vunpack.c.h.b16 %v1527
    %v4687 = vunpack.c.l.b16 %v1528
    %v4688 = vunpack.c.h.b16 %v1528
    %v4689 = vunpack.c.l.b16 %v1529
    %v4690 = vunpack.c.h.b16 %v1529
    %v4691 = vunpack.c.l.b16 %v1530
    %v4692 = vunpack.c.h.b16 %v1530
    %v4693 = vunpack.c.l.b16 %v1531
    %v4694 = vunpack.c.h.b16 %v1531
    %v4695 = vunpack.c.l.b16 %v1532
    %v4696 = vunpack.c.h.b16 %v1532
    %v4697 = vunpack.c.l.b16 %v1533
    %v4698 = vunpack.c.h.b16 %v1533
    %v4699 = vunpack.c.l.b16 %v1534
    %v4700 = vunpack.c.h.b16 %v1534
    %v4701 = vunpack.c.l.b16 %v1535
    %v4702 = vunpack.c.h.b16 %v1535
    %v4703 = vunpack.c.l.b16 %v1536
    %v4704 = vunpack.c.h.b16 %v1536
    %v4705 = vunpack.c.l.b16 %v1537
    %v4706 = vunpack.c.h.b16 %v1537
    %v4707 = vunpack.c.l.b16 %v1538
    %v4708 = vunpack.c.h.b16 %v1538
    %v4709 = vunpack.c.l.b16 %v1539
    %v4710 = vunpack.c.h.b16 %v1539
    %v4711 = vunpack.c.l.b16 %v1540
    %v4712 = vunpack.c.h.b16 %v1540
    %v4713 = vunpack.c.l.b16 %v1541
    %v4714 = vunpack.c.h.b16 %v1541
    %v4715 = vunpack.c.l.b16 %v1542
    %v4716 = vunpack.c.h.b16 %v1542
    %v4717 = vunpack.c.l.b16 %v1543
    %v4718 = vunpack.c.h.b16 %v1543
    %v4719 = vunpack.c.l.b16 %v1544
    %v4720 = vunpack.c.h.b16 %v1544
    %v4721 = vunpack.c.l.b16 %v1545
    %v4722 = vunpack.c.h.b16 %v1545
    %v4723 = vunpack.c.l.b16 %v1546
    %v4724 = vunpack.c.h.b16 %v1546
    %v4725 = vunpack.c.l.b16 %v1547
    %v4726 = vunpack.c.h.b16 %v1547
    %v4727 = vunpack.c.l.b16 %v1548
    %v4728 = vunpack.c.h.b16 %v1548
    %v4729 = vunpack.c.l.b16 %v1549
    %v4730 = vunpack.c.h.b16 %v1549
    %v4731 = vunpack.c.l.b16 %v1550
    %v4732 = vunpack.c.h.b16 %v1550
    %v4733 = vunpack.c.l.b16 %v1551
    %v4734 = vunpack.c.h.b16 %v1551
    %v4735 = vunpack.c.l.b16 %v1552
    %v4736 = vunpack.c.h.b16 %v1552
    %v4737 = vunpack.c.l.b16 %v1553
    %v4738 = vunpack.c.h.b16 %v1553
    %v4739 = vunpack.c.l.b16 %v1554
    %v4740 = vunpack.c.h.b16 %v1554
    %v4741 = vunpack.c.l.b16 %v1555
    %v4742 = vunpack.c.h.b16 %v1555
    %v4743 = vunpack.c.l.b16 %v1556
    %v4744 = vunpack.c.h.b16 %v1556
    %v4745 = vunpack.c.l.b16 %v1557
    %v4746 = vunpack.c.h.b16 %v1557
    %v4747 = vunpack.c.l.b16 %v1558
    %v4748 = vunpack.c.h.b16 %v1558
    %v4749 = vunpack.c.l.b16 %v1559
    %v4750 = vunpack.c.h.b16 %v1559
    %v4751 = vunpack.c.l.b16 %v1560
    %v4752 = vunpack.c.h.b16 %v1560
    %v4753 = vunpack.c.l.b16 %v1561
    %v4754 = vunpack.c.h.b16 %v1561
    %v4755 = vunpack.c.l.b16 %v1562
    %v4756 = vunpack.c.h.b16 %v1562
    %v4757 = vunpack.c.l.b16 %v1563
    %v4758 = vunpack.c.h.b16 %v1563
    %v4759 = vunpack.c.l.b16 %v1564
    %v4760 = vunpack.c.h.b16 %v1564
    %v4761 = vunpack.c.l.b16 %v1565
    %v4762 = vunpack.c.h.b16 %v1565
    %v4763 = vunpack.c.l.b16 %v1566
    %v4764 = vunpack.c.h.b16 %v1566
    %v4765 = vunpack.c.l.b16 %v1567
    %v4766 = vunpack.c.h.b16 %v1567
    %v4767 = vunpack.c.l.b16 %v1568
    %v4768 = vunpack.c.h.b16 %v1568
    %v4769 = vunpack.c.l.b16 %v1569
    %v4770 = vunpack.c.h.b16 %v1569
    %v4771 = vunpack.c.l.b16 %v1570
    %v4772 = vunpack.c.h.b16 %v1570
    %v4773 = vunpack.c.l.b16 %v1571
    %v4774 = vunpack.c.h.b16 %v1571
    %v4775 = vunpack.c.l.b16 %v1572
    %v4776 = vunpack.c.h.b16 %v1572
    %v4777 = vunpack.c.l.b16 %v1573
    %v4778 = vunpack.c.h.b16 %v1573
    %v4779 = vunpack.c.l.b16 %v1574
    %v4780 = vunpack.c.h.b16 %v1574
    %v4781 = vunpack.c.l.b16 %v1575
    %v4782 = vunpack.c.h.b16 %v1575
    %v4783 = vunpack.c.l.b16 %v1576
    %v4784 = vunpack.c.h.b16 %v1576
    %v4785 = vunpack.c.l.b16 %v1577
    %v4786 = vunpack.c.h.b16 %v1577
    %v4787 = vunpack.c.l.b16 %v1578
    %v4788 = vunpack.c.h.b16 %v1578
    %v4789 = vunpack.c.l.b16 %v1579
    %v4790 = vunpack.c.h.b16 %v1579
    %v4791 = vunpack.c.l.b16 %v1580
    %v4792 = vunpack.c.h.b16 %v1580
    %v4793 = vunpack.c.l.b16 %v1581
    %v4794 = vunpack.c.h.b16 %v1581
    %v4795 = vunpack.c.l.b16 %v1582
    %v4796 = vunpack.c.h.b16 %v1582
    %v4797 = vunpack.c.l.b16 %v1583
    %v4798 = vunpack.c.h.b16 %v1583
    %v4799 = vunpack.c.l.b16 %v1584
    %v4800 = vunpack.c.h.b16 %v1584
    %v4801 = vunpack.c.l.b16 %v1585
    %v4802 = vunpack.c.h.b16 %v1585
    %v4803 = vunpack.c.l.b16 %v1586
    %v4804 = vunpack.c.h.b16 %v1586
    %v4805 = vunpack.c.l.b16 %v1587
    %v4806 = vunpack.c.h.b16 %v1587
    %v4807 = vunpack.c.l.b16 %v1588
    %v4808 = vunpack.c.h.b16 %v1588
    %v4809 = vunpack.c.l.b16 %v1589
    %v4810 = vunpack.c.h.b16 %v1589
    %v4811 = vunpack.c.l.b16 %v1590
    %v4812 = vunpack.c.h.b16 %v1590
    %v4813 = vunpack.c.l.b16 %v1591
    %v4814 = vunpack.c.h.b16 %v1591
    %v4815 = vunpack.c.l.b16 %v1592
    %v4816 = vunpack.c.h.b16 %v1592
    %v4817 = vunpack.c.l.b16 %v1593
    %v4818 = vunpack.c.h.b16 %v1593
    %v4819 = vunpack.c.l.b16 %v1594
    %v4820 = vunpack.c.h.b16 %v1594
    %v4821 = vunpack.c.l.b16 %v1595
    %v4822 = vunpack.c.h.b16 %v1595
    %v4823 = vunpack.c.l.b16 %v1596
    %v4824 = vunpack.c.h.b16 %v1596
    %v4825 = vunpack.c.l.b16 %v1597
    %v4826 = vunpack.c.h.b16 %v1597
    %v4827 = vunpack.c.l.b16 %v1598
    %v4828 = vunpack.c.h.b16 %v1598
    %v4829 = vunpack.c.l.b16 %v1599
    %v4830 = vunpack.c.h.b16 %v1599
    %v4831 = vunpack.c.l.b16 %v1600
    %v4832 = vunpack.c.h.b16 %v1600
    %v4833 = vunpack.c.l.b16 %v1601
    %v4834 = vunpack.c.h.b16 %v1601
    %v4835 = vunpack.c.l.b16 %v1602
    %v4836 = vunpack.c.h.b16 %v1602
    %v4837 = vunpack.c.l.b16 %v1603
    %v4838 = vunpack.c.h.b16 %v1603
    %v4839 = vunpack.c.l.b16 %v1604
    %v4840 = vunpack.c.h.b16 %v1604
    %v4841 = vunpack.c.l.b16 %v1605
    %v4842 = vunpack.c.h.b16 %v1605
    %v4843 = vunpack.c.l.b16 %v1606
    %v4844 = vunpack.c.h.b16 %v1606
    %v4845 = vunpack.c.l.b16 %v1607
    %v4846 = vunpack.c.h.b16 %v1607
    %v4847 = vunpack.c.l.b16 %v1608
    %v4848 = vunpack.c.h.b16 %v1608
    %v4849 = vunpack.c.l.b16 %v1609
    %v4850 = vunpack.c.h.b16 %v1609
    %v4851 = vunpack.c.l.b16 %v1610
    %v4852 = vunpack.c.h.b16 %v1610
    %v4853 = vunpack.c.l.b16 %v1611
    %v4854 = vunpack.c.h.b16 %v1611
    %v4855 = vunpack.c.l.b16 %v1612
    %v4856 = vunpack.c.h.b16 %v1612
    %v4857 = vunpack.c.l.b16 %v1613
    %v4858 = vunpack.c.h.b16 %v1613
    %v4859 = vunpack.c.l.b16 %v1614
    %v4860 = vunpack.c.h.b16 %v1614
    %v4861 = vunpack.c.l.b16 %v1615
    %v4862 = vunpack.c.h.b16 %v1615
    %v4863 = vunpack.c.l.b16 %v1616
    %v4864 = vunpack.c.h.b16 %v1616
    %v4865 = vunpack.c.l.b16 %v1617
    %v4866 = vunpack.c.h.b16 %v1617
    %v4867 = vunpack.c.l.b16 %v1618
    %v4868 = vunpack.c.h.b16 %v1618
    %v4869 = vunpack.c.l.b16 %v1619
    %v4870 = vunpack.c.h.b16 %v1619
    %v4871 = vunpack.c.l.b16 %v1620
    %v4872 = vunpack.c.h.b16 %v1620
    %v4873 = vunpack.c.l.b16 %v1621
    %v4874 = vunpack.c.h.b16 %v1621
    %v4875 = vunpack.c.l.b16 %v1622
    %v4876 = vunpack.c.h.b16 %v1622
    %v4877 = vunpack.c.l.b16 %v1623
    %v4878 = vunpack.c.h.b16 %v1623
    %v4879 = vunpack.c.l.b16 %v1624
    %v4880 = vunpack.c.h.b16 %v1624
    %v4881 = vunpack.c.l.b16 %v1625
    %v4882 = vunpack.c.h.b16 %v1625
    %v4883 = vunpack.c.l.b16 %v1626
    %v4884 = vunpack.c.h.b16 %v1626
    %v4885 = vunpack.c.l.b16 %v1627
    %v4886 = vunpack.c.h.b16 %v1627
    %v4887 = vunpack.c.l.b16 %v1628
    %v4888 = vunpack.c.h.b16 %v1628
    %v4889 = vunpack.c.l.b16 %v1629
    %v4890 = vunpack.c.h.b16 %v1629
    %v4891 = vunpack.c.l.b16 %v1630
    %v4892 = vunpack.c.h.b16 %v1630
    %v4893 = vunpack.c.l.b16 %v1631
    %v4894 = vunpack.c.h.b16 %v1631
    %v4895 = vunpack.c.l.b16 %v1632
    %v4896 = vunpack.c.h.b16 %v1632
    %v4897 = vunpack.c.l.b16 %v1633
    %v4898 = vunpack.c.h.b16 %v1633
    %v4899 = vunpack.c.l.b16 %v1634
    %v4900 = vunpack.c.h.b16 %v1634
    %v4901 = vunpack.c.l.b16 %v1635
    %v4902 = vunpack.c.h.b16 %v1635
    %v4903 = vunpack.c.l.b16 %v1636
    %v4904 = vunpack.c.h.b16 %v1636
    %v4905 = vunpack.c.l.b16 %v1637
    %v4906 = vunpack.c.h.b16 %v1637
    %v4907 = vunpack.c.l.b16 %v1638
    %v4908 = vunpack.c.h.b16 %v1638
    %v4909 = vunpack.c.l.b16 %v1639
    %v4910 = vunpack.c.h.b16 %v1639
    %v4911 = vunpack.c.l.b16 %v1640
    %v4912 = vunpack.c.h.b16 %v1640
    %v4913 = vunpack.c.l.b16 %v1641
    %v4914 = vunpack.c.h.b16 %v1641
    %v4915 = vunpack.c.l.b16 %v1642
    %v4916 = vunpack.c.h.b16 %v1642
    %v4917 = vunpack.c.l.b16 %v1643
    %v4918 = vunpack.c.h.b16 %v1643
    %v4919 = vunpack.c.l.b16 %v1644
    %v4920 = vunpack.c.h.b16 %v1644
    %v4921 = vunpack.c.l.b16 %v1645
    %v4922 = vunpack.c.h.b16 %v1645
    %v4923 = vunpack.c.l.b16 %v1646
    %v4924 = vunpack.c.h.b16 %v1646
    %v4925 = vunpack.c.l.b16 %v1647
    %v4926 = vunpack.c.h.b16 %v1647
    %v4927 = vunpack.c.l.b16 %v1648
    %v4928 = vunpack.c.h.b16 %v1648
    %v4929 = vunpack.c.l.b16 %v1649
    %v4930 = vunpack.c.h.b16 %v1649
    %v4931 = vunpack.c.l.b16 %v1650
    %v4932 = vunpack.c.h.b16 %v1650
    %v4933 = vunpack.c.l.b16 %v1651
    %v4934 = vunpack.c.h.b16 %v1651
    %v4935 = vunpack.c.l.b16 %v1652
    %v4936 = vunpack.c.h.b16 %v1652
    %v4937 = vunpack.c.l.b16 %v1653
    %v4938 = vunpack.c.h.b16 %v1653
    %v4939 = vunpack.c.l.b16 %v1654
    %v4940 = vunpack.c.h.b16 %v1654
    %v4941 = vunpack.c.l.b16 %v1655
    %v4942 = vunpack.c.h.b16 %v1655
    %v4943 = vunpack.c.l.b16 %v1656
    %v4944 = vunpack.c.h.b16 %v1656
    %v4945 = vunpack.c.l.b16 %v1657
    %v4946 = vunpack.c.h.b16 %v1657
    %v4947 = vunpack.c.l.b16 %v1658
    %v4948 = vunpack.c.h.b16 %v1658
    %v4949 = vunpack.c.l.b16 %v1659
    %v4950 = vunpack.c.h.b16 %v1659
    %v4951 = vunpack.c.l.b16 %v1660
    %v4952 = vunpack.c.h.b16 %v1660
    %v4953 = vunpack.c.l.b16 %v1661
    %v4954 = vunpack.c.h.b16 %v1661
    %v4955 = vunpack.c.l.b16 %v1662
    %v4956 = vunpack.c.h.b16 %v1662
    %v4957 = vunpack.c.l.b16 %v1663
    %v4958 = vunpack.c.h.b16 %v1663
    %v4959 = vunpack.c.l.b16 %v1664
    %v4960 = vunpack.c.h.b16 %v1664
    %v4961 = vunpack.c.l.b16 %v1665
    %v4962 = vunpack.c.h.b16 %v1665
    %v4963 = vunpack.c.l.b16 %v1666
    %v4964 = vunpack.c.h.b16 %v1666
    %v4965 = vunpack.c.l.b16 %v1667
    %v4966 = vunpack.c.h.b16 %v1667
    %v4967 = vunpack.c.l.b16 %v1668
    %v4968 = vunpack.c.h.b16 %v1668
    %v4969 = vunpack.c.l.b16 %v1669
    %v4970 = vunpack.c.h.b16 %v1669
    %v4971 = vunpack.c.l.b16 %v1670
    %v4972 = vunpack.c.h.b16 %v1670
    %v4973 = vunpack.c.l.b16 %v1671
    %v4974 = vunpack.c.h.b16 %v1671
    %v4975 = vunpack.c.l.b16 %v1672
    %v4976 = vunpack.c.h.b16 %v1672
    %v4977 = vunpack.c.l.b16 %v1673
    %v4978 = vunpack.c.h.b16 %v1673
    %v4979 = vunpack.c.l.b16 %v1674
    %v4980 = vunpack.c.h.b16 %v1674
    %v4981 = vunpack.c.l.b16 %v1675
    %v4982 = vunpack.c.h.b16 %v1675
    %v4983 = vunpack.c.l.b16 %v1676
    %v4984 = vunpack.c.h.b16 %v1676
    %v4985 = vunpack.c.l.b16 %v1677
    %v4986 = vunpack.c.h.b16 %v1677
    %v4987 = vunpack.c.l.b16 %v1678
    %v4988 = vunpack.c.h.b16 %v1678
    %v4989 = vunpack.c.l.b16 %v1679
    %v4990 = vunpack.c.h.b16 %v1679
    %v4991 = vunpack.c.l.b16 %v1680
    %v4992 = vunpack.c.h.b16 %v1680
    %v4993 = vunpack.c.l.b16 %v1681
    %v4994 = vunpack.c.h.b16 %v1681
    %v4995 = vunpack.c.l.b16 %v1682
    %v4996 = vunpack.c.h.b16 %v1682
    %v4997 = vunpack.c.l.b16 %v1683
    %v4998 = vunpack.c.h.b16 %v1683
    %v4999 = vunpack.c.l.b16 %v1684
    %v5000 = vunpack.c.h.b16 %v1684
    %v5001 = vunpack.c.l.b16 %v1685
    %v5002 = vunpack.c.h.b16 %v1685
    %v5003 = vunpack.c.l.b16 %v1686
    %v5004 = vunpack.c.h.b16 %v1686
    %v5005 = vunpack.c.l.b16 %v1687
    %v5006 = vunpack.c.h.b16 %v1687
    %v5007 = vunpack.c.l.b16 %v1688
    %v5008 = vunpack.c.h.b16 %v1688
    %v5009 = vunpack.c.l.b16 %v1689
    %v5010 = vunpack.c.h.b16 %v1689
    %v5011 = vunpack.c.l.b16 %v1690
    %v5012 = vunpack.c.h.b16 %v1690
    %v5013 = vunpack.c.l.b16 %v1691
    %v5014 = vunpack.c.h.b16 %v1691
    %v5015 = vunpack.c.l.b16 %v1692
    %v5016 = vunpack.c.h.b16 %v1692
    %v5017 = vunpack.c.l.b16 %v1693
    %v5018 = vunpack.c.h.b16 %v1693
    %v5019 = vunpack.c.l.b16 %v1694
    %v5020 = vunpack.c.h.b16 %v1694
    %v5021 = vunpack.c.l.b16 %v1695
    %v5022 = vunpack.c.h.b16 %v1695
    %v5023 = vunpack.c.l.b16 %v1696
    %v5024 = vunpack.c.h.b16 %v1696
    %v5025 = vunpack.c.l.b16 %v1697
    %v5026 = vunpack.c.h.b16 %v1697
    %v5027 = vunpack.c.l.b16 %v1698
    %v5028 = vunpack.c.h.b16 %v1698
    %v5029 = vunpack.c.l.b16 %v1699
    %v5030 = vunpack.c.h.b16 %v1699
    %v5031 = vunpack.c.l.b16 %v1700
    %v5032 = vunpack.c.h.b16 %v1700
    %v5033 = vunpack.c.l.b16 %v1701
    %v5034 = vunpack.c.h.b16 %v1701
    %v5035 = vunpack.c.l.b16 %v1702
    %v5036 = vunpack.c.h.b16 %v1702
    %v5037 = vunpack.c.l.b16 %v1703
    %v5038 = vunpack.c.h.b16 %v1703
    %v5039 = vunpack.c.l.b16 %v1704
    %v5040 = vunpack.c.h.b16 %v1704
    %v5041 = vunpack.c.l.b16 %v1705
    %v5042 = vunpack.c.h.b16 %v1705
    %v5043 = vunpack.c.l.b16 %v1706
    %v5044 = vunpack.c.h.b16 %v1706
    %v5045 = vunpack.c.l.b16 %v1707
    %v5046 = vunpack.c.h.b16 %v1707
    %v5047 = vunpack.c.l.b16 %v1708
    %v5048 = vunpack.c.h.b16 %v1708
    %v5049 = vunpack.c.l.b16 %v1709
    %v5050 = vunpack.c.h.b16 %v1709
    %v5051 = vunpack.c.l.b16 %v1710
    %v5052 = vunpack.c.h.b16 %v1710
    %v5053 = vunpack.c.l.b16 %v1711
    %v5054 = vunpack.c.h.b16 %v1711
    %v5055 = vunpack.c.l.b16 %v1712
    %v5056 = vunpack.c.h.b16 %v1712
    %v5057 = vpack.c.b16 %v3017, %v3009
    %v5058 = vpack.c.b16 %v3018, %v3010
    %v5059 = vpack.c.b16 %v3019, %v3011
    %v5060 = vpack.c.b16 %v3020, %v3012
    %v5061 = vpack.c.b16 %v3021, %v3013
    %v5062 = vpack.c.b16 %v3022, %v3014
    %v5063 = vpack.c.b16 %v3023, %v3015
    %v5064 = vpack.c.b16 %v3024, %v3016
    %v5065 = vpack.c.b16 %v3033, %v3025
    %v5066 = vpack.c.b16 %v3034, %v3026
    %v5067 = vpack.c.b16 %v3035, %v3027
    %v5068 = vpack.c.b16 %v3036, %v3028
    %v5069 = vpack.c.b16 %v3037, %v3029
    %v5070 = vpack.c.b16 %v3038, %v3030
    %v5071 = vpack.c.b16 %v3039, %v3031
    %v5072 = vpack.c.b16 %v3040, %v3032
    %v5073 = vpack.c.b16 %v3049, %v3041
    %v5074 = vpack.c.b16 %v3050, %v3042
    %v5075 = vpack.c.b16 %v3051, %v3043
    %v5076 = vpack.c.b16 %v3052, %v3044
    %v5077 = vpack.c.b16 %v3053, %v3045
    %v5078 = vpack.c.b16 %v3054, %v3046
    %v5079 = vpack.c.b16 %v3055, %v3047
    %v5080 = vpack.c.b16 %v3056, %v3048
    %v5081 = vpack.c.b16 %v3065, %v3057
    %v5082 = vpack.c.b16 %v3066, %v3058
    %v5083 = vpack.c.b16 %v3067, %v3059
    %v5084 = vpack.c.b16 %v3068, %v3060
    %v5085 = vpack.c.b16 %v3069, %v3061
    %v5086 = vpack.c.b16 %v3070, %v3062
    %v5087 = vpack.c.b16 %v3071, %v3063
    %v5088 = vpack.c.b16 %v3072, %v3064
    %v5089 = vpack.c.b16 %v3081, %v3073
    %v5090 = vpack.c.b16 %v3082, %v3074
    %v5091 = vpack.c.b16 %v3083, %v3075
    %v5092 = vpack.c.b16 %v3084, %v3076
    %v5093 = vpack.c.b16 %v3085, %v3077
    %v5094 = vpack.c.b16 %v3086, %v3078
    %v5095 = vpack.c.b16 %v3087, %v3079
    %v5096 = vpack.c.b16 %v3088, %v3080
    %v5097 = vpack.c.b16 %v3097, %v3089
    %v5098 = vpack.c.b16 %v3098, %v3090
    %v5099 = vpack.c.b16 %v3099, %v3091
    %v5100 = vpack.c.b16 %v3100, %v3092
    %v5101 = vpack.c.b16 %v3101, %v3093
    %v5102 = vpack.c.b16 %v3102, %v3094
    %v5103 = vpack.c.b16 %v3103, %v3095
    %v5104 = vpack.c.b16 %v3104, %v3096
    %v5105 = vpack.c.b16 %v3113, %v3105
    %v5106 = vpack.c.b16 %v3114, %v3106
    %v5107 = vpack.c.b16 %v3115, %v3107
    %v5108 = vpack.c.b16 %v3116, %v3108
    %v5109 = vpack.c.b16 %v3117, %v3109
    %v5110 = vpack.c.b16 %v3118, %v3110
    %v5111 = vpack.c.b16 %v3119, %v3111
    %v5112 = vpack.c.b16 %v3120, %v3112
    %v5113 = vpack.c.b16 %v3129, %v3121
    %v5114 = vpack.c.b16 %v3130, %v3122
    %v5115 = vpack.c.b16 %v3131, %v3123
    %v5116 = vpack.c.b16 %v3132, %v3124
    %v5117 = vpack.c.b16 %v3133, %v3125
    %v5118 = vpack.c.b16 %v3134, %v3126
    %v5119 = vpack.c.b16 %v3135, %v3127
    %v5120 = vpack.c.b16 %v3136, %v3128
    %v5121 = vpack.c.b16 %v3145, %v3137
    %v5122 = vpack.c.b16 %v3146, %v3138
    %v5123 = vpack.c.b16 %v3147, %v3139
    %v5124 = vpack.c.b16 %v3148, %v3140
    %v5125 = vpack.c.b16 %v3149, %v3141
    %v5126 = vpack.c.b16 %v3150, %v3142
    %v5127 = vpack.c.b16 %v3151, %v3143
    %v5128 = vpack.c.b16 %v3152, %v3144
    %v5129 = vpack.c.b16 %v3161, %v3153
    %v5130 = vpack.c.b16 %v3162, %v3154
    %v5131 = vpack.c.b16 %v3163, %v3155
    %v5132 = vpack.c.b16 %v3164, %v3156
    %v5133 = vpack.c.b16 %v3165, %v3157
    %v5134 = vpack.c.b16 %v3166, %v3158
    %v5135 = vpack.c.b16 %v3167, %v3159
    %v5136 = vpack.c.b16 %v3168, %v3160
    %v5137 = vpack.c.b16 %v3177, %v3169
    %v5138 = vpack.c.b16 %v3178, %v3170
    %v5139 = vpack.c.b16 %v3179, %v3171
    %v5140 = vpack.c.b16 %v3180, %v3172
    %v5141 = vpack.c.b16 %v3181, %v3173
    %v5142 = vpack.c.b16 %v3182, %v3174
    %v5143 = vpack.c.b16 %v3183, %v3175
    %v5144 = vpack.c.b16 %v3184, %v3176
    %v5145 = vpack.c.b16 %v3193, %v3185
    %v5146 = vpack.c.b16 %v3194, %v3186
    %v5147 = vpack.c.b16 %v3195, %v3187
    %v5148 = vpack.c.b16 %v3196, %v3188
    %v5149 = vpack.c.b16 %v3197, %v3189
    %v5150 = vpack.c.b16 %v3198, %v3190
    %v5151 = vpack.c.b16 %v3199, %v3191
    %v5152 = vpack.c.b16 %v3200, %v3192
    %v5153 = vpack.c.b16 %v3209, %v3201
    %v5154 = vpack.c.b16 %v3210, %v3202
    %v5155 = vpack.c.b16 %v3211, %v3203
    %v5156 = vpack.c.b16 %v3212, %v3204
    %v5157 = vpack.c.b16 %v3213, %v3205
    %v5158 = vpack.c.b16 %v3214, %v3206
    %v5159 = vpack.c.b16 %v3215, %v3207
    %v5160 = vpack.c.b16 %v3216, %v3208
    %v5161 = vpack.c.b16 %v3225, %v3217
    %v5162 = vpack.c.b16 %v3226, %v3218
    %v5163 = vpack.c.b16 %v3227, %v3219
    %v5164 = vpack.c.b16 %v3228, %v3220
    %v5165 = vpack.c.b16 %v3229, %v3221
    %v5166 = vpack.c.b16 %v3230, %v3222
    %v5167 = vpack.c.b16 %v3231, %v3223
    %v5168 = vpack.c.b16 %v3232, %v3224
    %v5169 = vpack.c.b16 %v3241, %v3233
    %v5170 = vpack.c.b16 %v3242, %v3234
    %v5171 = vpack.c.b16 %v3243, %v3235
    %v5172 = vpack.c.b16 %v3244, %v3236
    %v5173 = vpack.c.b16 %v3245, %v3237
    %v5174 = vpack.c.b16 %v3246, %v3238
    %v5175 = vpack.c.b16 %v3247, %v3239
    %v5176 = vpack.c.b16 %v3248, %v3240
    %v5177 = vpack.c.b16 %v3257, %v3249
    %v5178 = vpack.c.b16 %v3258, %v3250
    %v5179 = vpack.c.b16 %v3259, %v3251
    %v5180 = vpack.c.b16 %v3260, %v3252
    %v5181 = vpack.c.b16 %v3261, %v3253
    %v5182 = vpack.c.b16 %v3262, %v3254
    %v5183 = vpack.c.b16 %v3263, %v3255
    %v5184 = vpack.c.b16 %v3264, %v3256
    %v5185 = vpack.c.b16 %v3273, %v3265
    %v5186 = vpack.c.b16 %v3274, %v3266
    %v5187 = vpack.c.b16 %v3275, %v3267
    %v5188 = vpack.c.b16 %v3276, %v3268
    %v5189 = vpack.c.b16 %v3277, %v3269
    %v5190 = vpack.c.b16 %v3278, %v3270
    %v5191 = vpack.c.b16 %v3279, %v3271
    %v5192 = vpack.c.b16 %v3280, %v3272
    %v5193 = vpack.c.b16 %v3289, %v3281
    %v5194 = vpack.c.b16 %v3290, %v3282
    %v5195 = vpack.c.b16 %v3291, %v3283
    %v5196 = vpack.c.b16 %v3292, %v3284
    %v5197 = vpack.c.b16 %v3293, %v3285
    %v5198 = vpack.c.b16 %v3294, %v3286
    %v5199 = vpack.c.b16 %v3295, %v3287
    %v5200 = vpack.c.b16 %v3296, %v3288
    %v5201 = vpack.c.b16 %v3305, %v3297
    %v5202 = vpack.c.b16 %v3306, %v3298
    %v5203 = vpack.c.b16 %v3307, %v3299
    %v5204 = vpack.c.b16 %v3308, %v3300
    %v5205 = vpack.c.b16 %v3309, %v3301
    %v5206 = vpack.c.b16 %v3310, %v3302
    %v5207 = vpack.c.b16 %v3311, %v3303
    %v5208 = vpack.c.b16 %v3312, %v3304
    %v5209 = vpack.c.b16 %v3321, %v3313
    %v5210 = vpack.c.b16 %v3322, %v3314
    %v5211 = vpack.c.b16 %v3323, %v3315
    %v5212 = vpack.c.b16 %v3324, %v3316
    %v5213 = vpack.c.b16 %v3325, %v3317
    %v5214 = vpack.c.b16 %v3326, %v3318
    %v5215 = vpack.c.b16 %v3327, %v3319
    %v5216 = vpack.c.b16 %v3328, %v3320
    %v5217 = vpack.c.b16 %v3337, %v3329
    %v5218 = vpack.c.b16 %v3338, %v3330
    %v5219 = vpack.c.b16 %v3339, %v3331
    %v5220 = vpack.c.b16 %v3340, %v3332
    %v5221 = vpack.c.b16 %v3341, %v3333
    %v5222 = vpack.c.b16 %v3342, %v3334
    %v5223 = vpack.c.b16 %v3343, %v3335
    %v5224 = vpack.c.b16 %v3344, %v3336
    %v5225 = vpack.c.b16 %v3353, %v3345
    %v5226 = vpack.c.b16 %v3354, %v3346
    %v5227 = vpack.c.b16 %v3355, %v3347
    %v5228 = vpack.c.b16 %v3356, %v3348
    %v5229 = vpack.c.b16 %v3357, %v3349
    %v5230 = vpack.c.b16 %v3358, %v3350
    %v5231 = vpack.c.b16 %v3359, %v3351
    %v5232 = vpack.c.b16 %v3360, %v3352
    %v5233 = vpack.c.b16 %v3369, %v3361
    %v5234 = vpack.c.b16 %v3370, %v3362
    %v5235 = vpack.c.b16 %v3371, %v3363
    %v5236 = vpack.c.b16 %v3372, %v3364
    %v5237 = vpack.c.b16 %v3373, %v3365
    %v5238 = vpack.c.b16 %v3374, %v3366
    %v5239 = vpack.c.b16 %v3375, %v3367
    %v5240 = vpack.c.b16 %v3376, %v3368
    %v5241 = vpack.c.b16 %v3385, %v3377
    %v5242 = vpack.c.b16 %v3386, %v3378
    %v5243 = vpack.c.b16 %v3387, %v3379
    %v5244 = vpack.c.b16 %v3388, %v3380
    %v5245 = vpack.c.b16 %v3389, %v3381
    %v5246 = vpack.c.b16 %v3390, %v3382
    %v5247 = vpack.c.b16 %v3391, %v3383
    %v5248 = vpack.c.b16 %v3392, %v3384
    %v5249 = vpack.c.b16 %v3401, %v3393
    %v5250 = vpack.c.b16 %v3402, %v3394
    %v5251 = vpack.c.b16 %v3403, %v3395
    %v5252 = vpack.c.b16 %v3404, %v3396
    %v5253 = vpack.c.b16 %v3405, %v3397
    %v5254 = vpack.c.b16 %v3406, %v3398
    %v5255 = vpack.c.b16 %v3407, %v3399
    %v5256 = vpack.c.b16 %v3408, %v3400
    %v5257 = vpack.c.b16 %v3417, %v3409
    %v5258 = vpack.c.b16 %v3418, %v3410
    %v5259 = vpack.c.b16 %v3419, %v3411
    %v5260 = vpack.c.b16 %v3420, %v3412
    %v5261 = vpack.c.b16 %v3421, %v3413
    %v5262 = vpack.c.b16 %v3422, %v3414
    %v5263 = vpack.c.b16 %v3423, %v3415
    %v5264 = vpack.c.b16 %v3424, %v3416
    %v5265 = vpack.c.b16 %v3433, %v3425
    %v5266 = vpack.c.b16 %v3434, %v3426
    %v5267 = vpack.c.b16 %v3435, %v3427
    %v5268 = vpack.c.b16 %v3436, %v3428
    %v5269 = vpack.c.b16 %v3437, %v3429
    %v5270 = vpack.c.b16 %v3438, %v3430
    %v5271 = vpack.c.b16 %v3439, %v3431
    %v5272 = vpack.c.b16 %v3440, %v3432
    %v5273 = vpack.c.b16 %v3449, %v3441
    %v5274 = vpack.c.b16 %v3450, %v3442
    %v5275 = vpack.c.b16 %v3451, %v3443
    %v5276 = vpack.c.b16 %v3452, %v3444
    %v5277 = vpack.c.b16 %v3453, %v3445
    %v5278 = vpack.c.b16 %v3454, %v3446
    %v5279 = vpack.c.b16 %v3455, %v3447
    %v5280 = vpack.c.b16 %v3456, %v3448
    %v5281 = vpack.c.b16 %v3465, %v3457
    %v5282 = vpack.c.b16 %v3466, %v3458
    %v5283 = vpack.c.b16 %v3467, %v3459
    %v5284 = vpack.c.b16 %v3468, %v3460
    %v5285 = vpack.c.b16 %v3469, %v3461
    %v5286 = vpack.c.b16 %v3470, %v3462
    %v5287 = vpack.c.b16 %v3471, %v3463
    %v5288 = vpack.c.b16 %v3472, %v3464
    %v5289 = vpack.c.b16 %v3481, %v3473
    %v5290 = vpack.c.b16 %v3482, %v3474
    %v5291 = vpack.c.b16 %v3483, %v3475
    %v5292 = vpack.c.b16 %v3484, %v3476
    %v5293 = vpack.c.b16 %v3485, %v3477
    %v5294 = vpack.c.b16 %v3486, %v3478
    %v5295 = vpack.c.b16 %v3487, %v3479
    %v5296 = vpack.c.b16 %v3488, %v3480
    %v5297 = vpack.c.b16 %v3497, %v3489
    %v5298 = vpack.c.b16 %v3498, %v3490
    %v5299 = vpack.c.b16 %v3499, %v3491
    %v5300 = vpack.c.b16 %v3500, %v3492
    %v5301 = vpack.c.b16 %v3501, %v3493
    %v5302 = vpack.c.b16 %v3502, %v3494
    %v5303 = vpack.c.b16 %v3503, %v3495
    %v5304 = vpack.c.b16 %v3504, %v3496
    %v5305 = vpack.c.b16 %v3513, %v3505
    %v5306 = vpack.c.b16 %v3514, %v3506
    %v5307 = vpack.c.b16 %v3515, %v3507
    %v5308 = vpack.c.b16 %v3516, %v3508
    %v5309 = vpack.c.b16 %v3517, %v3509
    %v5310 = vpack.c.b16 %v3518, %v3510
    %v5311 = vpack.c.b16 %v3519, %v3511
    %v5312 = vpack.c.b16 %v3520, %v3512
    %v5313 = vpack.c.b16 %v3529, %v3521
    %v5314 = vpack.c.b16 %v3530, %v3522
    %v5315 = vpack.c.b16 %v3531, %v3523
    %v5316 = vpack.c.b16 %v3532, %v3524
    %v5317 = vpack.c.b16 %v3533, %v3525
    %v5318 = vpack.c.b16 %v3534, %v3526
    %v5319 = vpack.c.b16 %v3535, %v3527
    %v5320 = vpack.c.b16 %v3536, %v3528
    %v5321 = vpack.c.b16 %v3545, %v3537
    %v5322 = vpack.c.b16 %v3546, %v3538
    %v5323 = vpack.c.b16 %v3547, %v3539
    %v5324 = vpack.c.b16 %v3548, %v3540
    %v5325 = vpack.c.b16 %v3549, %v3541
    %v5326 = vpack.c.b16 %v3550, %v3542
    %v5327 = vpack.c.b16 %v3551, %v3543
    %v5328 = vpack.c.b16 %v3552, %v3544
    %v5329 = vpack.c.b16 %v3561, %v3553
    %v5330 = vpack.c.b16 %v3562, %v3554
    %v5331 = vpack.c.b16 %v3563, %v3555
    %v5332 = vpack.c.b16 %v3564, %v3556
    %v5333 = vpack.c.b16 %v3565, %v3557
    %v5334 = vpack.c.b16 %v3566, %v3558
    %v5335 = vpack.c.b16 %v3567, %v3559
    %v5336 = vpack.c.b16 %v3568, %v3560
    %v5337 = vpack.c.b16 %v3577, %v3569
    %v5338 = vpack.c.b16 %v3578, %v3570
    %v5339 = vpack.c.b16 %v3579, %v3571
    %v5340 = vpack.c.b16 %v3580, %v3572
    %v5341 = vpack.c.b16 %v3581, %v3573
    %v5342 = vpack.c.b16 %v3582, %v3574
    %v5343 = vpack.c.b16 %v3583, %v3575
    %v5344 = vpack.c.b16 %v3584, %v3576
    %v5345 = vpack.c.b16 %v3593, %v3585
    %v5346 = vpack.c.b16 %v3594, %v3586
    %v5347 = vpack.c.b16 %v3595, %v3587
    %v5348 = vpack.c.b16 %v3596, %v3588
    %v5349 = vpack.c.b16 %v3597, %v3589
    %v5350 = vpack.c.b16 %v3598, %v3590
    %v5351 = vpack.c.b16 %v3599, %v3591
    %v5352 = vpack.c.b16 %v3600, %v3592
    %v5353 = vpack.c.b16 %v3609, %v3601
    %v5354 = vpack.c.b16 %v3610, %v3602
    %v5355 = vpack.c.b16 %v3611, %v3603
    %v5356 = vpack.c.b16 %v3612, %v3604
    %v5357 = vpack.c.b16 %v3613, %v3605
    %v5358 = vpack.c.b16 %v3614, %v3606
    %v5359 = vpack.c.b16 %v3615, %v3607
    %v5360 = vpack.c.b16 %v3616, %v3608
    %v5361 = vpack.c.b16 %v3625, %v3617
    %v5362 = vpack.c.b16 %v3626, %v3618
    %v5363 = vpack.c.b16 %v3627, %v3619
    %v5364 = vpack.c.b16 %v3628, %v3620
    %v5365 = vpack.c.b16 %v3629, %v3621
    %v5366 = vpack.c.b16 %v3630, %v3622
    %v5367 = vpack.c.b16 %v3631, %v3623
    %v5368 = vpack.c.b16 %v3632, %v3624
    %v5369 = vpack.c.b16 %v3641, %v3633
    %v5370 = vpack.c.b16 %v3642, %v3634
    %v5371 = vpack.c.b16 %v3643, %v3635
    %v5372 = vpack.c.b16 %v3644, %v3636
    %v5373 = vpack.c.b16 %v3645, %v3637
    %v5374 = vpack.c.b16 %v3646, %v3638
    %v5375 = vpack.c.b16 %v3647, %v3639
    %v5376 = vpack.c.b16 %v3648, %v3640
    %v5377 = vpack.c.b16 %v3657, %v3649
    %v5378 = vpack.c.b16 %v3658, %v3650
    %v5379 = vpack.c.b16 %v3659, %v3651
    %v5380 = vpack.c.b16 %v3660, %v3652
    %v5381 = vpack.c.b16 %v3661, %v3653
    %v5382 = vpack.c.b16 %v3662, %v3654
    %v5383 = vpack.c.b16 %v3663, %v3655
    %v5384 = vpack.c.b16 %v3664, %v3656
    %v5385 = vpack.c.b16 %v3673, %v3665
    %v5386 = vpack.c.b16 %v3674, %v3666
    %v5387 = vpack.c.b16 %v3675, %v3667
    %v5388 = vpack.c.b16 %v3676, %v3668
    %v5389 = vpack.c.b16 %v3677, %v3669
    %v5390 = vpack.c.b16 %v3678, %v3670
    %v5391 = vpack.c.b16 %v3679, %v3671
    %v5392 = vpack.c.b16 %v3680, %v3672
    %v5393 = vpack.c.b16 %v3689, %v3681
    %v5394 = vpack.c.b16 %v3690, %v3682
    %v5395 = vpack.c.b16 %v3691, %v3683
    %v5396 = vpack.c.b16 %v3692, %v3684
    %v5397 = vpack.c.b16 %v3693, %v3685
    %v5398 = vpack.c.b16 %v3694, %v3686
    %v5399 = vpack.c.b16 %v3695, %v3687
    %v5400 = vpack.c.b16 %v3696, %v3688
    %v5401 = vpack.c.b16 %v3705, %v3697
    %v5402 = vpack.c.b16 %v3706, %v3698
    %v5403 = vpack.c.b16 %v3707, %v3699
    %v5404 = vpack.c.b16 %v3708, %v3700
    %v5405 = vpack.c.b16 %v3709, %v3701
    %v5406 = vpack.c.b16 %v3710, %v3702
    %v5407 = vpack.c.b16 %v3711, %v3703
    %v5408 = vpack.c.b16 %v3712, %v3704
    %v5409 = vpack.c.b16 %v3721, %v3713
    %v5410 = vpack.c.b16 %v3722, %v3714
    %v5411 = vpack.c.b16 %v3723, %v3715
    %v5412 = vpack.c.b16 %v3724, %v3716
    %v5413 = vpack.c.b16 %v3725, %v3717
    %v5414 = vpack.c.b16 %v3726, %v3718
    %v5415 = vpack.c.b16 %v3727, %v3719
    %v5416 = vpack.c.b16 %v3728, %v3720
    %v5417 = vpack.c.b16 %v3737, %v3729
    %v5418 = vpack.c.b16 %v3738, %v3730
    %v5419 = vpack.c.b16 %v3739, %v3731
    %v5420 = vpack.c.b16 %v3740, %v3732
    %v5421 = vpack.c.b16 %v3741, %v3733
    %v5422 = vpack.c.b16 %v3742, %v3734
    %v5423 = vpack.c.b16 %v3743, %v3735
    %v5424 = vpack.c.b16 %v3744, %v3736
    %v5425 = vpack.c.b16 %v3753, %v3745
    %v5426 = vpack.c.b16 %v3754, %v3746
    %v5427 = vpack.c.b16 %v3755, %v3747
    %v5428 = vpack.c.b16 %v3756, %v3748
    %v5429 = vpack.c.b16 %v3757, %v3749
    %v5430 = vpack.c.b16 %v3758, %v3750
    %v5431 = vpack.c.b16 %v3759, %v3751
    %v5432 = vpack.c.b16 %v3760, %v3752
    %v5433 = vpack.c.b16 %v3769, %v3761
    %v5434 = vpack.c.b16 %v3770, %v3762
    %v5435 = vpack.c.b16 %v3771, %v3763
    %v5436 = vpack.c.b16 %v3772, %v3764
    %v5437 = vpack.c.b16 %v3773, %v3765
    %v5438 = vpack.c.b16 %v3774, %v3766
    %v5439 = vpack.c.b16 %v3775, %v3767
    %v5440 = vpack.c.b16 %v3776, %v3768
    %v5441 = vpack.c.b16 %v3785, %v3777
    %v5442 = vpack.c.b16 %v3786, %v3778
    %v5443 = vpack.c.b16 %v3787, %v3779
    %v5444 = vpack.c.b16 %v3788, %v3780
    %v5445 = vpack.c.b16 %v3789, %v3781
    %v5446 = vpack.c.b16 %v3790, %v3782
    %v5447 = vpack.c.b16 %v3791, %v3783
    %v5448 = vpack.c.b16 %v3792, %v3784
    %v5449 = vpack.c.b16 %v3801, %v3793
    %v5450 = vpack.c.b16 %v3802, %v3794
    %v5451 = vpack.c.b16 %v3803, %v3795
    %v5452 = vpack.c.b16 %v3804, %v3796
    %v5453 = vpack.c.b16 %v3805, %v3797
    %v5454 = vpack.c.b16 %v3806, %v3798
    %v5455 = vpack.c.b16 %v3807, %v3799
    %v5456 = vpack.c.b16 %v3808, %v3800
    %v5457 = vpack.c.b16 %v3817, %v3809
    %v5458 = vpack.c.b16 %v3818, %v3810
    %v5459 = vpack.c.b16 %v3819, %v3811
    %v5460 = vpack.c.b16 %v3820, %v3812
    %v5461 = vpack.c.b16 %v3821, %v3813
    %v5462 = vpack.c.b16 %v3822, %v3814
    %v5463 = vpack.c.b16 %v3823, %v3815
    %v5464 = vpack.c.b16 %v3824, %v3816
    %v5465 = vpack.c.b16 %v3833, %v3825
    %v5466 = vpack.c.b16 %v3834, %v3826
    %v5467 = vpack.c.b16 %v3835, %v3827
    %v5468 = vpack.c.b16 %v3836, %v3828
    %v5469 = vpack.c.b16 %v3837, %v3829
    %v5470 = vpack.c.b16 %v3838, %v3830
    %v5471 = vpack.c.b16 %v3839, %v3831
    %v5472 = vpack.c.b16 %v3840, %v3832
    %v5473 = vpack.c.b16 %v3849, %v3841
    %v5474 = vpack.c.b16 %v3850, %v3842
    %v5475 = vpack.c.b16 %v3851, %v3843
    %v5476 = vpack.c.b16 %v3852, %v3844
    %v5477 = vpack.c.b16 %v3853, %v3845
    %v5478 = vpack.c.b16 %v3854, %v3846
    %v5479 = vpack.c.b16 %v3855, %v3847
    %v5480 = vpack.c.b16 %v3856, %v3848
    %v5481 = vpack.c.b16 %v3865, %v3857
    %v5482 = vpack.c.b16 %v3866, %v3858
    %v5483 = vpack.c.b16 %v3867, %v3859
    %v5484 = vpack.c.b16 %v3868, %v3860
    %v5485 = vpack.c.b16 %v3869, %v3861
    %v5486 = vpack.c.b16 %v3870, %v3862
    %v5487 = vpack.c.b16 %v3871, %v3863
    %v5488 = vpack.c.b16 %v3872, %v3864
    %v5489 = vpack.c.b16 %v3881, %v3873
    %v5490 = vpack.c.b16 %v3882, %v3874
    %v5491 = vpack.c.b16 %v3883, %v3875
    %v5492 = vpack.c.b16 %v3884, %v3876
    %v5493 = vpack.c.b16 %v3885, %v3877
    %v5494 = vpack.c.b16 %v3886, %v3878
    %v5495 = vpack.c.b16 %v3887, %v3879
    %v5496 = vpack.c.b16 %v3888, %v3880
    %v5497 = vpack.c.b16 %v3897, %v3889
    %v5498 = vpack.c.b16 %v3898, %v3890
    %v5499 = vpack.c.b16 %v3899, %v3891
    %v5500 = vpack.c.b16 %v3900, %v3892
    %v5501 = vpack.c.b16 %v3901, %v3893
    %v5502 = vpack.c.b16 %v3902, %v3894
    %v5503 = vpack.c.b16 %v3903, %v3895
    %v5504 = vpack.c.b16 %v3904, %v3896
    %v5505 = vpack.c.b16 %v3913, %v3905
    %v5506 = vpack.c.b16 %v3914, %v3906
    %v5507 = vpack.c.b16 %v3915, %v3907
    %v5508 = vpack.c.b16 %v3916, %v3908
    %v5509 = vpack.c.b16 %v3917, %v3909
    %v5510 = vpack.c.b16 %v3918, %v3910
    %v5511 = vpack.c.b16 %v3919, %v3911
    %v5512 = vpack.c.b16 %v3920, %v3912
    %v5513 = vpack.c.b16 %v3929, %v3921
    %v5514 = vpack.c.b16 %v3930, %v3922
    %v5515 = vpack.c.b16 %v3931, %v3923
    %v5516 = vpack.c.b16 %v3932, %v3924
    %v5517 = vpack.c.b16 %v3933, %v3925
    %v5518 = vpack.c.b16 %v3934, %v3926
    %v5519 = vpack.c.b16 %v3935, %v3927
    %v5520 = vpack.c.b16 %v3936, %v3928
    %v5521 = vpack.c.b16 %v3945, %v3937
    %v5522 = vpack.c.b16 %v3946, %v3938
    %v5523 = vpack.c.b16 %v3947, %v3939
    %v5524 = vpack.c.b16 %v3948, %v3940
    %v5525 = vpack.c.b16 %v3949, %v3941
    %v5526 = vpack.c.b16 %v3950, %v3942
    %v5527 = vpack.c.b16 %v3951, %v3943
    %v5528 = vpack.c.b16 %v3952, %v3944
    %v5529 = vpack.c.b16 %v3961, %v3953
    %v5530 = vpack.c.b16 %v3962, %v3954
    %v5531 = vpack.c.b16 %v3963, %v3955
    %v5532 = vpack.c.b16 %v3964, %v3956
    %v5533 = vpack.c.b16 %v3965, %v3957
    %v5534 = vpack.c.b16 %v3966, %v3958
    %v5535 = vpack.c.b16 %v3967, %v3959
    %v5536 = vpack.c.b16 %v3968, %v3960
    %v5537 = vpack.c.b16 %v3977, %v3969
    %v5538 = vpack.c.b16 %v3978, %v3970
    %v5539 = vpack.c.b16 %v3979, %v3971
    %v5540 = vpack.c.b16 %v3980, %v3972
    %v5541 = vpack.c.b16 %v3981, %v3973
    %v5542 = vpack.c.b16 %v3982, %v3974
    %v5543 = vpack.c.b16 %v3983, %v3975
    %v5544 = vpack.c.b16 %v3984, %v3976
    %v5545 = vpack.c.b16 %v3993, %v3985
    %v5546 = vpack.c.b16 %v3994, %v3986
    %v5547 = vpack.c.b16 %v3995, %v3987
    %v5548 = vpack.c.b16 %v3996, %v3988
    %v5549 = vpack.c.b16 %v3997, %v3989
    %v5550 = vpack.c.b16 %v3998, %v3990
    %v5551 = vpack.c.b16 %v3999, %v3991
    %v5552 = vpack.c.b16 %v4000, %v3992
    %v5553 = vpack.c.b16 %v4009, %v4001
    %v5554 = vpack.c.b16 %v4010, %v4002
    %v5555 = vpack.c.b16 %v4011, %v4003
    %v5556 = vpack.c.b16 %v4012, %v4004
    %v5557 = vpack.c.b16 %v4013, %v4005
    %v5558 = vpack.c.b16 %v4014, %v4006
    %v5559 = vpack.c.b16 %v4015, %v4007
    %v5560 = vpack.c.b16 %v4016, %v4008
    %v5561 = vpack.c.b16 %v4025, %v4017
    %v5562 = vpack.c.b16 %v4026, %v4018
    %v5563 = vpack.c.b16 %v4027, %v4019
    %v5564 = vpack.c.b16 %v4028, %v4020
    %v5565 = vpack.c.b16 %v4029, %v4021
    %v5566 = vpack.c.b16 %v4030, %v4022
    %v5567 = vpack.c.b16 %v4031, %v4023
    %v5568 = vpack.c.b16 %v4032, %v4024
    %v5569 = vpack.c.b16 %v4041, %v4033
    %v5570 = vpack.c.b16 %v4042, %v4034
    %v5571 = vpack.c.b16 %v4043, %v4035
    %v5572 = vpack.c.b16 %v4044, %v4036
    %v5573 = vpack.c.b16 %v4045, %v4037
    %v5574 = vpack.c.b16 %v4046, %v4038
    %v5575 = vpack.c.b16 %v4047, %v4039
    %v5576 = vpack.c.b16 %v4048, %v4040
    %v5577 = vpack.c.b16 %v4057, %v4049
    %v5578 = vpack.c.b16 %v4058, %v4050
    %v5579 = vpack.c.b16 %v4059, %v4051
    %v5580 = vpack.c.b16 %v4060, %v4052
    %v5581 = vpack.c.b16 %v4061, %v4053
    %v5582 = vpack.c.b16 %v4062, %v4054
    %v5583 = vpack.c.b16 %v4063, %v4055
    %v5584 = vpack.c.b16 %v4064, %v4056
    %v5585 = vpack.c.b16 %v4073, %v4065
    %v5586 = vpack.c.b16 %v4074, %v4066
    %v5587 = vpack.c.b16 %v4075, %v4067
    %v5588 = vpack.c.b16 %v4076, %v4068
    %v5589 = vpack.c.b16 %v4077, %v4069
    %v5590 = vpack.c.b16 %v4078, %v4070
    %v5591 = vpack.c.b16 %v4079, %v4071
    %v5592 = vpack.c.b16 %v4080, %v4072
    %v5593 = vpack.c.b16 %v4089, %v4081
    %v5594 = vpack.c.b16 %v4090, %v4082
    %v5595 = vpack.c.b16 %v4091, %v4083
    %v5596 = vpack.c.b16 %v4092, %v4084
    %v5597 = vpack.c.b16 %v4093, %v4085
    %v5598 = vpack.c.b16 %v4094, %v4086
    %v5599 = vpack.c.b16 %v4095, %v4087
    %v5600 = vpack.c.b16 %v4096, %v4088
    %v5601 = vpack.c.b16 %v4105, %v4097
    %v5602 = vpack.c.b16 %v4106, %v4098
    %v5603 = vpack.c.b16 %v4107, %v4099
    %v5604 = vpack.c.b16 %v4108, %v4100
    %v5605 = vpack.c.b16 %v4109, %v4101
    %v5606 = vpack.c.b16 %v4110, %v4102
    %v5607 = vpack.c.b16 %v4111, %v4103
    %v5608 = vpack.c.b16 %v4112, %v4104
    %v5609 = vpack.c.b16 %v4121, %v4113
    %v5610 = vpack.c.b16 %v4122, %v4114
    %v5611 = vpack.c.b16 %v4123, %v4115
    %v5612 = vpack.c.b16 %v4124, %v4116
    %v5613 = vpack.c.b16 %v4125, %v4117
    %v5614 = vpack.c.b16 %v4126, %v4118
    %v5615 = vpack.c.b16 %v4127, %v4119
    %v5616 = vpack.c.b16 %v4128, %v4120
    %v5617 = vpack.c.b16 %v4137, %v4129
    %v5618 = vpack.c.b16 %v4138, %v4130
    %v5619 = vpack.c.b16 %v4139, %v4131
    %v5620 = vpack.c.b16 %v4140, %v4132
    %v5621 = vpack.c.b16 %v4141, %v4133
    %v5622 = vpack.c.b16 %v4142, %v4134
    %v5623 = vpack.c.b16 %v4143, %v4135
    %v5624 = vpack.c.b16 %v4144, %v4136
    %v5625 = vpack.c.b16 %v4153, %v4145
    %v5626 = vpack.c.b16 %v4154, %v4146
    %v5627 = vpack.c.b16 %v4155, %v4147
    %v5628 = vpack.c.b16 %v4156, %v4148
    %v5629 = vpack.c.b16 %v4157, %v4149
    %v5630 = vpack.c.b16 %v4158, %v4150
    %v5631 = vpack.c.b16 %v4159, %v4151
    %v5632 = vpack.c.b16 %v4160, %v4152
    %v5633 = vpack.c.b16 %v4169, %v4161
    %v5634 = vpack.c.b16 %v4170, %v4162
    %v5635 = vpack.c.b16 %v4171, %v4163
    %v5636 = vpack.c.b16 %v4172, %v4164
    %v5637 = vpack.c.b16 %v4173, %v4165
    %v5638 = vpack.c.b16 %v4174, %v4166
    %v5639 = vpack.c.b16 %v4175, %v4167
    %v5640 = vpack.c.b16 %v4176, %v4168
    %v5641 = vpack.c.b16 %v4185, %v4177
    %v5642 = vpack.c.b16 %v4186, %v4178
    %v5643 = vpack.c.b16 %v4187, %v4179
    %v5644 = vpack.c.b16 %v4188, %v4180
    %v5645 = vpack.c.b16 %v4189, %v4181
    %v5646 = vpack.c.b16 %v4190, %v4182
    %v5647 = vpack.c.b16 %v4191, %v4183
    %v5648 = vpack.c.b16 %v4192, %v4184
    %v5649 = vpack.c.b16 %v4201, %v4193
    %v5650 = vpack.c.b16 %v4202, %v4194
    %v5651 = vpack.c.b16 %v4203, %v4195
    %v5652 = vpack.c.b16 %v4204, %v4196
    %v5653 = vpack.c.b16 %v4205, %v4197
    %v5654 = vpack.c.b16 %v4206, %v4198
    %v5655 = vpack.c.b16 %v4207, %v4199
    %v5656 = vpack.c.b16 %v4208, %v4200
    %v5657 = vpack.c.b16 %v4217, %v4209
    %v5658 = vpack.c.b16 %v4218, %v4210
    %v5659 = vpack.c.b16 %v4219, %v4211
    %v5660 = vpack.c.b16 %v4220, %v4212
    %v5661 = vpack.c.b16 %v4221, %v4213
    %v5662 = vpack.c.b16 %v4222, %v4214
    %v5663 = vpack.c.b16 %v4223, %v4215
    %v5664 = vpack.c.b16 %v4224, %v4216
    %v5665 = vpack.c.b16 %v4233, %v4225
    %v5666 = vpack.c.b16 %v4234, %v4226
    %v5667 = vpack.c.b16 %v4235, %v4227
    %v5668 = vpack.c.b16 %v4236, %v4228
    %v5669 = vpack.c.b16 %v4237, %v4229
    %v5670 = vpack.c.b16 %v4238, %v4230
    %v5671 = vpack.c.b16 %v4239, %v4231
    %v5672 = vpack.c.b16 %v4240, %v4232
    %v5673 = vpack.c.b16 %v4249, %v4241
    %v5674 = vpack.c.b16 %v4250, %v4242
    %v5675 = vpack.c.b16 %v4251, %v4243
    %v5676 = vpack.c.b16 %v4252, %v4244
    %v5677 = vpack.c.b16 %v4253, %v4245
    %v5678 = vpack.c.b16 %v4254, %v4246
    %v5679 = vpack.c.b16 %v4255, %v4247
    %v5680 = vpack.c.b16 %v4256, %v4248
    %v5681 = vpack.c.b16 %v4265, %v4257
    %v5682 = vpack.c.b16 %v4266, %v4258
    %v5683 = vpack.c.b16 %v4267, %v4259
    %v5684 = vpack.c.b16 %v4268, %v4260
    %v5685 = vpack.c.b16 %v4269, %v4261
    %v5686 = vpack.c.b16 %v4270, %v4262
    %v5687 = vpack.c.b16 %v4271, %v4263
    %v5688 = vpack.c.b16 %v4272, %v4264
    %v5689 = vpack.c.b16 %v4281, %v4273
    %v5690 = vpack.c.b16 %v4282, %v4274
    %v5691 = vpack.c.b16 %v4283, %v4275
    %v5692 = vpack.c.b16 %v4284, %v4276
    %v5693 = vpack.c.b16 %v4285, %v4277
    %v5694 = vpack.c.b16 %v4286, %v4278
    %v5695 = vpack.c.b16 %v4287, %v4279
    %v5696 = vpack.c.b16 %v4288, %v4280
    %v5697 = vpack.c.b16 %v4297, %v4289
    %v5698 = vpack.c.b16 %v4298, %v4290
    %v5699 = vpack.c.b16 %v4299, %v4291
    %v5700 = vpack.c.b16 %v4300, %v4292
    %v5701 = vpack.c.b16 %v4301, %v4293
    %v5702 = vpack.c.b16 %v4302, %v4294
    %v5703 = vpack.c.b16 %v4303, %v4295
    %v5704 = vpack.c.b16 %v4304, %v4296
    %v5705 = vpack.c.b16 %v4313, %v4305
    %v5706 = vpack.c.b16 %v4314, %v4306
    %v5707 = vpack.c.b16 %v4315, %v4307
    %v5708 = vpack.c.b16 %v4316, %v4308
    %v5709 = vpack.c.b16 %v4317, %v4309
    %v5710 = vpack.c.b16 %v4318, %v4310
    %v5711 = vpack.c.b16 %v4319, %v4311
    %v5712 = vpack.c.b16 %v4320, %v4312
    %v5713 = vpack.c.b16 %v4329, %v4321
    %v5714 = vpack.c.b16 %v4330, %v4322
    %v5715 = vpack.c.b16 %v4331, %v4323
    %v5716 = vpack.c.b16 %v4332, %v4324
    %v5717 = vpack.c.b16 %v4333, %v4325
    %v5718 = vpack.c.b16 %v4334, %v4326
    %v5719 = vpack.c.b16 %v4335, %v4327
    %v5720 = vpack.c.b16 %v4336, %v4328
    %v5721 = vpack.c.b16 %v4345, %v4337
    %v5722 = vpack.c.b16 %v4346, %v4338
    %v5723 = vpack.c.b16 %v4347, %v4339
    %v5724 = vpack.c.b16 %v4348, %v4340
    %v5725 = vpack.c.b16 %v4349, %v4341
    %v5726 = vpack.c.b16 %v4350, %v4342
    %v5727 = vpack.c.b16 %v4351, %v4343
    %v5728 = vpack.c.b16 %v4352, %v4344
    %v5729 = vpack.c.b16 %v4361, %v4353
    %v5730 = vpack.c.b16 %v4362, %v4354
    %v5731 = vpack.c.b16 %v4363, %v4355
    %v5732 = vpack.c.b16 %v4364, %v4356
    %v5733 = vpack.c.b16 %v4365, %v4357
    %v5734 = vpack.c.b16 %v4366, %v4358
    %v5735 = vpack.c.b16 %v4367, %v4359
    %v5736 = vpack.c.b16 %v4368, %v4360
    %v5737 = vpack.c.b16 %v4377, %v4369
    %v5738 = vpack.c.b16 %v4378, %v4370
    %v5739 = vpack.c.b16 %v4379, %v4371
    %v5740 = vpack.c.b16 %v4380, %v4372
    %v5741 = vpack.c.b16 %v4381, %v4373
    %v5742 = vpack.c.b16 %v4382, %v4374
    %v5743 = vpack.c.b16 %v4383, %v4375
    %v5744 = vpack.c.b16 %v4384, %v4376
    %v5745 = vpack.c.b16 %v4393, %v4385
    %v5746 = vpack.c.b16 %v4394, %v4386
    %v5747 = vpack.c.b16 %v4395, %v4387
    %v5748 = vpack.c.b16 %v4396, %v4388
    %v5749 = vpack.c.b16 %v4397, %v4389
    %v5750 = vpack.c.b16 %v4398, %v4390
    %v5751 = vpack.c.b16 %v4399, %v4391
    %v5752 = vpack.c.b16 %v4400, %v4392
    %v5753 = vpack.c.b16 %v4409, %v4401
    %v5754 = vpack.c.b16 %v4410, %v4402
    %v5755 = vpack.c.b16 %v4411, %v4403
    %v5756 = vpack.c.b16 %v4412, %v4404
    %v5757 = vpack.c.b16 %v4413, %v4405
    %v5758 = vpack.c.b16 %v4414, %v4406
    %v5759 = vpack.c.b16 %v4415, %v4407
    %v5760 = vpack.c.b16 %v4416, %v4408
    %v5761 = vpack.c.b16 %v4425, %v4417
    %v5762 = vpack.c.b16 %v4426, %v4418
    %v5763 = vpack.c.b16 %v4427, %v4419
    %v5764 = vpack.c.b16 %v4428, %v4420
    %v5765 = vpack.c.b16 %v4429, %v4421
    %v5766 = vpack.c.b16 %v4430, %v4422
    %v5767 = vpack.c.b16 %v4431, %v4423
    %v5768 = vpack.c.b16 %v4432, %v4424
    %v5769 = vpack.c.b16 %v4441, %v4433
    %v5770 = vpack.c.b16 %v4442, %v4434
    %v5771 = vpack.c.b16 %v4443, %v4435
    %v5772 = vpack.c.b16 %v4444, %v4436
    %v5773 = vpack.c.b16 %v4445, %v4437
    %v5774 = vpack.c.b16 %v4446, %v4438
    %v5775 = vpack.c.b16 %v4447, %v4439
    %v5776 = vpack.c.b16 %v4448, %v4440
    %v5777 = vpack.c.b16 %v4457, %v4449
    %v5778 = vpack.c.b16 %v4458, %v4450
    %v5779 = vpack.c.b16 %v4459, %v4451
    %v5780 = vpack.c.b16 %v4460, %v4452
    %v5781 = vpack.c.b16 %v4461, %v4453
    %v5782 = vpack.c.b16 %v4462, %v4454
    %v5783 = vpack.c.b16 %v4463, %v4455
    %v5784 = vpack.c.b16 %v4464, %v4456
    %v5785 = vpack.c.b16 %v4473, %v4465
    %v5786 = vpack.c.b16 %v4474, %v4466
    %v5787 = vpack.c.b16 %v4475, %v4467
    %v5788 = vpack.c.b16 %v4476, %v4468
    %v5789 = vpack.c.b16 %v4477, %v4469
    %v5790 = vpack.c.b16 %v4478, %v4470
    %v5791 = vpack.c.b16 %v4479, %v4471
    %v5792 = vpack.c.b16 %v4480, %v4472
    %v5793 = vpack.c.b16 %v4489, %v4481
    %v5794 = vpack.c.b16 %v4490, %v4482
    %v5795 = vpack.c.b16 %v4491, %v4483
    %v5796 = vpack.c.b16 %v4492, %v4484
    %v5797 = vpack.c.b16 %v4493, %v4485
    %v5798 = vpack.c.b16 %v4494, %v4486
    %v5799 = vpack.c.b16 %v4495, %v4487
    %v5800 = vpack.c.b16 %v4496, %v4488
    %v5801 = vpack.c.b16 %v4505, %v4497
    %v5802 = vpack.c.b16 %v4506, %v4498
    %v5803 = vpack.c.b16 %v4507, %v4499
    %v5804 = vpack.c.b16 %v4508, %v4500
    %v5805 = vpack.c.b16 %v4509, %v4501
    %v5806 = vpack.c.b16 %v4510, %v4502
    %v5807 = vpack.c.b16 %v4511, %v4503
    %v5808 = vpack.c.b16 %v4512, %v4504
    %v5809 = vpack.c.b16 %v4521, %v4513
    %v5810 = vpack.c.b16 %v4522, %v4514
    %v5811 = vpack.c.b16 %v4523, %v4515
    %v5812 = vpack.c.b16 %v4524, %v4516
    %v5813 = vpack.c.b16 %v4525, %v4517
    %v5814 = vpack.c.b16 %v4526, %v4518
    %v5815 = vpack.c.b16 %v4527, %v4519
    %v5816 = vpack.c.b16 %v4528, %v4520
    %v5817 = vpack.c.b16 %v4537, %v4529
    %v5818 = vpack.c.b16 %v4538, %v4530
    %v5819 = vpack.c.b16 %v4539, %v4531
    %v5820 = vpack.c.b16 %v4540, %v4532
    %v5821 = vpack.c.b16 %v4541, %v4533
    %v5822 = vpack.c.b16 %v4542, %v4534
    %v5823 = vpack.c.b16 %v4543, %v4535
    %v5824 = vpack.c.b16 %v4544, %v4536
    %v5825 = vpack.c.b16 %v4553, %v4545
    %v5826 = vpack.c.b16 %v4554, %v4546
    %v5827 = vpack.c.b16 %v4555, %v4547
    %v5828 = vpack.c.b16 %v4556, %v4548
    %v5829 = vpack.c.b16 %v4557, %v4549
    %v5830 = vpack.c.b16 %v4558, %v4550
    %v5831 = vpack.c.b16 %v4559, %v4551
    %v5832 = vpack.c.b16 %v4560, %v4552
    %v5833 = vpack.c.b16 %v4569, %v4561
    %v5834 = vpack.c.b16 %v4570, %v4562
    %v5835 = vpack.c.b16 %v4571, %v4563
    %v5836 = vpack.c.b16 %v4572, %v4564
    %v5837 = vpack.c.b16 %v4573, %v4565
    %v5838 = vpack.c.b16 %v4574, %v4566
    %v5839 = vpack.c.b16 %v4575, %v4567
    %v5840 = vpack.c.b16 %v4576, %v4568
    %v5841 = vpack.c.b16 %v4585, %v4577
    %v5842 = vpack.c.b16 %v4586, %v4578
    %v5843 = vpack.c.b16 %v4587, %v4579
    %v5844 = vpack.c.b16 %v4588, %v4580
    %v5845 = vpack.c.b16 %v4589, %v4581
    %v5846 = vpack.c.b16 %v4590, %v4582
    %v5847 = vpack.c.b16 %v4591, %v4583
    %v5848 = vpack.c.b16 %v4592, %v4584
    %v5849 = vpack.c.b16 %v4601, %v4593
    %v5850 = vpack.c.b16 %v4602, %v4594
    %v5851 = vpack.c.b16 %v4603, %v4595
    %v5852 = vpack.c.b16 %v4604, %v4596
    %v5853 = vpack.c.b16 %v4605, %v4597
    %v5854 = vpack.c.b16 %v4606, %v4598
    %v5855 = vpack.c.b16 %v4607, %v4599
    %v5856 = vpack.c.b16 %v4608, %v4600
    %v5857 = vpack.c.b16 %v4617, %v4609
    %v5858 = vpack.c.b16 %v4618, %v4610
    %v5859 = vpack.c.b16 %v4619, %v4611
    %v5860 = vpack.c.b16 %v4620, %v4612
    %v5861 = vpack.c.b16 %v4621, %v4613
    %v5862 = vpack.c.b16 %v4622, %v4614
    %v5863 = vpack.c.b16 %v4623, %v4615
    %v5864 = vpack.c.b16 %v4624, %v4616
    %v5865 = vpack.c.b16 %v4633, %v4625
    %v5866 = vpack.c.b16 %v4634, %v4626
    %v5867 = vpack.c.b16 %v4635, %v4627
    %v5868 = vpack.c.b16 %v4636, %v4628
    %v5869 = vpack.c.b16 %v4637, %v4629
    %v5870 = vpack.c.b16 %v4638, %v4630
    %v5871 = vpack.c.b16 %v4639, %v4631
    %v5872 = vpack.c.b16 %v4640, %v4632
    %v5873 = vpack.c.b16 %v4649, %v4641
    %v5874 = vpack.c.b16 %v4650, %v4642
    %v5875 = vpack.c.b16 %v4651, %v4643
    %v5876 = vpack.c.b16 %v4652, %v4644
    %v5877 = vpack.c.b16 %v4653, %v4645
    %v5878 = vpack.c.b16 %v4654, %v4646
    %v5879 = vpack.c.b16 %v4655, %v4647
    %v5880 = vpack.c.b16 %v4656, %v4648
    %v5881 = vpack.c.b16 %v4665, %v4657
    %v5882 = vpack.c.b16 %v4666, %v4658
    %v5883 = vpack.c.b16 %v4667, %v4659
    %v5884 = vpack.c.b16 %v4668, %v4660
    %v5885 = vpack.c.b16 %v4669, %v4661
    %v5886 = vpack.c.b16 %v4670, %v4662
    %v5887 = vpack.c.b16 %v4671, %v4663
    %v5888 = vpack.c.b16 %v4672, %v4664
    %v5889 = vpack.c.b16 %v4681, %v4673
    %v5890 = vpack.c.b16 %v4682, %v4674
    %v5891 = vpack.c.b16 %v4683, %v4675
    %v5892 = vpack.c.b16 %v4684, %v4676
    %v5893 = vpack.c.b16 %v4685, %v4677
    %v5894 = vpack.c.b16 %v4686, %v4678
    %v5895 = vpack.c.b16 %v4687, %v4679
    %v5896 = vpack.c.b16 %v4688, %v4680
    %v5897 = vpack.c.b16 %v4697, %v4689
    %v5898 = vpack.c.b16 %v4698, %v4690
    %v5899 = vpack.c.b16 %v4699, %v4691
    %v5900 = vpack.c.b16 %v4700, %v4692
    %v5901 = vpack.c.b16 %v4701, %v4693
    %v5902 = vpack.c.b16 %v4702, %v4694
    %v5903 = vpack.c.b16 %v4703, %v4695
    %v5904 = vpack.c.b16 %v4704, %v4696
    %v5905 = vpack.c.b16 %v4713, %v4705
    %v5906 = vpack.c.b16 %v4714, %v4706
    %v5907 = vpack.c.b16 %v4715, %v4707
    %v5908 = vpack.c.b16 %v4716, %v4708
    %v5909 = vpack.c.b16 %v4717, %v4709
    %v5910 = vpack.c.b16 %v4718, %v4710
    %v5911 = vpack.c.b16 %v4719, %v4711
    %v5912 = vpack.c.b16 %v4720, %v4712
    %v5913 = vpack.c.b16 %v4729, %v4721
    %v5914 = vpack.c.b16 %v4730, %v4722
    %v5915 = vpack.c.b16 %v4731, %v4723
    %v5916 = vpack.c.b16 %v4732, %v4724
    %v5917 = vpack.c.b16 %v4733, %v4725
    %v5918 = vpack.c.b16 %v4734, %v4726
    %v5919 = vpack.c.b16 %v4735, %v4727
    %v5920 = vpack.c.b16 %v4736, %v4728
    %v5921 = vpack.c.b16 %v4745, %v4737
    %v5922 = vpack.c.b16 %v4746, %v4738
    %v5923 = vpack.c.b16 %v4747, %v4739
    %v5924 = vpack.c.b16 %v4748, %v4740
    %v5925 = vpack.c.b16 %v4749, %v4741
    %v5926 = vpack.c.b16 %v4750, %v4742
    %v5927 = vpack.c.b16 %v4751, %v4743
    %v5928 = vpack.c.b16 %v4752, %v4744
    %v5929 = vpack.c.b16 %v4761, %v4753
    %v5930 = vpack.c.b16 %v4762, %v4754
    %v5931 = vpack.c.b16 %v4763, %v4755
    %v5932 = vpack.c.b16 %v4764, %v4756
    %v5933 = vpack.c.b16 %v4765, %v4757
    %v5934 = vpack.c.b16 %v4766, %v4758
    %v5935 = vpack.c.b16 %v4767, %v4759
    %v5936 = vpack.c.b16 %v4768, %v4760
    %v5937 = vpack.c.b16 %v4777, %v4769
    %v5938 = vpack.c.b16 %v4778, %v4770
    %v5939 = vpack.c.b16 %v4779, %v4771
    %v5940 = vpack.c.b16 %v4780, %v4772
    %v5941 = vpack.c.b16 %v4781, %v4773
    %v5942 = vpack.c.b16 %v4782, %v4774
    %v5943 = vpack.c.b16 %v4783, %v4775
    %v5944 = vpack.c.b16 %v4784, %v4776
    %v5945 = vpack.c.b16 %v4793, %v4785
    %v5946 = vpack.c.b16 %v4794, %v4786
    %v5947 = vpack.c.b16 %v4795, %v4787
    %v5948 = vpack.c.b16 %v4796, %v4788
    %v5949 = vpack.c.b16 %v4797, %v4789
    %v5950 = vpack.c.b16 %v4798, %v4790
    %v5951 = vpack.c.b16 %v4799, %v4791
    %v5952 = vpack.c.b16 %v4800, %v4792
    %v5953 = vpack.c.b16 %v4809, %v4801
    %v5954 = vpack.c.b16 %v4810, %v4802
    %v5955 = vpack.c.b16 %v4811, %v4803
    %v5956 = vpack.c.b16 %v4812, %v4804
    %v5957 = vpack.c.b16 %v4813, %v4805
    %v5958 = vpack.c.b16 %v4814, %v4806
    %v5959 = vpack.c.b16 %v4815, %v4807
    %v5960 = vpack.c.b16 %v4816, %v4808
    %v5961 = vpack.c.b16 %v4825, %v4817
    %v5962 = vpack.c.b16 %v4826, %v4818
    %v5963 = vpack.c.b16 %v4827, %v4819
    %v5964 = vpack.c.b16 %v4828, %v4820
    %v5965 = vpack.c.b16 %v4829, %v4821
    %v5966 = vpack.c.b16 %v4830, %v4822
    %v5967 = vpack.c.b16 %v4831, %v4823
    %v5968 = vpack.c.b16 %v4832, %v4824
    %v5969 = vpack.c.b16 %v4841, %v4833
    %v5970 = vpack.c.b16 %v4842, %v4834
    %v5971 = vpack.c.b16 %v4843, %v4835
    %v5972 = vpack.c.b16 %v4844, %v4836
    %v5973 = vpack.c.b16 %v4845, %v4837
    %v5974 = vpack.c.b16 %v4846, %v4838
    %v5975 = vpack.c.b16 %v4847, %v4839
    %v5976 = vpack.c.b16 %v4848, %v4840
    %v5977 = vpack.c.b16 %v4857, %v4849
    %v5978 = vpack.c.b16 %v4858, %v4850
    %v5979 = vpack.c.b16 %v4859, %v4851
    %v5980 = vpack.c.b16 %v4860, %v4852
    %v5981 = vpack.c.b16 %v4861, %v4853
    %v5982 = vpack.c.b16 %v4862, %v4854
    %v5983 = vpack.c.b16 %v4863, %v4855
    %v5984 = vpack.c.b16 %v4864, %v4856
    %v5985 = vpack.c.b16 %v4873, %v4865
    %v5986 = vpack.c.b16 %v4874, %v4866
    %v5987 = vpack.c.b16 %v4875, %v4867
    %v5988 = vpack.c.b16 %v4876, %v4868
    %v5989 = vpack.c.b16 %v4877, %v4869
    %v5990 = vpack.c.b16 %v4878, %v4870
    %v5991 = vpack.c.b16 %v4879, %v4871
    %v5992 = vpack.c.b16 %v4880, %v4872
    %v5993 = vpack.c.b16 %v4889, %v4881
    %v5994 = vpack.c.b16 %v4890, %v4882
    %v5995 = vpack.c.b16 %v4891, %v4883
    %v5996 = vpack.c.b16 %v4892, %v4884
    %v5997 = vpack.c.b16 %v4893, %v4885
    %v5998 = vpack.c.b16 %v4894, %v4886
    %v5999 = vpack.c.b16 %v4895, %v4887
    %v6000 = vpack.c.b16 %v4896, %v4888
    %v6001 = vpack.c.b16 %v4905, %v4897
    %v6002 = vpack.c.b16 %v4906, %v4898
    %v6003 = vpack.c.b16 %v4907, %v4899
    %v6004 = vpack.c.b16 %v4908, %v4900
    %v6005 = vpack.c.b16 %v4909, %v4901
    %v6006 = vpack.c.b16 %v4910, %v4902
    %v6007 = vpack.c.b16 %v4911, %v4903
    %v6008 = vpack.c.b16 %v4912, %v4904
    %v6009 = vpack.c.b16 %v4921, %v4913
    %v6010 = vpack.c.b16 %v4922, %v4914
    %v6011 = vpack.c.b16 %v4923, %v4915
    %v6012 = vpack.c.b16 %v4924, %v4916
    %v6013 = vpack.c.b16 %v4925, %v4917
    %v6014 = vpack.c.b16 %v4926, %v4918
    %v6015 = vpack.c.b16 %v4927, %v4919
    %v6016 = vpack.c.b16 %v4928, %v4920
    %v6017 = vpack.c.b16 %v4937, %v4929
    %v6018 = vpack.c.b16 %v4938, %v4930
    %v6019 = vpack.c.b16 %v4939, %v4931
    %v6020 = vpack.c.b16 %v4940, %v4932
    %v6021 = vpack.c.b16 %v4941, %v4933
    %v6022 = vpack.c.b16 %v4942, %v4934
    %v6023 = vpack.c.b16 %v4943, %v4935
    %v6024 = vpack.c.b16 %v4944, %v4936
    %v6025 = vpack.c.b16 %v4953, %v4945
    %v6026 = vpack.c.b16 %v4954, %v4946
    %v6027 = vpack.c.b16 %v4955, %v4947
    %v6028 = vpack.c.b16 %v4956, %v4948
    %v6029 = vpack.c.b16 %v4957, %v4949
    %v6030 = vpack.c.b16 %v4958, %v4950
    %v6031 = vpack.c.b16 %v4959, %v4951
    %v6032 = vpack.c.b16 %v4960, %v4952
    %v6033 = vpack.c.b16 %v4969, %v4961
    %v6034 = vpack.c.b16 %v4970, %v4962
    %v6035 = vpack.c.b16 %v4971, %v4963
    %v6036 = vpack.c.b16 %v4972, %v4964
    %v6037 = vpack.c.b16 %v4973, %v4965
    %v6038 = vpack.c.b16 %v4974, %v4966
    %v6039 = vpack.c.b16 %v4975, %v4967
    %v6040 = vpack.c.b16 %v4976, %v4968
    %v6041 = vpack.c.b16 %v4985, %v4977
    %v6042 = vpack.c.b16 %v4986, %v4978
    %v6043 = vpack.c.b16 %v4987, %v4979
    %v6044 = vpack.c.b16 %v4988, %v4980
    %v6045 = vpack.c.b16 %v4989, %v4981
    %v6046 = vpack.c.b16 %v4990, %v4982
    %v6047 = vpack.c.b16 %v4991, %v4983
    %v6048 = vpack.c.b16 %v4992, %v4984
    %v6049 = vpack.c.b16 %v5001, %v4993
    %v6050 = vpack.c.b16 %v5002, %v4994
    %v6051 = vpack.c.b16 %v5003, %v4995
    %v6052 = vpack.c.b16 %v5004, %v4996
    %v6053 = vpack.c.b16 %v5005, %v4997
    %v6054 = vpack.c.b16 %v5006, %v4998
    %v6055 = vpack.c.b16 %v5007, %v4999
    %v6056 = vpack.c.b16 %v5008, %v5000
    %v6057 = vpack.c.b16 %v5017, %v5009
    %v6058 = vpack.c.b16 %v5018, %v5010
    %v6059 = vpack.c.b16 %v5019, %v5011
    %v6060 = vpack.c.b16 %v5020, %v5012
    %v6061 = vpack.c.b16 %v5021, %v5013
    %v6062 = vpack.c.b16 %v5022, %v5014
    %v6063 = vpack.c.b16 %v5023, %v5015
    %v6064 = vpack.c.b16 %v5024, %v5016
    %v6065 = vpack.c.b16 %v5033, %v5025
    %v6066 = vpack.c.b16 %v5034, %v5026
    %v6067 = vpack.c.b16 %v5035, %v5027
    %v6068 = vpack.c.b16 %v5036, %v5028
    %v6069 = vpack.c.b16 %v5037, %v5029
    %v6070 = vpack.c.b16 %v5038, %v5030
    %v6071 = vpack.c.b16 %v5039, %v5031
    %v6072 = vpack.c.b16 %v5040, %v5032
    %v6073 = vpack.c.b16 %v5049, %v5041
    %v6074 = vpack.c.b16 %v5050, %v5042
    %v6075 = vpack.c.b16 %v5051, %v5043
    %v6076 = vpack.c.b16 %v5052, %v5044
    %v6077 = vpack.c.b16 %v5053, %v5045
    %v6078 = vpack.c.b16 %v5054, %v5046
    %v6079 = vpack.c.b16 %v5055, %v5047
    %v6080 = vpack.c.b16 %v5056, %v5048
    %7105 = vmatprep.subr.bf16.mxu0 %v5058
    %7106 = vmatpush1.bf16.msra.mxu0 %v5057
    %7107 = vmatprep.subr.bf16.mxu0 %v5066
    %7108 = vmatpush1.bf16.msra.mxu0 %v5065
    %7109 = vmatprep.subr.bf16.mxu0 %v5074
    %7110 = vmatpush1.bf16.msra.mxu0 %v5073
    %7111 = vmatprep.subr.bf16.mxu0 %v5082
    %7112 = vmatpush1.bf16.msra.mxu0 %v5081
    %7113 = vmatprep.subr.bf16.mxu0 %v5090
    %7114 = vmatpush1.bf16.msra.mxu0 %v5089
    %7115 = vmatprep.subr.bf16.mxu0 %v5098
    %7116 = vmatpush1.bf16.msra.mxu0 %v5097
    %7117 = vmatprep.subr.bf16.mxu0 %v5106
    %7118 = vmatpush1.bf16.msra.mxu0 %v5105
    %7119 = vmatprep.subr.bf16.mxu0 %v5114
    %7120 = vmatpush1.bf16.msra.mxu0 %v5113
    %7121 = vmatprep.subr.bf16.mxu0 %v5122
    %7122 = vmatpush1.bf16.msra.mxu0 %v5121
    %7123 = vmatprep.subr.bf16.mxu0 %v5130
    %7124 = vmatpush1.bf16.msra.mxu0 %v5129
    %7125 = vmatprep.subr.bf16.mxu0 %v5138
    %7126 = vmatpush1.bf16.msra.mxu0 %v5137
    %7127 = vmatprep.subr.bf16.mxu0 %v5146
    %7128 = vmatpush1.bf16.msra.mxu0 %v5145
    %7129 = vmatprep.subr.bf16.mxu0 %v5154
    %7130 = vmatpush1.bf16.msra.mxu0 %v5153
    %7131 = vmatprep.subr.bf16.mxu0 %v5162
    %7132 = vmatpush1.bf16.msra.mxu0 %v5161
    %7133 = vmatprep.subr.bf16.mxu0 %v5170
    %7134 = vmatpush1.bf16.msra.mxu0 %v5169
    %7135 = vmatprep.subr.bf16.mxu0 %v5178
    %7136 = vmatpush1.bf16.msra.mxu0 %v5177
    %7137 = vmatprep.mubr.bf16.mxu0 %v1714
    %7138 = vmatmul.mubr.bf16.gmra.mrb[0].mxu0 %v1713
    %v7139 = vpop.f32.mrb[0].mxu0
    %v7140 = vadd.f32 %v1977, %v7139
    %v7141 = vpop.f32.mrb[0].mxu0
    %v7142 = vadd.f32 %v1978, %v7141
    %v7143 = vpop.f32.mrb[0].mxu0
    %v7144 = vpop.f32.mrb[0].mxu0
    %7145 = vdwg.mxu0
    %7146 = vmatprep.subr.bf16.mxu0 %v5186
    %7147 = vmatpush1.bf16.msra.mxu0 %v5185
    %7148 = vmatprep.subr.bf16.mxu0 %v5194
    %7149 = vmatpush1.bf16.msra.mxu0 %v5193
    %7150 = vmatprep.subr.bf16.mxu0 %v5202
    %7151 = vmatpush1.bf16.msra.mxu0 %v5201
    %7152 = vmatprep.subr.bf16.mxu0 %v5210
    %7153 = vmatpush1.bf16.msra.mxu0 %v5209
    %7154 = vmatprep.subr.bf16.mxu0 %v5218
    %7155 = vmatpush1.bf16.msra.mxu0 %v5217
    %7156 = vmatprep.subr.bf16.mxu0 %v5226
    %7157 = vmatpush1.bf16.msra.mxu0 %v5225
    %7158 = vmatprep.subr.bf16.mxu0 %v5234
    %7159 = vmatpush1.bf16.msra.mxu0 %v5233
    %7160 = vmatprep.subr.bf16.mxu0 %v5242
    %7161 = vmatpush1.bf16.msra.mxu0 %v5241
    %7162 = vmatprep.subr.bf16.mxu0 %v5250
    %7163 = vmatpush1.bf16.msra.mxu0 %v5249
    %7164 = vmatprep.subr.bf16.mxu0 %v5258
    %7165 = vmatpush1.bf16.msra.mxu0 %v5257
    %7166 = vmatprep.subr.bf16.mxu0 %v5266
    %7167 = vmatpush1.bf16.msra.mxu0 %v5265
    %7168 = vmatprep.subr.bf16.mxu0 %v5274
    %7169 = vmatpush1.bf16.msra.mxu0 %v5273
    %7170 = vmatprep.subr.bf16.mxu0 %v5282
    %7171 = vmatpush1.bf16.msra.mxu0 %v5281
    %7172 = vmatprep.subr.bf16.mxu0 %v5290
    %7173 = vmatpush1.bf16.msra.mxu0 %v5289
    %7174 = vmatprep.subr.bf16.mxu0 %v5298
    %7175 = vmatpush1.bf16.msra.mxu0 %v5297
    %7176 = vmatprep.subr.bf16.mxu0 %v5306
    %7177 = vmatpush1.bf16.msra.mxu0 %v5305
    %7178 = vmatprep.mubr.bf16.mxu0 %v1716
    %7179 = vmatmul.mubr.bf16.gmra.mrb[0].mxu0 %v1715
    %v7180 = vpop.f32.mrb[0].mxu0
    %v7181 = vadd.f32 %v7140, %v7180
    %v7182 = vpop.f32.mrb[0].mxu0
    %v7183 = vadd.f32 %v7142, %v7182
    %v7184 = vpop.f32.mrb[0].mxu0
    %v7185 = vpop.f32.mrb[0].mxu0
    %7186 = vdwg.mxu0
    %7187 = vmatprep.subr.bf16.mxu0 %v5314
    %7188 = vmatpush1.bf16.msra.mxu0 %v5313
    %7189 = vmatprep.subr.bf16.mxu0 %v5322
    %7190 = vmatpush1.bf16.msra.mxu0 %v5321
    %7191 = vmatprep.subr.bf16.mxu0 %v5330
    %7192 = vmatpush1.bf16.msra.mxu0 %v5329
    %7193 = vmatprep.subr.bf16.mxu0 %v5338
    %7194 = vmatpush1.bf16.msra.mxu0 %v5337
    %7195 = vmatprep.subr.bf16.mxu0 %v5346
    %7196 = vmatpush1.bf16.msra.mxu0 %v5345
    %7197 = vmatprep.subr.bf16.mxu0 %v5354
    %7198 = vmatpush1.bf16.msra.mxu0 %v5353
    %7199 = vmatprep.subr.bf16.mxu0 %v5362
    %7200 = vmatpush1.bf16.msra.mxu0 %v5361
    %7201 = vmatprep.subr.bf16.mxu0 %v5370
    %7202 = vmatpush1.bf16.msra.mxu0 %v5369
    %7203 = vmatprep.subr.bf16.mxu0 %v5378
    %7204 = vmatpush1.bf16.msra.mxu0 %v5377
    %7205 = vmatprep.subr.bf16.mxu0 %v5386
    %7206 = vmatpush1.bf16.msra.mxu0 %v5385
    %7207 = vmatprep.subr.bf16.mxu0 %v5394
    %7208 = vmatpush1.bf16.msra.mxu0 %v5393
    %7209 = vmatprep.subr.bf16.mxu0 %v5402
    %7210 = vmatpush1.bf16.msra.mxu0 %v5401
    %7211 = vmatprep.subr.bf16.mxu0 %v5410
    %7212 = vmatpush1.bf16.msra.mxu0 %v5409
    %7213 = vmatprep.subr.bf16.mxu0 %v5418
    %7214 = vmatpush1.bf16.msra.mxu0 %v5417
    %7215 = vmatprep.subr.bf16.mxu0 %v5426
    %7216 = vmatpush1.bf16.msra.mxu0 %v5425
    %7217 = vmatprep.subr.bf16.mxu0 %v5434
    %7218 = vmatpush1.bf16.msra.mxu0 %v5433
    %7219 = vmatprep.mubr.bf16.mxu0 %v1718
    %7220 = vmatmul.mubr.bf16.gmra.mrb[0].mxu0 %v1717
    %v7221 = vpop.f32.mrb[0].mxu0
    %v7222 = vadd.f32 %v7181, %v7221
    %v7223 = vpop.f32.mrb[0].mxu0
    %v7224 = vadd.f32 %v7183, %v7223
    %v7225 = vpop.f32.mrb[0].mxu0
    %v7226 = vpop.f32.mrb[0].mxu0
    %7227 = vdwg.mxu0
    %7228 = vmatprep.subr.bf16.mxu0 %v5442
    %7229 = vmatpush1.bf16.msra.mxu0 %v5441
    %7230 = vmatprep.subr.bf16.mxu0 %v5450
    %7231 = vmatpush1.bf16.msra.mxu0 %v5449
    %7232 = vmatprep.subr.bf16.mxu0 %v5458
    %7233 = vmatpush1.bf16.msra.mxu0 %v5457
    %7234 = vmatprep.subr.bf16.mxu0 %v5466
    %7235 = vmatpush1.bf16.msra.mxu0 %v5465
    %7236 = vmatprep.subr.bf16.mxu0 %v5474
    %7237 = vmatpush1.bf16.msra.mxu0 %v5473
    %7238 = vmatprep.subr.bf16.mxu0 %v5482
    %7239 = vmatpush1.bf16.msra.mxu0 %v5481
    %7240 = vmatprep.subr.bf16.mxu0 %v5490
    %7241 = vmatpush1.bf16.msra.mxu0 %v5489
    %7242 = vmatprep.subr.bf16.mxu0 %v5498
    %7243 = vmatpush1.bf16.msra.mxu0 %v5497
    %7244 = vmatprep.subr.bf16.mxu0 %v5506
    %7245 = vmatpush1.bf16.msra.mxu0 %v5505
    %7246 = vmatprep.subr.bf16.mxu0 %v5514
    %7247 = vmatpush1.bf16.msra.mxu0 %v5513
    %7248 = vmatprep.subr.bf16.mxu0 %v5522
    %7249 = vmatpush1.bf16.msra.mxu0 %v5521
    %7250 = vmatprep.subr.bf16.mxu0 %v5530
    %7251 = vmatpush1.bf16.msra.mxu0 %v5529
    %7252 = vmatprep.subr.bf16.mxu0 %v5538
    %7253 = vmatpush1.bf16.msra.mxu0 %v5537
    %7254 = vmatprep.subr.bf16.mxu0 %v5546
    %7255 = vmatpush1.bf16.msra.mxu0 %v5545
    %7256 = vmatprep.subr.bf16.mxu0 %v5554
    %7257 = vmatpush1.bf16.msra.mxu0 %v5553
    %7258 = vmatprep.subr.bf16.mxu0 %v5562
    %7259 = vmatpush1.bf16.msra.mxu0 %v5561
    %7260 = vmatprep.mubr.bf16.mxu0 %v1720
    %7261 = vmatmul.mubr.bf16.gmra.mrb[0].mxu0 %v1719
    %v7262 = vpop.f32.mrb[0].mxu0
    %v7263 = vadd.f32 %v7222, %v7262
    %v7264 = vpop.f32.mrb[0].mxu0
    %v7265 = vadd.f32 %v7224, %v7264
    %v7266 = vpop.f32.mrb[0].mxu0
    %v7267 = vpop.f32.mrb[0].mxu0
    %7268 = vdwg.mxu0
    %7269 = vmatprep.subr.bf16.mxu0 %v5570
    %7270 = vmatpush1.bf16.msra.mxu0 %v5569
    %7271 = vmatprep.subr.bf16.mxu0 %v5578
    %7272 = vmatpush1.bf16.msra.mxu0 %v5577
    %7273 = vmatprep.subr.bf16.mxu0 %v5586
    %7274 = vmatpush1.bf16.msra.mxu0 %v5585
    %7275 = vmatprep.subr.bf16.mxu0 %v5594
    %7276 = vmatpush1.bf16.msra.mxu0 %v5593
    %7277 = vmatprep.subr.bf16.mxu0 %v5602
    %7278 = vmatpush1.bf16.msra.mxu0 %v5601
    %7279 = vmatprep.subr.bf16.mxu0 %v5610
    %7280 = vmatpush1.bf16.msra.mxu0 %v5609
    %7281 = vmatprep.subr.bf16.mxu0 %v5618
    %7282 = vmatpush1.bf16.msra.mxu0 %v5617
    %7283 = vmatprep.subr.bf16.mxu0 %v5626
    %7284 = vmatpush1.bf16.msra.mxu0 %v5625
    %7285 = vmatprep.subr.bf16.mxu0 %v5634
    %7286 = vmatpush1.bf16.msra.mxu0 %v5633
    %7287 = vmatprep.subr.bf16.mxu0 %v5642
    %7288 = vmatpush1.bf16.msra.mxu0 %v5641
    %7289 = vmatprep.subr.bf16.mxu0 %v5650
    %7290 = vmatpush1.bf16.msra.mxu0 %v5649
    %7291 = vmatprep.subr.bf16.mxu0 %v5658
    %7292 = vmatpush1.bf16.msra.mxu0 %v5657
    %7293 = vmatprep.subr.bf16.mxu0 %v5666
    %7294 = vmatpush1.bf16.msra.mxu0 %v5665
    %7295 = vmatprep.subr.bf16.mxu0 %v5674
    %7296 = vmatpush1.bf16.msra.mxu0 %v5673
    %7297 = vmatprep.subr.bf16.mxu0 %v5682
    %7298 = vmatpush1.bf16.msra.mxu0 %v5681
    %7299 = vmatprep.subr.bf16.mxu0 %v5690
    %7300 = vmatpush1.bf16.msra.mxu0 %v5689
    %7301 = vmatprep.mubr.bf16.mxu0 %v1722
    %7302 = vmatmul.mubr.bf16.gmra.mrb[0].mxu0 %v1721
    %v7303 = vpop.f32.mrb[0].mxu0
    %v7304 = vadd.f32 %v7263, %v7303
    %v7305 = vpop.f32.mrb[0].mxu0
    %v7306 = vadd.f32 %v7265, %v7305
    %v7307 = vpop.f32.mrb[0].mxu0
    %v7308 = vpop.f32.mrb[0].mxu0
    %7309 = vdwg.mxu0
    %7310 = vmatprep.subr.bf16.mxu0 %v5698
    %7311 = vmatpush1.bf16.msra.mxu0 %v5697
    %7312 = vmatprep.subr.bf16.mxu0 %v5706
    %7313 = vmatpush1.bf16.msra.mxu0 %v5705
    %7314 = vmatprep.subr.bf16.mxu0 %v5714
    %7315 = vmatpush1.bf16.msra.mxu0 %v5713
    %7316 = vmatprep.subr.bf16.mxu0 %v5722
    %7317 = vmatpush1.bf16.msra.mxu0 %v5721
    %7318 = vmatprep.subr.bf16.mxu0 %v5730
    %7319 = vmatpush1.bf16.msra.mxu0 %v5729
    %7320 = vmatprep.subr.bf16.mxu0 %v5738
    %7321 = vmatpush1.bf16.msra.mxu0 %v5737
    %7322 = vmatprep.subr.bf16.mxu0 %v5746
    %7323 = vmatpush1.bf16.msra.mxu0 %v5745
    %7324 = vmatprep.subr.bf16.mxu0 %v5754
    %7325 = vmatpush1.bf16.msra.mxu0 %v5753
    %7326 = vmatprep.subr.bf16.mxu0 %v5762
    %7327 = vmatpush1.bf16.msra.mxu0 %v5761
    %7328 = vmatprep.subr.bf16.mxu0 %v5770
    %7329 = vmatpush1.bf16.msra.mxu0 %v5769
    %7330 = vmatprep.subr.bf16.mxu0 %v5778
    %7331 = vmatpush1.bf16.msra.mxu0 %v5777
    %7332 = vmatprep.subr.bf16.mxu0 %v5786
    %7333 = vmatpush1.bf16.msra.mxu0 %v5785
    %7334 = vmatprep.subr.bf16.mxu0 %v5794
    %7335 = vmatpush1.bf16.msra.mxu0 %v5793
    %7336 = vmatprep.subr.bf16.mxu0 %v5802
    %7337 = vmatpush1.bf16.msra.mxu0 %v5801
    %7338 = vmatprep.subr.bf16.mxu0 %v5810
    %7339 = vmatpush1.bf16.msra.mxu0 %v5809
    %7340 = vmatprep.subr.bf16.mxu0 %v5818
    %7341 = vmatpush1.bf16.msra.mxu0 %v5817
    %7342 = vmatprep.mubr.bf16.mxu0 %v1724
    %7343 = vmatmul.mubr.bf16.gmra.mrb[0].mxu0 %v1723
    %v7344 = vpop.f32.mrb[0].mxu0
    %v7345 = vadd.f32 %v7304, %v7344
    %v7346 = vpop.f32.mrb[0].mxu0
    %v7347 = vadd.f32 %v7306, %v7346
    %v7348 = vpop.f32.mrb[0].mxu0
    %v7349 = vpop.f32.mrb[0].mxu0
    %7350 = vdwg.mxu0
    %7351 = vmatprep.subr.bf16.mxu0 %v5826
    %7352 = vmatpush1.bf16.msra.mxu0 %v5825
    %7353 = vmatprep.subr.bf16.mxu0 %v5834
    %7354 = vmatpush1.bf16.msra.mxu0 %v5833
    %7355 = vmatprep.subr.bf16.mxu0 %v5842
    %7356 = vmatpush1.bf16.msra.mxu0 %v5841
    %7357 = vmatprep.subr.bf16.mxu0 %v5850
    %7358 = vmatpush1.bf16.msra.mxu0 %v5849
    %7359 = vmatprep.subr.bf16.mxu0 %v5858
    %7360 = vmatpush1.bf16.msra.mxu0 %v5857
    %7361 = vmatprep.subr.bf16.mxu0 %v5866
    %7362 = vmatpush1.bf16.msra.mxu0 %v5865
    %7363 = vmatprep.subr.bf16.mxu0 %v5874
    %7364 = vmatpush1.bf16.msra.mxu0 %v5873
    %7365 = vmatprep.subr.bf16.mxu0 %v5882
    %7366 = vmatpush1.bf16.msra.mxu0 %v5881
    %7367 = vmatprep.subr.bf16.mxu0 %v5890
    %7368 = vmatpush1.bf16.msra.mxu0 %v5889
    %7369 = vmatprep.subr.bf16.mxu0 %v5898
    %7370 = vmatpush1.bf16.msra.mxu0 %v5897
    %7371 = vmatprep.subr.bf16.mxu0 %v5906
    %7372 = vmatpush1.bf16.msra.mxu0 %v5905
    %7373 = vmatprep.subr.bf16.mxu0 %v5914
    %7374 = vmatpush1.bf16.msra.mxu0 %v5913
    %7375 = vmatprep.subr.bf16.mxu0 %v5922
    %7376 = vmatpush1.bf16.msra.mxu0 %v5921
    %7377 = vmatprep.subr.bf16.mxu0 %v5930
    %7378 = vmatpush1.bf16.msra.mxu0 %v5929
    %7379 = vmatprep.subr.bf16.mxu0 %v5938
    %7380 = vmatpush1.bf16.msra.mxu0 %v5937
    %7381 = vmatprep.subr.bf16.mxu0 %v5946
    %7382 = vmatpush1.bf16.msra.mxu0 %v5945
    %7383 = vmatprep.mubr.bf16.mxu0 %v1726
    %7384 = vmatmul.mubr.bf16.gmra.mrb[0].mxu0 %v1725
    %v7385 = vpop.f32.mrb[0].mxu0
    %v7386 = vadd.f32 %v7345, %v7385
    %v7387 = vpop.f32.mrb[0].mxu0
    %v7388 = vadd.f32 %v7347, %v7387
    %v7389 = vpop.f32.mrb[0].mxu0
    %v7390 = vpop.f32.mrb[0].mxu0
    %7391 = vdwg.mxu0
    %7392 = vmatprep.subr.bf16.mxu0 %v5954
    %7393 = vmatpush1.bf16.msra.mxu0 %v5953
    %7394 = vmatprep.subr.bf16.mxu0 %v5962
    %7395 = vmatpush1.bf16.msra.mxu0 %v5961
    %7396 = vmatprep.subr.bf16.mxu0 %v5970
    %7397 = vmatpush1.bf16.msra.mxu0 %v5969
    %7398 = vmatprep.subr.bf16.mxu0 %v5978
    %7399 = vmatpush1.bf16.msra.mxu0 %v5977
    %7400 = vmatprep.subr.bf16.mxu0 %v5986
    %7401 = vmatpush1.bf16.msra.mxu0 %v5985
    %7402 = vmatprep.subr.bf16.mxu0 %v5994
    %7403 = vmatpush1.bf16.msra.mxu0 %v5993
    %7404 = vmatprep.subr.bf16.mxu0 %v6002
    %7405 = vmatpush1.bf16.msra.mxu0 %v6001
    %7406 = vmatprep.subr.bf16.mxu0 %v6010
    %7407 = vmatpush1.bf16.msra.mxu0 %v6009
    %7408 = vmatprep.subr.bf16.mxu0 %v6018
    %7409 = vmatpush1.bf16.msra.mxu0 %v6017
    %7410 = vmatprep.subr.bf16.mxu0 %v6026
    %7411 = vmatpush1.bf16.msra.mxu0 %v6025
    %7412 = vmatprep.subr.bf16.mxu0 %v6034
    %7413 = vmatpush1.bf16.msra.mxu0 %v6033
    %7414 = vmatprep.subr.bf16.mxu0 %v6042
    %7415 = vmatpush1.bf16.msra.mxu0 %v6041
    %7416 = vmatprep.subr.bf16.mxu0 %v6050
    %7417 = vmatpush1.bf16.msra.mxu0 %v6049
    %7418 = vmatprep.subr.bf16.mxu0 %v6058
    %7419 = vmatpush1.bf16.msra.mxu0 %v6057
    %7420 = vmatprep.subr.bf16.mxu0 %v6066
    %7421 = vmatpush1.bf16.msra.mxu0 %v6065
    %7422 = vmatprep.subr.bf16.mxu0 %v6074
    %7423 = vmatpush1.bf16.msra.mxu0 %v6073
    %7424 = vmatprep.mubr.bf16.mxu0 %v1728
    %7425 = vmatmul.mubr.bf16.gmra.mrb[0].mxu0 %v1727
    %v7426 = vpop.f32.mrb[0].mxu0
    %v7427 = vadd.f32 %v7386, %v7426
    %v7428 = vpop.f32.mrb[0].mxu0
    %v7429 = vadd.f32 %v7388, %v7428
    %v7430 = vpop.f32.mrb[0].mxu0
    %v7431 = vpop.f32.mrb[0].mxu0
    %7432 = vdwg.mxu0
    %7433 = vmatprep.subr.bf16.mxu0 %v5060
    %7434 = vmatpush1.bf16.msra.mxu0 %v5059
    %7435 = vmatprep.subr.bf16.mxu0 %v5068
    %7436 = vmatpush1.bf16.msra.mxu0 %v5067
    %7437 = vmatprep.subr.bf16.mxu0 %v5076
    %7438 = vmatpush1.bf16.msra.mxu0 %v5075
    %7439 = vmatprep.subr.bf16.mxu0 %v5084
    %7440 = vmatpush1.bf16.msra.mxu0 %v5083
    %7441 = vmatprep.subr.bf16.mxu0 %v5092
    %7442 = vmatpush1.bf16.msra.mxu0 %v5091
    %7443 = vmatprep.subr.bf16.mxu0 %v5100
    %7444 = vmatpush1.bf16.msra.mxu0 %v5099
    %7445 = vmatprep.subr.bf16.mxu0 %v5108
    %7446 = vmatpush1.bf16.msra.mxu0 %v5107
    %7447 = vmatprep.subr.bf16.mxu0 %v5116
    %7448 = vmatpush1.bf16.msra.mxu0 %v5115
    %7449 = vmatprep.subr.bf16.mxu0 %v5124
    %7450 = vmatpush1.bf16.msra.mxu0 %v5123
    %7451 = vmatprep.subr.bf16.mxu0 %v5132
    %7452 = vmatpush1.bf16.msra.mxu0 %v5131
    %7453 = vmatprep.subr.bf16.mxu0 %v5140
    %7454 = vmatpush1.bf16.msra.mxu0 %v5139
    %7455 = vmatprep.subr.bf16.mxu0 %v5148
    %7456 = vmatpush1.bf16.msra.mxu0 %v5147
    %7457 = vmatprep.subr.bf16.mxu0 %v5156
    %7458 = vmatpush1.bf16.msra.mxu0 %v5155
    %7459 = vmatprep.subr.bf16.mxu0 %v5164
    %7460 = vmatpush1.bf16.msra.mxu0 %v5163
    %7461 = vmatprep.subr.bf16.mxu0 %v5172
    %7462 = vmatpush1.bf16.msra.mxu0 %v5171
    %7463 = vmatprep.subr.bf16.mxu0 %v5180
    %7464 = vmatpush1.bf16.msra.mxu0 %v5179
    %7465 = vmatprep.mubr.bf16.mxu0 %v1714
    %7466 = vmatmul.mubr.bf16.gmra.mrb[0].mxu0 %v1713
    %v7467 = vpop.f32.mrb[0].mxu0
    %v7468 = vadd.f32 %v1979, %v7467
    %v7469 = vpop.f32.mrb[0].mxu0
    %v7470 = vadd.f32 %v1980, %v7469
    %v7471 = vpop.f32.mrb[0].mxu0
    %v7472 = vpop.f32.mrb[0].mxu0
    %7473 = vdwg.mxu0
    %7474 = vmatprep.subr.bf16.mxu0 %v5188
    %7475 = vmatpush1.bf16.msra.mxu0 %v5187
    %7476 = vmatprep.subr.bf16.mxu0 %v5196
    %7477 = vmatpush1.bf16.msra.mxu0 %v5195
    %7478 = vmatprep.subr.bf16.mxu0 %v5204
    %7479 = vmatpush1.bf16.msra.mxu0 %v5203
    %7480 = vmatprep.subr.bf16.mxu0 %v5212
    %7481 = vmatpush1.bf16.msra.mxu0 %v5211
    %7482 = vmatprep.subr.bf16.mxu0 %v5220
    %7483 = vmatpush1.bf16.msra.mxu0 %v5219
    %7484 = vmatprep.subr.bf16.mxu0 %v5228
    %7485 = vmatpush1.bf16.msra.mxu0 %v5227
    %7486 = vmatprep.subr.bf16.mxu0 %v5236
    %7487 = vmatpush1.bf16.msra.mxu0 %v5235
    %7488 = vmatprep.subr.bf16.mxu0 %v5244
    %7489 = vmatpush1.bf16.msra.mxu0 %v5243
    %7490 = vmatprep.subr.bf16.mxu0 %v5252
    %7491 = vmatpush1.bf16.msra.mxu0 %v5251
    %7492 = vmatprep.subr.bf16.mxu0 %v5260
    %7493 = vmatpush1.bf16.msra.mxu0 %v5259
    %7494 = vmatprep.subr.bf16.mxu0 %v5268
    %7495 = vmatpush1.bf16.msra.mxu0 %v5267
    %7496 = vmatprep.subr.bf16.mxu0 %v5276
    %7497 = vmatpush1.bf16.msra.mxu0 %v5275
    %7498 = vmatprep.subr.bf16.mxu0 %v5284
    %7499 = vmatpush1.bf16.msra.mxu0 %v5283
    %7500 = vmatprep.subr.bf16.mxu0 %v5292
    %7501 = vmatpush1.bf16.msra.mxu0 %v5291
    %7502 = vmatprep.subr.bf16.mxu0 %v5300
    %7503 = vmatpush1.bf16.msra.mxu0 %v5299
    %7504 = vmatprep.subr.bf16.mxu0 %v5308
    %7505 = vmatpush1.bf16.msra.mxu0 %v5307
    %7506 = vmatprep.mubr.bf16.mxu0 %v1716
    %7507 = vmatmul.mubr.bf16.gmra.mrb[0].mxu0 %v1715
    %v7508 = vpop.f32.mrb[0].mxu0
    %v7509 = vadd.f32 %v7468, %v7508
    %v7510 = vpop.f32.mrb[0].mxu0
    %v7511 = vadd.f32 %v7470, %v7510
    %v7512 = vpop.f32.mrb[0].mxu0
    %v7513 = vpop.f32.mrb[0].mxu0
    %7514 = vdwg.mxu0
    %7515 = vmatprep.subr.bf16.mxu0 %v5316
    %7516 = vmatpush1.bf16.msra.mxu0 %v5315
    %7517 = vmatprep.subr.bf16.mxu0 %v5324
    %7518 = vmatpush1.bf16.msra.mxu0 %v5323
    %7519 = vmatprep.subr.bf16.mxu0 %v5332
    %7520 = vmatpush1.bf16.msra.mxu0 %v5331
    %7521 = vmatprep.subr.bf16.mxu0 %v5340
    %7522 = vmatpush1.bf16.msra.mxu0 %v5339
    %7523 = vmatprep.subr.bf16.mxu0 %v5348
    %7524 = vmatpush1.bf16.msra.mxu0 %v5347
    %7525 = vmatprep.subr.bf16.mxu0 %v5356
    %7526 = vmatpush1.bf16.msra.mxu0 %v5355
    %7527 = vmatprep.subr.bf16.mxu0 %v5364
    %7528 = vmatpush1.bf16.msra.mxu0 %v5363
    %7529 = vmatprep.subr.bf16.mxu0 %v5372
    %7530 = vmatpush1.bf16.msra.mxu0 %v5371
    %7531 = vmatprep.subr.bf16.mxu0 %v5380
    %7532 = vmatpush1.bf16.msra.mxu0 %v5379
    %7533 = vmatprep.subr.bf16.mxu0 %v5388
    %7534 = vmatpush1.bf16.msra.mxu0 %v5387
    %7535 = vmatprep.subr.bf16.mxu0 %v5396
    %7536 = vmatpush1.bf16.msra.mxu0 %v5395
    %7537 = vmatprep.subr.bf16.mxu0 %v5404
    %7538 = vmatpush1.bf16.msra.mxu0 %v5403
    %7539 = vmatprep.subr.bf16.mxu0 %v5412
    %7540 = vmatpush1.bf16.msra.mxu0 %v5411
    %7541 = vmatprep.subr.bf16.mxu0 %v5420
    %7542 = vmatpush1.bf16.msra.mxu0 %v5419
    %7543 = vmatprep.subr.bf16.mxu0 %v5428
    %7544 = vmatpush1.bf16.msra.mxu0 %v5427
    %7545 = vmatprep.subr.bf16.mxu0 %v5436
    %7546 = vmatpush1.bf16.msra.mxu0 %v5435
    %7547 = vmatprep.mubr.bf16.mxu0 %v1718
    %7548 = vmatmul.mubr.bf16.gmra.mrb[0].mxu0 %v1717
    %v7549 = vpop.f32.mrb[0].mxu0
    %v7550 = vadd.f32 %v7509, %v7549
    %v7551 = vpop.f32.mrb[0].mxu0
    %v7552 = vadd.f32 %v7511, %v7551
    %v7553 = vpop.f32.mrb[0].mxu0
    %v7554 = vpop.f32.mrb[0].mxu0
    %7555 = vdwg.mxu0
    %7556 = vmatprep.subr.bf16.mxu0 %v5444
    %7557 = vmatpush1.bf16.msra.mxu0 %v5443
    %7558 = vmatprep.subr.bf16.mxu0 %v5452
    %7559 = vmatpush1.bf16.msra.mxu0 %v5451
    %7560 = vmatprep.subr.bf16.mxu0 %v5460
    %7561 = vmatpush1.bf16.msra.mxu0 %v5459
    %7562 = vmatprep.subr.bf16.mxu0 %v5468
    %7563 = vmatpush1.bf16.msra.mxu0 %v5467
    %7564 = vmatprep.subr.bf16.mxu0 %v5476
    %7565 = vmatpush1.bf16.msra.mxu0 %v5475
    %7566 = vmatprep.subr.bf16.mxu0 %v5484
    %7567 = vmatpush1.bf16.msra.mxu0 %v5483
    %7568 = vmatprep.subr.bf16.mxu0 %v5492
    %7569 = vmatpush1.bf16.msra.mxu0 %v5491
    %7570 = vmatprep.subr.bf16.mxu0 %v5500
    %7571 = vmatpush1.bf16.msra.mxu0 %v5499
    %7572 = vmatprep.subr.bf16.mxu0 %v5508
    %7573 = vmatpush1.bf16.msra.mxu0 %v5507
    %7574 = vmatprep.subr.bf16.mxu0 %v5516
    %7575 = vmatpush1.bf16.msra.mxu0 %v5515
    %7576 = vmatprep.subr.bf16.mxu0 %v5524
    %7577 = vmatpush1.bf16.msra.mxu0 %v5523
    %7578 = vmatprep.subr.bf16.mxu0 %v5532
    %7579 = vmatpush1.bf16.msra.mxu0 %v5531
    %7580 = vmatprep.subr.bf16.mxu0 %v5540
    %7581 = vmatpush1.bf16.msra.mxu0 %v5539
    %7582 = vmatprep.subr.bf16.mxu0 %v5548
    %7583 = vmatpush1.bf16.msra.mxu0 %v5547
    %7584 = vmatprep.subr.bf16.mxu0 %v5556
    %7585 = vmatpush1.bf16.msra.mxu0 %v5555
    %7586 = vmatprep.subr.bf16.mxu0 %v5564
    %7587 = vmatpush1.bf16.msra.mxu0 %v5563
    %7588 = vmatprep.mubr.bf16.mxu0 %v1720
    %7589 = vmatmul.mubr.bf16.gmra.mrb[0].mxu0 %v1719
    %v7590 = vpop.f32.mrb[0].mxu0
    %v7591 = vadd.f32 %v7550, %v7590
    %v7592 = vpop.f32.mrb[0].mxu0
    %v7593 = vadd.f32 %v7552, %v7592
    %v7594 = vpop.f32.mrb[0].mxu0
    %v7595 = vpop.f32.mrb[0].mxu0
    %7596 = vdwg.mxu0
    %7597 = vmatprep.subr.bf16.mxu0 %v5572
    %7598 = vmatpush1.bf16.msra.mxu0 %v5571
    %7599 = vmatprep.subr.bf16.mxu0 %v5580
    %7600 = vmatpush1.bf16.msra.mxu0 %v5579
    %7601 = vmatprep.subr.bf16.mxu0 %v5588
    %7602 = vmatpush1.bf16.msra.mxu0 %v5587
    %7603 = vmatprep.subr.bf16.mxu0 %v5596
    %7604 = vmatpush1.bf16.msra.mxu0 %v5595
    %7605 = vmatprep.subr.bf16.mxu0 %v5604
    %7606 = vmatpush1.bf16.msra.mxu0 %v5603
    %7607 = vmatprep.subr.bf16.mxu0 %v5612
    %7608 = vmatpush1.bf16.msra.mxu0 %v5611
    %7609 = vmatprep.subr.bf16.mxu0 %v5620
    %7610 = vmatpush1.bf16.msra.mxu0 %v5619
    %7611 = vmatprep.subr.bf16.mxu0 %v5628
    %7612 = vmatpush1.bf16.msra.mxu0 %v5627
    %7613 = vmatprep.subr.bf16.mxu0 %v5636
    %7614 = vmatpush1.bf16.msra.mxu0 %v5635
    %7615 = vmatprep.subr.bf16.mxu0 %v5644
    %7616 = vmatpush1.bf16.msra.mxu0 %v5643
    %7617 = vmatprep.subr.bf16.mxu0 %v5652
    %7618 = vmatpush1.bf16.msra.mxu0 %v5651
    %7619 = vmatprep.subr.bf16.mxu0 %v5660
    %7620 = vmatpush1.bf16.msra.mxu0 %v5659
    %7621 = vmatprep.subr.bf16.mxu0 %v5668
    %7622 = vmatpush1.bf16.msra.mxu0 %v5667
    %7623 = vmatprep.subr.bf16.mxu0 %v5676
    %7624 = vmatpush1.bf16.msra.mxu0 %v5675
    %7625 = vmatprep.subr.bf16.mxu0 %v5684
    %7626 = vmatpush1.bf16.msra.mxu0 %v5683
    %7627 = vmatprep.subr.bf16.mxu0 %v5692
    %7628 = vmatpush1.bf16.msra.mxu0 %v5691
    %7629 = vmatprep.mubr.bf16.mxu0 %v1722
    %7630 = vmatmul.mubr.bf16.gmra.mrb[0].mxu0 %v1721
    %v7631 = vpop.f32.mrb[0].mxu0
    %v7632 = vadd.f32 %v7591, %v7631
    %v7633 = vpop.f32.mrb[0].mxu0
    %v7634 = vadd.f32 %v7593, %v7633
    %v7635 = vpop.f32.mrb[0].mxu0
    %v7636 = vpop.f32.mrb[0].mxu0
    %7637 = vdwg.mxu0
    %7638 = vmatprep.subr.bf16.mxu0 %v5700
    %7639 = vmatpush1.bf16.msra.mxu0 %v5699
    %7640 = vmatprep.subr.bf16.mxu0 %v5708
    %7641 = vmatpush1.bf16.msra.mxu0 %v5707
    %7642 = vmatprep.subr.bf16.mxu0 %v5716
    %7643 = vmatpush1.bf16.msra.mxu0 %v5715
    %7644 = vmatprep.subr.bf16.mxu0 %v5724
    %7645 = vmatpush1.bf16.msra.mxu0 %v5723
    %7646 = vmatprep.subr.bf16.mxu0 %v5732
    %7647 = vmatpush1.bf16.msra.mxu0 %v5731
    %7648 = vmatprep.subr.bf16.mxu0 %v5740
    %7649 = vmatpush1.bf16.msra.mxu0 %v5739
    %7650 = vmatprep.subr.bf16.mxu0 %v5748
    %7651 = vmatpush1.bf16.msra.mxu0 %v5747
    %7652 = vmatprep.subr.bf16.mxu0 %v5756
    %7653 = vmatpush1.bf16.msra.mxu0 %v5755
    %7654 = vmatprep.subr.bf16.mxu0 %v5764
    %7655 = vmatpush1.bf16.msra.mxu0 %v5763
    %7656 = vmatprep.subr.bf16.mxu0 %v5772
    %7657 = vmatpush1.bf16.msra.mxu0 %v5771
    %7658 = vmatprep.subr.bf16.mxu0 %v5780
    %7659 = vmatpush1.bf16.msra.mxu0 %v5779
    %7660 = vmatprep.subr.bf16.mxu0 %v5788
    %7661 = vmatpush1.bf16.msra.mxu0 %v5787
    %7662 = vmatprep.subr.bf16.mxu0 %v5796
    %7663 = vmatpush1.bf16.msra.mxu0 %v5795
    %7664 = vmatprep.subr.bf16.mxu0 %v5804
    %7665 = vmatpush1.bf16.msra.mxu0 %v5803
    %7666 = vmatprep.subr.bf16.mxu0 %v5812
    %7667 = vmatpush1.bf16.msra.mxu0 %v5811
    %7668 = vmatprep.subr.bf16.mxu0 %v5820
    %7669 = vmatpush1.bf16.msra.mxu0 %v5819
    %7670 = vmatprep.mubr.bf16.mxu0 %v1724
    %7671 = vmatmul.mubr.bf16.gmra.mrb[0].mxu0 %v1723
    %v7672 = vpop.f32.mrb[0].mxu0
    %v7673 = vadd.f32 %v7632, %v7672
    %v7674 = vpop.f32.mrb[0].mxu0
    %v7675 = vadd.f32 %v7634, %v7674
    %v7676 = vpop.f32.mrb[0].mxu0
    %v7677 = vpop.f32.mrb[0].mxu0
    %7678 = vdwg.mxu0
    %7679 = vmatprep.subr.bf16.mxu0 %v5828
    %7680 = vmatpush1.bf16.msra.mxu0 %v5827
    %7681 = vmatprep.subr.bf16.mxu0 %v5836
    %7682 = vmatpush1.bf16.msra.mxu0 %v5835
    %7683 = vmatprep.subr.bf16.mxu0 %v5844
    %7684 = vmatpush1.bf16.msra.mxu0 %v5843
    %7685 = vmatprep.subr.bf16.mxu0 %v5852
    %7686 = vmatpush1.bf16.msra.mxu0 %v5851
    %7687 = vmatprep.subr.bf16.mxu0 %v5860
    %7688 = vmatpush1.bf16.msra.mxu0 %v5859
    %7689 = vmatprep.subr.bf16.mxu0 %v5868
    %7690 = vmatpush1.bf16.msra.mxu0 %v5867
    %7691 = vmatprep.subr.bf16.mxu0 %v5876
    %7692 = vmatpush1.bf16.msra.mxu0 %v5875
    %7693 = vmatprep.subr.bf16.mxu0 %v5884
    %7694 = vmatpush1.bf16.msra.mxu0 %v5883
    %7695 = vmatprep.subr.bf16.mxu0 %v5892
    %7696 = vmatpush1.bf16.msra.mxu0 %v5891
    %7697 = vmatprep.subr.bf16.mxu0 %v5900
    %7698 = vmatpush1.bf16.msra.mxu0 %v5899
    %7699 = vmatprep.subr.bf16.mxu0 %v5908
    %7700 = vmatpush1.bf16.msra.mxu0 %v5907
    %7701 = vmatprep.subr.bf16.mxu0 %v5916
    %7702 = vmatpush1.bf16.msra.mxu0 %v5915
    %7703 = vmatprep.subr.bf16.mxu0 %v5924
    %7704 = vmatpush1.bf16.msra.mxu0 %v5923
    %7705 = vmatprep.subr.bf16.mxu0 %v5932
    %7706 = vmatpush1.bf16.msra.mxu0 %v5931
    %7707 = vmatprep.subr.bf16.mxu0 %v5940
    %7708 = vmatpush1.bf16.msra.mxu0 %v5939
    %7709 = vmatprep.subr.bf16.mxu0 %v5948
    %7710 = vmatpush1.bf16.msra.mxu0 %v5947
    %7711 = vmatprep.mubr.bf16.mxu0 %v1726
    %7712 = vmatmul.mubr.bf16.gmra.mrb[0].mxu0 %v1725
    %v7713 = vpop.f32.mrb[0].mxu0
    %v7714 = vadd.f32 %v7673, %v7713
    %v7715 = vpop.f32.mrb[0].mxu0
    %v7716 = vadd.f32 %v7675, %v7715
    %v7717 = vpop.f32.mrb[0].mxu0
    %v7718 = vpop.f32.mrb[0].mxu0
    %7719 = vdwg.mxu0
    %7720 = vmatprep.subr.bf16.mxu0 %v5956
    %7721 = vmatpush1.bf16.msra.mxu0 %v5955
    %7722 = vmatprep.subr.bf16.mxu0 %v5964
    %7723 = vmatpush1.bf16.msra.mxu0 %v5963
    %7724 = vmatprep.subr.bf16.mxu0 %v5972
    %7725 = vmatpush1.bf16.msra.mxu0 %v5971
    %7726 = vmatprep.subr.bf16.mxu0 %v5980
    %7727 = vmatpush1.bf16.msra.mxu0 %v5979
    %7728 = vmatprep.subr.bf16.mxu0 %v5988
    %7729 = vmatpush1.bf16.msra.mxu0 %v5987
    %7730 = vmatprep.subr.bf16.mxu0 %v5996
    %7731 = vmatpush1.bf16.msra.mxu0 %v5995
    %7732 = vmatprep.subr.bf16.mxu0 %v6004
    %7733 = vmatpush1.bf16.msra.mxu0 %v6003
    %7734 = vmatprep.subr.bf16.mxu0 %v6012
    %7735 = vmatpush1.bf16.msra.mxu0 %v6011
    %7736 = vmatprep.subr.bf16.mxu0 %v6020
    %7737 = vmatpush1.bf16.msra.mxu0 %v6019
    %7738 = vmatprep.subr.bf16.mxu0 %v6028
    %7739 = vmatpush1.bf16.msra.mxu0 %v6027
    %7740 = vmatprep.subr.bf16.mxu0 %v6036
    %7741 = vmatpush1.bf16.msra.mxu0 %v6035
    %7742 = vmatprep.subr.bf16.mxu0 %v6044
    %7743 = vmatpush1.bf16.msra.mxu0 %v6043
    %7744 = vmatprep.subr.bf16.mxu0 %v6052
    %7745 = vmatpush1.bf16.msra.mxu0 %v6051
    %7746 = vmatprep.subr.bf16.mxu0 %v6060
    %7747 = vmatpush1.bf16.msra.mxu0 %v6059
    %7748 = vmatprep.subr.bf16.mxu0 %v6068
    %7749 = vmatpush1.bf16.msra.mxu0 %v6067
    %7750 = vmatprep.subr.bf16.mxu0 %v6076
    %7751 = vmatpush1.bf16.msra.mxu0 %v6075
    %7752 = vmatprep.mubr.bf16.mxu0 %v1728
    %7753 = vmatmul.mubr.bf16.gmra.mrb[0].mxu0 %v1727
    %v7754 = vpop.f32.mrb[0].mxu0
    %v7755 = vadd.f32 %v7714, %v7754
    %v7756 = vpop.f32.mrb[0].mxu0
    %v7757 = vadd.f32 %v7716, %v7756
    %v7758 = vpop.f32.mrb[0].mxu0
    %v7759 = vpop.f32.mrb[0].mxu0
    %7760 = vdwg.mxu0
    %7761 = vmatprep.subr.bf16.mxu0 %v5062
    %7762 = vmatpush1.bf16.msra.mxu0 %v5061
    %7763 = vmatprep.subr.bf16.mxu0 %v5070
    %7764 = vmatpush1.bf16.msra.mxu0 %v5069
    %7765 = vmatprep.subr.bf16.mxu0 %v5078
    %7766 = vmatpush1.bf16.msra.mxu0 %v5077
    %7767 = vmatprep.subr.bf16.mxu0 %v5086
    %7768 = vmatpush1.bf16.msra.mxu0 %v5085
    %7769 = vmatprep.subr.bf16.mxu0 %v5094
    %7770 = vmatpush1.bf16.msra.mxu0 %v5093
    %7771 = vmatprep.subr.bf16.mxu0 %v5102
    %7772 = vmatpush1.bf16.msra.mxu0 %v5101
    %7773 = vmatprep.subr.bf16.mxu0 %v5110
    %7774 = vmatpush1.bf16.msra.mxu0 %v5109
    %7775 = vmatprep.subr.bf16.mxu0 %v5118
    %7776 = vmatpush1.bf16.msra.mxu0 %v5117
    %7777 = vmatprep.subr.bf16.mxu0 %v5126
    %7778 = vmatpush1.bf16.msra.mxu0 %v5125
    %7779 = vmatprep.subr.bf16.mxu0 %v5134
    %7780 = vmatpush1.bf16.msra.mxu0 %v5133
    %7781 = vmatprep.subr.bf16.mxu0 %v5142
    %7782 = vmatpush1.bf16.msra.mxu0 %v5141
    %7783 = vmatprep.subr.bf16.mxu0 %v5150
    %7784 = vmatpush1.bf16.msra.mxu0 %v5149
    %7785 = vmatprep.subr.bf16.mxu0 %v5158
    %7786 = vmatpush1.bf16.msra.mxu0 %v5157
    %7787 = vmatprep.subr.bf16.mxu0 %v5166
    %7788 = vmatpush1.bf16.msra.mxu0 %v5165
    %7789 = vmatprep.subr.bf16.mxu0 %v5174
    %7790 = vmatpush1.bf16.msra.mxu0 %v5173
    %7791 = vmatprep.subr.bf16.mxu0 %v5182
    %7792 = vmatpush1.bf16.msra.mxu0 %v5181
    %7793 = vmatprep.mubr.bf16.mxu0 %v1714
    %7794 = vmatmul.mubr.bf16.gmra.mrb[0].mxu0 %v1713
    %v7795 = vpop.f32.mrb[0].mxu0
    %v7796 = vadd.f32 %v1981, %v7795
    %v7797 = vpop.f32.mrb[0].mxu0
    %v7798 = vadd.f32 %v1982, %v7797
    %v7799 = vpop.f32.mrb[0].mxu0
    %v7800 = vpop.f32.mrb[0].mxu0
    %7801 = vdwg.mxu0
    %7802 = vmatprep.subr.bf16.mxu0 %v5190
    %7803 = vmatpush1.bf16.msra.mxu0 %v5189
    %7804 = vmatprep.subr.bf16.mxu0 %v5198
    %7805 = vmatpush1.bf16.msra.mxu0 %v5197
    %7806 = vmatprep.subr.bf16.mxu0 %v5206
    %7807 = vmatpush1.bf16.msra.mxu0 %v5205
    %7808 = vmatprep.subr.bf16.mxu0 %v5214
    %7809 = vmatpush1.bf16.msra.mxu0 %v5213
    %7810 = vmatprep.subr.bf16.mxu0 %v5222
    %7811 = vmatpush1.bf16.msra.mxu0 %v5221
    %7812 = vmatprep.subr.bf16.mxu0 %v5230
    %7813 = vmatpush1.bf16.msra.mxu0 %v5229
    %7814 = vmatprep.subr.bf16.mxu0 %v5238
    %7815 = vmatpush1.bf16.msra.mxu0 %v5237
    %7816 = vmatprep.subr.bf16.mxu0 %v5246
    %7817 = vmatpush1.bf16.msra.mxu0 %v5245
    %7818 = vmatprep.subr.bf16.mxu0 %v5254
    %7819 = vmatpush1.bf16.msra.mxu0 %v5253
    %7820 = vmatprep.subr.bf16.mxu0 %v5262
    %7821 = vmatpush1.bf16.msra.mxu0 %v5261
    %7822 = vmatprep.subr.bf16.mxu0 %v5270
    %7823 = vmatpush1.bf16.msra.mxu0 %v5269
    %7824 = vmatprep.subr.bf16.mxu0 %v5278
    %7825 = vmatpush1.bf16.msra.mxu0 %v5277
    %7826 = vmatprep.subr.bf16.mxu0 %v5286
    %7827 = vmatpush1.bf16.msra.mxu0 %v5285
    %7828 = vmatprep.subr.bf16.mxu0 %v5294
    %7829 = vmatpush1.bf16.msra.mxu0 %v5293
    %7830 = vmatprep.subr.bf16.mxu0 %v5302
    %7831 = vmatpush1.bf16.msra.mxu0 %v5301
    %7832 = vmatprep.subr.bf16.mxu0 %v5310
    %7833 = vmatpush1.bf16.msra.mxu0 %v5309
    %7834 = vmatprep.mubr.bf16.mxu0 %v1716
    %7835 = vmatmul.mubr.bf16.gmra.mrb[0].mxu0 %v1715
    %v7836 = vpop.f32.mrb[0].mxu0
    %v7837 = vadd.f32 %v7796, %v7836
    %v7838 = vpop.f32.mrb[0].mxu0
    %v7839 = vadd.f32 %v7798, %v7838
    %v7840 = vpop.f32.mrb[0].mxu0
    %v7841 = vpop.f32.mrb[0].mxu0
    %7842 = vdwg.mxu0
    %7843 = vmatprep.subr.bf16.mxu0 %v5318
    %7844 = vmatpush1.bf16.msra.mxu0 %v5317
    %7845 = vmatprep.subr.bf16.mxu0 %v5326
    %7846 = vmatpush1.bf16.msra.mxu0 %v5325
    %7847 = vmatprep.subr.bf16.mxu0 %v5334
    %7848 = vmatpush1.bf16.msra.mxu0 %v5333
    %7849 = vmatprep.subr.bf16.mxu0 %v5342
    %7850 = vmatpush1.bf16.msra.mxu0 %v5341
    %7851 = vmatprep.subr.bf16.mxu0 %v5350
    %7852 = vmatpush1.bf16.msra.mxu0 %v5349
    %7853 = vmatprep.subr.bf16.mxu0 %v5358
    %7854 = vmatpush1.bf16.msra.mxu0 %v5357
    %7855 = vmatprep.subr.bf16.mxu0 %v5366
    %7856 = vmatpush1.bf16.msra.mxu0 %v5365
    %7857 = vmatprep.subr.bf16.mxu0 %v5374
    %7858 = vmatpush1.bf16.msra.mxu0 %v5373
    %7859 = vmatprep.subr.bf16.mxu0 %v5382
    %7860 = vmatpush1.bf16.msra.mxu0 %v5381
    %7861 = vmatprep.subr.bf16.mxu0 %v5390
    %7862 = vmatpush1.bf16.msra.mxu0 %v5389
    %7863 = vmatprep.subr.bf16.mxu0 %v5398
    %7864 = vmatpush1.bf16.msra.mxu0 %v5397
    %7865 = vmatprep.subr.bf16.mxu0 %v5406
    %7866 = vmatpush1.bf16.msra.mxu0 %v5405
    %7867 = vmatprep.subr.bf16.mxu0 %v5414
    %7868 = vmatpush1.bf16.msra.mxu0 %v5413
    %7869 = vmatprep.subr.bf16.mxu0 %v5422
    %7870 = vmatpush1.bf16.msra.mxu0 %v5421
    %7871 = vmatprep.subr.bf16.mxu0 %v5430
    %7872 = vmatpush1.bf16.msra.mxu0 %v5429
    %7873 = vmatprep.subr.bf16.mxu0 %v5438
    %7874 = vmatpush1.bf16.msra.mxu0 %v5437
    %7875 = vmatprep.mubr.bf16.mxu0 %v1718
    %7876 = vmatmul.mubr.bf16.gmra.mrb[0].mxu0 %v1717
    %v7877 = vpop.f32.mrb[0].mxu0
    %v7878 = vadd.f32 %v7837, %v7877
    %v7879 = vpop.f32.mrb[0].mxu0
    %v7880 = vadd.f32 %v7839, %v7879
    %v7881 = vpop.f32.mrb[0].mxu0
    %v7882 = vpop.f32.mrb[0].mxu0
    %7883 = vdwg.mxu0
    %7884 = vmatprep.subr.bf16.mxu0 %v5446
    %7885 = vmatpush1.bf16.msra.mxu0 %v5445
    %7886 = vmatprep.subr.bf16.mxu0 %v5454
    %7887 = vmatpush1.bf16.msra.mxu0 %v5453
    %7888 = vmatprep.subr.bf16.mxu0 %v5462
    %7889 = vmatpush1.bf16.msra.mxu0 %v5461
    %7890 = vmatprep.subr.bf16.mxu0 %v5470
    %7891 = vmatpush1.bf16.msra.mxu0 %v5469
    %7892 = vmatprep.subr.bf16.mxu0 %v5478
    %7893 = vmatpush1.bf16.msra.mxu0 %v5477
    %7894 = vmatprep.subr.bf16.mxu0 %v5486
    %7895 = vmatpush1.bf16.msra.mxu0 %v5485
    %7896 = vmatprep.subr.bf16.mxu0 %v5494
    %7897 = vmatpush1.bf16.msra.mxu0 %v5493
    %7898 = vmatprep.subr.bf16.mxu0 %v5502
    %7899 = vmatpush1.bf16.msra.mxu0 %v5501
    %7900 = vmatprep.subr.bf16.mxu0 %v5510
    %7901 = vmatpush1.bf16.msra.mxu0 %v5509
    %7902 = vmatprep.subr.bf16.mxu0 %v5518
    %7903 = vmatpush1.bf16.msra.mxu0 %v5517
    %7904 = vmatprep.subr.bf16.mxu0 %v5526
    %7905 = vmatpush1.bf16.msra.mxu0 %v5525
    %7906 = vmatprep.subr.bf16.mxu0 %v5534
    %7907 = vmatpush1.bf16.msra.mxu0 %v5533
    %7908 = vmatprep.subr.bf16.mxu0 %v5542
    %7909 = vmatpush1.bf16.msra.mxu0 %v5541
    %7910 = vmatprep.subr.bf16.mxu0 %v5550
    %7911 = vmatpush1.bf16.msra.mxu0 %v5549
    %7912 = vmatprep.subr.bf16.mxu0 %v5558
    %7913 = vmatpush1.bf16.msra.mxu0 %v5557
    %7914 = vmatprep.subr.bf16.mxu0 %v5566
    %7915 = vmatpush1.bf16.msra.mxu0 %v5565
    %7916 = vmatprep.mubr.bf16.mxu0 %v1720
    %7917 = vmatmul.mubr.bf16.gmra.mrb[0].mxu0 %v1719
    %v7918 = vpop.f32.mrb[0].mxu0
    %v7919 = vadd.f32 %v7878, %v7918
    %v7920 = vpop.f32.mrb[0].mxu0
    %v7921 = vadd.f32 %v7880, %v7920
    %v7922 = vpop.f32.mrb[0].mxu0
    %v7923 = vpop.f32.mrb[0].mxu0
    %7924 = vdwg.mxu0
    %7925 = vmatprep.subr.bf16.mxu0 %v5574
    %7926 = vmatpush1.bf16.msra.mxu0 %v5573
    %7927 = vmatprep.subr.bf16.mxu0 %v5582
    %7928 = vmatpush1.bf16.msra.mxu0 %v5581
    %7929 = vmatprep.subr.bf16.mxu0 %v5590
    %7930 = vmatpush1.bf16.msra.mxu0 %v5589
    %7931 = vmatprep.subr.bf16.mxu0 %v5598
    %7932 = vmatpush1.bf16.msra.mxu0 %v5597
    %7933 = vmatprep.subr.bf16.mxu0 %v5606
    %7934 = vmatpush1.bf16.msra.mxu0 %v5605
    %7935 = vmatprep.subr.bf16.mxu0 %v5614
    %7936 = vmatpush1.bf16.msra.mxu0 %v5613
    %7937 = vmatprep.subr.bf16.mxu0 %v5622
    %7938 = vmatpush1.bf16.msra.mxu0 %v5621
    %7939 = vmatprep.subr.bf16.mxu0 %v5630
    %7940 = vmatpush1.bf16.msra.mxu0 %v5629
    %7941 = vmatprep.subr.bf16.mxu0 %v5638
    %7942 = vmatpush1.bf16.msra.mxu0 %v5637
    %7943 = vmatprep.subr.bf16.mxu0 %v5646
    %7944 = vmatpush1.bf16.msra.mxu0 %v5645
    %7945 = vmatprep.subr.bf16.mxu0 %v5654
    %7946 = vmatpush1.bf16.msra.mxu0 %v5653
    %7947 = vmatprep.subr.bf16.mxu0 %v5662
    %7948 = vmatpush1.bf16.msra.mxu0 %v5661
    %7949 = vmatprep.subr.bf16.mxu0 %v5670
    %7950 = vmatpush1.bf16.msra.mxu0 %v5669
    %7951 = vmatprep.subr.bf16.mxu0 %v5678
    %7952 = vmatpush1.bf16.msra.mxu0 %v5677
    %7953 = vmatprep.subr.bf16.mxu0 %v5686
    %7954 = vmatpush1.bf16.msra.mxu0 %v5685
    %7955 = vmatprep.subr.bf16.mxu0 %v5694
    %7956 = vmatpush1.bf16.msra.mxu0 %v5693
    %7957 = vmatprep.mubr.bf16.mxu0 %v1722
    %7958 = vmatmul.mubr.bf16.gmra.mrb[0].mxu0 %v1721
    %v7959 = vpop.f32.mrb[0].mxu0
    %v7960 = vadd.f32 %v7919, %v7959
    %v7961 = vpop.f32.mrb[0].mxu0
    %v7962 = vadd.f32 %v7921, %v7961
    %v7963 = vpop.f32.mrb[0].mxu0
    %v7964 = vpop.f32.mrb[0].mxu0
    %7965 = vdwg.mxu0
    %7966 = vmatprep.subr.bf16.mxu0 %v5702
    %7967 = vmatpush1.bf16.msra.mxu0 %v5701
    %7968 = vmatprep.subr.bf16.mxu0 %v5710
    %7969 = vmatpush1.bf16.msra.mxu0 %v5709
    %7970 = vmatprep.subr.bf16.mxu0 %v5718
    %7971 = vmatpush1.bf16.msra.mxu0 %v5717
    %7972 = vmatprep.subr.bf16.mxu0 %v5726
    %7973 = vmatpush1.bf16.msra.mxu0 %v5725
    %7974 = vmatprep.subr.bf16.mxu0 %v5734
    %7975 = vmatpush1.bf16.msra.mxu0 %v5733
    %7976 = vmatprep.subr.bf16.mxu0 %v5742
    %7977 = vmatpush1.bf16.msra.mxu0 %v5741
    %7978 = vmatprep.subr.bf16.mxu0 %v5750
    %7979 = vmatpush1.bf16.msra.mxu0 %v5749
    %7980 = vmatprep.subr.bf16.mxu0 %v5758
    %7981 = vmatpush1.bf16.msra.mxu0 %v5757
    %7982 = vmatprep.subr.bf16.mxu0 %v5766
    %7983 = vmatpush1.bf16.msra.mxu0 %v5765
    %7984 = vmatprep.subr.bf16.mxu0 %v5774
    %7985 = vmatpush1.bf16.msra.mxu0 %v5773
    %7986 = vmatprep.subr.bf16.mxu0 %v5782
    %7987 = vmatpush1.bf16.msra.mxu0 %v5781
    %7988 = vmatprep.subr.bf16.mxu0 %v5790
    %7989 = vmatpush1.bf16.msra.mxu0 %v5789
    %7990 = vmatprep.subr.bf16.mxu0 %v5798
    %7991 = vmatpush1.bf16.msra.mxu0 %v5797
    %7992 = vmatprep.subr.bf16.mxu0 %v5806
    %7993 = vmatpush1.bf16.msra.mxu0 %v5805
    %7994 = vmatprep.subr.bf16.mxu0 %v5814
    %7995 = vmatpush1.bf16.msra.mxu0 %v5813
    %7996 = vmatprep.subr.bf16.mxu0 %v5822
    %7997 = vmatpush1.bf16.msra.mxu0 %v5821
    %7998 = vmatprep.mubr.bf16.mxu0 %v1724
    %7999 = vmatmul.mubr.bf16.gmra.mrb[0].mxu0 %v1723
    %v8000 = vpop.f32.mrb[0].mxu0
    %v8001 = vadd.f32 %v7960, %v8000
    %v8002 = vpop.f32.mrb[0].mxu0
    %v8003 = vadd.f32 %v7962, %v8002
    %v8004 = vpop.f32.mrb[0].mxu0
    %v8005 = vpop.f32.mrb[0].mxu0
    %8006 = vdwg.mxu0
    %8007 = vmatprep.subr.bf16.mxu0 %v5830
    %8008 = vmatpush1.bf16.msra.mxu0 %v5829
    %8009 = vmatprep.subr.bf16.mxu0 %v5838
    %8010 = vmatpush1.bf16.msra.mxu0 %v5837
    %8011 = vmatprep.subr.bf16.mxu0 %v5846
    %8012 = vmatpush1.bf16.msra.mxu0 %v5845
    %8013 = vmatprep.subr.bf16.mxu0 %v5854
    %8014 = vmatpush1.bf16.msra.mxu0 %v5853
    %8015 = vmatprep.subr.bf16.mxu0 %v5862
    %8016 = vmatpush1.bf16.msra.mxu0 %v5861
    %8017 = vmatprep.subr.bf16.mxu0 %v5870
    %8018 = vmatpush1.bf16.msra.mxu0 %v5869
    %8019 = vmatprep.subr.bf16.mxu0 %v5878
    %8020 = vmatpush1.bf16.msra.mxu0 %v5877
    %8021 = vmatprep.subr.bf16.mxu0 %v5886
    %8022 = vmatpush1.bf16.msra.mxu0 %v5885
    %8023 = vmatprep.subr.bf16.mxu0 %v5894
    %8024 = vmatpush1.bf16.msra.mxu0 %v5893
    %8025 = vmatprep.subr.bf16.mxu0 %v5902
    %8026 = vmatpush1.bf16.msra.mxu0 %v5901
    %8027 = vmatprep.subr.bf16.mxu0 %v5910
    %8028 = vmatpush1.bf16.msra.mxu0 %v5909
    %8029 = vmatprep.subr.bf16.mxu0 %v5918
    %8030 = vmatpush1.bf16.msra.mxu0 %v5917
    %8031 = vmatprep.subr.bf16.mxu0 %v5926
    %8032 = vmatpush1.bf16.msra.mxu0 %v5925
    %8033 = vmatprep.subr.bf16.mxu0 %v5934
    %8034 = vmatpush1.bf16.msra.mxu0 %v5933
    %8035 = vmatprep.subr.bf16.mxu0 %v5942
    %8036 = vmatpush1.bf16.msra.mxu0 %v5941
    %8037 = vmatprep.subr.bf16.mxu0 %v5950
    %8038 = vmatpush1.bf16.msra.mxu0 %v5949
    %8039 = vmatprep.mubr.bf16.mxu0 %v1726
    %8040 = vmatmul.mubr.bf16.gmra.mrb[0].mxu0 %v1725
    %v8041 = vpop.f32.mrb[0].mxu0
    %v8042 = vadd.f32 %v8001, %v8041
    %v8043 = vpop.f32.mrb[0].mxu0
    %v8044 = vadd.f32 %v8003, %v8043
    %v8045 = vpop.f32.mrb[0].mxu0
    %v8046 = vpop.f32.mrb[0].mxu0
    %8047 = vdwg.mxu0
    %8048 = vmatprep.subr.bf16.mxu0 %v5958
    %8049 = vmatpush1.bf16.msra.mxu0 %v5957
    %8050 = vmatprep.subr.bf16.mxu0 %v5966
    %8051 = vmatpush1.bf16.msra.mxu0 %v5965
    %8052 = vmatprep.subr.bf16.mxu0 %v5974
    %8053 = vmatpush1.bf16.msra.mxu0 %v5973
    %8054 = vmatprep.subr.bf16.mxu0 %v5982
    %8055 = vmatpush1.bf16.msra.mxu0 %v5981
    %8056 = vmatprep.subr.bf16.mxu0 %v5990
    %8057 = vmatpush1.bf16.msra.mxu0 %v5989
    %8058 = vmatprep.subr.bf16.mxu0 %v5998
    %8059 = vmatpush1.bf16.msra.mxu0 %v5997
    %8060 = vmatprep.subr.bf16.mxu0 %v6006
    %8061 = vmatpush1.bf16.msra.mxu0 %v6005
    %8062 = vmatprep.subr.bf16.mxu0 %v6014
    %8063 = vmatpush1.bf16.msra.mxu0 %v6013
    %8064 = vmatprep.subr.bf16.mxu0 %v6022
    %8065 = vmatpush1.bf16.msra.mxu0 %v6021
    %8066 = vmatprep.subr.bf16.mxu0 %v6030
    %8067 = vmatpush1.bf16.msra.mxu0 %v6029
    %8068 = vmatprep.subr.bf16.mxu0 %v6038
    %8069 = vmatpush1.bf16.msra.mxu0 %v6037
    %8070 = vmatprep.subr.bf16.mxu0 %v6046
    %8071 = vmatpush1.bf16.msra.mxu0 %v6045
    %8072 = vmatprep.subr.bf16.mxu0 %v6054
    %8073 = vmatpush1.bf16.msra.mxu0 %v6053
    %8074 = vmatprep.subr.bf16.mxu0 %v6062
    %8075 = vmatpush1.bf16.msra.mxu0 %v6061
    %8076 = vmatprep.subr.bf16.mxu0 %v6070
    %8077 = vmatpush1.bf16.msra.mxu0 %v6069
    %8078 = vmatprep.subr.bf16.mxu0 %v6078
    %8079 = vmatpush1.bf16.msra.mxu0 %v6077
    %8080 = vmatprep.mubr.bf16.mxu0 %v1728
    %8081 = vmatmul.mubr.bf16.gmra.mrb[0].mxu0 %v1727
    %v8082 = vpop.f32.mrb[0].mxu0
    %v8083 = vadd.f32 %v8042, %v8082
    %v8084 = vpop.f32.mrb[0].mxu0
    %v8085 = vadd.f32 %v8044, %v8084
    %v8086 = vpop.f32.mrb[0].mxu0
    %v8087 = vpop.f32.mrb[0].mxu0
    %8088 = vdwg.mxu0
    %8089 = vmatprep.subr.bf16.mxu0 %v5064
    %8090 = vmatpush1.bf16.msra.mxu0 %v5063
    %8091 = vmatprep.subr.bf16.mxu0 %v5072
    %8092 = vmatpush1.bf16.msra.mxu0 %v5071
    %8093 = vmatprep.subr.bf16.mxu0 %v5080
    %8094 = vmatpush1.bf16.msra.mxu0 %v5079
    %8095 = vmatprep.subr.bf16.mxu0 %v5088
    %8096 = vmatpush1.bf16.msra.mxu0 %v5087
    %8097 = vmatprep.subr.bf16.mxu0 %v5096
    %8098 = vmatpush1.bf16.msra.mxu0 %v5095
    %8099 = vmatprep.subr.bf16.mxu0 %v5104
    %8100 = vmatpush1.bf16.msra.mxu0 %v5103
    %8101 = vmatprep.subr.bf16.mxu0 %v5112
    %8102 = vmatpush1.bf16.msra.mxu0 %v5111
    %8103 = vmatprep.subr.bf16.mxu0 %v5120
    %8104 = vmatpush1.bf16.msra.mxu0 %v5119
    %8105 = vmatprep.subr.bf16.mxu0 %v5128
    %8106 = vmatpush1.bf16.msra.mxu0 %v5127
    %8107 = vmatprep.subr.bf16.mxu0 %v5136
    %8108 = vmatpush1.bf16.msra.mxu0 %v5135
    %8109 = vmatprep.subr.bf16.mxu0 %v5144
    %8110 = vmatpush1.bf16.msra.mxu0 %v5143
    %8111 = vmatprep.subr.bf16.mxu0 %v5152
    %8112 = vmatpush1.bf16.msra.mxu0 %v5151
    %8113 = vmatprep.subr.bf16.mxu0 %v5160
    %8114 = vmatpush1.bf16.msra.mxu0 %v5159
    %8115 = vmatprep.subr.bf16.mxu0 %v5168
    %8116 = vmatpush1.bf16.msra.mxu0 %v5167
    %8117 = vmatprep.subr.bf16.mxu0 %v5176
    %8118 = vmatpush1.bf16.msra.mxu0 %v5175
    %8119 = vmatprep.subr.bf16.mxu0 %v5184
    %8120 = vmatpush1.bf16.msra.mxu0 %v5183
    %8121 = vmatprep.mubr.bf16.mxu0 %v1714
    %8122 = vmatmul.mubr.bf16.gmra.mrb[0].mxu0 %v1713
    %v8123 = vpop.f32.mrb[0].mxu0
    %v8124 = vadd.f32 %v1983, %v8123
    %v8125 = vpop.f32.mrb[0].mxu0
    %v8126 = vadd.f32 %v1984, %v8125
    %v8127 = vpop.f32.mrb[0].mxu0
    %v8128 = vpop.f32.mrb[0].mxu0
    %8129 = vdwg.mxu0
    %8130 = vmatprep.subr.bf16.mxu0 %v5192
    %8131 = vmatpush1.bf16.msra.mxu0 %v5191
    %8132 = vmatprep.subr.bf16.mxu0 %v5200
    %8133 = vmatpush1.bf16.msra.mxu0 %v5199
    %8134 = vmatprep.subr.bf16.mxu0 %v5208
    %8135 = vmatpush1.bf16.msra.mxu0 %v5207
    %8136 = vmatprep.subr.bf16.mxu0 %v5216
    %8137 = vmatpush1.bf16.msra.mxu0 %v5215
    %8138 = vmatprep.subr.bf16.mxu0 %v5224
    %8139 = vmatpush1.bf16.msra.mxu0 %v5223
    %8140 = vmatprep.subr.bf16.mxu0 %v5232
    %8141 = vmatpush1.bf16.msra.mxu0 %v5231
    %8142 = vmatprep.subr.bf16.mxu0 %v5240
    %8143 = vmatpush1.bf16.msra.mxu0 %v5239
    %8144 = vmatprep.subr.bf16.mxu0 %v5248
    %8145 = vmatpush1.bf16.msra.mxu0 %v5247
    %8146 = vmatprep.subr.bf16.mxu0 %v5256
    %8147 = vmatpush1.bf16.msra.mxu0 %v5255
    %8148 = vmatprep.subr.bf16.mxu0 %v5264
    %8149 = vmatpush1.bf16.msra.mxu0 %v5263
    %8150 = vmatprep.subr.bf16.mxu0 %v5272
    %8151 = vmatpush1.bf16.msra.mxu0 %v5271
    %8152 = vmatprep.subr.bf16.mxu0 %v5280
    %8153 = vmatpush1.bf16.msra.mxu0 %v5279
    %8154 = vmatprep.subr.bf16.mxu0 %v5288
    %8155 = vmatpush1.bf16.msra.mxu0 %v5287
    %8156 = vmatprep.subr.bf16.mxu0 %v5296
    %8157 = vmatpush1.bf16.msra.mxu0 %v5295
    %8158 = vmatprep.subr.bf16.mxu0 %v5304
    %8159 = vmatpush1.bf16.msra.mxu0 %v5303
    %8160 = vmatprep.subr.bf16.mxu0 %v5312
    %8161 = vmatpush1.bf16.msra.mxu0 %v5311
    %8162 = vmatprep.mubr.bf16.mxu0 %v1716
    %8163 = vmatmul.mubr.bf16.gmra.mrb[0].mxu0 %v1715
    %v8164 = vpop.f32.mrb[0].mxu0
    %v8165 = vadd.f32 %v8124, %v8164
    %v8166 = vpop.f32.mrb[0].mxu0
    %v8167 = vadd.f32 %v8126, %v8166
    %v8168 = vpop.f32.mrb[0].mxu0
    %v8169 = vpop.f32.mrb[0].mxu0
    %8170 = vdwg.mxu0
    %8171 = vmatprep.subr.bf16.mxu0 %v5320
    %8172 = vmatpush1.bf16.msra.mxu0 %v5319
    %8173 = vmatprep.subr.bf16.mxu0 %v5328
    %8174 = vmatpush1.bf16.msra.mxu0 %v5327
    %8175 = vmatprep.subr.bf16.mxu0 %v5336
    %8176 = vmatpush1.bf16.msra.mxu0 %v5335
    %8177 = vmatprep.subr.bf16.mxu0 %v5344
    %8178 = vmatpush1.bf16.msra.mxu0 %v5343
    %8179 = vmatprep.subr.bf16.mxu0 %v5352
    %8180 = vmatpush1.bf16.msra.mxu0 %v5351
    %8181 = vmatprep.subr.bf16.mxu0 %v5360
    %8182 = vmatpush1.bf16.msra.mxu0 %v5359
    %8183 = vmatprep.subr.bf16.mxu0 %v5368
    %8184 = vmatpush1.bf16.msra.mxu0 %v5367
    %8185 = vmatprep.subr.bf16.mxu0 %v5376
    %8186 = vmatpush1.bf16.msra.mxu0 %v5375
    %8187 = vmatprep.subr.bf16.mxu0 %v5384
    %8188 = vmatpush1.bf16.msra.mxu0 %v5383
    %8189 = vmatprep.subr.bf16.mxu0 %v5392
    %8190 = vmatpush1.bf16.msra.mxu0 %v5391
    %8191 = vmatprep.subr.bf16.mxu0 %v5400
    %8192 = vmatpush1.bf16.msra.mxu0 %v5399
    %8193 = vmatprep.subr.bf16.mxu0 %v5408
    %8194 = vmatpush1.bf16.msra.mxu0 %v5407
    %8195 = vmatprep.subr.bf16.mxu0 %v5416
    %8196 = vmatpush1.bf16.msra.mxu0 %v5415
    %8197 = vmatprep.subr.bf16.mxu0 %v5424
    %8198 = vmatpush1.bf16.msra.mxu0 %v5423
    %8199 = vmatprep.subr.bf16.mxu0 %v5432
    %8200 = vmatpush1.bf16.msra.mxu0 %v5431
    %8201 = vmatprep.subr.bf16.mxu0 %v5440
    %8202 = vmatpush1.bf16.msra.mxu0 %v5439
    %8203 = vmatprep.mubr.bf16.mxu0 %v1718
    %8204 = vmatmul.mubr.bf16.gmra.mrb[0].mxu0 %v1717
    %v8205 = vpop.f32.mrb[0].mxu0
    %v8206 = vadd.f32 %v8165, %v8205
    %v8207 = vpop.f32.mrb[0].mxu0
    %v8208 = vadd.f32 %v8167, %v8207
    %v8209 = vpop.f32.mrb[0].mxu0
    %v8210 = vpop.f32.mrb[0].mxu0
    %8211 = vdwg.mxu0
    %8212 = vmatprep.subr.bf16.mxu0 %v5448
    %8213 = vmatpush1.bf16.msra.mxu0 %v5447
    %8214 = vmatprep.subr.bf16.mxu0 %v5456
    %8215 = vmatpush1.bf16.msra.mxu0 %v5455
    %8216 = vmatprep.subr.bf16.mxu0 %v5464
    %8217 = vmatpush1.bf16.msra.mxu0 %v5463
    %8218 = vmatprep.subr.bf16.mxu0 %v5472
    %8219 = vmatpush1.bf16.msra.mxu0 %v5471
    %8220 = vmatprep.subr.bf16.mxu0 %v5480
    %8221 = vmatpush1.bf16.msra.mxu0 %v5479
    %8222 = vmatprep.subr.bf16.mxu0 %v5488
    %8223 = vmatpush1.bf16.msra.mxu0 %v5487
    %8224 = vmatprep.subr.bf16.mxu0 %v5496
    %8225 = vmatpush1.bf16.msra.mxu0 %v5495
    %8226 = vmatprep.subr.bf16.mxu0 %v5504
    %8227 = vmatpush1.bf16.msra.mxu0 %v5503
    %8228 = vmatprep.subr.bf16.mxu0 %v5512
    %8229 = vmatpush1.bf16.msra.mxu0 %v5511
    %8230 = vmatprep.subr.bf16.mxu0 %v5520
    %8231 = vmatpush1.bf16.msra.mxu0 %v5519
    %8232 = vmatprep.subr.bf16.mxu0 %v5528
    %8233 = vmatpush1.bf16.msra.mxu0 %v5527
    %8234 = vmatprep.subr.bf16.mxu0 %v5536
    %8235 = vmatpush1.bf16.msra.mxu0 %v5535
    %8236 = vmatprep.subr.bf16.mxu0 %v5544
    %8237 = vmatpush1.bf16.msra.mxu0 %v5543
    %8238 = vmatprep.subr.bf16.mxu0 %v5552
    %8239 = vmatpush1.bf16.msra.mxu0 %v5551
    %8240 = vmatprep.subr.bf16.mxu0 %v5560
    %8241 = vmatpush1.bf16.msra.mxu0 %v5559
    %8242 = vmatprep.subr.bf16.mxu0 %v5568
    %8243 = vmatpush1.bf16.msra.mxu0 %v5567
    %8244 = vmatprep.mubr.bf16.mxu0 %v1720
    %8245 = vmatmul.mubr.bf16.gmra.mrb[0].mxu0 %v1719
    %v8246 = vpop.f32.mrb[0].mxu0
    %v8247 = vadd.f32 %v8206, %v8246
    %v8248 = vpop.f32.mrb[0].mxu0
    %v8249 = vadd.f32 %v8208, %v8248
    %v8250 = vpop.f32.mrb[0].mxu0
    %v8251 = vpop.f32.mrb[0].mxu0
    %8252 = vdwg.mxu0
    %8253 = vmatprep.subr.bf16.mxu0 %v5576
    %8254 = vmatpush1.bf16.msra.mxu0 %v5575
    %8255 = vmatprep.subr.bf16.mxu0 %v5584
    %8256 = vmatpush1.bf16.msra.mxu0 %v5583
    %8257 = vmatprep.subr.bf16.mxu0 %v5592
    %8258 = vmatpush1.bf16.msra.mxu0 %v5591
    %8259 = vmatprep.subr.bf16.mxu0 %v5600
    %8260 = vmatpush1.bf16.msra.mxu0 %v5599
    %8261 = vmatprep.subr.bf16.mxu0 %v5608
    %8262 = vmatpush1.bf16.msra.mxu0 %v5607
    %8263 = vmatprep.subr.bf16.mxu0 %v5616
    %8264 = vmatpush1.bf16.msra.mxu0 %v5615
    %8265 = vmatprep.subr.bf16.mxu0 %v5624
    %8266 = vmatpush1.bf16.msra.mxu0 %v5623
    %8267 = vmatprep.subr.bf16.mxu0 %v5632
    %8268 = vmatpush1.bf16.msra.mxu0 %v5631
    %8269 = vmatprep.subr.bf16.mxu0 %v5640
    %8270 = vmatpush1.bf16.msra.mxu0 %v5639
    %8271 = vmatprep.subr.bf16.mxu0 %v5648
    %8272 = vmatpush1.bf16.msra.mxu0 %v5647
    %8273 = vmatprep.subr.bf16.mxu0 %v5656
    %8274 = vmatpush1.bf16.msra.mxu0 %v5655
    %8275 = vmatprep.subr.bf16.mxu0 %v5664
    %8276 = vmatpush1.bf16.msra.mxu0 %v5663
    %8277 = vmatprep.subr.bf16.mxu0 %v5672
    %8278 = vmatpush1.bf16.msra.mxu0 %v5671
    %8279 = vmatprep.subr.bf16.mxu0 %v5680
    %8280 = vmatpush1.bf16.msra.mxu0 %v5679
    %8281 = vmatprep.subr.bf16.mxu0 %v5688
    %8282 = vmatpush1.bf16.msra.mxu0 %v5687
    %8283 = vmatprep.subr.bf16.mxu0 %v5696
    %8284 = vmatpush1.bf16.msra.mxu0 %v5695
    %8285 = vmatprep.mubr.bf16.mxu0 %v1722
    %8286 = vmatmul.mubr.bf16.gmra.mrb[0].mxu0 %v1721
    %v8287 = vpop.f32.mrb[0].mxu0
    %v8288 = vadd.f32 %v8247, %v8287
    %v8289 = vpop.f32.mrb[0].mxu0
    %v8290 = vadd.f32 %v8249, %v8289
    %v8291 = vpop.f32.mrb[0].mxu0
    %v8292 = vpop.f32.mrb[0].mxu0
    %8293 = vdwg.mxu0
    %8294 = vmatprep.subr.bf16.mxu0 %v5704
    %8295 = vmatpush1.bf16.msra.mxu0 %v5703
    %8296 = vmatprep.subr.bf16.mxu0 %v5712
    %8297 = vmatpush1.bf16.msra.mxu0 %v5711
    %8298 = vmatprep.subr.bf16.mxu0 %v5720
    %8299 = vmatpush1.bf16.msra.mxu0 %v5719
    %8300 = vmatprep.subr.bf16.mxu0 %v5728
    %8301 = vmatpush1.bf16.msra.mxu0 %v5727
    %8302 = vmatprep.subr.bf16.mxu0 %v5736
    %8303 = vmatpush1.bf16.msra.mxu0 %v5735
    %8304 = vmatprep.subr.bf16.mxu0 %v5744
    %8305 = vmatpush1.bf16.msra.mxu0 %v5743
    %8306 = vmatprep.subr.bf16.mxu0 %v5752
    %8307 = vmatpush1.bf16.msra.mxu0 %v5751
    %8308 = vmatprep.subr.bf16.mxu0 %v5760
    %8309 = vmatpush1.bf16.msra.mxu0 %v5759
    %8310 = vmatprep.subr.bf16.mxu0 %v5768
    %8311 = vmatpush1.bf16.msra.mxu0 %v5767
    %8312 = vmatprep.subr.bf16.mxu0 %v5776
    %8313 = vmatpush1.bf16.msra.mxu0 %v5775
    %8314 = vmatprep.subr.bf16.mxu0 %v5784
    %8315 = vmatpush1.bf16.msra.mxu0 %v5783
    %8316 = vmatprep.subr.bf16.mxu0 %v5792
    %8317 = vmatpush1.bf16.msra.mxu0 %v5791
    %8318 = vmatprep.subr.bf16.mxu0 %v5800
    %8319 = vmatpush1.bf16.msra.mxu0 %v5799
    %8320 = vmatprep.subr.bf16.mxu0 %v5808
    %8321 = vmatpush1.bf16.msra.mxu0 %v5807
    %8322 = vmatprep.subr.bf16.mxu0 %v5816
    %8323 = vmatpush1.bf16.msra.mxu0 %v5815
    %8324 = vmatprep.subr.bf16.mxu0 %v5824
    %8325 = vmatpush1.bf16.msra.mxu0 %v5823
    %8326 = vmatprep.mubr.bf16.mxu0 %v1724
    %8327 = vmatmul.mubr.bf16.gmra.mrb[0].mxu0 %v1723
    %v8328 = vpop.f32.mrb[0].mxu0
    %v8329 = vadd.f32 %v8288, %v8328
    %v8330 = vpop.f32.mrb[0].mxu0
    %v8331 = vadd.f32 %v8290, %v8330
    %v8332 = vpop.f32.mrb[0].mxu0
    %v8333 = vpop.f32.mrb[0].mxu0
    %8334 = vdwg.mxu0
    %8335 = vmatprep.subr.bf16.mxu0 %v5832
    %8336 = vmatpush1.bf16.msra.mxu0 %v5831
    %8337 = vmatprep.subr.bf16.mxu0 %v5840
    %8338 = vmatpush1.bf16.msra.mxu0 %v5839
    %8339 = vmatprep.subr.bf16.mxu0 %v5848
    %8340 = vmatpush1.bf16.msra.mxu0 %v5847
    %8341 = vmatprep.subr.bf16.mxu0 %v5856
    %8342 = vmatpush1.bf16.msra.mxu0 %v5855
    %8343 = vmatprep.subr.bf16.mxu0 %v5864
    %8344 = vmatpush1.bf16.msra.mxu0 %v5863
    %8345 = vmatprep.subr.bf16.mxu0 %v5872
    %8346 = vmatpush1.bf16.msra.mxu0 %v5871
    %8347 = vmatprep.subr.bf16.mxu0 %v5880
    %8348 = vmatpush1.bf16.msra.mxu0 %v5879
    %8349 = vmatprep.subr.bf16.mxu0 %v5888
    %8350 = vmatpush1.bf16.msra.mxu0 %v5887
    %8351 = vmatprep.subr.bf16.mxu0 %v5896
    %8352 = vmatpush1.bf16.msra.mxu0 %v5895
    %8353 = vmatprep.subr.bf16.mxu0 %v5904
    %8354 = vmatpush1.bf16.msra.mxu0 %v5903
    %8355 = vmatprep.subr.bf16.mxu0 %v5912
    %8356 = vmatpush1.bf16.msra.mxu0 %v5911
    %8357 = vmatprep.subr.bf16.mxu0 %v5920
    %8358 = vmatpush1.bf16.msra.mxu0 %v5919
    %8359 = vmatprep.subr.bf16.mxu0 %v5928
    %8360 = vmatpush1.bf16.msra.mxu0 %v5927
    %8361 = vmatprep.subr.bf16.mxu0 %v5936
    %8362 = vmatpush1.bf16.msra.mxu0 %v5935
    %8363 = vmatprep.subr.bf16.mxu0 %v5944
    %8364 = vmatpush1.bf16.msra.mxu0 %v5943
    %8365 = vmatprep.subr.bf16.mxu0 %v5952
    %8366 = vmatpush1.bf16.msra.mxu0 %v5951
    %8367 = vmatprep.mubr.bf16.mxu0 %v1726
    %8368 = vmatmul.mubr.bf16.gmra.mrb[0].mxu0 %v1725
    %v8369 = vpop.f32.mrb[0].mxu0
    %v8370 = vadd.f32 %v8329, %v8369
    %v8371 = vpop.f32.mrb[0].mxu0
    %v8372 = vadd.f32 %v8331, %v8371
    %v8373 = vpop.f32.mrb[0].mxu0
    %v8374 = vpop.f32.mrb[0].mxu0
    %8375 = vdwg.mxu0
    %8376 = vmatprep.subr.bf16.mxu0 %v5960
    %8377 = vmatpush1.bf16.msra.mxu0 %v5959
    %8378 = vmatprep.subr.bf16.mxu0 %v5968
    %8379 = vmatpush1.bf16.msra.mxu0 %v5967
    %8380 = vmatprep.subr.bf16.mxu0 %v5976
    %8381 = vmatpush1.bf16.msra.mxu0 %v5975
    %8382 = vmatprep.subr.bf16.mxu0 %v5984
    %8383 = vmatpush1.bf16.msra.mxu0 %v5983
    %8384 = vmatprep.subr.bf16.mxu0 %v5992
    %8385 = vmatpush1.bf16.msra.mxu0 %v5991
    %8386 = vmatprep.subr.bf16.mxu0 %v6000
    %8387 = vmatpush1.bf16.msra.mxu0 %v5999
    %8388 = vmatprep.subr.bf16.mxu0 %v6008
    %8389 = vmatpush1.bf16.msra.mxu0 %v6007
    %8390 = vmatprep.subr.bf16.mxu0 %v6016
    %8391 = vmatpush1.bf16.msra.mxu0 %v6015
    %8392 = vmatprep.subr.bf16.mxu0 %v6024
    %8393 = vmatpush1.bf16.msra.mxu0 %v6023
    %8394 = vmatprep.subr.bf16.mxu0 %v6032
    %8395 = vmatpush1.bf16.msra.mxu0 %v6031
    %8396 = vmatprep.subr.bf16.mxu0 %v6040
    %8397 = vmatpush1.bf16.msra.mxu0 %v6039
    %8398 = vmatprep.subr.bf16.mxu0 %v6048
    %8399 = vmatpush1.bf16.msra.mxu0 %v6047
    %8400 = vmatprep.subr.bf16.mxu0 %v6056
    %8401 = vmatpush1.bf16.msra.mxu0 %v6055
    %8402 = vmatprep.subr.bf16.mxu0 %v6064
    %8403 = vmatpush1.bf16.msra.mxu0 %v6063
    %8404 = vmatprep.subr.bf16.mxu0 %v6072
    %8405 = vmatpush1.bf16.msra.mxu0 %v6071
    %8406 = vmatprep.subr.bf16.mxu0 %v6080
    %8407 = vmatpush1.bf16.msra.mxu0 %v6079
    %8408 = vmatprep.mubr.bf16.mxu0 %v1728
    %8409 = vmatmul.mubr.bf16.gmra.mrb[0].mxu0 %v1727
    %v8410 = vpop.f32.mrb[0].mxu0
    %v8411 = vadd.f32 %v8370, %v8410
    %v8412 = vpop.f32.mrb[0].mxu0
    %v8413 = vadd.f32 %v8372, %v8412
    %v8414 = vpop.f32.mrb[0].mxu0
    %v8415 = vpop.f32.mrb[0].mxu0
    %8416 = vdwg.mxu0
    %v8417 = vmax.f32 %v7427, 0.0
    %v8418 = vmax.f32 %v7429, 0.0
    %v8419 = vmax.f32 %v7755, 0.0
    %v8420 = vmax.f32 %v7757, 0.0
    %v8421 = vmax.f32 %v8083, 0.0
    %v8422 = vmax.f32 %v8085, 0.0
    %v8423 = vmax.f32 %v8411, 0.0
    %v8424 = vmax.f32 %v8413, 0.0
    %v8425 = vld [vmem:[#allocation7] sm:$0xff]
    %v8426 = vld [vmem:[#allocation7 + $0x8] sm:$0xff]
    %v8427 = vld [vmem:[#allocation7 + $0x10] sm:$0xff]
    %v8428 = vld [vmem:[#allocation7 + $0x18] sm:$0xff]
    %v8429 = vld [vmem:[#allocation7 + $0x20] sm:$0xff]
    %v8430 = vld [vmem:[#allocation7 + $0x28] sm:$0xff]
    %v8431 = vld [vmem:[#allocation7 + $0x30] sm:$0xff]
    %v8432 = vld [vmem:[#allocation7 + $0x38] sm:$0xff]
    %v8433 = vld [vmem:[#allocation7 + $0x40] sm:$0xff]
    %v8434 = vld [vmem:[#allocation7 + $0x48] sm:$0xff]
    %v8435 = vld [vmem:[#allocation7 + $0x50] sm:$0xff]
    %v8436 = vld [vmem:[#allocation7 + $0x58] sm:$0xff]
    %v8437 = vld [vmem:[#allocation7 + $0x60] sm:$0xff]
    %v8438 = vld [vmem:[#allocation7 + $0x68] sm:$0xff]
    %v8439 = vld [vmem:[#allocation7 + $0x70] sm:$0xff]
    %v8440 = vld [vmem:[#allocation7 + $0x78] sm:$0xff]
    %v8441 = vld [vmem:[#allocation7 + $0x80] sm:$0xff]
    %v8442 = vld [vmem:[#allocation7 + $0x88] sm:$0xff]
    %v8443 = vld [vmem:[#allocation7 + $0x90] sm:$0xff]
    %v8444 = vld [vmem:[#allocation7 + $0x98] sm:$0xff]
    %v8445 = vld [vmem:[#allocation7 + $0xa0] sm:$0xff]
    %v8446 = vld [vmem:[#allocation7 + $0xa8] sm:$0xff]
    %v8447 = vld [vmem:[#allocation7 + $0xb0] sm:$0xff]
    %v8448 = vld [vmem:[#allocation7 + $0xb8] sm:$0xff]
    %v8449 = vld [vmem:[#allocation7 + $0xc0] sm:$0xff]
    %v8450 = vld [vmem:[#allocation7 + $0xc8] sm:$0xff]
    %v8451 = vld [vmem:[#allocation7 + $0xd0] sm:$0xff]
    %v8452 = vld [vmem:[#allocation7 + $0xd8] sm:$0xff]
    %v8453 = vld [vmem:[#allocation7 + $0xe0] sm:$0xff]
    %v8454 = vld [vmem:[#allocation7 + $0xe8] sm:$0xff]
    %v8455 = vld [vmem:[#allocation7 + $0xf0] sm:$0xff]
    %v8456 = vld [vmem:[#allocation7 + $0xf8] sm:$0xff]
    %v8457 = vld [vmem:[#allocation7 + $0x100] sm:$0xff]
    %v8458 = vld [vmem:[#allocation7 + $0x108] sm:$0xff]
    %v8459 = vld [vmem:[#allocation7 + $0x110] sm:$0xff]
    %v8460 = vld [vmem:[#allocation7 + $0x118] sm:$0xff]
    %v8461 = vld [vmem:[#allocation7 + $0x120] sm:$0xff]
    %v8462 = vld [vmem:[#allocation7 + $0x128] sm:$0xff]
    %v8463 = vld [vmem:[#allocation7 + $0x130] sm:$0xff]
    %v8464 = vld [vmem:[#allocation7 + $0x138] sm:$0xff]
    %v8465 = vld [vmem:[#allocation7 + $0x140] sm:$0xff]
    %v8466 = vld [vmem:[#allocation7 + $0x148] sm:$0xff]
    %v8467 = vld [vmem:[#allocation7 + $0x150] sm:$0xff]
    %v8468 = vld [vmem:[#allocation7 + $0x158] sm:$0xff]
    %v8469 = vld [vmem:[#allocation7 + $0x160] sm:$0xff]
    %v8470 = vld [vmem:[#allocation7 + $0x168] sm:$0xff]
    %v8471 = vld [vmem:[#allocation7 + $0x170] sm:$0xff]
    %v8472 = vld [vmem:[#allocation7 + $0x178] sm:$0xff]
    %v8473 = vld [vmem:[#allocation7 + $0x180] sm:$0xff]
    %v8474 = vld [vmem:[#allocation7 + $0x188] sm:$0xff]
    %v8475 = vld [vmem:[#allocation7 + $0x190] sm:$0xff]
    %v8476 = vld [vmem:[#allocation7 + $0x198] sm:$0xff]
    %v8477 = vld [vmem:[#allocation7 + $0x1a0] sm:$0xff]
    %v8478 = vld [vmem:[#allocation7 + $0x1a8] sm:$0xff]
    %v8479 = vld [vmem:[#allocation7 + $0x1b0] sm:$0xff]
    %v8480 = vld [vmem:[#allocation7 + $0x1b8] sm:$0xff]
    %v8481 = vld [vmem:[#allocation7 + $0x1c0] sm:$0xff]
    %v8482 = vld [vmem:[#allocation7 + $0x1c8] sm:$0xff]
    %v8483 = vld [vmem:[#allocation7 + $0x1d0] sm:$0xff]
    %v8484 = vld [vmem:[#allocation7 + $0x1d8] sm:$0xff]
    %v8485 = vld [vmem:[#allocation7 + $0x1e0] sm:$0xff]
    %v8486 = vld [vmem:[#allocation7 + $0x1e8] sm:$0xff]
    %v8487 = vld [vmem:[#allocation7 + $0x1f0] sm:$0xff]
    %v8488 = vld [vmem:[#allocation7 + $0x1f8] sm:$0xff]
    %v8489 = vld [vmem:[#allocation7 + $0x200] sm:$0xff]
    %v8490 = vld [vmem:[#allocation7 + $0x208] sm:$0xff]
    %v8491 = vld [vmem:[#allocation7 + $0x210] sm:$0xff]
    %v8492 = vld [vmem:[#allocation7 + $0x218] sm:$0xff]
    %v8493 = vld [vmem:[#allocation7 + $0x220] sm:$0xff]
    %v8494 = vld [vmem:[#allocation7 + $0x228] sm:$0xff]
    %v8495 = vld [vmem:[#allocation7 + $0x230] sm:$0xff]
    %v8496 = vld [vmem:[#allocation7 + $0x238] sm:$0xff]
    %v8497 = vld [vmem:[#allocation7 + $0x240] sm:$0xff]
    %v8498 = vld [vmem:[#allocation7 + $0x248] sm:$0xff]
    %v8499 = vld [vmem:[#allocation7 + $0x250] sm:$0xff]
    %v8500 = vld [vmem:[#allocation7 + $0x258] sm:$0xff]
    %v8501 = vld [vmem:[#allocation7 + $0x260] sm:$0xff]
    %v8502 = vld [vmem:[#allocation7 + $0x268] sm:$0xff]
    %v8503 = vld [vmem:[#allocation7 + $0x270] sm:$0xff]
    %v8504 = vld [vmem:[#allocation7 + $0x278] sm:$0xff]
    %v8505 = vld [vmem:[#allocation7 + $0x280] sm:$0xff]
    %v8506 = vld [vmem:[#allocation7 + $0x288] sm:$0xff]
    %v8507 = vld [vmem:[#allocation7 + $0x290] sm:$0xff]
    %v8508 = vld [vmem:[#allocation7 + $0x298] sm:$0xff]
    %v8509 = vld [vmem:[#allocation7 + $0x2a0] sm:$0xff]
    %v8510 = vld [vmem:[#allocation7 + $0x2a8] sm:$0xff]
    %v8511 = vld [vmem:[#allocation7 + $0x2b0] sm:$0xff]
    %v8512 = vld [vmem:[#allocation7 + $0x2b8] sm:$0xff]
    %v8513 = vld [vmem:[#allocation7 + $0x2c0] sm:$0xff]
    %v8514 = vld [vmem:[#allocation7 + $0x2c8] sm:$0xff]
    %v8515 = vld [vmem:[#allocation7 + $0x2d0] sm:$0xff]
    %v8516 = vld [vmem:[#allocation7 + $0x2d8] sm:$0xff]
    %v8517 = vld [vmem:[#allocation7 + $0x2e0] sm:$0xff]
    %v8518 = vld [vmem:[#allocation7 + $0x2e8] sm:$0xff]
    %v8519 = vld [vmem:[#allocation7 + $0x2f0] sm:$0xff]
    %v8520 = vld [vmem:[#allocation7 + $0x2f8] sm:$0xff]
    %v8521 = vld [vmem:[#allocation7 + $0x300] sm:$0xff]
    %v8522 = vld [vmem:[#allocation7 + $0x308] sm:$0xff]
    %v8523 = vld [vmem:[#allocation7 + $0x310] sm:$0xff]
    %v8524 = vld [vmem:[#allocation7 + $0x318] sm:$0xff]
    %v8525 = vld [vmem:[#allocation7 + $0x320] sm:$0xff]
    %v8526 = vld [vmem:[#allocation7 + $0x328] sm:$0xff]
    %v8527 = vld [vmem:[#allocation7 + $0x330] sm:$0xff]
    %v8528 = vld [vmem:[#allocation7 + $0x338] sm:$0xff]
    %v8529 = vld [vmem:[#allocation7 + $0x340] sm:$0xff]
    %v8530 = vld [vmem:[#allocation7 + $0x348] sm:$0xff]
    %v8531 = vld [vmem:[#allocation7 + $0x350] sm:$0xff]
    %v8532 = vld [vmem:[#allocation7 + $0x358] sm:$0xff]
    %v8533 = vld [vmem:[#allocation7 + $0x360] sm:$0xff]
    %v8534 = vld [vmem:[#allocation7 + $0x368] sm:$0xff]
    %v8535 = vld [vmem:[#allocation7 + $0x370] sm:$0xff]
    %v8536 = vld [vmem:[#allocation7 + $0x378] sm:$0xff]
    %v8537 = vld [vmem:[#allocation7 + $0x380] sm:$0xff]
    %v8538 = vld [vmem:[#allocation7 + $0x388] sm:$0xff]
    %v8539 = vld [vmem:[#allocation7 + $0x390] sm:$0xff]
    %v8540 = vld [vmem:[#allocation7 + $0x398] sm:$0xff]
    %v8541 = vld [vmem:[#allocation7 + $0x3a0] sm:$0xff]
    %v8542 = vld [vmem:[#allocation7 + $0x3a8] sm:$0xff]
    %v8543 = vld [vmem:[#allocation7 + $0x3b0] sm:$0xff]
    %v8544 = vld [vmem:[#allocation7 + $0x3b8] sm:$0xff]
    %v8545 = vld [vmem:[#allocation7 + $0x3c0] sm:$0xff]
    %v8546 = vld [vmem:[#allocation7 + $0x3c8] sm:$0xff]
    %v8547 = vld [vmem:[#allocation7 + $0x3d0] sm:$0xff]
    %v8548 = vld [vmem:[#allocation7 + $0x3d8] sm:$0xff]
    %v8549 = vld [vmem:[#allocation7 + $0x3e0] sm:$0xff]
    %v8550 = vld [vmem:[#allocation7 + $0x3e8] sm:$0xff]
    %v8551 = vld [vmem:[#allocation7 + $0x3f0] sm:$0xff]
    %v8552 = vld [vmem:[#allocation7 + $0x3f8] sm:$0xff]
    %v8553 = vld [vmem:[#allocation7 + $0x400] sm:$0xff]
    %v8554 = vld [vmem:[#allocation7 + $0x408] sm:$0xff]
    %v8555 = vld [vmem:[#allocation7 + $0x410] sm:$0xff]
    %v8556 = vld [vmem:[#allocation7 + $0x418] sm:$0xff]
    %v8557 = vld [vmem:[#allocation7 + $0x420] sm:$0xff]
    %v8558 = vld [vmem:[#allocation7 + $0x428] sm:$0xff]
    %v8559 = vld [vmem:[#allocation7 + $0x430] sm:$0xff]
    %v8560 = vld [vmem:[#allocation7 + $0x438] sm:$0xff]
    %v8561 = vld [vmem:[#allocation7 + $0x440] sm:$0xff]
    %v8562 = vld [vmem:[#allocation7 + $0x448] sm:$0xff]
    %v8563 = vld [vmem:[#allocation7 + $0x450] sm:$0xff]
    %v8564 = vld [vmem:[#allocation7 + $0x458] sm:$0xff]
    %v8565 = vld [vmem:[#allocation7 + $0x460] sm:$0xff]
    %v8566 = vld [vmem:[#allocation7 + $0x468] sm:$0xff]
    %v8567 = vld [vmem:[#allocation7 + $0x470] sm:$0xff]
    %v8568 = vld [vmem:[#allocation7 + $0x478] sm:$0xff]
    %v8569 = vld [vmem:[#allocation7 + $0x480] sm:$0xff]
    %v8570 = vld [vmem:[#allocation7 + $0x488] sm:$0xff]
    %v8571 = vld [vmem:[#allocation7 + $0x490] sm:$0xff]
    %v8572 = vld [vmem:[#allocation7 + $0x498] sm:$0xff]
    %v8573 = vld [vmem:[#allocation7 + $0x4a0] sm:$0xff]
    %v8574 = vld [vmem:[#allocation7 + $0x4a8] sm:$0xff]
    %v8575 = vld [vmem:[#allocation7 + $0x4b0] sm:$0xff]
    %v8576 = vld [vmem:[#allocation7 + $0x4b8] sm:$0xff]
    %v8577 = vld [vmem:[#allocation7 + $0x4c0] sm:$0xff]
    %v8578 = vld [vmem:[#allocation7 + $0x4c8] sm:$0xff]
    %v8579 = vld [vmem:[#allocation7 + $0x4d0] sm:$0xff]
    %v8580 = vld [vmem:[#allocation7 + $0x4d8] sm:$0xff]
    %v8581 = vld [vmem:[#allocation7 + $0x4e0] sm:$0xff]
    %v8582 = vld [vmem:[#allocation7 + $0x4e8] sm:$0xff]
    %v8583 = vld [vmem:[#allocation7 + $0x4f0] sm:$0xff]
    %v8584 = vld [vmem:[#allocation7 + $0x4f8] sm:$0xff]
    %v8585 = vld [vmem:[#allocation7 + $0x500] sm:$0xff]
    %v8586 = vld [vmem:[#allocation7 + $0x508] sm:$0xff]
    %v8587 = vld [vmem:[#allocation7 + $0x510] sm:$0xff]
    %v8588 = vld [vmem:[#allocation7 + $0x518] sm:$0xff]
    %v8589 = vld [vmem:[#allocation7 + $0x520] sm:$0xff]
    %v8590 = vld [vmem:[#allocation7 + $0x528] sm:$0xff]
    %v8591 = vld [vmem:[#allocation7 + $0x530] sm:$0xff]
    %v8592 = vld [vmem:[#allocation7 + $0x538] sm:$0xff]
    %v8593 = vld [vmem:[#allocation7 + $0x540] sm:$0xff]
    %v8594 = vld [vmem:[#allocation7 + $0x548] sm:$0xff]
    %v8595 = vld [vmem:[#allocation7 + $0x550] sm:$0xff]
    %v8596 = vld [vmem:[#allocation7 + $0x558] sm:$0xff]
    %v8597 = vld [vmem:[#allocation7 + $0x560] sm:$0xff]
    %v8598 = vld [vmem:[#allocation7 + $0x568] sm:$0xff]
    %v8599 = vld [vmem:[#allocation7 + $0x570] sm:$0xff]
    %v8600 = vld [vmem:[#allocation7 + $0x578] sm:$0xff]
    %v8601 = vld [vmem:[#allocation7 + $0x580] sm:$0xff]
    %v8602 = vld [vmem:[#allocation7 + $0x588] sm:$0xff]
    %v8603 = vld [vmem:[#allocation7 + $0x590] sm:$0xff]
    %v8604 = vld [vmem:[#allocation7 + $0x598] sm:$0xff]
    %v8605 = vld [vmem:[#allocation7 + $0x5a0] sm:$0xff]
    %v8606 = vld [vmem:[#allocation7 + $0x5a8] sm:$0xff]
    %v8607 = vld [vmem:[#allocation7 + $0x5b0] sm:$0xff]
    %v8608 = vld [vmem:[#allocation7 + $0x5b8] sm:$0xff]
    %v8609 = vld [vmem:[#allocation7 + $0x5c0] sm:$0xff]
    %v8610 = vld [vmem:[#allocation7 + $0x5c8] sm:$0xff]
    %v8611 = vld [vmem:[#allocation7 + $0x5d0] sm:$0xff]
    %v8612 = vld [vmem:[#allocation7 + $0x5d8] sm:$0xff]
    %v8613 = vld [vmem:[#allocation7 + $0x5e0] sm:$0xff]
    %v8614 = vld [vmem:[#allocation7 + $0x5e8] sm:$0xff]
    %v8615 = vld [vmem:[#allocation7 + $0x5f0] sm:$0xff]
    %v8616 = vld [vmem:[#allocation7 + $0x5f8] sm:$0xff]
    %v8617 = vld [vmem:[#allocation7 + $0x600] sm:$0xff]
    %v8618 = vld [vmem:[#allocation7 + $0x608] sm:$0xff]
    %v8619 = vld [vmem:[#allocation7 + $0x610] sm:$0xff]
    %v8620 = vld [vmem:[#allocation7 + $0x618] sm:$0xff]
    %v8621 = vld [vmem:[#allocation7 + $0x620] sm:$0xff]
    %v8622 = vld [vmem:[#allocation7 + $0x628] sm:$0xff]
    %v8623 = vld [vmem:[#allocation7 + $0x630] sm:$0xff]
    %v8624 = vld [vmem:[#allocation7 + $0x638] sm:$0xff]
    %v8625 = vld [vmem:[#allocation7 + $0x640] sm:$0xff]
    %v8626 = vld [vmem:[#allocation7 + $0x648] sm:$0xff]
    %v8627 = vld [vmem:[#allocation7 + $0x650] sm:$0xff]
    %v8628 = vld [vmem:[#allocation7 + $0x658] sm:$0xff]
    %v8629 = vld [vmem:[#allocation7 + $0x660] sm:$0xff]
    %v8630 = vld [vmem:[#allocation7 + $0x668] sm:$0xff]
    %v8631 = vld [vmem:[#allocation7 + $0x670] sm:$0xff]
    %v8632 = vld [vmem:[#allocation7 + $0x678] sm:$0xff]
    %v8633 = vld [vmem:[#allocation7 + $0x680] sm:$0xff]
    %v8634 = vld [vmem:[#allocation7 + $0x688] sm:$0xff]
    %v8635 = vld [vmem:[#allocation7 + $0x690] sm:$0xff]
    %v8636 = vld [vmem:[#allocation7 + $0x698] sm:$0xff]
    %v8637 = vld [vmem:[#allocation7 + $0x6a0] sm:$0xff]
    %v8638 = vld [vmem:[#allocation7 + $0x6a8] sm:$0xff]
    %v8639 = vld [vmem:[#allocation7 + $0x6b0] sm:$0xff]
    %v8640 = vld [vmem:[#allocation7 + $0x6b8] sm:$0xff]
    %v8641 = vld [vmem:[#allocation7 + $0x6c0] sm:$0xff]
    %v8642 = vld [vmem:[#allocation7 + $0x6c8] sm:$0xff]
    %v8643 = vld [vmem:[#allocation7 + $0x6d0] sm:$0xff]
    %v8644 = vld [vmem:[#allocation7 + $0x6d8] sm:$0xff]
    %v8645 = vld [vmem:[#allocation7 + $0x6e0] sm:$0xff]
    %v8646 = vld [vmem:[#allocation7 + $0x6e8] sm:$0xff]
    %v8647 = vld [vmem:[#allocation7 + $0x6f0] sm:$0xff]
    %v8648 = vld [vmem:[#allocation7 + $0x6f8] sm:$0xff]
    %v8649 = vld [vmem:[#allocation7 + $0x700] sm:$0xff]
    %v8650 = vld [vmem:[#allocation7 + $0x708] sm:$0xff]
    %v8651 = vld [vmem:[#allocation7 + $0x710] sm:$0xff]
    %v8652 = vld [vmem:[#allocation7 + $0x718] sm:$0xff]
    %v8653 = vld [vmem:[#allocation7 + $0x720] sm:$0xff]
    %v8654 = vld [vmem:[#allocation7 + $0x728] sm:$0xff]
    %v8655 = vld [vmem:[#allocation7 + $0x730] sm:$0xff]
    %v8656 = vld [vmem:[#allocation7 + $0x738] sm:$0xff]
    %v8657 = vld [vmem:[#allocation7 + $0x740] sm:$0xff]
    %v8658 = vld [vmem:[#allocation7 + $0x748] sm:$0xff]
    %v8659 = vld [vmem:[#allocation7 + $0x750] sm:$0xff]
    %v8660 = vld [vmem:[#allocation7 + $0x758] sm:$0xff]
    %v8661 = vld [vmem:[#allocation7 + $0x760] sm:$0xff]
    %v8662 = vld [vmem:[#allocation7 + $0x768] sm:$0xff]
    %v8663 = vld [vmem:[#allocation7 + $0x770] sm:$0xff]
    %v8664 = vld [vmem:[#allocation7 + $0x778] sm:$0xff]
    %v8665 = vld [vmem:[#allocation7 + $0x780] sm:$0xff]
    %v8666 = vld [vmem:[#allocation7 + $0x788] sm:$0xff]
    %v8667 = vld [vmem:[#allocation7 + $0x790] sm:$0xff]
    %v8668 = vld [vmem:[#allocation7 + $0x798] sm:$0xff]
    %v8669 = vld [vmem:[#allocation7 + $0x7a0] sm:$0xff]
    %v8670 = vld [vmem:[#allocation7 + $0x7a8] sm:$0xff]
    %v8671 = vld [vmem:[#allocation7 + $0x7b0] sm:$0xff]
    %v8672 = vld [vmem:[#allocation7 + $0x7b8] sm:$0xff]
    %v8673 = vld [vmem:[#allocation7 + $0x7c0] sm:$0xff]
    %v8674 = vld [vmem:[#allocation7 + $0x7c8] sm:$0xff]
    %v8675 = vld [vmem:[#allocation7 + $0x7d0] sm:$0xff]
    %v8676 = vld [vmem:[#allocation7 + $0x7d8] sm:$0xff]
    %v8677 = vld [vmem:[#allocation7 + $0x7e0] sm:$0xff]
    %v8678 = vld [vmem:[#allocation7 + $0x7e8] sm:$0xff]
    %v8679 = vld [vmem:[#allocation7 + $0x7f0] sm:$0xff]
    %v8680 = vld [vmem:[#allocation7 + $0x7f8] sm:$0xff]
    %v8681 = vpack.c.bf16 %v8417, %v8417
    %v8682 = vpack.c.bf16 %v8418, %v8418
    %v8683 = vpack.c.bf16 %v8419, %v8419
    %v8684 = vpack.c.bf16 %v8420, %v8420
    %v8685 = vpack.c.bf16 %v8421, %v8421
    %v8686 = vpack.c.bf16 %v8422, %v8422
    %v8687 = vpack.c.bf16 %v8423, %v8423
    %v8688 = vpack.c.bf16 %v8424, %v8424
    %v8689 = vld [vmem:[#allocation9] sm:$0x77]
    %v8690 = vld [vmem:[#allocation9 + $0x8] sm:$0x77]
    %v8693 = vlaneseq
    %v8694 = vshrl.u32 %v8693, 7
    %v8695 = vsub.s32 0, %v8694
    %v8696 = vrot.slane %v8689, %v8695
    %v8697 = vlaneseq
    %v8698 = vshrl.u32 %v8697, 7
    %v8699 = vsub.s32 4, %v8698
    %v8700 = vrot.slane %v8689, %v8699
    %v8701 = vlaneseq
    %v8702 = vshrl.u32 %v8701, 7
    %v8703 = vsub.s32 0, %v8702
    %v8704 = vrot.slane %v8690, %v8703
    %v8705 = vlaneseq
    %v8706 = vshrl.u32 %v8705, 7
    %v8707 = vsub.s32 4, %v8706
    %v8708 = vrot.slane %v8690, %v8707
    %v8713 = vlaneseq
    %v8714 = vshrl.u32 %v8713, 7
    %v8715 = vsub.s32 0, %v8714
    %v8716 = vrot.slane %v8696, %v8715
    %v8717 = vlaneseq
    %v8718 = vshrl.u32 %v8717, 7
    %v8719 = vsub.s32 0, %v8718
    %v8720 = vrot.slane %v8700, %v8719
    %v8721 = vlaneseq
    %v8722 = vshrl.u32 %v8721, 7
    %v8723 = vsub.s32 0, %v8722
    %v8724 = vrot.slane %v8704, %v8723
    %v8725 = vlaneseq
    %v8726 = vshrl.u32 %v8725, 7
    %v8727 = vsub.s32 0, %v8726
    %v8728 = vrot.slane %v8708, %v8727
    %v8729 = vmul.f32 %v163, %v8716
    %v8730 = vmul.f32 %v163, %v8720
    %v8731 = vmul.f32 %v163, %v8724
    %v8732 = vmul.f32 %v163, %v8728
    %v8733 = vlaneseq
    %v8734 = vshrl.u32 %v8733, 7
    %v8735 = vsub.s32 1, %v8734
    %v8736 = vrot.slane %v8689, %v8735
    %v8737 = vlaneseq
    %v8738 = vshrl.u32 %v8737, 7
    %v8739 = vsub.s32 5, %v8738
    %v8740 = vrot.slane %v8689, %v8739
    %v8741 = vlaneseq
    %v8742 = vshrl.u32 %v8741, 7
    %v8743 = vsub.s32 1, %v8742
    %v8744 = vrot.slane %v8690, %v8743
    %v8745 = vlaneseq
    %v8746 = vshrl.u32 %v8745, 7
    %v8747 = vsub.s32 5, %v8746
    %v8748 = vrot.slane %v8690, %v8747
    %v8753 = vlaneseq
    %v8754 = vshrl.u32 %v8753, 7
    %v8755 = vsub.s32 1, %v8754
    %v8756 = vrot.slane %v8736, %v8755
    %v8757 = vlaneseq
    %v8758 = vshrl.u32 %v8757, 7
    %v8759 = vsub.s32 1, %v8758
    %v8760 = vrot.slane %v8740, %v8759
    %v8761 = vlaneseq
    %v8762 = vshrl.u32 %v8761, 7
    %v8763 = vsub.s32 1, %v8762
    %v8764 = vrot.slane %v8744, %v8763
    %v8765 = vlaneseq
    %v8766 = vshrl.u32 %v8765, 7
    %v8767 = vsub.s32 1, %v8766
    %v8768 = vrot.slane %v8748, %v8767
    %v8769 = vmul.f32 %v335, %v8756
    %v8770 = vmul.f32 %v335, %v8760
    %v8771 = vmul.f32 %v335, %v8764
    %v8772 = vmul.f32 %v335, %v8768
    %v8773 = vadd.f32 %v8729, %v8769
    %v8774 = vadd.f32 %v8730, %v8770
    %v8775 = vadd.f32 %v8731, %v8771
    %v8776 = vadd.f32 %v8732, %v8772
    %v8777 = vlaneseq
    %v8778 = vshrl.u32 %v8777, 7
    %v8779 = vsub.s32 2, %v8778
    %v8780 = vrot.slane %v8689, %v8779
    %v8781 = vlaneseq
    %v8782 = vshrl.u32 %v8781, 7
    %v8783 = vsub.s32 6, %v8782
    %v8784 = vrot.slane %v8689, %v8783
    %v8785 = vlaneseq
    %v8786 = vshrl.u32 %v8785, 7
    %v8787 = vsub.s32 2, %v8786
    %v8788 = vrot.slane %v8690, %v8787
    %v8789 = vlaneseq
    %v8790 = vshrl.u32 %v8789, 7
    %v8791 = vsub.s32 6, %v8790
    %v8792 = vrot.slane %v8690, %v8791
    %v8797 = vlaneseq
    %v8798 = vshrl.u32 %v8797, 7
    %v8799 = vsub.s32 2, %v8798
    %v8800 = vrot.slane %v8780, %v8799
    %v8801 = vlaneseq
    %v8802 = vshrl.u32 %v8801, 7
    %v8803 = vsub.s32 2, %v8802
    %v8804 = vrot.slane %v8784, %v8803
    %v8805 = vlaneseq
    %v8806 = vshrl.u32 %v8805, 7
    %v8807 = vsub.s32 2, %v8806
    %v8808 = vrot.slane %v8788, %v8807
    %v8809 = vlaneseq
    %v8810 = vshrl.u32 %v8809, 7
    %v8811 = vsub.s32 2, %v8810
    %v8812 = vrot.slane %v8792, %v8811
    %v8813 = vadd.f32 %v8773, %v8800
    %v8814 = vadd.f32 %v8774, %v8804
    %v8815 = vadd.f32 %v8775, %v8808
    %v8816 = vadd.f32 %v8776, %v8812
    %v9073 = vunpack.c.l.b16 %v8425
    %v9074 = vunpack.c.h.b16 %v8425
    %v9075 = vunpack.c.l.b16 %v8426
    %v9076 = vunpack.c.h.b16 %v8426
    %v9077 = vunpack.c.l.b16 %v8427
    %v9078 = vunpack.c.h.b16 %v8427
    %v9079 = vunpack.c.l.b16 %v8428
    %v9080 = vunpack.c.h.b16 %v8428
    %v9081 = vunpack.c.l.b16 %v8429
    %v9082 = vunpack.c.h.b16 %v8429
    %v9083 = vunpack.c.l.b16 %v8430
    %v9084 = vunpack.c.h.b16 %v8430
    %v9085 = vunpack.c.l.b16 %v8431
    %v9086 = vunpack.c.h.b16 %v8431
    %v9087 = vunpack.c.l.b16 %v8432
    %v9088 = vunpack.c.h.b16 %v8432
    %v9089 = vunpack.c.l.b16 %v8433
    %v9090 = vunpack.c.h.b16 %v8433
    %v9091 = vunpack.c.l.b16 %v8434
    %v9092 = vunpack.c.h.b16 %v8434
    %v9093 = vunpack.c.l.b16 %v8435
    %v9094 = vunpack.c.h.b16 %v8435
    %v9095 = vunpack.c.l.b16 %v8436
    %v9096 = vunpack.c.h.b16 %v8436
    %v9097 = vunpack.c.l.b16 %v8437
    %v9098 = vunpack.c.h.b16 %v8437
    %v9099 = vunpack.c.l.b16 %v8438
    %v9100 = vunpack.c.h.b16 %v8438
    %v9101 = vunpack.c.l.b16 %v8439
    %v9102 = vunpack.c.h.b16 %v8439
    %v9103 = vunpack.c.l.b16 %v8440
    %v9104 = vunpack.c.h.b16 %v8440
    %v9105 = vunpack.c.l.b16 %v8441
    %v9106 = vunpack.c.h.b16 %v8441
    %v9107 = vunpack.c.l.b16 %v8442
    %v9108 = vunpack.c.h.b16 %v8442
    %v9109 = vunpack.c.l.b16 %v8443
    %v9110 = vunpack.c.h.b16 %v8443
    %v9111 = vunpack.c.l.b16 %v8444
    %v9112 = vunpack.c.h.b16 %v8444
    %v9113 = vunpack.c.l.b16 %v8445
    %v9114 = vunpack.c.h.b16 %v8445
    %v9115 = vunpack.c.l.b16 %v8446
    %v9116 = vunpack.c.h.b16 %v8446
    %v9117 = vunpack.c.l.b16 %v8447
    %v9118 = vunpack.c.h.b16 %v8447
    %v9119 = vunpack.c.l.b16 %v8448
    %v9120 = vunpack.c.h.b16 %v8448
    %v9121 = vunpack.c.l.b16 %v8449
    %v9122 = vunpack.c.h.b16 %v8449
    %v9123 = vunpack.c.l.b16 %v8450
    %v9124 = vunpack.c.h.b16 %v8450
    %v9125 = vunpack.c.l.b16 %v8451
    %v9126 = vunpack.c.h.b16 %v8451
    %v9127 = vunpack.c.l.b16 %v8452
    %v9128 = vunpack.c.h.b16 %v8452
    %v9129 = vunpack.c.l.b16 %v8453
    %v9130 = vunpack.c.h.b16 %v8453
    %v9131 = vunpack.c.l.b16 %v8454
    %v9132 = vunpack.c.h.b16 %v8454
    %v9133 = vunpack.c.l.b16 %v8455
    %v9134 = vunpack.c.h.b16 %v8455
    %v9135 = vunpack.c.l.b16 %v8456
    %v9136 = vunpack.c.h.b16 %v8456
    %v9137 = vunpack.c.l.b16 %v8457
    %v9138 = vunpack.c.h.b16 %v8457
    %v9139 = vunpack.c.l.b16 %v8458
    %v9140 = vunpack.c.h.b16 %v8458
    %v9141 = vunpack.c.l.b16 %v8459
    %v9142 = vunpack.c.h.b16 %v8459
    %v9143 = vunpack.c.l.b16 %v8460
    %v9144 = vunpack.c.h.b16 %v8460
    %v9145 = vunpack.c.l.b16 %v8461
    %v9146 = vunpack.c.h.b16 %v8461
    %v9147 = vunpack.c.l.b16 %v8462
    %v9148 = vunpack.c.h.b16 %v8462
    %v9149 = vunpack.c.l.b16 %v8463
    %v9150 = vunpack.c.h.b16 %v8463
    %v9151 = vunpack.c.l.b16 %v8464
    %v9152 = vunpack.c.h.b16 %v8464
    %v9153 = vunpack.c.l.b16 %v8465
    %v9154 = vunpack.c.h.b16 %v8465
    %v9155 = vunpack.c.l.b16 %v8466
    %v9156 = vunpack.c.h.b16 %v8466
    %v9157 = vunpack.c.l.b16 %v8467
    %v9158 = vunpack.c.h.b16 %v8467
    %v9159 = vunpack.c.l.b16 %v8468
    %v9160 = vunpack.c.h.b16 %v8468
    %v9161 = vunpack.c.l.b16 %v8469
    %v9162 = vunpack.c.h.b16 %v8469
    %v9163 = vunpack.c.l.b16 %v8470
    %v9164 = vunpack.c.h.b16 %v8470
    %v9165 = vunpack.c.l.b16 %v8471
    %v9166 = vunpack.c.h.b16 %v8471
    %v9167 = vunpack.c.l.b16 %v8472
    %v9168 = vunpack.c.h.b16 %v8472
    %v9169 = vunpack.c.l.b16 %v8473
    %v9170 = vunpack.c.h.b16 %v8473
    %v9171 = vunpack.c.l.b16 %v8474
    %v9172 = vunpack.c.h.b16 %v8474
    %v9173 = vunpack.c.l.b16 %v8475
    %v9174 = vunpack.c.h.b16 %v8475
    %v9175 = vunpack.c.l.b16 %v8476
    %v9176 = vunpack.c.h.b16 %v8476
    %v9177 = vunpack.c.l.b16 %v8477
    %v9178 = vunpack.c.h.b16 %v8477
    %v9179 = vunpack.c.l.b16 %v8478
    %v9180 = vunpack.c.h.b16 %v8478
    %v9181 = vunpack.c.l.b16 %v8479
    %v9182 = vunpack.c.h.b16 %v8479
    %v9183 = vunpack.c.l.b16 %v8480
    %v9184 = vunpack.c.h.b16 %v8480
    %v9185 = vunpack.c.l.b16 %v8481
    %v9186 = vunpack.c.h.b16 %v8481
    %v9187 = vunpack.c.l.b16 %v8482
    %v9188 = vunpack.c.h.b16 %v8482
    %v9189 = vunpack.c.l.b16 %v8483
    %v9190 = vunpack.c.h.b16 %v8483
    %v9191 = vunpack.c.l.b16 %v8484
    %v9192 = vunpack.c.h.b16 %v8484
    %v9193 = vunpack.c.l.b16 %v8485
    %v9194 = vunpack.c.h.b16 %v8485
    %v9195 = vunpack.c.l.b16 %v8486
    %v9196 = vunpack.c.h.b16 %v8486
    %v9197 = vunpack.c.l.b16 %v8487
    %v9198 = vunpack.c.h.b16 %v8487
    %v9199 = vunpack.c.l.b16 %v8488
    %v9200 = vunpack.c.h.b16 %v8488
    %v9201 = vunpack.c.l.b16 %v8489
    %v9202 = vunpack.c.h.b16 %v8489
    %v9203 = vunpack.c.l.b16 %v8490
    %v9204 = vunpack.c.h.b16 %v8490
    %v9205 = vunpack.c.l.b16 %v8491
    %v9206 = vunpack.c.h.b16 %v8491
    %v9207 = vunpack.c.l.b16 %v8492
    %v9208 = vunpack.c.h.b16 %v8492
    %v9209 = vunpack.c.l.b16 %v8493
    %v9210 = vunpack.c.h.b16 %v8493
    %v9211 = vunpack.c.l.b16 %v8494
    %v9212 = vunpack.c.h.b16 %v8494
    %v9213 = vunpack.c.l.b16 %v8495
    %v9214 = vunpack.c.h.b16 %v8495
    %v9215 = vunpack.c.l.b16 %v8496
    %v9216 = vunpack.c.h.b16 %v8496
    %v9217 = vunpack.c.l.b16 %v8497
    %v9218 = vunpack.c.h.b16 %v8497
    %v9219 = vunpack.c.l.b16 %v8498
    %v9220 = vunpack.c.h.b16 %v8498
    %v9221 = vunpack.c.l.b16 %v8499
    %v9222 = vunpack.c.h.b16 %v8499
    %v9223 = vunpack.c.l.b16 %v8500
    %v9224 = vunpack.c.h.b16 %v8500
    %v9225 = vunpack.c.l.b16 %v8501
    %v9226 = vunpack.c.h.b16 %v8501
    %v9227 = vunpack.c.l.b16 %v8502
    %v9228 = vunpack.c.h.b16 %v8502
    %v9229 = vunpack.c.l.b16 %v8503
    %v9230 = vunpack.c.h.b16 %v8503
    %v9231 = vunpack.c.l.b16 %v8504
    %v9232 = vunpack.c.h.b16 %v8504
    %v9233 = vunpack.c.l.b16 %v8505
    %v9234 = vunpack.c.h.b16 %v8505
    %v9235 = vunpack.c.l.b16 %v8506
    %v9236 = vunpack.c.h.b16 %v8506
    %v9237 = vunpack.c.l.b16 %v8507
    %v9238 = vunpack.c.h.b16 %v8507
    %v9239 = vunpack.c.l.b16 %v8508
    %v9240 = vunpack.c.h.b16 %v8508
    %v9241 = vunpack.c.l.b16 %v8509
    %v9242 = vunpack.c.h.b16 %v8509
    %v9243 = vunpack.c.l.b16 %v8510
    %v9244 = vunpack.c.h.b16 %v8510
    %v9245 = vunpack.c.l.b16 %v8511
    %v9246 = vunpack.c.h.b16 %v8511
    %v9247 = vunpack.c.l.b16 %v8512
    %v9248 = vunpack.c.h.b16 %v8512
    %v9249 = vunpack.c.l.b16 %v8513
    %v9250 = vunpack.c.h.b16 %v8513
    %v9251 = vunpack.c.l.b16 %v8514
    %v9252 = vunpack.c.h.b16 %v8514
    %v9253 = vunpack.c.l.b16 %v8515
    %v9254 = vunpack.c.h.b16 %v8515
    %v9255 = vunpack.c.l.b16 %v8516
    %v9256 = vunpack.c.h.b16 %v8516
    %v9257 = vunpack.c.l.b16 %v8517
    %v9258 = vunpack.c.h.b16 %v8517
    %v9259 = vunpack.c.l.b16 %v8518
    %v9260 = vunpack.c.h.b16 %v8518
    %v9261 = vunpack.c.l.b16 %v8519
    %v9262 = vunpack.c.h.b16 %v8519
    %v9263 = vunpack.c.l.b16 %v8520
    %v9264 = vunpack.c.h.b16 %v8520
    %v9265 = vunpack.c.l.b16 %v8521
    %v9266 = vunpack.c.h.b16 %v8521
    %v9267 = vunpack.c.l.b16 %v8522
    %v9268 = vunpack.c.h.b16 %v8522
    %v9269 = vunpack.c.l.b16 %v8523
    %v9270 = vunpack.c.h.b16 %v8523
    %v9271 = vunpack.c.l.b16 %v8524
    %v9272 = vunpack.c.h.b16 %v8524
    %v9273 = vunpack.c.l.b16 %v8525
    %v9274 = vunpack.c.h.b16 %v8525
    %v9275 = vunpack.c.l.b16 %v8526
    %v9276 = vunpack.c.h.b16 %v8526
    %v9277 = vunpack.c.l.b16 %v8527
    %v9278 = vunpack.c.h.b16 %v8527
    %v9279 = vunpack.c.l.b16 %v8528
    %v9280 = vunpack.c.h.b16 %v8528
    %v9281 = vunpack.c.l.b16 %v8529
    %v9282 = vunpack.c.h.b16 %v8529
    %v9283 = vunpack.c.l.b16 %v8530
    %v9284 = vunpack.c.h.b16 %v8530
    %v9285 = vunpack.c.l.b16 %v8531
    %v9286 = vunpack.c.h.b16 %v8531
    %v9287 = vunpack.c.l.b16 %v8532
    %v9288 = vunpack.c.h.b16 %v8532
    %v9289 = vunpack.c.l.b16 %v8533
    %v9290 = vunpack.c.h.b16 %v8533
    %v9291 = vunpack.c.l.b16 %v8534
    %v9292 = vunpack.c.h.b16 %v8534
    %v9293 = vunpack.c.l.b16 %v8535
    %v9294 = vunpack.c.h.b16 %v8535
    %v9295 = vunpack.c.l.b16 %v8536
    %v9296 = vunpack.c.h.b16 %v8536
    %v9297 = vunpack.c.l.b16 %v8537
    %v9298 = vunpack.c.h.b16 %v8537
    %v9299 = vunpack.c.l.b16 %v8538
    %v9300 = vunpack.c.h.b16 %v8538
    %v9301 = vunpack.c.l.b16 %v8539
    %v9302 = vunpack.c.h.b16 %v8539
    %v9303 = vunpack.c.l.b16 %v8540
    %v9304 = vunpack.c.h.b16 %v8540
    %v9305 = vunpack.c.l.b16 %v8541
    %v9306 = vunpack.c.h.b16 %v8541
    %v9307 = vunpack.c.l.b16 %v8542
    %v9308 = vunpack.c.h.b16 %v8542
    %v9309 = vunpack.c.l.b16 %v8543
    %v9310 = vunpack.c.h.b16 %v8543
    %v9311 = vunpack.c.l.b16 %v8544
    %v9312 = vunpack.c.h.b16 %v8544
    %v9313 = vunpack.c.l.b16 %v8545
    %v9314 = vunpack.c.h.b16 %v8545
    %v9315 = vunpack.c.l.b16 %v8546
    %v9316 = vunpack.c.h.b16 %v8546
    %v9317 = vunpack.c.l.b16 %v8547
    %v9318 = vunpack.c.h.b16 %v8547
    %v9319 = vunpack.c.l.b16 %v8548
    %v9320 = vunpack.c.h.b16 %v8548
    %v9321 = vunpack.c.l.b16 %v8549
    %v9322 = vunpack.c.h.b16 %v8549
    %v9323 = vunpack.c.l.b16 %v8550
    %v9324 = vunpack.c.h.b16 %v8550
    %v9325 = vunpack.c.l.b16 %v8551
    %v9326 = vunpack.c.h.b16 %v8551
    %v9327 = vunpack.c.l.b16 %v8552
    %v9328 = vunpack.c.h.b16 %v8552
    %v9329 = vunpack.c.l.b16 %v8553
    %v9330 = vunpack.c.h.b16 %v8553
    %v9331 = vunpack.c.l.b16 %v8554
    %v9332 = vunpack.c.h.b16 %v8554
    %v9333 = vunpack.c.l.b16 %v8555
    %v9334 = vunpack.c.h.b16 %v8555
    %v9335 = vunpack.c.l.b16 %v8556
    %v9336 = vunpack.c.h.b16 %v8556
    %v9337 = vunpack.c.l.b16 %v8557
    %v9338 = vunpack.c.h.b16 %v8557
    %v9339 = vunpack.c.l.b16 %v8558
    %v9340 = vunpack.c.h.b16 %v8558
    %v9341 = vunpack.c.l.b16 %v8559
    %v9342 = vunpack.c.h.b16 %v8559
    %v9343 = vunpack.c.l.b16 %v8560
    %v9344 = vunpack.c.h.b16 %v8560
    %v9345 = vunpack.c.l.b16 %v8561
    %v9346 = vunpack.c.h.b16 %v8561
    %v9347 = vunpack.c.l.b16 %v8562
    %v9348 = vunpack.c.h.b16 %v8562
    %v9349 = vunpack.c.l.b16 %v8563
    %v9350 = vunpack.c.h.b16 %v8563
    %v9351 = vunpack.c.l.b16 %v8564
    %v9352 = vunpack.c.h.b16 %v8564
    %v9353 = vunpack.c.l.b16 %v8565
    %v9354 = vunpack.c.h.b16 %v8565
    %v9355 = vunpack.c.l.b16 %v8566
    %v9356 = vunpack.c.h.b16 %v8566
    %v9357 = vunpack.c.l.b16 %v8567
    %v9358 = vunpack.c.h.b16 %v8567
    %v9359 = vunpack.c.l.b16 %v8568
    %v9360 = vunpack.c.h.b16 %v8568
    %v9361 = vunpack.c.l.b16 %v8569
    %v9362 = vunpack.c.h.b16 %v8569
    %v9363 = vunpack.c.l.b16 %v8570
    %v9364 = vunpack.c.h.b16 %v8570
    %v9365 = vunpack.c.l.b16 %v8571
    %v9366 = vunpack.c.h.b16 %v8571
    %v9367 = vunpack.c.l.b16 %v8572
    %v9368 = vunpack.c.h.b16 %v8572
    %v9369 = vunpack.c.l.b16 %v8573
    %v9370 = vunpack.c.h.b16 %v8573
    %v9371 = vunpack.c.l.b16 %v8574
    %v9372 = vunpack.c.h.b16 %v8574
    %v9373 = vunpack.c.l.b16 %v8575
    %v9374 = vunpack.c.h.b16 %v8575
    %v9375 = vunpack.c.l.b16 %v8576
    %v9376 = vunpack.c.h.b16 %v8576
    %v9377 = vunpack.c.l.b16 %v8577
    %v9378 = vunpack.c.h.b16 %v8577
    %v9379 = vunpack.c.l.b16 %v8578
    %v9380 = vunpack.c.h.b16 %v8578
    %v9381 = vunpack.c.l.b16 %v8579
    %v9382 = vunpack.c.h.b16 %v8579
    %v9383 = vunpack.c.l.b16 %v8580
    %v9384 = vunpack.c.h.b16 %v8580
    %v9385 = vunpack.c.l.b16 %v8581
    %v9386 = vunpack.c.h.b16 %v8581
    %v9387 = vunpack.c.l.b16 %v8582
    %v9388 = vunpack.c.h.b16 %v8582
    %v9389 = vunpack.c.l.b16 %v8583
    %v9390 = vunpack.c.h.b16 %v8583
    %v9391 = vunpack.c.l.b16 %v8584
    %v9392 = vunpack.c.h.b16 %v8584
    %v9393 = vunpack.c.l.b16 %v8585
    %v9394 = vunpack.c.h.b16 %v8585
    %v9395 = vunpack.c.l.b16 %v8586
    %v9396 = vunpack.c.h.b16 %v8586
    %v9397 = vunpack.c.l.b16 %v8587
    %v9398 = vunpack.c.h.b16 %v8587
    %v9399 = vunpack.c.l.b16 %v8588
    %v9400 = vunpack.c.h.b16 %v8588
    %v9401 = vunpack.c.l.b16 %v8589
    %v9402 = vunpack.c.h.b16 %v8589
    %v9403 = vunpack.c.l.b16 %v8590
    %v9404 = vunpack.c.h.b16 %v8590
    %v9405 = vunpack.c.l.b16 %v8591
    %v9406 = vunpack.c.h.b16 %v8591
    %v9407 = vunpack.c.l.b16 %v8592
    %v9408 = vunpack.c.h.b16 %v8592
    %v9409 = vunpack.c.l.b16 %v8593
    %v9410 = vunpack.c.h.b16 %v8593
    %v9411 = vunpack.c.l.b16 %v8594
    %v9412 = vunpack.c.h.b16 %v8594
    %v9413 = vunpack.c.l.b16 %v8595
    %v9414 = vunpack.c.h.b16 %v8595
    %v9415 = vunpack.c.l.b16 %v8596
    %v9416 = vunpack.c.h.b16 %v8596
    %v9417 = vunpack.c.l.b16 %v8597
    %v9418 = vunpack.c.h.b16 %v8597
    %v9419 = vunpack.c.l.b16 %v8598
    %v9420 = vunpack.c.h.b16 %v8598
    %v9421 = vunpack.c.l.b16 %v8599
    %v9422 = vunpack.c.h.b16 %v8599
    %v9423 = vunpack.c.l.b16 %v8600
    %v9424 = vunpack.c.h.b16 %v8600
    %v9425 = vunpack.c.l.b16 %v8601
    %v9426 = vunpack.c.h.b16 %v8601
    %v9427 = vunpack.c.l.b16 %v8602
    %v9428 = vunpack.c.h.b16 %v8602
    %v9429 = vunpack.c.l.b16 %v8603
    %v9430 = vunpack.c.h.b16 %v8603
    %v9431 = vunpack.c.l.b16 %v8604
    %v9432 = vunpack.c.h.b16 %v8604
    %v9433 = vunpack.c.l.b16 %v8605
    %v9434 = vunpack.c.h.b16 %v8605
    %v9435 = vunpack.c.l.b16 %v8606
    %v9436 = vunpack.c.h.b16 %v8606
    %v9437 = vunpack.c.l.b16 %v8607
    %v9438 = vunpack.c.h.b16 %v8607
    %v9439 = vunpack.c.l.b16 %v8608
    %v9440 = vunpack.c.h.b16 %v8608
    %v9441 = vunpack.c.l.b16 %v8609
    %v9442 = vunpack.c.h.b16 %v8609
    %v9443 = vunpack.c.l.b16 %v8610
    %v9444 = vunpack.c.h.b16 %v8610
    %v9445 = vunpack.c.l.b16 %v8611
    %v9446 = vunpack.c.h.b16 %v8611
    %v9447 = vunpack.c.l.b16 %v8612
    %v9448 = vunpack.c.h.b16 %v8612
    %v9449 = vunpack.c.l.b16 %v8613
    %v9450 = vunpack.c.h.b16 %v8613
    %v9451 = vunpack.c.l.b16 %v8614
    %v9452 = vunpack.c.h.b16 %v8614
    %v9453 = vunpack.c.l.b16 %v8615
    %v9454 = vunpack.c.h.b16 %v8615
    %v9455 = vunpack.c.l.b16 %v8616
    %v9456 = vunpack.c.h.b16 %v8616
    %v9457 = vunpack.c.l.b16 %v8617
    %v9458 = vunpack.c.h.b16 %v8617
    %v9459 = vunpack.c.l.b16 %v8618
    %v9460 = vunpack.c.h.b16 %v8618
    %v9461 = vunpack.c.l.b16 %v8619
    %v9462 = vunpack.c.h.b16 %v8619
    %v9463 = vunpack.c.l.b16 %v8620
    %v9464 = vunpack.c.h.b16 %v8620
    %v9465 = vunpack.c.l.b16 %v8621
    %v9466 = vunpack.c.h.b16 %v8621
    %v9467 = vunpack.c.l.b16 %v8622
    %v9468 = vunpack.c.h.b16 %v8622
    %v9469 = vunpack.c.l.b16 %v8623
    %v9470 = vunpack.c.h.b16 %v8623
    %v9471 = vunpack.c.l.b16 %v8624
    %v9472 = vunpack.c.h.b16 %v8624
    %v9473 = vunpack.c.l.b16 %v8625
    %v9474 = vunpack.c.h.b16 %v8625
    %v9475 = vunpack.c.l.b16 %v8626
    %v9476 = vunpack.c.h.b16 %v8626
    %v9477 = vunpack.c.l.b16 %v8627
    %v9478 = vunpack.c.h.b16 %v8627
    %v9479 = vunpack.c.l.b16 %v8628
    %v9480 = vunpack.c.h.b16 %v8628
    %v9481 = vunpack.c.l.b16 %v8629
    %v9482 = vunpack.c.h.b16 %v8629
    %v9483 = vunpack.c.l.b16 %v8630
    %v9484 = vunpack.c.h.b16 %v8630
    %v9485 = vunpack.c.l.b16 %v8631
    %v9486 = vunpack.c.h.b16 %v8631
    %v9487 = vunpack.c.l.b16 %v8632
    %v9488 = vunpack.c.h.b16 %v8632
    %v9489 = vunpack.c.l.b16 %v8633
    %v9490 = vunpack.c.h.b16 %v8633
    %v9491 = vunpack.c.l.b16 %v8634
    %v9492 = vunpack.c.h.b16 %v8634
    %v9493 = vunpack.c.l.b16 %v8635
    %v9494 = vunpack.c.h.b16 %v8635
    %v9495 = vunpack.c.l.b16 %v8636
    %v9496 = vunpack.c.h.b16 %v8636
    %v9497 = vunpack.c.l.b16 %v8637
    %v9498 = vunpack.c.h.b16 %v8637
    %v9499 = vunpack.c.l.b16 %v8638
    %v9500 = vunpack.c.h.b16 %v8638
    %v9501 = vunpack.c.l.b16 %v8639
    %v9502 = vunpack.c.h.b16 %v8639
    %v9503 = vunpack.c.l.b16 %v8640
    %v9504 = vunpack.c.h.b16 %v8640
    %v9505 = vunpack.c.l.b16 %v8641
    %v9506 = vunpack.c.h.b16 %v8641
    %v9507 = vunpack.c.l.b16 %v8642
    %v9508 = vunpack.c.h.b16 %v8642
    %v9509 = vunpack.c.l.b16 %v8643
    %v9510 = vunpack.c.h.b16 %v8643
    %v9511 = vunpack.c.l.b16 %v8644
    %v9512 = vunpack.c.h.b16 %v8644
    %v9513 = vunpack.c.l.b16 %v8645
    %v9514 = vunpack.c.h.b16 %v8645
    %v9515 = vunpack.c.l.b16 %v8646
    %v9516 = vunpack.c.h.b16 %v8646
    %v9517 = vunpack.c.l.b16 %v8647
    %v9518 = vunpack.c.h.b16 %v8647
    %v9519 = vunpack.c.l.b16 %v8648
    %v9520 = vunpack.c.h.b16 %v8648
    %v9521 = vunpack.c.l.b16 %v8649
    %v9522 = vunpack.c.h.b16 %v8649
    %v9523 = vunpack.c.l.b16 %v8650
    %v9524 = vunpack.c.h.b16 %v8650
    %v9525 = vunpack.c.l.b16 %v8651
    %v9526 = vunpack.c.h.b16 %v8651
    %v9527 = vunpack.c.l.b16 %v8652
    %v9528 = vunpack.c.h.b16 %v8652
    %v9529 = vunpack.c.l.b16 %v8653
    %v9530 = vunpack.c.h.b16 %v8653
    %v9531 = vunpack.c.l.b16 %v8654
    %v9532 = vunpack.c.h.b16 %v8654
    %v9533 = vunpack.c.l.b16 %v8655
    %v9534 = vunpack.c.h.b16 %v8655
    %v9535 = vunpack.c.l.b16 %v8656
    %v9536 = vunpack.c.h.b16 %v8656
    %v9537 = vunpack.c.l.b16 %v8657
    %v9538 = vunpack.c.h.b16 %v8657
    %v9539 = vunpack.c.l.b16 %v8658
    %v9540 = vunpack.c.h.b16 %v8658
    %v9541 = vunpack.c.l.b16 %v8659
    %v9542 = vunpack.c.h.b16 %v8659
    %v9543 = vunpack.c.l.b16 %v8660
    %v9544 = vunpack.c.h.b16 %v8660
    %v9545 = vunpack.c.l.b16 %v8661
    %v9546 = vunpack.c.h.b16 %v8661
    %v9547 = vunpack.c.l.b16 %v8662
    %v9548 = vunpack.c.h.b16 %v8662
    %v9549 = vunpack.c.l.b16 %v8663
    %v9550 = vunpack.c.h.b16 %v8663
    %v9551 = vunpack.c.l.b16 %v8664
    %v9552 = vunpack.c.h.b16 %v8664
    %v9553 = vunpack.c.l.b16 %v8665
    %v9554 = vunpack.c.h.b16 %v8665
    %v9555 = vunpack.c.l.b16 %v8666
    %v9556 = vunpack.c.h.b16 %v8666
    %v9557 = vunpack.c.l.b16 %v8667
    %v9558 = vunpack.c.h.b16 %v8667
    %v9559 = vunpack.c.l.b16 %v8668
    %v9560 = vunpack.c.h.b16 %v8668
    %v9561 = vunpack.c.l.b16 %v8669
    %v9562 = vunpack.c.h.b16 %v8669
    %v9563 = vunpack.c.l.b16 %v8670
    %v9564 = vunpack.c.h.b16 %v8670
    %v9565 = vunpack.c.l.b16 %v8671
    %v9566 = vunpack.c.h.b16 %v8671
    %v9567 = vunpack.c.l.b16 %v8672
    %v9568 = vunpack.c.h.b16 %v8672
    %v9569 = vunpack.c.l.b16 %v8673
    %v9570 = vunpack.c.h.b16 %v8673
    %v9571 = vunpack.c.l.b16 %v8674
    %v9572 = vunpack.c.h.b16 %v8674
    %v9573 = vunpack.c.l.b16 %v8675
    %v9574 = vunpack.c.h.b16 %v8675
    %v9575 = vunpack.c.l.b16 %v8676
    %v9576 = vunpack.c.h.b16 %v8676
    %v9577 = vunpack.c.l.b16 %v8677
    %v9578 = vunpack.c.h.b16 %v8677
    %v9579 = vunpack.c.l.b16 %v8678
    %v9580 = vunpack.c.h.b16 %v8678
    %v9581 = vunpack.c.l.b16 %v8679
    %v9582 = vunpack.c.h.b16 %v8679
    %v9583 = vunpack.c.l.b16 %v8680
    %v9584 = vunpack.c.h.b16 %v8680
    %v9585 = vpack.c.b16 %v9077, %v9073
    %v9586 = vpack.c.b16 %v9078, %v9074
    %v9587 = vpack.c.b16 %v9079, %v9075
    %v9588 = vpack.c.b16 %v9080, %v9076
    %v9589 = vpack.c.b16 %v9085, %v9081
    %v9590 = vpack.c.b16 %v9086, %v9082
    %v9591 = vpack.c.b16 %v9087, %v9083
    %v9592 = vpack.c.b16 %v9088, %v9084
    %v9593 = vpack.c.b16 %v9093, %v9089
    %v9594 = vpack.c.b16 %v9094, %v9090
    %v9595 = vpack.c.b16 %v9095, %v9091
    %v9596 = vpack.c.b16 %v9096, %v9092
    %v9597 = vpack.c.b16 %v9101, %v9097
    %v9598 = vpack.c.b16 %v9102, %v9098
    %v9599 = vpack.c.b16 %v9103, %v9099
    %v9600 = vpack.c.b16 %v9104, %v9100
    %v9601 = vpack.c.b16 %v9109, %v9105
    %v9602 = vpack.c.b16 %v9110, %v9106
    %v9603 = vpack.c.b16 %v9111, %v9107
    %v9604 = vpack.c.b16 %v9112, %v9108
    %v9605 = vpack.c.b16 %v9117, %v9113
    %v9606 = vpack.c.b16 %v9118, %v9114
    %v9607 = vpack.c.b16 %v9119, %v9115
    %v9608 = vpack.c.b16 %v9120, %v9116
    %v9609 = vpack.c.b16 %v9125, %v9121
    %v9610 = vpack.c.b16 %v9126, %v9122
    %v9611 = vpack.c.b16 %v9127, %v9123
    %v9612 = vpack.c.b16 %v9128, %v9124
    %v9613 = vpack.c.b16 %v9133, %v9129
    %v9614 = vpack.c.b16 %v9134, %v9130
    %v9615 = vpack.c.b16 %v9135, %v9131
    %v9616 = vpack.c.b16 %v9136, %v9132
    %v9617 = vpack.c.b16 %v9141, %v9137
    %v9618 = vpack.c.b16 %v9142, %v9138
    %v9619 = vpack.c.b16 %v9143, %v9139
    %v9620 = vpack.c.b16 %v9144, %v9140
    %v9621 = vpack.c.b16 %v9149, %v9145
    %v9622 = vpack.c.b16 %v9150, %v9146
    %v9623 = vpack.c.b16 %v9151, %v9147
    %v9624 = vpack.c.b16 %v9152, %v9148
    %v9625 = vpack.c.b16 %v9157, %v9153
    %v9626 = vpack.c.b16 %v9158, %v9154
    %v9627 = vpack.c.b16 %v9159, %v9155
    %v9628 = vpack.c.b16 %v9160, %v9156
    %v9629 = vpack.c.b16 %v9165, %v9161
    %v9630 = vpack.c.b16 %v9166, %v9162
    %v9631 = vpack.c.b16 %v9167, %v9163
    %v9632 = vpack.c.b16 %v9168, %v9164
    %v9633 = vpack.c.b16 %v9173, %v9169
    %v9634 = vpack.c.b16 %v9174, %v9170
    %v9635 = vpack.c.b16 %v9175, %v9171
    %v9636 = vpack.c.b16 %v9176, %v9172
    %v9637 = vpack.c.b16 %v9181, %v9177
    %v9638 = vpack.c.b16 %v9182, %v9178
    %v9639 = vpack.c.b16 %v9183, %v9179
    %v9640 = vpack.c.b16 %v9184, %v9180
    %v9641 = vpack.c.b16 %v9189, %v9185
    %v9642 = vpack.c.b16 %v9190, %v9186
    %v9643 = vpack.c.b16 %v9191, %v9187
    %v9644 = vpack.c.b16 %v9192, %v9188
    %v9645 = vpack.c.b16 %v9197, %v9193
    %v9646 = vpack.c.b16 %v9198, %v9194
    %v9647 = vpack.c.b16 %v9199, %v9195
    %v9648 = vpack.c.b16 %v9200, %v9196
    %v9649 = vpack.c.b16 %v9205, %v9201
    %v9650 = vpack.c.b16 %v9206, %v9202
    %v9651 = vpack.c.b16 %v9207, %v9203
    %v9652 = vpack.c.b16 %v9208, %v9204
    %v9653 = vpack.c.b16 %v9213, %v9209
    %v9654 = vpack.c.b16 %v9214, %v9210
    %v9655 = vpack.c.b16 %v9215, %v9211
    %v9656 = vpack.c.b16 %v9216, %v9212
    %v9657 = vpack.c.b16 %v9221, %v9217
    %v9658 = vpack.c.b16 %v9222, %v9218
    %v9659 = vpack.c.b16 %v9223, %v9219
    %v9660 = vpack.c.b16 %v9224, %v9220
    %v9661 = vpack.c.b16 %v9229, %v9225
    %v9662 = vpack.c.b16 %v9230, %v9226
    %v9663 = vpack.c.b16 %v9231, %v9227
    %v9664 = vpack.c.b16 %v9232, %v9228
    %v9665 = vpack.c.b16 %v9237, %v9233
    %v9666 = vpack.c.b16 %v9238, %v9234
    %v9667 = vpack.c.b16 %v9239, %v9235
    %v9668 = vpack.c.b16 %v9240, %v9236
    %v9669 = vpack.c.b16 %v9245, %v9241
    %v9670 = vpack.c.b16 %v9246, %v9242
    %v9671 = vpack.c.b16 %v9247, %v9243
    %v9672 = vpack.c.b16 %v9248, %v9244
    %v9673 = vpack.c.b16 %v9253, %v9249
    %v9674 = vpack.c.b16 %v9254, %v9250
    %v9675 = vpack.c.b16 %v9255, %v9251
    %v9676 = vpack.c.b16 %v9256, %v9252
    %v9677 = vpack.c.b16 %v9261, %v9257
    %v9678 = vpack.c.b16 %v9262, %v9258
    %v9679 = vpack.c.b16 %v9263, %v9259
    %v9680 = vpack.c.b16 %v9264, %v9260
    %v9681 = vpack.c.b16 %v9269, %v9265
    %v9682 = vpack.c.b16 %v9270, %v9266
    %v9683 = vpack.c.b16 %v9271, %v9267
    %v9684 = vpack.c.b16 %v9272, %v9268
    %v9685 = vpack.c.b16 %v9277, %v9273
    %v9686 = vpack.c.b16 %v9278, %v9274
    %v9687 = vpack.c.b16 %v9279, %v9275
    %v9688 = vpack.c.b16 %v9280, %v9276
    %v9689 = vpack.c.b16 %v9285, %v9281
    %v9690 = vpack.c.b16 %v9286, %v9282
    %v9691 = vpack.c.b16 %v9287, %v9283
    %v9692 = vpack.c.b16 %v9288, %v9284
    %v9693 = vpack.c.b16 %v9293, %v9289
    %v9694 = vpack.c.b16 %v9294, %v9290
    %v9695 = vpack.c.b16 %v9295, %v9291
    %v9696 = vpack.c.b16 %v9296, %v9292
    %v9697 = vpack.c.b16 %v9301, %v9297
    %v9698 = vpack.c.b16 %v9302, %v9298
    %v9699 = vpack.c.b16 %v9303, %v9299
    %v9700 = vpack.c.b16 %v9304, %v9300
    %v9701 = vpack.c.b16 %v9309, %v9305
    %v9702 = vpack.c.b16 %v9310, %v9306
    %v9703 = vpack.c.b16 %v9311, %v9307
    %v9704 = vpack.c.b16 %v9312, %v9308
    %v9705 = vpack.c.b16 %v9317, %v9313
    %v9706 = vpack.c.b16 %v9318, %v9314
    %v9707 = vpack.c.b16 %v9319, %v9315
    %v9708 = vpack.c.b16 %v9320, %v9316
    %v9709 = vpack.c.b16 %v9325, %v9321
    %v9710 = vpack.c.b16 %v9326, %v9322
    %v9711 = vpack.c.b16 %v9327, %v9323
    %v9712 = vpack.c.b16 %v9328, %v9324
    %v9713 = vpack.c.b16 %v9333, %v9329
    %v9714 = vpack.c.b16 %v9334, %v9330
    %v9715 = vpack.c.b16 %v9335, %v9331
    %v9716 = vpack.c.b16 %v9336, %v9332
    %v9717 = vpack.c.b16 %v9341, %v9337
    %v9718 = vpack.c.b16 %v9342, %v9338
    %v9719 = vpack.c.b16 %v9343, %v9339
    %v9720 = vpack.c.b16 %v9344, %v9340
    %v9721 = vpack.c.b16 %v9349, %v9345
    %v9722 = vpack.c.b16 %v9350, %v9346
    %v9723 = vpack.c.b16 %v9351, %v9347
    %v9724 = vpack.c.b16 %v9352, %v9348
    %v9725 = vpack.c.b16 %v9357, %v9353
    %v9726 = vpack.c.b16 %v9358, %v9354
    %v9727 = vpack.c.b16 %v9359, %v9355
    %v9728 = vpack.c.b16 %v9360, %v9356
    %v9729 = vpack.c.b16 %v9365, %v9361
    %v9730 = vpack.c.b16 %v9366, %v9362
    %v9731 = vpack.c.b16 %v9367, %v9363
    %v9732 = vpack.c.b16 %v9368, %v9364
    %v9733 = vpack.c.b16 %v9373, %v9369
    %v9734 = vpack.c.b16 %v9374, %v9370
    %v9735 = vpack.c.b16 %v9375, %v9371
    %v9736 = vpack.c.b16 %v9376, %v9372
    %v9737 = vpack.c.b16 %v9381, %v9377
    %v9738 = vpack.c.b16 %v9382, %v9378
    %v9739 = vpack.c.b16 %v9383, %v9379
    %v9740 = vpack.c.b16 %v9384, %v9380
    %v9741 = vpack.c.b16 %v9389, %v9385
    %v9742 = vpack.c.b16 %v9390, %v9386
    %v9743 = vpack.c.b16 %v9391, %v9387
    %v9744 = vpack.c.b16 %v9392, %v9388
    %v9745 = vpack.c.b16 %v9397, %v9393
    %v9746 = vpack.c.b16 %v9398, %v9394
    %v9747 = vpack.c.b16 %v9399, %v9395
    %v9748 = vpack.c.b16 %v9400, %v9396
    %v9749 = vpack.c.b16 %v9405, %v9401
    %v9750 = vpack.c.b16 %v9406, %v9402
    %v9751 = vpack.c.b16 %v9407, %v9403
    %v9752 = vpack.c.b16 %v9408, %v9404
    %v9753 = vpack.c.b16 %v9413, %v9409
    %v9754 = vpack.c.b16 %v9414, %v9410
    %v9755 = vpack.c.b16 %v9415, %v9411
    %v9756 = vpack.c.b16 %v9416, %v9412
    %v9757 = vpack.c.b16 %v9421, %v9417
    %v9758 = vpack.c.b16 %v9422, %v9418
    %v9759 = vpack.c.b16 %v9423, %v9419
    %v9760 = vpack.c.b16 %v9424, %v9420
    %v9761 = vpack.c.b16 %v9429, %v9425
    %v9762 = vpack.c.b16 %v9430, %v9426
    %v9763 = vpack.c.b16 %v9431, %v9427
    %v9764 = vpack.c.b16 %v9432, %v9428
    %v9765 = vpack.c.b16 %v9437, %v9433
    %v9766 = vpack.c.b16 %v9438, %v9434
    %v9767 = vpack.c.b16 %v9439, %v9435
    %v9768 = vpack.c.b16 %v9440, %v9436
    %v9769 = vpack.c.b16 %v9445, %v9441
    %v9770 = vpack.c.b16 %v9446, %v9442
    %v9771 = vpack.c.b16 %v9447, %v9443
    %v9772 = vpack.c.b16 %v9448, %v9444
    %v9773 = vpack.c.b16 %v9453, %v9449
    %v9774 = vpack.c.b16 %v9454, %v9450
    %v9775 = vpack.c.b16 %v9455, %v9451
    %v9776 = vpack.c.b16 %v9456, %v9452
    %v9777 = vpack.c.b16 %v9461, %v9457
    %v9778 = vpack.c.b16 %v9462, %v9458
    %v9779 = vpack.c.b16 %v9463, %v9459
    %v9780 = vpack.c.b16 %v9464, %v9460
    %v9781 = vpack.c.b16 %v9469, %v9465
    %v9782 = vpack.c.b16 %v9470, %v9466
    %v9783 = vpack.c.b16 %v9471, %v9467
    %v9784 = vpack.c.b16 %v9472, %v9468
    %v9785 = vpack.c.b16 %v9477, %v9473
    %v9786 = vpack.c.b16 %v9478, %v9474
    %v9787 = vpack.c.b16 %v9479, %v9475
    %v9788 = vpack.c.b16 %v9480, %v9476
    %v9789 = vpack.c.b16 %v9485, %v9481
    %v9790 = vpack.c.b16 %v9486, %v9482
    %v9791 = vpack.c.b16 %v9487, %v9483
    %v9792 = vpack.c.b16 %v9488, %v9484
    %v9793 = vpack.c.b16 %v9493, %v9489
    %v9794 = vpack.c.b16 %v9494, %v9490
    %v9795 = vpack.c.b16 %v9495, %v9491
    %v9796 = vpack.c.b16 %v9496, %v9492
    %v9797 = vpack.c.b16 %v9501, %v9497
    %v9798 = vpack.c.b16 %v9502, %v9498
    %v9799 = vpack.c.b16 %v9503, %v9499
    %v9800 = vpack.c.b16 %v9504, %v9500
    %v9801 = vpack.c.b16 %v9509, %v9505
    %v9802 = vpack.c.b16 %v9510, %v9506
    %v9803 = vpack.c.b16 %v9511, %v9507
    %v9804 = vpack.c.b16 %v9512, %v9508
    %v9805 = vpack.c.b16 %v9517, %v9513
    %v9806 = vpack.c.b16 %v9518, %v9514
    %v9807 = vpack.c.b16 %v9519, %v9515
    %v9808 = vpack.c.b16 %v9520, %v9516
    %v9809 = vpack.c.b16 %v9525, %v9521
    %v9810 = vpack.c.b16 %v9526, %v9522
    %v9811 = vpack.c.b16 %v9527, %v9523
    %v9812 = vpack.c.b16 %v9528, %v9524
    %v9813 = vpack.c.b16 %v9533, %v9529
    %v9814 = vpack.c.b16 %v9534, %v9530
    %v9815 = vpack.c.b16 %v9535, %v9531
    %v9816 = vpack.c.b16 %v9536, %v9532
    %v9817 = vpack.c.b16 %v9541, %v9537
    %v9818 = vpack.c.b16 %v9542, %v9538
    %v9819 = vpack.c.b16 %v9543, %v9539
    %v9820 = vpack.c.b16 %v9544, %v9540
    %v9821 = vpack.c.b16 %v9549, %v9545
    %v9822 = vpack.c.b16 %v9550, %v9546
    %v9823 = vpack.c.b16 %v9551, %v9547
    %v9824 = vpack.c.b16 %v9552, %v9548
    %v9825 = vpack.c.b16 %v9557, %v9553
    %v9826 = vpack.c.b16 %v9558, %v9554
    %v9827 = vpack.c.b16 %v9559, %v9555
    %v9828 = vpack.c.b16 %v9560, %v9556
    %v9829 = vpack.c.b16 %v9565, %v9561
    %v9830 = vpack.c.b16 %v9566, %v9562
    %v9831 = vpack.c.b16 %v9567, %v9563
    %v9832 = vpack.c.b16 %v9568, %v9564
    %v9833 = vpack.c.b16 %v9573, %v9569
    %v9834 = vpack.c.b16 %v9574, %v9570
    %v9835 = vpack.c.b16 %v9575, %v9571
    %v9836 = vpack.c.b16 %v9576, %v9572
    %v9837 = vpack.c.b16 %v9581, %v9577
    %v9838 = vpack.c.b16 %v9582, %v9578
    %v9839 = vpack.c.b16 %v9583, %v9579
    %v9840 = vpack.c.b16 %v9584, %v9580
    %10097 = vmatprep.subr.bf16.mxu0 %v9586
    %10098 = vmatpush1.bf16.msra.mxu0 %v9585
    %10099 = vmatprep.subr.bf16.mxu0 %v9590
    %10100 = vmatpush1.bf16.msra.mxu0 %v9589
    %10101 = vmatprep.subr.bf16.mxu0 %v9594
    %10102 = vmatpush1.bf16.msra.mxu0 %v9593
    %10103 = vmatprep.subr.bf16.mxu0 %v9598
    %10104 = vmatpush1.bf16.msra.mxu0 %v9597
    %10105 = vmatprep.subr.bf16.mxu0 %v9602
    %10106 = vmatpush1.bf16.msra.mxu0 %v9601
    %10107 = vmatprep.subr.bf16.mxu0 %v9606
    %10108 = vmatpush1.bf16.msra.mxu0 %v9605
    %10109 = vmatprep.subr.bf16.mxu0 %v9610
    %10110 = vmatpush1.bf16.msra.mxu0 %v9609
    %10111 = vmatprep.subr.bf16.mxu0 %v9614
    %10112 = vmatpush1.bf16.msra.mxu0 %v9613
    %10113 = vmatprep.subr.bf16.mxu0 %v9618
    %10114 = vmatpush1.bf16.msra.mxu0 %v9617
    %10115 = vmatprep.subr.bf16.mxu0 %v9622
    %10116 = vmatpush1.bf16.msra.mxu0 %v9621
    %10117 = vmatprep.subr.bf16.mxu0 %v9626
    %10118 = vmatpush1.bf16.msra.mxu0 %v9625
    %10119 = vmatprep.subr.bf16.mxu0 %v9630
    %10120 = vmatpush1.bf16.msra.mxu0 %v9629
    %10121 = vmatprep.subr.bf16.mxu0 %v9634
    %10122 = vmatpush1.bf16.msra.mxu0 %v9633
    %10123 = vmatprep.subr.bf16.mxu0 %v9638
    %10124 = vmatpush1.bf16.msra.mxu0 %v9637
    %10125 = vmatprep.subr.bf16.mxu0 %v9642
    %10126 = vmatpush1.bf16.msra.mxu0 %v9641
    %10127 = vmatprep.subr.bf16.mxu0 %v9646
    %10128 = vmatpush1.bf16.msra.mxu0 %v9645
    %10129 = vmatprep.mubr.bf16.mxu0 %v8682
    %10130 = vmatmul.mubr.bf16.gmra.mrb[0].mxu0 %v8681
    %v10131 = vpop.f32.mrb[0].mxu0
    %v10132 = vadd.f32 %v8813, %v10131
    %v10133 = vpop.f32.mrb[0].mxu0
    %v10134 = vadd.f32 %v8814, %v10133
    %v10135 = vpop.f32.mrb[0].mxu0
    %v10136 = vpop.f32.mrb[0].mxu0
    %10137 = vdwg.mxu0
    %10138 = vmatprep.subr.bf16.mxu0 %v9650
    %10139 = vmatpush1.bf16.msra.mxu0 %v9649
    %10140 = vmatprep.subr.bf16.mxu0 %v9654
    %10141 = vmatpush1.bf16.msra.mxu0 %v9653
    %10142 = vmatprep.subr.bf16.mxu0 %v9658
    %10143 = vmatpush1.bf16.msra.mxu0 %v9657
    %10144 = vmatprep.subr.bf16.mxu0 %v9662
    %10145 = vmatpush1.bf16.msra.mxu0 %v9661
    %10146 = vmatprep.subr.bf16.mxu0 %v9666
    %10147 = vmatpush1.bf16.msra.mxu0 %v9665
    %10148 = vmatprep.subr.bf16.mxu0 %v9670
    %10149 = vmatpush1.bf16.msra.mxu0 %v9669
    %10150 = vmatprep.subr.bf16.mxu0 %v9674
    %10151 = vmatpush1.bf16.msra.mxu0 %v9673
    %10152 = vmatprep.subr.bf16.mxu0 %v9678
    %10153 = vmatpush1.bf16.msra.mxu0 %v9677
    %10154 = vmatprep.subr.bf16.mxu0 %v9682
    %10155 = vmatpush1.bf16.msra.mxu0 %v9681
    %10156 = vmatprep.subr.bf16.mxu0 %v9686
    %10157 = vmatpush1.bf16.msra.mxu0 %v9685
    %10158 = vmatprep.subr.bf16.mxu0 %v9690
    %10159 = vmatpush1.bf16.msra.mxu0 %v9689
    %10160 = vmatprep.subr.bf16.mxu0 %v9694
    %10161 = vmatpush1.bf16.msra.mxu0 %v9693
    %10162 = vmatprep.subr.bf16.mxu0 %v9698
    %10163 = vmatpush1.bf16.msra.mxu0 %v9697
    %10164 = vmatprep.subr.bf16.mxu0 %v9702
    %10165 = vmatpush1.bf16.msra.mxu0 %v9701
    %10166 = vmatprep.subr.bf16.mxu0 %v9706
    %10167 = vmatpush1.bf16.msra.mxu0 %v9705
    %10168 = vmatprep.subr.bf16.mxu0 %v9710
    %10169 = vmatpush1.bf16.msra.mxu0 %v9709
    %10170 = vmatprep.mubr.bf16.mxu0 %v8684
    %10171 = vmatmul.mubr.bf16.gmra.mrb[0].mxu0 %v8683
    %v10172 = vpop.f32.mrb[0].mxu0
    %v10173 = vadd.f32 %v10132, %v10172
    %v10174 = vpop.f32.mrb[0].mxu0
    %v10175 = vadd.f32 %v10134, %v10174
    %v10176 = vpop.f32.mrb[0].mxu0
    %v10177 = vpop.f32.mrb[0].mxu0
    %10178 = vdwg.mxu0
    %10179 = vmatprep.subr.bf16.mxu0 %v9714
    %10180 = vmatpush1.bf16.msra.mxu0 %v9713
    %10181 = vmatprep.subr.bf16.mxu0 %v9718
    %10182 = vmatpush1.bf16.msra.mxu0 %v9717
    %10183 = vmatprep.subr.bf16.mxu0 %v9722
    %10184 = vmatpush1.bf16.msra.mxu0 %v9721
    %10185 = vmatprep.subr.bf16.mxu0 %v9726
    %10186 = vmatpush1.bf16.msra.mxu0 %v9725
    %10187 = vmatprep.subr.bf16.mxu0 %v9730
    %10188 = vmatpush1.bf16.msra.mxu0 %v9729
    %10189 = vmatprep.subr.bf16.mxu0 %v9734
    %10190 = vmatpush1.bf16.msra.mxu0 %v9733
    %10191 = vmatprep.subr.bf16.mxu0 %v9738
    %10192 = vmatpush1.bf16.msra.mxu0 %v9737
    %10193 = vmatprep.subr.bf16.mxu0 %v9742
    %10194 = vmatpush1.bf16.msra.mxu0 %v9741
    %10195 = vmatprep.subr.bf16.mxu0 %v9746
    %10196 = vmatpush1.bf16.msra.mxu0 %v9745
    %10197 = vmatprep.subr.bf16.mxu0 %v9750
    %10198 = vmatpush1.bf16.msra.mxu0 %v9749
    %10199 = vmatprep.subr.bf16.mxu0 %v9754
    %10200 = vmatpush1.bf16.msra.mxu0 %v9753
    %10201 = vmatprep.subr.bf16.mxu0 %v9758
    %10202 = vmatpush1.bf16.msra.mxu0 %v9757
    %10203 = vmatprep.subr.bf16.mxu0 %v9762
    %10204 = vmatpush1.bf16.msra.mxu0 %v9761
    %10205 = vmatprep.subr.bf16.mxu0 %v9766
    %10206 = vmatpush1.bf16.msra.mxu0 %v9765
    %10207 = vmatprep.subr.bf16.mxu0 %v9770
    %10208 = vmatpush1.bf16.msra.mxu0 %v9769
    %10209 = vmatprep.subr.bf16.mxu0 %v9774
    %10210 = vmatpush1.bf16.msra.mxu0 %v9773
    %10211 = vmatprep.mubr.bf16.mxu0 %v8686
    %10212 = vmatmul.mubr.bf16.gmra.mrb[0].mxu0 %v8685
    %v10213 = vpop.f32.mrb[0].mxu0
    %v10214 = vadd.f32 %v10173, %v10213
    %v10215 = vpop.f32.mrb[0].mxu0
    %v10216 = vadd.f32 %v10175, %v10215
    %v10217 = vpop.f32.mrb[0].mxu0
    %v10218 = vpop.f32.mrb[0].mxu0
    %10219 = vdwg.mxu0
    %10220 = vmatprep.subr.bf16.mxu0 %v9778
    %10221 = vmatpush1.bf16.msra.mxu0 %v9777
    %10222 = vmatprep.subr.bf16.mxu0 %v9782
    %10223 = vmatpush1.bf16.msra.mxu0 %v9781
    %10224 = vmatprep.subr.bf16.mxu0 %v9786
    %10225 = vmatpush1.bf16.msra.mxu0 %v9785
    %10226 = vmatprep.subr.bf16.mxu0 %v9790
    %10227 = vmatpush1.bf16.msra.mxu0 %v9789
    %10228 = vmatprep.subr.bf16.mxu0 %v9794
    %10229 = vmatpush1.bf16.msra.mxu0 %v9793
    %10230 = vmatprep.subr.bf16.mxu0 %v9798
    %10231 = vmatpush1.bf16.msra.mxu0 %v9797
    %10232 = vmatprep.subr.bf16.mxu0 %v9802
    %10233 = vmatpush1.bf16.msra.mxu0 %v9801
    %10234 = vmatprep.subr.bf16.mxu0 %v9806
    %10235 = vmatpush1.bf16.msra.mxu0 %v9805
    %10236 = vmatprep.subr.bf16.mxu0 %v9810
    %10237 = vmatpush1.bf16.msra.mxu0 %v9809
    %10238 = vmatprep.subr.bf16.mxu0 %v9814
    %10239 = vmatpush1.bf16.msra.mxu0 %v9813
    %10240 = vmatprep.subr.bf16.mxu0 %v9818
    %10241 = vmatpush1.bf16.msra.mxu0 %v9817
    %10242 = vmatprep.subr.bf16.mxu0 %v9822
    %10243 = vmatpush1.bf16.msra.mxu0 %v9821
    %10244 = vmatprep.subr.bf16.mxu0 %v9826
    %10245 = vmatpush1.bf16.msra.mxu0 %v9825
    %10246 = vmatprep.subr.bf16.mxu0 %v9830
    %10247 = vmatpush1.bf16.msra.mxu0 %v9829
    %10248 = vmatprep.subr.bf16.mxu0 %v9834
    %10249 = vmatpush1.bf16.msra.mxu0 %v9833
    %10250 = vmatprep.subr.bf16.mxu0 %v9838
    %10251 = vmatpush1.bf16.msra.mxu0 %v9837
    %10252 = vmatprep.mubr.bf16.mxu0 %v8688
    %10253 = vmatmul.mubr.bf16.gmra.mrb[0].mxu0 %v8687
    %v10254 = vpop.f32.mrb[0].mxu0
    %v10255 = vadd.f32 %v10214, %v10254
    %v10256 = vpop.f32.mrb[0].mxu0
    %v10257 = vadd.f32 %v10216, %v10256
    %v10258 = vpop.f32.mrb[0].mxu0
    %v10259 = vpop.f32.mrb[0].mxu0
    %10260 = vdwg.mxu0
    %10261 = vmatprep.subr.bf16.mxu0 %v9588
    %10262 = vmatpush1.bf16.msra.mxu0 %v9587
    %10263 = vmatprep.subr.bf16.mxu0 %v9592
    %10264 = vmatpush1.bf16.msra.mxu0 %v9591
    %10265 = vmatprep.subr.bf16.mxu0 %v9596
    %10266 = vmatpush1.bf16.msra.mxu0 %v9595
    %10267 = vmatprep.subr.bf16.mxu0 %v9600
    %10268 = vmatpush1.bf16.msra.mxu0 %v9599
    %10269 = vmatprep.subr.bf16.mxu0 %v9604
    %10270 = vmatpush1.bf16.msra.mxu0 %v9603
    %10271 = vmatprep.subr.bf16.mxu0 %v9608
    %10272 = vmatpush1.bf16.msra.mxu0 %v9607
    %10273 = vmatprep.subr.bf16.mxu0 %v9612
    %10274 = vmatpush1.bf16.msra.mxu0 %v9611
    %10275 = vmatprep.subr.bf16.mxu0 %v9616
    %10276 = vmatpush1.bf16.msra.mxu0 %v9615
    %10277 = vmatprep.subr.bf16.mxu0 %v9620
    %10278 = vmatpush1.bf16.msra.mxu0 %v9619
    %10279 = vmatprep.subr.bf16.mxu0 %v9624
    %10280 = vmatpush1.bf16.msra.mxu0 %v9623
    %10281 = vmatprep.subr.bf16.mxu0 %v9628
    %10282 = vmatpush1.bf16.msra.mxu0 %v9627
    %10283 = vmatprep.subr.bf16.mxu0 %v9632
    %10284 = vmatpush1.bf16.msra.mxu0 %v9631
    %10285 = vmatprep.subr.bf16.mxu0 %v9636
    %10286 = vmatpush1.bf16.msra.mxu0 %v9635
    %10287 = vmatprep.subr.bf16.mxu0 %v9640
    %10288 = vmatpush1.bf16.msra.mxu0 %v9639
    %10289 = vmatprep.subr.bf16.mxu0 %v9644
    %10290 = vmatpush1.bf16.msra.mxu0 %v9643
    %10291 = vmatprep.subr.bf16.mxu0 %v9648
    %10292 = vmatpush1.bf16.msra.mxu0 %v9647
    %10293 = vmatprep.mubr.bf16.mxu0 %v8682
    %10294 = vmatmul.mubr.bf16.gmra.mrb[0].mxu0 %v8681
    %v10295 = vpop.f32.mrb[0].mxu0
    %v10296 = vadd.f32 %v8815, %v10295
    %v10297 = vpop.f32.mrb[0].mxu0
    %v10298 = vadd.f32 %v8816, %v10297
    %v10299 = vpop.f32.mrb[0].mxu0
    %v10300 = vpop.f32.mrb[0].mxu0
    %10301 = vdwg.mxu0
    %10302 = vmatprep.subr.bf16.mxu0 %v9652
    %10303 = vmatpush1.bf16.msra.mxu0 %v9651
    %10304 = vmatprep.subr.bf16.mxu0 %v9656
    %10305 = vmatpush1.bf16.msra.mxu0 %v9655
    %10306 = vmatprep.subr.bf16.mxu0 %v9660
    %10307 = vmatpush1.bf16.msra.mxu0 %v9659
    %10308 = vmatprep.subr.bf16.mxu0 %v9664
    %10309 = vmatpush1.bf16.msra.mxu0 %v9663
    %10310 = vmatprep.subr.bf16.mxu0 %v9668
    %10311 = vmatpush1.bf16.msra.mxu0 %v9667
    %10312 = vmatprep.subr.bf16.mxu0 %v9672
    %10313 = vmatpush1.bf16.msra.mxu0 %v9671
    %10314 = vmatprep.subr.bf16.mxu0 %v9676
    %10315 = vmatpush1.bf16.msra.mxu0 %v9675
    %10316 = vmatprep.subr.bf16.mxu0 %v9680
    %10317 = vmatpush1.bf16.msra.mxu0 %v9679
    %10318 = vmatprep.subr.bf16.mxu0 %v9684
    %10319 = vmatpush1.bf16.msra.mxu0 %v9683
    %10320 = vmatprep.subr.bf16.mxu0 %v9688
    %10321 = vmatpush1.bf16.msra.mxu0 %v9687
    %10322 = vmatprep.subr.bf16.mxu0 %v9692
    %10323 = vmatpush1.bf16.msra.mxu0 %v9691
    %10324 = vmatprep.subr.bf16.mxu0 %v9696
    %10325 = vmatpush1.bf16.msra.mxu0 %v9695
    %10326 = vmatprep.subr.bf16.mxu0 %v9700
    %10327 = vmatpush1.bf16.msra.mxu0 %v9699
    %10328 = vmatprep.subr.bf16.mxu0 %v9704
    %10329 = vmatpush1.bf16.msra.mxu0 %v9703
    %10330 = vmatprep.subr.bf16.mxu0 %v9708
    %10331 = vmatpush1.bf16.msra.mxu0 %v9707
    %10332 = vmatprep.subr.bf16.mxu0 %v9712
    %10333 = vmatpush1.bf16.msra.mxu0 %v9711
    %10334 = vmatprep.mubr.bf16.mxu0 %v8684
    %10335 = vmatmul.mubr.bf16.gmra.mrb[0].mxu0 %v8683
    %v10336 = vpop.f32.mrb[0].mxu0
    %v10337 = vadd.f32 %v10296, %v10336
    %v10338 = vpop.f32.mrb[0].mxu0
    %v10339 = vadd.f32 %v10298, %v10338
    %v10340 = vpop.f32.mrb[0].mxu0
    %v10341 = vpop.f32.mrb[0].mxu0
    %10342 = vdwg.mxu0
    %10343 = vmatprep.subr.bf16.mxu0 %v9716
    %10344 = vmatpush1.bf16.msra.mxu0 %v9715
    %10345 = vmatprep.subr.bf16.mxu0 %v9720
    %10346 = vmatpush1.bf16.msra.mxu0 %v9719
    %10347 = vmatprep.subr.bf16.mxu0 %v9724
    %10348 = vmatpush1.bf16.msra.mxu0 %v9723
    %10349 = vmatprep.subr.bf16.mxu0 %v9728
    %10350 = vmatpush1.bf16.msra.mxu0 %v9727
    %10351 = vmatprep.subr.bf16.mxu0 %v9732
    %10352 = vmatpush1.bf16.msra.mxu0 %v9731
    %10353 = vmatprep.subr.bf16.mxu0 %v9736
    %10354 = vmatpush1.bf16.msra.mxu0 %v9735
    %10355 = vmatprep.subr.bf16.mxu0 %v9740
    %10356 = vmatpush1.bf16.msra.mxu0 %v9739
    %10357 = vmatprep.subr.bf16.mxu0 %v9744
    %10358 = vmatpush1.bf16.msra.mxu0 %v9743
    %10359 = vmatprep.subr.bf16.mxu0 %v9748
    %10360 = vmatpush1.bf16.msra.mxu0 %v9747
    %10361 = vmatprep.subr.bf16.mxu0 %v9752
    %10362 = vmatpush1.bf16.msra.mxu0 %v9751
    %10363 = vmatprep.subr.bf16.mxu0 %v9756
    %10364 = vmatpush1.bf16.msra.mxu0 %v9755
    %10365 = vmatprep.subr.bf16.mxu0 %v9760
    %10366 = vmatpush1.bf16.msra.mxu0 %v9759
    %10367 = vmatprep.subr.bf16.mxu0 %v9764
    %10368 = vmatpush1.bf16.msra.mxu0 %v9763
    %10369 = vmatprep.subr.bf16.mxu0 %v9768
    %10370 = vmatpush1.bf16.msra.mxu0 %v9767
    %10371 = vmatprep.subr.bf16.mxu0 %v9772
    %10372 = vmatpush1.bf16.msra.mxu0 %v9771
    %10373 = vmatprep.subr.bf16.mxu0 %v9776
    %10374 = vmatpush1.bf16.msra.mxu0 %v9775
    %10375 = vmatprep.mubr.bf16.mxu0 %v8686
    %10376 = vmatmul.mubr.bf16.gmra.mrb[0].mxu0 %v8685
    %v10377 = vpop.f32.mrb[0].mxu0
    %v10378 = vadd.f32 %v10337, %v10377
    %v10379 = vpop.f32.mrb[0].mxu0
    %v10380 = vadd.f32 %v10339, %v10379
    %v10381 = vpop.f32.mrb[0].mxu0
    %v10382 = vpop.f32.mrb[0].mxu0
    %10383 = vdwg.mxu0
    %10384 = vmatprep.subr.bf16.mxu0 %v9780
    %10385 = vmatpush1.bf16.msra.mxu0 %v9779
    %10386 = vmatprep.subr.bf16.mxu0 %v9784
    %10387 = vmatpush1.bf16.msra.mxu0 %v9783
    %10388 = vmatprep.subr.bf16.mxu0 %v9788
    %10389 = vmatpush1.bf16.msra.mxu0 %v9787
    %10390 = vmatprep.subr.bf16.mxu0 %v9792
    %10391 = vmatpush1.bf16.msra.mxu0 %v9791
    %10392 = vmatprep.subr.bf16.mxu0 %v9796
    %10393 = vmatpush1.bf16.msra.mxu0 %v9795
    %10394 = vmatprep.subr.bf16.mxu0 %v9800
    %10395 = vmatpush1.bf16.msra.mxu0 %v9799
    %10396 = vmatprep.subr.bf16.mxu0 %v9804
    %10397 = vmatpush1.bf16.msra.mxu0 %v9803
    %10398 = vmatprep.subr.bf16.mxu0 %v9808
    %10399 = vmatpush1.bf16.msra.mxu0 %v9807
    %10400 = vmatprep.subr.bf16.mxu0 %v9812
    %10401 = vmatpush1.bf16.msra.mxu0 %v9811
    %10402 = vmatprep.subr.bf16.mxu0 %v9816
    %10403 = vmatpush1.bf16.msra.mxu0 %v9815
    %10404 = vmatprep.subr.bf16.mxu0 %v9820
    %10405 = vmatpush1.bf16.msra.mxu0 %v9819
    %10406 = vmatprep.subr.bf16.mxu0 %v9824
    %10407 = vmatpush1.bf16.msra.mxu0 %v9823
    %10408 = vmatprep.subr.bf16.mxu0 %v9828
    %10409 = vmatpush1.bf16.msra.mxu0 %v9827
    %10410 = vmatprep.subr.bf16.mxu0 %v9832
    %10411 = vmatpush1.bf16.msra.mxu0 %v9831
    %10412 = vmatprep.subr.bf16.mxu0 %v9836
    %10413 = vmatpush1.bf16.msra.mxu0 %v9835
    %10414 = vmatprep.subr.bf16.mxu0 %v9840
    %10415 = vmatpush1.bf16.msra.mxu0 %v9839
    %10416 = vmatprep.mubr.bf16.mxu0 %v8688
    %10417 = vmatmul.mubr.bf16.gmra.mrb[0].mxu0 %v8687
    %v10418 = vpop.f32.mrb[0].mxu0
    %v10419 = vadd.f32 %v10378, %v10418
    %v10420 = vpop.f32.mrb[0].mxu0
    %v10421 = vadd.f32 %v10380, %v10420
    %v10422 = vpop.f32.mrb[0].mxu0
    %v10423 = vpop.f32.mrb[0].mxu0
    %10424 = vdwg.mxu0
    %v10425 = vmax.f32 %v10255, 0.0
    %v10426 = vmax.f32 %v10257, 0.0
    %v10427 = vmax.f32 %v10419, 0.0
    %v10428 = vmax.f32 %v10421, 0.0
    %v10429 = vld [vmem:[#allocation10] sm:$0xff]
    %v10430 = vld [vmem:[#allocation10 + $0x8] sm:$0xff]
    %v10431 = vld [vmem:[#allocation10 + $0x10] sm:$0xff]
    %v10432 = vld [vmem:[#allocation10 + $0x18] sm:$0xff]
    %v10433 = vld [vmem:[#allocation10 + $0x20] sm:$0xff]
    %v10434 = vld [vmem:[#allocation10 + $0x28] sm:$0xff]
    %v10435 = vld [vmem:[#allocation10 + $0x30] sm:$0xff]
    %v10436 = vld [vmem:[#allocation10 + $0x38] sm:$0xff]
    %v10437 = vld [vmem:[#allocation10 + $0x40] sm:$0xff]
    %v10438 = vld [vmem:[#allocation10 + $0x48] sm:$0xff]
    %v10439 = vld [vmem:[#allocation10 + $0x50] sm:$0xff]
    %v10440 = vld [vmem:[#allocation10 + $0x58] sm:$0xff]
    %v10441 = vld [vmem:[#allocation10 + $0x60] sm:$0xff]
    %v10442 = vld [vmem:[#allocation10 + $0x68] sm:$0xff]
    %v10443 = vld [vmem:[#allocation10 + $0x70] sm:$0xff]
    %v10444 = vld [vmem:[#allocation10 + $0x78] sm:$0xff]
    %v10445 = vld [vmem:[#allocation10 + $0x80] sm:$0xff]
    %v10446 = vld [vmem:[#allocation10 + $0x88] sm:$0xff]
    %v10447 = vld [vmem:[#allocation10 + $0x90] sm:$0xff]
    %v10448 = vld [vmem:[#allocation10 + $0x98] sm:$0xff]
    %v10449 = vld [vmem:[#allocation10 + $0xa0] sm:$0xff]
    %v10450 = vld [vmem:[#allocation10 + $0xa8] sm:$0xff]
    %v10451 = vld [vmem:[#allocation10 + $0xb0] sm:$0xff]
    %v10452 = vld [vmem:[#allocation10 + $0xb8] sm:$0xff]
    %v10453 = vld [vmem:[#allocation10 + $0xc0] sm:$0xff]
    %v10454 = vld [vmem:[#allocation10 + $0xc8] sm:$0xff]
    %v10455 = vld [vmem:[#allocation10 + $0xd0] sm:$0xff]
    %v10456 = vld [vmem:[#allocation10 + $0xd8] sm:$0xff]
    %v10457 = vld [vmem:[#allocation10 + $0xe0] sm:$0xff]
    %v10458 = vld [vmem:[#allocation10 + $0xe8] sm:$0xff]
    %v10459 = vld [vmem:[#allocation10 + $0xf0] sm:$0xff]
    %v10460 = vld [vmem:[#allocation10 + $0xf8] sm:$0xff]
    %v10461 = vld [vmem:[#allocation10 + $0x100] sm:$0xff]
    %v10462 = vld [vmem:[#allocation10 + $0x108] sm:$0xff]
    %v10463 = vld [vmem:[#allocation10 + $0x110] sm:$0xff]
    %v10464 = vld [vmem:[#allocation10 + $0x118] sm:$0xff]
    %v10465 = vld [vmem:[#allocation10 + $0x120] sm:$0xff]
    %v10466 = vld [vmem:[#allocation10 + $0x128] sm:$0xff]
    %v10467 = vld [vmem:[#allocation10 + $0x130] sm:$0xff]
    %v10468 = vld [vmem:[#allocation10 + $0x138] sm:$0xff]
    %v10469 = vld [vmem:[#allocation10 + $0x140] sm:$0xff]
    %v10470 = vld [vmem:[#allocation10 + $0x148] sm:$0xff]
    %v10471 = vld [vmem:[#allocation10 + $0x150] sm:$0xff]
    %v10472 = vld [vmem:[#allocation10 + $0x158] sm:$0xff]
    %v10473 = vld [vmem:[#allocation10 + $0x160] sm:$0xff]
    %v10474 = vld [vmem:[#allocation10 + $0x168] sm:$0xff]
    %v10475 = vld [vmem:[#allocation10 + $0x170] sm:$0xff]
    %v10476 = vld [vmem:[#allocation10 + $0x178] sm:$0xff]
    %v10477 = vld [vmem:[#allocation10 + $0x180] sm:$0xff]
    %v10478 = vld [vmem:[#allocation10 + $0x188] sm:$0xff]
    %v10479 = vld [vmem:[#allocation10 + $0x190] sm:$0xff]
    %v10480 = vld [vmem:[#allocation10 + $0x198] sm:$0xff]
    %v10481 = vld [vmem:[#allocation10 + $0x1a0] sm:$0xff]
    %v10482 = vld [vmem:[#allocation10 + $0x1a8] sm:$0xff]
    %v10483 = vld [vmem:[#allocation10 + $0x1b0] sm:$0xff]
    %v10484 = vld [vmem:[#allocation10 + $0x1b8] sm:$0xff]
    %v10485 = vld [vmem:[#allocation10 + $0x1c0] sm:$0xff]
    %v10486 = vld [vmem:[#allocation10 + $0x1c8] sm:$0xff]
    %v10487 = vld [vmem:[#allocation10 + $0x1d0] sm:$0xff]
    %v10488 = vld [vmem:[#allocation10 + $0x1d8] sm:$0xff]
    %v10489 = vld [vmem:[#allocation10 + $0x1e0] sm:$0xff]
    %v10490 = vld [vmem:[#allocation10 + $0x1e8] sm:$0xff]
    %v10491 = vld [vmem:[#allocation10 + $0x1f0] sm:$0xff]
    %v10492 = vld [vmem:[#allocation10 + $0x1f8] sm:$0xff]
    %v10493 = vld [vmem:[#allocation12] sm:$0x7]
    %v10494 = vlaneseq
    %v10495 = vshrl.u32 %v10494, 7
    %v10496 = vsub.s32 0, %v10495
    %v10497 = vrot.slane %v10493, %v10496
    %v10498 = vmul.f32 %v163, %v10497
    %v10499 = vlaneseq
    %v10500 = vshrl.u32 %v10499, 7
    %v10501 = vsub.s32 1, %v10500
    %v10502 = vrot.slane %v10493, %v10501
    %v10503 = vmul.f32 %v335, %v10502
    %v10504 = vadd.f32 %v10498, %v10503
    %v10505 = vlaneseq
    %v10506 = vshrl.u32 %v10505, 7
    %v10507 = vsub.s32 2, %v10506
    %v10508 = vrot.slane %v10493, %v10507
    %v10509 = vadd.f32 %v10504, %v10508
    %10510 = vmatprep.subr.mxu0 0.0
    %10511 = vmatpush1.msra.mxu0 %v10429
    %10512 = vmatprep.subr.mxu0 0.0
    %10513 = vmatpush1.msra.mxu0 %v10430
    %10514 = vmatprep.subr.mxu0 0.0
    %10515 = vmatpush1.msra.mxu0 %v10431
    %10516 = vmatprep.subr.mxu0 0.0
    %10517 = vmatpush1.msra.mxu0 %v10432
    %10518 = vmatprep.subr.mxu0 0.0
    %10519 = vmatpush1.msra.mxu0 %v10433
    %10520 = vmatprep.subr.mxu0 0.0
    %10521 = vmatpush1.msra.mxu0 %v10434
    %10522 = vmatprep.subr.mxu0 0.0
    %10523 = vmatpush1.msra.mxu0 %v10435
    %10524 = vmatprep.subr.mxu0 0.0
    %10525 = vmatpush1.msra.mxu0 %v10436
    %10526 = vmatprep.subr.mxu0 0.0
    %10527 = vmatpush1.msra.mxu0 %v10437
    %10528 = vmatprep.subr.mxu0 0.0
    %10529 = vmatpush1.msra.mxu0 %v10438
    %10530 = vmatprep.subr.mxu0 0.0
    %10531 = vmatpush1.msra.mxu0 %v10439
    %10532 = vmatprep.subr.mxu0 0.0
    %10533 = vmatpush1.msra.mxu0 %v10440
    %10534 = vmatprep.subr.mxu0 0.0
    %10535 = vmatpush1.msra.mxu0 %v10441
    %10536 = vmatprep.subr.mxu0 0.0
    %10537 = vmatpush1.msra.mxu0 %v10442
    %10538 = vmatprep.subr.mxu0 0.0
    %10539 = vmatpush1.msra.mxu0 %v10443
    %10540 = vmatprep.subr.mxu0 0.0
    %10541 = vmatpush1.msra.mxu0 %v10444
    %10542 = vmatprep.subr.mxu0 0.0
    %10543 = vmatpush1.msra.mxu0 %v10445
    %10544 = vmatprep.subr.mxu0 0.0
    %10545 = vmatpush1.msra.mxu0 %v10446
    %10546 = vmatprep.subr.mxu0 0.0
    %10547 = vmatpush1.msra.mxu0 %v10447
    %10548 = vmatprep.subr.mxu0 0.0
    %10549 = vmatpush1.msra.mxu0 %v10448
    %10550 = vmatprep.subr.mxu0 0.0
    %10551 = vmatpush1.msra.mxu0 %v10449
    %10552 = vmatprep.subr.mxu0 0.0
    %10553 = vmatpush1.msra.mxu0 %v10450
    %10554 = vmatprep.subr.mxu0 0.0
    %10555 = vmatpush1.msra.mxu0 %v10451
    %10556 = vmatprep.subr.mxu0 0.0
    %10557 = vmatpush1.msra.mxu0 %v10452
    %10558 = vmatprep.subr.mxu0 0.0
    %10559 = vmatpush1.msra.mxu0 %v10453
    %10560 = vmatprep.subr.mxu0 0.0
    %10561 = vmatpush1.msra.mxu0 %v10454
    %10562 = vmatprep.subr.mxu0 0.0
    %10563 = vmatpush1.msra.mxu0 %v10455
    %10564 = vmatprep.subr.mxu0 0.0
    %10565 = vmatpush1.msra.mxu0 %v10456
    %10566 = vmatprep.subr.mxu0 0.0
    %10567 = vmatpush1.msra.mxu0 %v10457
    %10568 = vmatprep.subr.mxu0 0.0
    %10569 = vmatpush1.msra.mxu0 %v10458
    %10570 = vmatprep.subr.mxu0 0.0
    %10571 = vmatpush1.msra.mxu0 %v10459
    %10572 = vmatprep.subr.mxu0 0.0
    %10573 = vmatpush1.msra.mxu0 %v10460
    %10574 = vmatprep.mubr.f32.mxu0 %v10426
    %10575 = vmatmul.mubr.f32.gmra.mrb[0].mxu0 %v10425
    %v10576 = vpop.f32.mrb[0].mxu0
    %v10577 = vadd.f32 %v10509, %v10576
    %v10578 = vpop.f32.mrb[0].mxu0
    %10579 = vdwg.mxu0
    %10580 = vmatprep.subr.mxu0 0.0
    %10581 = vmatpush1.msra.mxu0 %v10461
    %10582 = vmatprep.subr.mxu0 0.0
    %10583 = vmatpush1.msra.mxu0 %v10462
    %10584 = vmatprep.subr.mxu0 0.0
    %10585 = vmatpush1.msra.mxu0 %v10463
    %10586 = vmatprep.subr.mxu0 0.0
    %10587 = vmatpush1.msra.mxu0 %v10464
    %10588 = vmatprep.subr.mxu0 0.0
    %10589 = vmatpush1.msra.mxu0 %v10465
    %10590 = vmatprep.subr.mxu0 0.0
    %10591 = vmatpush1.msra.mxu0 %v10466
    %10592 = vmatprep.subr.mxu0 0.0
    %10593 = vmatpush1.msra.mxu0 %v10467
    %10594 = vmatprep.subr.mxu0 0.0
    %10595 = vmatpush1.msra.mxu0 %v10468
    %10596 = vmatprep.subr.mxu0 0.0
    %10597 = vmatpush1.msra.mxu0 %v10469
    %10598 = vmatprep.subr.mxu0 0.0
    %10599 = vmatpush1.msra.mxu0 %v10470
    %10600 = vmatprep.subr.mxu0 0.0
    %10601 = vmatpush1.msra.mxu0 %v10471
    %10602 = vmatprep.subr.mxu0 0.0
    %10603 = vmatpush1.msra.mxu0 %v10472
    %10604 = vmatprep.subr.mxu0 0.0
    %10605 = vmatpush1.msra.mxu0 %v10473
    %10606 = vmatprep.subr.mxu0 0.0
    %10607 = vmatpush1.msra.mxu0 %v10474
    %10608 = vmatprep.subr.mxu0 0.0
    %10609 = vmatpush1.msra.mxu0 %v10475
    %10610 = vmatprep.subr.mxu0 0.0
    %10611 = vmatpush1.msra.mxu0 %v10476
    %10612 = vmatprep.subr.mxu0 0.0
    %10613 = vmatpush1.msra.mxu0 %v10477
    %10614 = vmatprep.subr.mxu0 0.0
    %10615 = vmatpush1.msra.mxu0 %v10478
    %10616 = vmatprep.subr.mxu0 0.0
    %10617 = vmatpush1.msra.mxu0 %v10479
    %10618 = vmatprep.subr.mxu0 0.0
    %10619 = vmatpush1.msra.mxu0 %v10480
    %10620 = vmatprep.subr.mxu0 0.0
    %10621 = vmatpush1.msra.mxu0 %v10481
    %10622 = vmatprep.subr.mxu0 0.0
    %10623 = vmatpush1.msra.mxu0 %v10482
    %10624 = vmatprep.subr.mxu0 0.0
    %10625 = vmatpush1.msra.mxu0 %v10483
    %10626 = vmatprep.subr.mxu0 0.0
    %10627 = vmatpush1.msra.mxu0 %v10484
    %10628 = vmatprep.subr.mxu0 0.0
    %10629 = vmatpush1.msra.mxu0 %v10485
    %10630 = vmatprep.subr.mxu0 0.0
    %10631 = vmatpush1.msra.mxu0 %v10486
    %10632 = vmatprep.subr.mxu0 0.0
    %10633 = vmatpush1.msra.mxu0 %v10487
    %10634 = vmatprep.subr.mxu0 0.0
    %10635 = vmatpush1.msra.mxu0 %v10488
    %10636 = vmatprep.subr.mxu0 0.0
    %10637 = vmatpush1.msra.mxu0 %v10489
    %10638 = vmatprep.subr.mxu0 0.0
    %10639 = vmatpush1.msra.mxu0 %v10490
    %10640 = vmatprep.subr.mxu0 0.0
    %10641 = vmatpush1.msra.mxu0 %v10491
    %10642 = vmatprep.subr.mxu0 0.0
    %10643 = vmatpush1.msra.mxu0 %v10492
    %10644 = vmatprep.mubr.f32.mxu0 %v10428
    %10645 = vmatmul.mubr.f32.gmra.mrb[0].mxu0 %v10427
    %v10646 = vpop.f32.mrb[0].mxu0
    %v10647 = vadd.f32 %v10577, %v10646
    %v10648 = vpop.f32.mrb[0].mxu0
    %10649 = vdwg.mxu0
    %v10650 = vmax.f32 %v10647, 0.0
    %v10651 = vld [vmem:[%s8] sm:$0xff]
    %v10652 = vld [vmem:[%s8 + $0x8] sm:$0xff]
    %v10653 = vld [vmem:[%s8 + $0x10] sm:$0xff]
    %v10654 = vld [vmem:[%s8 + $0x18] sm:$0xff]
    %v10655 = vld [vmem:[%s8 + $0x20] sm:$0xff]
    %v10656 = vld [vmem:[%s8 + $0x28] sm:$0xff]
    %v10657 = vld [vmem:[%s8 + $0x30] sm:$0xff]
    %v10658 = vld [vmem:[%s8 + $0x38] sm:$0xff]
    %v10659 = vld [vmem:[%s8 + $0x40] sm:$0xff]
    %v10660 = vld [vmem:[%s8 + $0x48] sm:$0xff]
    %v10661 = vld [vmem:[%s8 + $0x50] sm:$0xff]
    %v10662 = vld [vmem:[%s8 + $0x58] sm:$0xff]
    %v10663 = vld [vmem:[%s8 + $0x60] sm:$0xff]
    %v10664 = vld [vmem:[%s8 + $0x68] sm:$0xff]
    %v10665 = vld [vmem:[%s8 + $0x70] sm:$0xff]
    %v10666 = vld [vmem:[%s8 + $0x78] sm:$0xff]
    %v10667 = vld [vmem:[#allocation13] sm:$0x7]
    %v10668 = vlaneseq
    %v10669 = vshrl.u32 %v10668, 7
    %v10670 = vsub.s32 0, %v10669
    %v10671 = vrot.slane %v10667, %v10670
    %v10672 = vmul.f32 %v163, %v10671
    %v10673 = vlaneseq
    %v10674 = vshrl.u32 %v10673, 7
    %v10675 = vsub.s32 1, %v10674
    %v10676 = vrot.slane %v10667, %v10675
    %v10677 = vmul.f32 %v335, %v10676
    %v10678 = vadd.f32 %v10672, %v10677
    %v10679 = vlaneseq
    %v10680 = vshrl.u32 %v10679, 7
    %v10681 = vsub.s32 2, %v10680
    %v10682 = vrot.slane %v10667, %v10681
    %v10683 = vadd.f32 %v10678, %v10682
    %10684 = vmatprep.subr.mxu0 0.0
    %10685 = vmatpush1.msra.mxu0 %v10651
    %10686 = vmatprep.subr.mxu0 0.0
    %10687 = vmatpush1.msra.mxu0 %v10652
    %10688 = vmatprep.subr.mxu0 0.0
    %10689 = vmatpush1.msra.mxu0 %v10653
    %10690 = vmatprep.subr.mxu0 0.0
    %10691 = vmatpush1.msra.mxu0 %v10654
    %10692 = vmatprep.subr.mxu0 0.0
    %10693 = vmatpush1.msra.mxu0 %v10655
    %10694 = vmatprep.subr.mxu0 0.0
    %10695 = vmatpush1.msra.mxu0 %v10656
    %10696 = vmatprep.subr.mxu0 0.0
    %10697 = vmatpush1.msra.mxu0 %v10657
    %10698 = vmatprep.subr.mxu0 0.0
    %10699 = vmatpush1.msra.mxu0 %v10658
    %10700 = vmatprep.subr.mxu0 0.0
    %10701 = vmatpush1.msra.mxu0 %v10659
    %10702 = vmatprep.subr.mxu0 0.0
    %10703 = vmatpush1.msra.mxu0 %v10660
    %10704 = vmatprep.subr.mxu0 0.0
    %10705 = vmatpush1.msra.mxu0 %v10661
    %10706 = vmatprep.subr.mxu0 0.0
    %10707 = vmatpush1.msra.mxu0 %v10662
    %10708 = vmatprep.subr.mxu0 0.0
    %10709 = vmatpush1.msra.mxu0 %v10663
    %10710 = vmatprep.subr.mxu0 0.0
    %10711 = vmatpush1.msra.mxu0 %v10664
    %10712 = vmatprep.subr.mxu0 0.0
    %10713 = vmatpush1.msra.mxu0 %v10665
    %10714 = vmatprep.subr.mxu0 0.0
    %10715 = vmatpush1.msra.mxu0 %v10666
    %10716 = vmatprep.subr.mxu0 0.0
    %10717 = vmatpush1.msra.mxu0 0.0
    %10718 = vmatprep.subr.mxu0 0.0
    %10719 = vmatpush1.msra.mxu0 0.0
    %10720 = vmatprep.subr.mxu0 0.0
    %10721 = vmatpush1.msra.mxu0 0.0
    %10722 = vmatprep.subr.mxu0 0.0
    %10723 = vmatpush1.msra.mxu0 0.0
    %10724 = vmatprep.subr.mxu0 0.0
    %10725 = vmatpush1.msra.mxu0 0.0
    %10726 = vmatprep.subr.mxu0 0.0
    %10727 = vmatpush1.msra.mxu0 0.0
    %10728 = vmatprep.subr.mxu0 0.0
    %10729 = vmatpush1.msra.mxu0 0.0
    %10730 = vmatprep.subr.mxu0 0.0
    %10731 = vmatpush1.msra.mxu0 0.0
    %10732 = vmatprep.subr.mxu0 0.0
    %10733 = vmatpush1.msra.mxu0 0.0
    %10734 = vmatprep.subr.mxu0 0.0
    %10735 = vmatpush1.msra.mxu0 0.0
    %10736 = vmatprep.subr.mxu0 0.0
    %10737 = vmatpush1.msra.mxu0 0.0
    %10738 = vmatprep.subr.mxu0 0.0
    %10739 = vmatpush1.msra.mxu0 0.0
    %10740 = vmatprep.subr.mxu0 0.0
    %10741 = vmatpush1.msra.mxu0 0.0
    %10742 = vmatprep.subr.mxu0 0.0
    %10743 = vmatpush1.msra.mxu0 0.0
    %10744 = vmatprep.subr.mxu0 0.0
    %10745 = vmatpush1.msra.mxu0 0.0
    %10746 = vmatprep.subr.mxu0 0.0
    %10747 = vmatpush1.msra.mxu0 0.0
    %10748 = vmatprep.mubr.f32.mxu0 0.0
    %10749 = vmatmul.mubr.f32.gmra.mrb[0].mxu0 %v10650
    %v10750 = vpop.f32.mrb[0].mxu0
    %v10751 = vadd.f32 %v10683, %v10750
    %v10752 = vpop.f32.mrb[0].mxu0
    %10753 = vdwg.mxu0
    %v10754 = vmax.f32 %v10751, 0.0
    %v10755 = vld [vmem:[%s10] sm:$0xff]
    %v10756 = vld [vmem:[%s10 + $0x8] sm:$0xff]
    %v10757 = vld [vmem:[%s10 + $0x10] sm:$0xff]
    %v10758 = vld [vmem:[%s10 + $0x18] sm:$0xff]
    %v10759 = vld [vmem:[%s10 + $0x20] sm:$0xff]
    %v10760 = vld [vmem:[%s10 + $0x28] sm:$0xff]
    %v10761 = vld [vmem:[%s10 + $0x30] sm:$0xff]
    %v10762 = vld [vmem:[%s10 + $0x38] sm:$0xff]
    %v10763 = vld [vmem:[#allocation15] sm:$0x7]
    %v10764 = vlaneseq
    %v10765 = vshrl.u32 %v10764, 7
    %v10766 = vsub.s32 0, %v10765
    %v10767 = vrot.slane %v10763, %v10766
    %v10768 = vmul.f32 %v163, %v10767
    %v10769 = vlaneseq
    %v10770 = vshrl.u32 %v10769, 7
    %v10771 = vsub.s32 1, %v10770
    %v10772 = vrot.slane %v10763, %v10771
    %v10773 = vmul.f32 %v335, %v10772
    %v10774 = vadd.f32 %v10768, %v10773
    %v10775 = vlaneseq
    %v10776 = vshrl.u32 %v10775, 7
    %v10777 = vsub.s32 2, %v10776
    %v10778 = vrot.slane %v10763, %v10777
    %v10779 = vadd.f32 %v10774, %v10778
    %vm10780 = vcmask 523264
    %v10782 = vsel %vm10780, %v10754, 0
    %10784 = vmatprep.subr.mxu0 0.0
    %10785 = vmatpush1.msra.mxu0 %v10755
    %10786 = vmatprep.subr.mxu0 0.0
    %10787 = vmatpush1.msra.mxu0 %v10756
    %10788 = vmatprep.subr.mxu0 0.0
    %10789 = vmatpush1.msra.mxu0 %v10757
    %10790 = vmatprep.subr.mxu0 0.0
    %10791 = vmatpush1.msra.mxu0 %v10758
    %10792 = vmatprep.subr.mxu0 0.0
    %10793 = vmatpush1.msra.mxu0 %v10759
    %10794 = vmatprep.subr.mxu0 0.0
    %10795 = vmatpush1.msra.mxu0 %v10760
    %10796 = vmatprep.subr.mxu0 0.0
    %10797 = vmatpush1.msra.mxu0 %v10761
    %10798 = vmatprep.subr.mxu0 0.0
    %10799 = vmatpush1.msra.mxu0 %v10762
    %10800 = vmatprep.subr.mxu0 0.0
    %10801 = vmatpush1.msra.mxu0 0.0
    %10802 = vmatprep.subr.mxu0 0.0
    %10803 = vmatpush1.msra.mxu0 0.0
    %10804 = vmatprep.subr.mxu0 0.0
    %10805 = vmatpush1.msra.mxu0 0.0
    %10806 = vmatprep.subr.mxu0 0.0
    %10807 = vmatpush1.msra.mxu0 0.0
    %10808 = vmatprep.subr.mxu0 0.0
    %10809 = vmatpush1.msra.mxu0 0.0
    %10810 = vmatprep.subr.mxu0 0.0
    %10811 = vmatpush1.msra.mxu0 0.0
    %10812 = vmatprep.subr.mxu0 0.0
    %10813 = vmatpush1.msra.mxu0 0.0
    %10814 = vmatprep.subr.mxu0 0.0
    %10815 = vmatpush1.msra.mxu0 0.0
    %10816 = vmatprep.subr.mxu0 0.0
    %10817 = vmatpush1.msra.mxu0 0.0
    %10818 = vmatprep.subr.mxu0 0.0
    %10819 = vmatpush1.msra.mxu0 0.0
    %10820 = vmatprep.subr.mxu0 0.0
    %10821 = vmatpush1.msra.mxu0 0.0
    %10822 = vmatprep.subr.mxu0 0.0
    %10823 = vmatpush1.msra.mxu0 0.0
    %10824 = vmatprep.subr.mxu0 0.0
    %10825 = vmatpush1.msra.mxu0 0.0
    %10826 = vmatprep.subr.mxu0 0.0
    %10827 = vmatpush1.msra.mxu0 0.0
    %10828 = vmatprep.subr.mxu0 0.0
    %10829 = vmatpush1.msra.mxu0 0.0
    %10830 = vmatprep.subr.mxu0 0.0
    %10831 = vmatpush1.msra.mxu0 0.0
    %10832 = vmatprep.subr.mxu0 0.0
    %10833 = vmatpush1.msra.mxu0 0.0
    %10834 = vmatprep.subr.mxu0 0.0
    %10835 = vmatpush1.msra.mxu0 0.0
    %10836 = vmatprep.subr.mxu0 0.0
    %10837 = vmatpush1.msra.mxu0 0.0
    %10838 = vmatprep.subr.mxu0 0.0
    %10839 = vmatpush1.msra.mxu0 0.0
    %10840 = vmatprep.subr.mxu0 0.0
    %10841 = vmatpush1.msra.mxu0 0.0
    %10842 = vmatprep.subr.mxu0 0.0
    %10843 = vmatpush1.msra.mxu0 0.0
    %10844 = vmatprep.subr.mxu0 0.0
    %10845 = vmatpush1.msra.mxu0 0.0
    %10846 = vmatprep.subr.mxu0 0.0
    %10847 = vmatpush1.msra.mxu0 0.0
    %10848 = vmatprep.mubr.f32.mxu0 0.0
    %10849 = vmatmul.mubr.f32.gmra.mrb[0].mxu0 %v10782
    %v10850 = vpop.f32.mrb[0].mxu0
    %v10851 = vadd.f32 %v10779, %v10850
    %v10852 = vpop.f32.mrb[0].mxu0
    %10853 = vdwg.mxu0
    %vm10854 = vcmask 23552
    %10855 = vst.msk [vmem:[%s12] sm:$0xff] %vm10854, %v10851
    // Predicated region
    $region86: #{sr_forward.1} parent=1 // pred_check
      _
    $region87: #{sr_forward.1} parent=1 // pred_check_branch
      %10857 = sbr.rel (0) target = $region89
    $region88: #{sr_forward.1} parent=1 // pred_region
      _
    $region89: #{sr_forward.1} parent=1 // pred_fallthru
      _
    // Predicated region
    $region90: #{sr_forward.1} parent=1 // pred_check
      _
    $region91: #{sr_forward.1} parent=1 // pred_check_branch
      %10859 = sbr.rel (0) target = $region93
    $region92: #{sr_forward.1} parent=1 // pred_region
      _
    $region93: #{sr_forward.1} parent=1 // pred_fallthru
      _
    %10860 = vsyncpa [#allocation3], 1
    %10861 = vsyncpa [#allocation5], 1
    %10862 = vsyncpa [#allocation8], 1
    %10863 = vsyncpa [#allocation11], 1
    %10864 = vsyncpa [#allocation14], 1

</llo_original>
